<compile_context>
chip_gen: v7x
topology: tpu7x:2x2x1
jax: 0.10.0
libtpu: 0.0.40
codegen_flags: <defaults>
</compile_context>

<pallas_src>
import math

import jax
import jax.numpy as jnp
from jax import lax
from jax.experimental import pallas as pl
from jax.experimental.pallas import tpu as pltpu

NEG_SLOPE = 0.2  # torch model uses F.leaky_relu(..., negative_slope=0.2)

# row indices into the stacked (10, nhid, nhid) weight tensor
_CONV1, _CONV2, _CONV3, _CROSS1, _CROSS2, _CROSS3, _RO0, _RO1, _RO2, _RO3 = range(10)


# ----------------------------------------------------------------------------------
# In-kernel helpers (pure jnp, traced inside the fused Pallas kernel)
# ----------------------------------------------------------------------------------

def _dot(a, b):
    return jnp.dot(a, b, preferred_element_type=jnp.float32)


def _dot_t0(a, b):      # a^T @ b without an explicit transpose
    return lax.dot_general(a, b, (((0,), (0,)), ((), ())),
                           preferred_element_type=jnp.float32)


def _dot_t1(a, b):      # a @ b^T
    return lax.dot_general(a, b, (((1,), (1,)), ((), ())),
                           preferred_element_type=jnp.float32)


def _leaky_relu(x):
    return jnp.where(x > 0, x, NEG_SLOPE * x)


def _eye(n):
    r = lax.broadcasted_iota(jnp.int32, (n, n), 0)
    c = lax.broadcasted_iota(jnp.int32, (n, n), 1)
    return (r == c).astype(jnp.float32)


def _block_diag2(a, b):
    """diag(a, b) for two dense blocks (zero off-diagonal blocks)."""
    z12 = jnp.zeros((a.shape[0], b.shape[1]), jnp.float32)
    z21 = jnp.zeros((b.shape[0], a.shape[1]), jnp.float32)
    top = jnp.concatenate([a, z12], axis=1)
    bot = jnp.concatenate([z21, b], axis=1)
    return jnp.concatenate([top, bot], axis=0)


def _readout(x, w):
    # SimGNN-style attention readout: sum_i sigmoid(<x_i, tanh(mean(x) W)>) x_i
    tg = jnp.tanh(_dot(jnp.mean(x, axis=0, keepdims=True), w))
    coefs = jax.nn.sigmoid(jnp.sum(x * tg, axis=-1, keepdims=True))
    return jnp.sum(coefs * x, axis=0, keepdims=True)          # (1, C)


def _cross(x1, x2, w):
    # CrossGraphConvolution: bilinear attention between the two graphs' hyperedges.
    s = _dot_t1(_dot(x1, w), x2)                               # (E1, E2)
    a12 = jax.nn.softmax(s, axis=1)
    a21 = jax.nn.softmax(s, axis=0)
    return _dot(a12, x2), _dot_t0(a21, x1)


def _hg_level(h, x, sizes, kk, i_full, cw, cb, p_row, crw, rw, need_h):
    """One level: block-diag hypergraph conv -> per-graph top-k hyperedge pooling ->
    cross-graph attention -> per-graph readout.  `h` is the (n1+n2, n1+n2)
    block-diagonal incidence, `x` the stacked (n1+n2, C) node features."""
    n1, n2 = sizes
    k1, k2 = kk
    nt = n1 + n2
    kt = k1 + k2

    # ---- hypergraph convolution: leaky_relu(D_v^-1 H B_e^-1 H^T X Theta + b) -----
    xw = _dot(x, cw)                                           # shared weights, one issue
    dv = jnp.sum(h, axis=1, keepdims=True)                     # node degrees   (nt, 1)
    be = jnp.sum(h, axis=0, keepdims=True)                     # edge degrees   (1, nt)
    inv_dv = jnp.where(dv > 0, 1.0 / dv, 0.0)
    inv_be = jnp.where(be > 0, 1.0 / be, 0.0)
    h_be = h * inv_be                                          # fold B_e^-1 into H cols
    y = _leaky_relu(_dot(h * inv_dv, _dot_t0(h_be, xw)) + cb)  # (nt, C)

    # ---- hyperedge pooling: mean member features, sigmoid gate, per-graph top-k ---
    xe = _dot_t0(h_be, y)                                      # (nt, C) mean member feats
    raw = _dot_t1(xe, p_row)                                   # (nt, 1) scores
    # bit-exact transpose of the scores (identity matmul multiplies by 1 / adds 0),
    # so the rank comparison sees identical values in both orientations (tie safety).
    raw_t = _dot_t0(raw, i_full[:nt, :nt])                     # (1, nt)
    gate = jax.nn.sigmoid(raw)                                 # (nt, 1)

    ridx = lax.broadcasted_iota(jnp.int32, (nt, nt), 0)
    cidx = lax.broadcasted_iota(jnp.int32, (nt, nt), 1)
    gid_r = jnp.where(ridx < n1, 0, 1)
    gid_c = jnp.where(cidx < n1, 0, 1)
    same = gid_r == gid_c                                      # same-graph mask
    beats = jnp.logical_or(raw_t > raw,
                           jnp.logical_and(raw_t == raw, cidx < ridx))
    rank = jnp.sum(jnp.logical_and(same, beats).astype(jnp.float32),
                   axis=1, keepdims=True)                      # dense rank within graph
    riota = lax.broadcasted_iota(jnp.int32, (nt, 1), 0)
    in_g1 = riota < n1
    keep = (rank < jnp.where(in_g1, float(k1), float(k2))).astype(jnp.float32)
    col = rank + jnp.where(in_g1, 0.0, float(k1))              # target column (score order)
    kiota = lax.broadcasted_iota(jnp.int32, (nt, kt), 1).astype(jnp.float32)
    s_onehot = keep * (col == kiota).astype(jnp.float32)       # (nt, kt) selection matrix

    x_pool = _dot_t0(s_onehot * gate, xe)                      # (kt, C) gated pooled feats
    if need_h:
        hs = _dot(h, s_onehot)                                 # (nt, kt)
        h_new = (_dot_t0(hs, hs) > 0).astype(jnp.float32)      # coarsened incidence
    else:
        h_new = None                                           # last level: not needed

    # ---- cross-graph attention + per-graph readouts --------------------------------
    o1, o2 = _cross(x_pool[:k1], x_pool[k1:], crw)
    x_next = jnp.concatenate([o1, o2], axis=0)                 # (kt, C)
    return h_new, x_next, _readout(o1, rw), _readout(o2, rw)


# ----------------------------------------------------------------------------------
# The fused kernel (whole forward pass for one graph pair; grid batches pairs)
# ----------------------------------------------------------------------------------

def _make_kernel(n, k_hops, kks):
    def kernel(a_ref, x_ref, c0w_ref, w_ref, b_ref, p_ref, mw_ref, mb_ref, out_ref):
        nt0 = 2 * n
        i_full = _eye(nt0)                                     # hoisted, reused everywhere
        c = c0w_ref.shape[1]                                   # nhid

        a1 = a_ref[0, 0]
        a2 = a_ref[0, 1]
        x1 = x_ref[0, 0]
        x2 = x_ref[0, 1]

        a_blk = _block_diag2(a1, a2)                           # (2N, 2N) pair adjacency
        x_blk = jnp.concatenate([x1, x2], axis=0)              # (2N, F)

        # ---- level 0: shared-weight GCN on the block-diagonal pair graph ----------
        an = a_blk + i_full                                    # add self loops
        deg_c = jnp.sum(an, axis=1, keepdims=True)
        deg_r = jnp.sum(an, axis=0, keepdims=True)             # symmetric -> same values
        dinv_c = jnp.where(deg_c > 0, lax.rsqrt(deg_c), 0.0)
        dinv_r = jnp.where(deg_r > 0, lax.rsqrt(deg_r), 0.0)
        f_blk = _leaky_relu(_dot(an * dinv_c * dinv_r, _dot(x_blk, c0w_ref[...]))
                            + b_ref[0:1, :])
        ro0 = w_ref[_RO0]
        reads = [_readout(f_blk[:n], ro0), _readout(f_blk[n:], ro0)]

        # ---- hypergraph construction: hyperedge j = k-hop neighbourhood of node j --
        ab = (a_blk > 0).astype(jnp.float32) + i_full
        h_blk = ab
        for _ in range(k_hops - 1):
            h_blk = (_dot(h_blk, ab) > 0).astype(jnp.float32)

        # ---- three pooling levels ---------------------------------------------------
        feats = f_blk
        sizes = (n, n)
        for lvl in range(3):
            kk = kks[lvl]
            h_blk, feats, r1, r2 = _hg_level(
                h_blk, feats, sizes, kk, i_full,
                w_ref[_CONV1 + lvl], b_ref[1 + lvl:2 + lvl, :],
                p_ref[lvl:lvl + 1, :], w_ref[_CROSS1 + lvl], w_ref[_RO1 + lvl],
                need_h=(lvl < 2))
            reads += [r1, r2]
            sizes = kk

        # ---- MLP head: lane-concat the 8 readouts, one wide first-layer matmul -----
        scores = jnp.concatenate(reads, axis=1)                # (1, 8*nhid)
        h0 = jnp.maximum(_dot(scores, mw_ref[0:8 * c, :]) + mb_ref[0:1, :], 0.0)
        h1 = jnp.maximum(_dot(h0, mw_ref[8 * c:12 * c, 0:2 * c])
                         + mb_ref[1:2, 0:2 * c], 0.0)
        h2 = jnp.maximum(_dot(h1, mw_ref[12 * c:14 * c, 0:c])
                         + mb_ref[2:3, 0:c], 0.0)
        y = jax.nn.sigmoid(_dot(h2, mw_ref[14 * c:15 * c, 0:1]) + mb_ref[3:4, 0:1])

        # lane-dense write: broadcast the scalar score across one 128-lane row.
        out_ref[0] = jnp.broadcast_to(y, (1, 128))

    return kernel


# ----------------------------------------------------------------------------------
# Wrapper: one pallas_call, grid over graph pairs, weights VMEM-resident
# ----------------------------------------------------------------------------------

def model_forward(packed, a_pair, x_pair, *, k, ratio1, ratio2, ratio3):
    b, _, n, f = x_pair.shape

    def keep(e, r):
        return max(1, int(math.ceil(r * e)))

    k1 = keep(n, ratio1)
    k2 = keep(k1, ratio2)
    k3 = keep(k2, ratio3)
    kks = ((k1, k1), (k2, k2), (k3, k3))

    in_specs = [
        pl.BlockSpec((1, 2, n, n), lambda i: (i, 0, 0, 0)),            # adjacencies
        pl.BlockSpec((1, 2, n, f), lambda i: (i, 0, 0, 0)),            # node features
        pl.BlockSpec(packed['conv0_w'].shape, lambda i: (0, 0)),       # resident weights
        pl.BlockSpec(packed['w_stack'].shape, lambda i: (0, 0, 0)),
        pl.BlockSpec(packed['b_stack'].shape, lambda i: (0, 0)),
        pl.BlockSpec(packed['p_stack'].shape, lambda i: (0, 0)),
        pl.BlockSpec(packed['mlp_w'].shape, lambda i: (0, 0)),
        pl.BlockSpec(packed['mlp_b'].shape, lambda i: (0, 0)),
    ]
    out = pl.pallas_call(
        _make_kernel(n, k, kks),
        out_shape=jax.ShapeDtypeStruct((b, 1, 128), jnp.float32),
        grid=(b,),
        in_specs=in_specs,
        out_specs=pl.BlockSpec((1, 1, 128), lambda i: (i, 0, 0)),
        compiler_params=pltpu.CompilerParams(dimension_semantics=("parallel",)),
    )(a_pair, x_pair, packed['conv0_w'], packed['w_stack'], packed['b_stack'],
      packed['p_stack'], packed['mlp_w'], packed['mlp_b'])
    return out[:, 0, :1]                                               # (B, 1) scores


# ----------------------------------------------------------------------------------
# Parameters
# ----------------------------------------------------------------------------------

def _glorot(key, shape):
    lim = math.sqrt(6.0 / (shape[0] + shape[1]))
    return jax.random.uniform(key, shape, jnp.float32, -lim, lim)


def make_params(key, num_features, nhid):
    keys = iter(jax.random.split(key, 32))
    g = lambda shape: _glorot(next(keys), shape)
    z = lambda shape: jnp.zeros(shape, jnp.float32)
    p = {'conv0_w': g((num_features, nhid)), 'conv0_b': z((1, nhid))}
    for name in ('conv1', 'conv2', 'conv3'):
        p[name + '_w'] = g((nhid, nhid))
        p[name + '_b'] = z((1, nhid))
    for name in ('pool1', 'pool2', 'pool3'):
        p[name + '_p'] = g((nhid, 1))
    for name in ('cross1', 'cross2', 'cross3'):
        p[name + '_w'] = g((nhid, nhid))
    for name in ('ro0', 'ro1', 'ro2', 'ro3'):
        p[name + '_w'] = g((nhid, nhid))
    p['mlp_w0'] = g((8 * nhid, 4 * nhid)); p['mlp_b0'] = z((1, 4 * nhid))
    p['mlp_w1'] = g((4 * nhid, 2 * nhid)); p['mlp_b1'] = z((1, 2 * nhid))
    p['mlp_w2'] = g((2 * nhid, nhid));     p['mlp_b2'] = z((1, nhid))
    p['mlp_w3'] = g((nhid, 1));            p['mlp_b3'] = z((1, 1))
    return p


def pack_params(p, nhid):
    """Collapse the ~29 parameters into 6 stacked tensors (6 weight DMAs per launch)."""
    c = nhid
    w_stack = jnp.stack([p['conv1_w'], p['conv2_w'], p['conv3_w'],
                         p['cross1_w'], p['cross2_w'], p['cross3_w'],
                         p['ro0_w'], p['ro1_w'], p['ro2_w'], p['ro3_w']], axis=0)
    b_stack = jnp.concatenate([p['conv0_b'], p['conv1_b'],
                               p['conv2_b'], p['conv3_b']], axis=0)          # (4, nhid)
    p_stack = jnp.stack([p['pool1_p'][:, 0], p['pool2_p'][:, 0],
                         p['pool3_p'][:, 0]], axis=0)                        # (3, nhid)
    mlp_w = jnp.zeros((15 * c, 4 * c), jnp.float32)
    mlp_w = mlp_w.at[0:8 * c, :].set(p['mlp_w0'])
    mlp_w = mlp_w.at[8 * c:12 * c, 0:2 * c].set(p['mlp_w1'])
    mlp_w = mlp_w.at[12 * c:14 * c, 0:c].set(p['mlp_w2'])
    mlp_w = mlp_w.at[14 * c:15 * c, 0:1].set(p['mlp_w3'])
    mlp_b = jnp.zeros((4, 4 * c), jnp.float32)
    mlp_b = mlp_b.at[0, :].set(p['mlp_b0'][0])
    mlp_b = mlp_b.at[1, 0:2 * c].set(p['mlp_b1'][0])
    mlp_b = mlp_b.at[2, 0:c].set(p['mlp_b2'][0])
    mlp_b = mlp_b.at[3, 0:1].set(p['mlp_b3'][0])
    return {'conv0_w': p['conv0_w'], 'w_stack': w_stack, 'b_stack': b_stack,
            'p_stack': p_stack, 'mlp_w': mlp_w, 'mlp_b': mlp_b}


# ----------------------------------------------------------------------------------
# Driver
# ----------------------------------------------------------------------------------

if __name__ == "__main__":
    num_features, nhid, k = 8, 32, 2
    ratio1 = ratio2 = ratio3 = 0.5
    n_nodes, batch_pairs = 16, 8

    key = jax.random.PRNGKey(0)
    kp, ka, kx = jax.random.split(key, 3)
    params = make_params(kp, num_features, nhid)
    packed = pack_params(params, nhid)

    # random symmetric adjacencies (zero diagonal, edge weight 1) for B pairs of graphs
    u = (jax.random.uniform(ka, (batch_pairs, 2, n_nodes, n_nodes)) < 0.35
         ).astype(jnp.float32)
    ut = jnp.triu(u, 1)
    a_pair = ((ut + jnp.swapaxes(ut, -1, -2)) > 0).astype(jnp.float32)
    x_pair = jax.random.normal(kx, (batch_pairs, 2, n_nodes, num_features), jnp.float32)

    out = model_forward(packed, a_pair, x_pair,
                        k=k, ratio1=ratio1, ratio2=ratio2, ratio3=ratio3)
    out = jax.block_until_ready(out)
    assert out.shape == (batch_pairs, 1) and bool(jnp.isfinite(out).all())
    print("KERNEL_OK")
</pallas_src>

<mosaic_0001>
module attributes {stable_mosaic.version = 11 : i64} {
  func.func @kernel(%arg0: i32, %arg1: memref<1x2x16x16xf32, #tpu.memory_space<vmem>>, %arg2: memref<1x2x16x8xf32, #tpu.memory_space<vmem>>, %arg3: memref<8x32xf32, #tpu.memory_space<vmem>>, %arg4: memref<10x32x32xf32, #tpu.memory_space<vmem>>, %arg5: memref<4x32xf32, #tpu.memory_space<vmem>>, %arg6: memref<3x32xf32, #tpu.memory_space<vmem>>, %arg7: memref<480x128xf32, #tpu.memory_space<vmem>>, %arg8: memref<4x128xf32, #tpu.memory_space<vmem>>, %arg9: memref<1x1x128xf32, #tpu.memory_space<vmem>>) attributes {dimension_semantics = [#tpu.dimension_semantics<parallel>], iteration_bounds = array<i64: 8>, scalar_prefetch = 0 : i64, scratch_operands = 0 : i64, tpu.core_type = #tpu.core_type<tc>, window_params = [{transform_indices = @transform_0, window_bounds = array<i64: 1, 2, 16, 16>}, {transform_indices = @transform_1, window_bounds = array<i64: 1, 2, 16, 8>}, {pipeline_mode = #tpu.pipeline_mode<synchronous>, transform_indices = @transform_2, window_bounds = array<i64: 8, 32>}, {pipeline_mode = #tpu.pipeline_mode<synchronous>, transform_indices = @transform_3, window_bounds = array<i64: 10, 32, 32>}, {pipeline_mode = #tpu.pipeline_mode<synchronous>, transform_indices = @transform_4, window_bounds = array<i64: 4, 32>}, {pipeline_mode = #tpu.pipeline_mode<synchronous>, transform_indices = @transform_5, window_bounds = array<i64: 3, 32>}, {pipeline_mode = #tpu.pipeline_mode<synchronous>, transform_indices = @transform_6, window_bounds = array<i64: 480, 128>}, {pipeline_mode = #tpu.pipeline_mode<synchronous>, transform_indices = @transform_7, window_bounds = array<i64: 4, 128>}, {transform_indices = @transform_8, window_bounds = array<i64: 1, 1, 128>}]} {
    %0 = tpu.iota {dimensions = array<i32: 0>} : vector<32x32xi32>
    %1 = tpu.iota {dimensions = array<i32: 1>} : vector<32x32xi32>
    %2 = arith.cmpi eq, %0, %1 : vector<32x32xi32>
    %3 = arith.extui %2 : vector<32x32xi1> to vector<32x32xi32>
    %4 = arith.sitofp %3 : vector<32x32xi32> to vector<32x32xf32>
    %c0 = arith.constant 0 : index
    %c0_0 = arith.constant 0 : index
    %c0_1 = arith.constant 0 : index
    %c0_2 = arith.constant 0 : index
    %5 = vector.load %arg1[%c0, %c0_0, %c0_1, %c0_2] : memref<1x2x16x16xf32, #tpu.memory_space<vmem>>, vector<1x1x16x16xf32>
    %6 = vector.shape_cast %5 : vector<1x1x16x16xf32> to vector<16x16xf32>
    %c0_3 = arith.constant 0 : index
    %c1 = arith.constant 1 : index
    %c0_4 = arith.constant 0 : index
    %c0_5 = arith.constant 0 : index
    %7 = vector.load %arg1[%c0_3, %c1, %c0_4, %c0_5] : memref<1x2x16x16xf32, #tpu.memory_space<vmem>>, vector<1x1x16x16xf32>
    %8 = vector.shape_cast %7 : vector<1x1x16x16xf32> to vector<16x16xf32>
    %c0_6 = arith.constant 0 : index
    %c0_7 = arith.constant 0 : index
    %c0_8 = arith.constant 0 : index
    %c0_9 = arith.constant 0 : index
    %9 = vector.load %arg2[%c0_6, %c0_7, %c0_8, %c0_9] : memref<1x2x16x8xf32, #tpu.memory_space<vmem>>, vector<1x1x16x8xf32>
    %10 = vector.shape_cast %9 : vector<1x1x16x8xf32> to vector<16x8xf32>
    %c0_10 = arith.constant 0 : index
    %c1_11 = arith.constant 1 : index
    %c0_12 = arith.constant 0 : index
    %c0_13 = arith.constant 0 : index
    %11 = vector.load %arg2[%c0_10, %c1_11, %c0_12, %c0_13] : memref<1x2x16x8xf32, #tpu.memory_space<vmem>>, vector<1x1x16x8xf32>
    %12 = vector.shape_cast %11 : vector<1x1x16x8xf32> to vector<16x8xf32>
    %cst = arith.constant 0.000000e+00 : f32
    %13 = vector.broadcast %cst : f32 to vector<16x16xf32>
    %cst_14 = arith.constant 0.000000e+00 : f32
    %14 = vector.broadcast %cst_14 : f32 to vector<16x16xf32>
    %15 = tpu.concatenate %6, %13 in 1 : vector<16x16xf32>, vector<16x16xf32> -> vector<16x32xf32>
    %16 = tpu.concatenate %14, %8 in 1 : vector<16x16xf32>, vector<16x16xf32> -> vector<16x32xf32>
    %17 = tpu.concatenate %15, %16 in 0 : vector<16x32xf32>, vector<16x32xf32> -> vector<32x32xf32>
    %18 = tpu.concatenate %10, %12 in 0 : vector<16x8xf32>, vector<16x8xf32> -> vector<32x8xf32>
    %19 = arith.addf %17, %4 : vector<32x32xf32>
    %cst_15 = arith.constant dense<0.000000e+00> : vector<32xf32>
    %20 = vector.multi_reduction <add>, %19, %cst_15 [1] : vector<32x32xf32> to vector<32xf32>
    %21 = vector.shape_cast %20 : vector<32xf32> to vector<32x1xf32>
    %cst_16 = arith.constant dense<0.000000e+00> : vector<32xf32>
    %22 = vector.multi_reduction <add>, %19, %cst_16 [0] : vector<32x32xf32> to vector<32xf32>
    %23 = vector.shape_cast %22 : vector<32xf32> to vector<1x32xf32>
    %cst_17 = arith.constant 0.000000e+00 : f32
    %24 = vector.broadcast %cst_17 : f32 to vector<32x1xf32>
    %25 = arith.cmpf ogt, %21, %24 : vector<32x1xf32>
    %26 = math.rsqrt %21 : vector<32x1xf32>
    %cst_18 = arith.constant 0.000000e+00 : f32
    %27 = vector.broadcast %cst_18 : f32 to vector<32x1xf32>
    %28 = arith.select %25, %26, %27 : vector<32x1xi1>, vector<32x1xf32>
    %cst_19 = arith.constant 0.000000e+00 : f32
    %29 = vector.broadcast %cst_19 : f32 to vector<1x32xf32>
    %30 = arith.cmpf ogt, %23, %29 : vector<1x32xf32>
    %31 = math.rsqrt %23 : vector<1x32xf32>
    %cst_20 = arith.constant 0.000000e+00 : f32
    %32 = vector.broadcast %cst_20 : f32 to vector<1x32xf32>
    %33 = arith.select %30, %31, %32 : vector<1x32xi1>, vector<1x32xf32>
    %34 = vector.broadcast %28 : vector<32x1xf32> to vector<32x32xf32>
    %35 = arith.mulf %19, %34 : vector<32x32xf32>
    %36 = vector.broadcast %33 : vector<1x32xf32> to vector<32x32xf32>
    %37 = arith.mulf %35, %36 : vector<32x32xf32>
    %c0_21 = arith.constant 0 : index
    %c0_22 = arith.constant 0 : index
    %38 = vector.load %arg3[%c0_21, %c0_22] : memref<8x32xf32, #tpu.memory_space<vmem>>, vector<8x32xf32>
    %cst_23 = arith.constant dense<0.000000e+00> : vector<32x32xf32>
    %39 = tpu.matmul %18, %38, %cst_23 {dimension_numbers = #tpu.dot_dimension_numbers<[1], [0], [0], [1], [0, 0, 1, 1], [], []>} : vector<32x8xf32>, vector<8x32xf32>, vector<32x32xf32> -> vector<32x32xf32>
    %cst_24 = arith.constant dense<0.000000e+00> : vector<32x32xf32>
    %40 = tpu.matmul %37, %39, %cst_24 {dimension_numbers = #tpu.dot_dimension_numbers<[1], [0], [0], [1], [0, 0, 1, 1], [], []>} : vector<32x32xf32>, vector<32x32xf32>, vector<32x32xf32> -> vector<32x32xf32>
    %c0_25 = arith.constant 0 : index
    %c0_26 = arith.constant 0 : index
    %41 = vector.load %arg5[%c0_25, %c0_26] : memref<4x32xf32, #tpu.memory_space<vmem>>, vector<1x32xf32>
    %42 = vector.broadcast %41 : vector<1x32xf32> to vector<32x32xf32>
    %43 = arith.addf %40, %42 : vector<32x32xf32>
    %cst_27 = arith.constant 0.000000e+00 : f32
    %44 = vector.broadcast %cst_27 : f32 to vector<32x32xf32>
    %45 = arith.cmpf ogt, %43, %44 : vector<32x32xf32>
    %cst_28 = arith.constant 2.000000e-01 : f32
    %46 = vector.broadcast %cst_28 : f32 to vector<32x32xf32>
    %47 = arith.mulf %46, %43 : vector<32x32xf32>
    %48 = arith.select %45, %43, %47 : vector<32x32xi1>, vector<32x32xf32>
    %c6 = arith.constant 6 : index
    %c0_29 = arith.constant 0 : index
    %c0_30 = arith.constant 0 : index
    %49 = vector.load %arg4[%c6, %c0_29, %c0_30] : memref<10x32x32xf32, #tpu.memory_space<vmem>>, vector<1x32x32xf32>
    %50 = vector.shape_cast %49 : vector<1x32x32xf32> to vector<32x32xf32>
    %51 = vector.extract_strided_slice %48 {offsets = [0, 0], sizes = [16, 32], strides = [1, 1]} : vector<32x32xf32> to vector<16x32xf32>
    %cst_31 = arith.constant dense<0.000000e+00> : vector<32xf32>
    %52 = vector.multi_reduction <add>, %51, %cst_31 [0] : vector<16x32xf32> to vector<32xf32>
    %53 = vector.shape_cast %52 : vector<32xf32> to vector<1x32xf32>
    %cst_32 = arith.constant 1.600000e+01 : f32
    %54 = vector.broadcast %cst_32 : f32 to vector<1x32xf32>
    %55 = arith.divf %53, %54 : vector<1x32xf32>
    %cst_33 = arith.constant dense<0.000000e+00> : vector<1x32xf32>
    %56 = tpu.matmul %55, %50, %cst_33 {dimension_numbers = #tpu.dot_dimension_numbers<[1], [0], [0], [1], [0, 0, 1, 1], [], []>} : vector<1x32xf32>, vector<32x32xf32>, vector<1x32xf32> -> vector<1x32xf32>
    %57 = math.tanh %56 : vector<1x32xf32>
    %58 = vector.broadcast %57 : vector<1x32xf32> to vector<16x32xf32>
    %59 = arith.mulf %51, %58 : vector<16x32xf32>
    %cst_34 = arith.constant dense<0.000000e+00> : vector<16xf32>
    %60 = vector.multi_reduction <add>, %59, %cst_34 [1] : vector<16x32xf32> to vector<16xf32>
    %61 = vector.shape_cast %60 : vector<16xf32> to vector<16x1xf32>
    %62 = arith.negf %61 : vector<16x1xf32>
    %63 = math.exp %62 : vector<16x1xf32>
    %cst_35 = arith.constant 1.000000e+00 : f32
    %64 = vector.broadcast %cst_35 : f32 to vector<16x1xf32>
    %65 = arith.addf %64, %63 : vector<16x1xf32>
    %66 = arith.divf %64, %65 : vector<16x1xf32>
    %67 = vector.broadcast %66 : vector<16x1xf32> to vector<16x32xf32>
    %68 = arith.mulf %67, %51 : vector<16x32xf32>
    %cst_36 = arith.constant dense<0.000000e+00> : vector<32xf32>
    %69 = vector.multi_reduction <add>, %68, %cst_36 [0] : vector<16x32xf32> to vector<32xf32>
    %70 = vector.shape_cast %69 : vector<32xf32> to vector<1x32xf32>
    %71 = vector.extract_strided_slice %48 {offsets = [16, 0], sizes = [16, 32], strides = [1, 1]} : vector<32x32xf32> to vector<16x32xf32>
    %cst_37 = arith.constant dense<0.000000e+00> : vector<32xf32>
    %72 = vector.multi_reduction <add>, %71, %cst_37 [0] : vector<16x32xf32> to vector<32xf32>
    %73 = vector.shape_cast %72 : vector<32xf32> to vector<1x32xf32>
    %cst_38 = arith.constant 1.600000e+01 : f32
    %74 = vector.broadcast %cst_38 : f32 to vector<1x32xf32>
    %75 = arith.divf %73, %74 : vector<1x32xf32>
    %cst_39 = arith.constant dense<0.000000e+00> : vector<1x32xf32>
    %76 = tpu.matmul %75, %50, %cst_39 {dimension_numbers = #tpu.dot_dimension_numbers<[1], [0], [0], [1], [0, 0, 1, 1], [], []>} : vector<1x32xf32>, vector<32x32xf32>, vector<1x32xf32> -> vector<1x32xf32>
    %77 = math.tanh %76 : vector<1x32xf32>
    %78 = vector.broadcast %77 : vector<1x32xf32> to vector<16x32xf32>
    %79 = arith.mulf %71, %78 : vector<16x32xf32>
    %cst_40 = arith.constant dense<0.000000e+00> : vector<16xf32>
    %80 = vector.multi_reduction <add>, %79, %cst_40 [1] : vector<16x32xf32> to vector<16xf32>
    %81 = vector.shape_cast %80 : vector<16xf32> to vector<16x1xf32>
    %82 = arith.negf %81 : vector<16x1xf32>
    %83 = math.exp %82 : vector<16x1xf32>
    %cst_41 = arith.constant 1.000000e+00 : f32
    %84 = vector.broadcast %cst_41 : f32 to vector<16x1xf32>
    %85 = arith.addf %84, %83 : vector<16x1xf32>
    %86 = arith.divf %84, %85 : vector<16x1xf32>
    %87 = vector.broadcast %86 : vector<16x1xf32> to vector<16x32xf32>
    %88 = arith.mulf %87, %71 : vector<16x32xf32>
    %cst_42 = arith.constant dense<0.000000e+00> : vector<32xf32>
    %89 = vector.multi_reduction <add>, %88, %cst_42 [0] : vector<16x32xf32> to vector<32xf32>
    %90 = vector.shape_cast %89 : vector<32xf32> to vector<1x32xf32>
    %cst_43 = arith.constant 0.000000e+00 : f32
    %91 = vector.broadcast %cst_43 : f32 to vector<32x32xf32>
    %92 = arith.cmpf ogt, %17, %91 : vector<32x32xf32>
    %93 = arith.extui %92 : vector<32x32xi1> to vector<32x32xi32>
    %94 = arith.sitofp %93 : vector<32x32xi32> to vector<32x32xf32>
    %95 = arith.addf %94, %4 : vector<32x32xf32>
    %cst_44 = arith.constant dense<0.000000e+00> : vector<32x32xf32>
    %96 = tpu.matmul %95, %95, %cst_44 {dimension_numbers = #tpu.dot_dimension_numbers<[1], [0], [0], [1], [0, 0, 1, 1], [], []>} : vector<32x32xf32>, vector<32x32xf32>, vector<32x32xf32> -> vector<32x32xf32>
    %cst_45 = arith.constant 0.000000e+00 : f32
    %97 = vector.broadcast %cst_45 : f32 to vector<32x32xf32>
    %98 = arith.cmpf ogt, %96, %97 : vector<32x32xf32>
    %99 = arith.extui %98 : vector<32x32xi1> to vector<32x32xi32>
    %100 = arith.sitofp %99 : vector<32x32xi32> to vector<32x32xf32>
    %c0_46 = arith.constant 0 : index
    %c0_47 = arith.constant 0 : index
    %c0_48 = arith.constant 0 : index
    %101 = vector.load %arg4[%c0_46, %c0_47, %c0_48] : memref<10x32x32xf32, #tpu.memory_space<vmem>>, vector<1x32x32xf32>
    %102 = vector.shape_cast %101 : vector<1x32x32xf32> to vector<32x32xf32>
    %c1_49 = arith.constant 1 : index
    %c0_50 = arith.constant 0 : index
    %103 = vector.load %arg5[%c1_49, %c0_50] : memref<4x32xf32, #tpu.memory_space<vmem>>, vector<1x32xf32>
    %c0_51 = arith.constant 0 : index
    %c0_52 = arith.constant 0 : index
    %104 = vector.load %arg6[%c0_51, %c0_52] : memref<3x32xf32, #tpu.memory_space<vmem>>, vector<1x32xf32>
    %c3 = arith.constant 3 : index
    %c0_53 = arith.constant 0 : index
    %c0_54 = arith.constant 0 : index
    %105 = vector.load %arg4[%c3, %c0_53, %c0_54] : memref<10x32x32xf32, #tpu.memory_space<vmem>>, vector<1x32x32xf32>
    %106 = vector.shape_cast %105 : vector<1x32x32xf32> to vector<32x32xf32>
    %c7 = arith.constant 7 : index
    %c0_55 = arith.constant 0 : index
    %c0_56 = arith.constant 0 : index
    %107 = vector.load %arg4[%c7, %c0_55, %c0_56] : memref<10x32x32xf32, #tpu.memory_space<vmem>>, vector<1x32x32xf32>
    %108 = vector.shape_cast %107 : vector<1x32x32xf32> to vector<32x32xf32>
    %cst_57 = arith.constant dense<0.000000e+00> : vector<32x32xf32>
    %109 = tpu.matmul %48, %102, %cst_57 {dimension_numbers = #tpu.dot_dimension_numbers<[1], [0], [0], [1], [0, 0, 1, 1], [], []>} : vector<32x32xf32>, vector<32x32xf32>, vector<32x32xf32> -> vector<32x32xf32>
    %cst_58 = arith.constant dense<0.000000e+00> : vector<32xf32>
    %110 = vector.multi_reduction <add>, %100, %cst_58 [1] : vector<32x32xf32> to vector<32xf32>
    %111 = vector.shape_cast %110 : vector<32xf32> to vector<32x1xf32>
    %cst_59 = arith.constant dense<0.000000e+00> : vector<32xf32>
    %112 = vector.multi_reduction <add>, %100, %cst_59 [0] : vector<32x32xf32> to vector<32xf32>
    %113 = vector.shape_cast %112 : vector<32xf32> to vector<1x32xf32>
    %cst_60 = arith.constant 0.000000e+00 : f32
    %114 = vector.broadcast %cst_60 : f32 to vector<32x1xf32>
    %115 = arith.cmpf ogt, %111, %114 : vector<32x1xf32>
    %cst_61 = arith.constant 1.000000e+00 : f32
    %116 = vector.broadcast %cst_61 : f32 to vector<32x1xf32>
    %117 = arith.divf %116, %111 : vector<32x1xf32>
    %cst_62 = arith.constant 0.000000e+00 : f32
    %118 = vector.broadcast %cst_62 : f32 to vector<32x1xf32>
    %119 = arith.select %115, %117, %118 : vector<32x1xi1>, vector<32x1xf32>
    %cst_63 = arith.constant 0.000000e+00 : f32
    %120 = vector.broadcast %cst_63 : f32 to vector<1x32xf32>
    %121 = arith.cmpf ogt, %113, %120 : vector<1x32xf32>
    %cst_64 = arith.constant 1.000000e+00 : f32
    %122 = vector.broadcast %cst_64 : f32 to vector<1x32xf32>
    %123 = arith.divf %122, %113 : vector<1x32xf32>
    %cst_65 = arith.constant 0.000000e+00 : f32
    %124 = vector.broadcast %cst_65 : f32 to vector<1x32xf32>
    %125 = arith.select %121, %123, %124 : vector<1x32xi1>, vector<1x32xf32>
    %126 = vector.broadcast %125 : vector<1x32xf32> to vector<32x32xf32>
    %127 = arith.mulf %100, %126 : vector<32x32xf32>
    %128 = vector.broadcast %119 : vector<32x1xf32> to vector<32x32xf32>
    %129 = arith.mulf %100, %128 : vector<32x32xf32>
    %cst_66 = arith.constant dense<0.000000e+00> : vector<32x32xf32>
    %130 = tpu.matmul %127, %109, %cst_66 {dimension_numbers = #tpu.dot_dimension_numbers<[0], [0], [1], [1], [0, 1, 1, 1], [], []>} : vector<32x32xf32>, vector<32x32xf32>, vector<32x32xf32> -> vector<32x32xf32>
    %cst_67 = arith.constant dense<0.000000e+00> : vector<32x32xf32>
    %131 = tpu.matmul %129, %130, %cst_67 {dimension_numbers = #tpu.dot_dimension_numbers<[1], [0], [0], [1], [0, 0, 1, 1], [], []>} : vector<32x32xf32>, vector<32x32xf32>, vector<32x32xf32> -> vector<32x32xf32>
    %132 = vector.broadcast %103 : vector<1x32xf32> to vector<32x32xf32>
    %133 = arith.addf %131, %132 : vector<32x32xf32>
    %cst_68 = arith.constant 0.000000e+00 : f32
    %134 = vector.broadcast %cst_68 : f32 to vector<32x32xf32>
    %135 = arith.cmpf ogt, %133, %134 : vector<32x32xf32>
    %cst_69 = arith.constant 2.000000e-01 : f32
    %136 = vector.broadcast %cst_69 : f32 to vector<32x32xf32>
    %137 = arith.mulf %136, %133 : vector<32x32xf32>
    %138 = arith.select %135, %133, %137 : vector<32x32xi1>, vector<32x32xf32>
    %cst_70 = arith.constant dense<0.000000e+00> : vector<32x32xf32>
    %139 = tpu.matmul %127, %138, %cst_70 {dimension_numbers = #tpu.dot_dimension_numbers<[0], [0], [1], [1], [0, 1, 1, 1], [], []>} : vector<32x32xf32>, vector<32x32xf32>, vector<32x32xf32> -> vector<32x32xf32>
    %cst_71 = arith.constant dense<0.000000e+00> : vector<32x1xf32>
    %140 = tpu.matmul %139, %104, %cst_71 {dimension_numbers = #tpu.dot_dimension_numbers<[1], [1], [0], [0], [0, 0, 1, 0], [], []>} : vector<32x32xf32>, vector<1x32xf32>, vector<32x1xf32> -> vector<32x1xf32>
    %cst_72 = arith.constant dense<0.000000e+00> : vector<1x32xf32>
    %141 = tpu.matmul %140, %4, %cst_72 {dimension_numbers = #tpu.dot_dimension_numbers<[0], [0], [1], [1], [0, 1, 1, 1], [], []>} : vector<32x1xf32>, vector<32x32xf32>, vector<1x32xf32> -> vector<1x32xf32>
    %142 = arith.negf %140 : vector<32x1xf32>
    %143 = math.exp %142 : vector<32x1xf32>
    %cst_73 = arith.constant 1.000000e+00 : f32
    %144 = vector.broadcast %cst_73 : f32 to vector<32x1xf32>
    %145 = arith.addf %144, %143 : vector<32x1xf32>
    %146 = arith.divf %144, %145 : vector<32x1xf32>
    %147 = tpu.iota {dimensions = array<i32: 0>} : vector<32x32xi32>
    %148 = tpu.iota {dimensions = array<i32: 1>} : vector<32x32xi32>
    %c16_i32 = arith.constant 16 : i32
    %149 = vector.broadcast %c16_i32 : i32 to vector<32x32xi32>
    %150 = arith.cmpi slt, %147, %149 : vector<32x32xi32>
    %c0_i32 = arith.constant 0 : i32
    %c1_i32 = arith.constant 1 : i32
    %151 = vector.broadcast %c0_i32 : i32 to vector<32x32xi32>
    %152 = vector.broadcast %c1_i32 : i32 to vector<32x32xi32>
    %153 = arith.select %150, %151, %152 : vector<32x32xi1>, vector<32x32xi32>
    %c16_i32_74 = arith.constant 16 : i32
    %154 = vector.broadcast %c16_i32_74 : i32 to vector<32x32xi32>
    %155 = arith.cmpi slt, %148, %154 : vector<32x32xi32>
    %c0_i32_75 = arith.constant 0 : i32
    %c1_i32_76 = arith.constant 1 : i32
    %156 = vector.broadcast %c0_i32_75 : i32 to vector<32x32xi32>
    %157 = vector.broadcast %c1_i32_76 : i32 to vector<32x32xi32>
    %158 = arith.select %155, %156, %157 : vector<32x32xi1>, vector<32x32xi32>
    %159 = arith.cmpi eq, %153, %158 : vector<32x32xi32>
    %160 = vector.broadcast %141 : vector<1x32xf32> to vector<32x32xf32>
    %161 = vector.broadcast %140 : vector<32x1xf32> to vector<32x32xf32>
    %162 = arith.cmpf ogt, %160, %161 : vector<32x32xf32>
    %163 = vector.broadcast %141 : vector<1x32xf32> to vector<32x32xf32>
    %164 = vector.broadcast %140 : vector<32x1xf32> to vector<32x32xf32>
    %165 = arith.cmpf oeq, %163, %164 : vector<32x32xf32>
    %166 = arith.cmpi slt, %148, %147 : vector<32x32xi32>
    %167 = arith.andi %165, %166 : vector<32x32xi1>
    %168 = arith.ori %162, %167 : vector<32x32xi1>
    %169 = arith.andi %159, %168 : vector<32x32xi1>
    %170 = arith.extui %169 : vector<32x32xi1> to vector<32x32xi32>
    %171 = arith.sitofp %170 : vector<32x32xi32> to vector<32x32xf32>
    %cst_77 = arith.constant dense<0.000000e+00> : vector<32xf32>
    %172 = vector.multi_reduction <add>, %171, %cst_77 [1] : vector<32x32xf32> to vector<32xf32>
    %173 = vector.shape_cast %172 : vector<32xf32> to vector<32x1xf32>
    %174 = tpu.iota {dimensions = array<i32: 0>} : vector<32x1xi32>
    %c16_i32_78 = arith.constant 16 : i32
    %175 = vector.broadcast %c16_i32_78 : i32 to vector<32x1xi32>
    %176 = arith.cmpi slt, %174, %175 : vector<32x1xi32>
    %cst_79 = arith.constant 8.000000e+00 : f32
    %cst_80 = arith.constant 8.000000e+00 : f32
    %177 = vector.broadcast %cst_79 : f32 to vector<32x1xf32>
    %178 = vector.broadcast %cst_80 : f32 to vector<32x1xf32>
    %179 = arith.select %176, %177, %178 : vector<32x1xi1>, vector<32x1xf32>
    %180 = arith.cmpf olt, %173, %179 : vector<32x1xf32>
    %181 = arith.extui %180 : vector<32x1xi1> to vector<32x1xi32>
    %182 = arith.sitofp %181 : vector<32x1xi32> to vector<32x1xf32>
    %cst_81 = arith.constant 0.000000e+00 : f32
    %cst_82 = arith.constant 8.000000e+00 : f32
    %183 = vector.broadcast %cst_81 : f32 to vector<32x1xf32>
    %184 = vector.broadcast %cst_82 : f32 to vector<32x1xf32>
    %185 = arith.select %176, %183, %184 : vector<32x1xi1>, vector<32x1xf32>
    %186 = arith.addf %173, %185 : vector<32x1xf32>
    %187 = tpu.iota {dimensions = array<i32: 1>} : vector<32x16xi32>
    %188 = arith.sitofp %187 : vector<32x16xi32> to vector<32x16xf32>
    %189 = vector.broadcast %186 : vector<32x1xf32> to vector<32x16xf32>
    %190 = arith.cmpf oeq, %189, %188 : vector<32x16xf32>
    %191 = arith.extui %190 : vector<32x16xi1> to vector<32x16xi32>
    %192 = arith.sitofp %191 : vector<32x16xi32> to vector<32x16xf32>
    %193 = vector.broadcast %182 : vector<32x1xf32> to vector<32x16xf32>
    %194 = arith.mulf %193, %192 : vector<32x16xf32>
    %195 = vector.broadcast %146 : vector<32x1xf32> to vector<32x16xf32>
    %196 = arith.mulf %194, %195 : vector<32x16xf32>
    %cst_83 = arith.constant dense<0.000000e+00> : vector<16x32xf32>
    %197 = tpu.matmul %196, %139, %cst_83 {dimension_numbers = #tpu.dot_dimension_numbers<[0], [0], [1], [1], [0, 1, 1, 1], [], []>} : vector<32x16xf32>, vector<32x32xf32>, vector<16x32xf32> -> vector<16x32xf32>
    %cst_84 = arith.constant dense<0.000000e+00> : vector<32x16xf32>
    %198 = tpu.matmul %100, %194, %cst_84 {dimension_numbers = #tpu.dot_dimension_numbers<[1], [0], [0], [1], [0, 0, 1, 1], [], []>} : vector<32x32xf32>, vector<32x16xf32>, vector<32x16xf32> -> vector<32x16xf32>
    %cst_85 = arith.constant dense<0.000000e+00> : vector<16x16xf32>
    %199 = tpu.matmul %198, %198, %cst_85 {dimension_numbers = #tpu.dot_dimension_numbers<[0], [0], [1], [1], [0, 1, 1, 1], [], []>} : vector<32x16xf32>, vector<32x16xf32>, vector<16x16xf32> -> vector<16x16xf32>
    %cst_86 = arith.constant 0.000000e+00 : f32
    %200 = vector.broadcast %cst_86 : f32 to vector<16x16xf32>
    %201 = arith.cmpf ogt, %199, %200 : vector<16x16xf32>
    %202 = arith.extui %201 : vector<16x16xi1> to vector<16x16xi32>
    %203 = arith.sitofp %202 : vector<16x16xi32> to vector<16x16xf32>
    %204 = vector.extract_strided_slice %197 {offsets = [0, 0], sizes = [8, 32], strides = [1, 1]} : vector<16x32xf32> to vector<8x32xf32>
    %205 = vector.extract_strided_slice %197 {offsets = [8, 0], sizes = [8, 32], strides = [1, 1]} : vector<16x32xf32> to vector<8x32xf32>
    %cst_87 = arith.constant dense<0.000000e+00> : vector<8x32xf32>
    %206 = tpu.matmul %204, %106, %cst_87 {dimension_numbers = #tpu.dot_dimension_numbers<[1], [0], [0], [1], [0, 0, 1, 1], [], []>} : vector<8x32xf32>, vector<32x32xf32>, vector<8x32xf32> -> vector<8x32xf32>
    %cst_88 = arith.constant dense<0.000000e+00> : vector<8x8xf32>
    %207 = tpu.matmul %206, %205, %cst_88 {dimension_numbers = #tpu.dot_dimension_numbers<[1], [1], [0], [0], [0, 0, 1, 0], [], []>} : vector<8x32xf32>, vector<8x32xf32>, vector<8x8xf32> -> vector<8x8xf32>
    %cst_89 = arith.constant dense<0xFF800000> : vector<8xf32>
    %208 = vector.multi_reduction <maximumf>, %207, %cst_89 [1] : vector<8x8xf32> to vector<8xf32>
    %cst_90 = arith.constant 0xFF800000 : f32
    %209 = vector.broadcast %cst_90 : f32 to vector<8xf32>
    %210 = arith.maximumf %209, %208 : vector<8xf32>
    %211 = vector.shape_cast %210 : vector<8xf32> to vector<8x1xf32>
    %212 = vector.broadcast %211 : vector<8x1xf32> to vector<8x8xf32>
    %213 = arith.subf %207, %212 : vector<8x8xf32>
    %214 = math.exp %213 : vector<8x8xf32>
    %cst_91 = arith.constant dense<0.000000e+00> : vector<8xf32>
    %215 = vector.multi_reduction <add>, %214, %cst_91 [1] : vector<8x8xf32> to vector<8xf32>
    %216 = vector.shape_cast %215 : vector<8xf32> to vector<8x1xf32>
    %217 = vector.broadcast %216 : vector<8x1xf32> to vector<8x8xf32>
    %218 = arith.divf %214, %217 : vector<8x8xf32>
    %cst_92 = arith.constant dense<0xFF800000> : vector<8xf32>
    %219 = vector.multi_reduction <maximumf>, %207, %cst_92 [0] : vector<8x8xf32> to vector<8xf32>
    %cst_93 = arith.constant 0xFF800000 : f32
    %220 = vector.broadcast %cst_93 : f32 to vector<8xf32>
    %221 = arith.maximumf %220, %219 : vector<8xf32>
    %222 = vector.shape_cast %221 : vector<8xf32> to vector<1x8xf32>
    %223 = vector.broadcast %222 : vector<1x8xf32> to vector<8x8xf32>
    %224 = arith.subf %207, %223 : vector<8x8xf32>
    %225 = math.exp %224 : vector<8x8xf32>
    %cst_94 = arith.constant dense<0.000000e+00> : vector<8xf32>
    %226 = vector.multi_reduction <add>, %225, %cst_94 [0] : vector<8x8xf32> to vector<8xf32>
    %227 = vector.shape_cast %226 : vector<8xf32> to vector<1x8xf32>
    %228 = vector.broadcast %227 : vector<1x8xf32> to vector<8x8xf32>
    %229 = arith.divf %225, %228 : vector<8x8xf32>
    %cst_95 = arith.constant dense<0.000000e+00> : vector<8x32xf32>
    %230 = tpu.matmul %218, %205, %cst_95 {dimension_numbers = #tpu.dot_dimension_numbers<[1], [0], [0], [1], [0, 0, 1, 1], [], []>} : vector<8x8xf32>, vector<8x32xf32>, vector<8x32xf32> -> vector<8x32xf32>
    %cst_96 = arith.constant dense<0.000000e+00> : vector<8x32xf32>
    %231 = tpu.matmul %229, %204, %cst_96 {dimension_numbers = #tpu.dot_dimension_numbers<[0], [0], [1], [1], [0, 1, 1, 1], [], []>} : vector<8x8xf32>, vector<8x32xf32>, vector<8x32xf32> -> vector<8x32xf32>
    %232 = tpu.concatenate %230, %231 in 0 : vector<8x32xf32>, vector<8x32xf32> -> vector<16x32xf32>
    %cst_97 = arith.constant dense<0.000000e+00> : vector<32xf32>
    %233 = vector.multi_reduction <add>, %230, %cst_97 [0] : vector<8x32xf32> to vector<32xf32>
    %234 = vector.shape_cast %233 : vector<32xf32> to vector<1x32xf32>
    %cst_98 = arith.constant 8.000000e+00 : f32
    %235 = vector.broadcast %cst_98 : f32 to vector<1x32xf32>
    %236 = arith.divf %234, %235 : vector<1x32xf32>
    %cst_99 = arith.constant dense<0.000000e+00> : vector<1x32xf32>
    %237 = tpu.matmul %236, %108, %cst_99 {dimension_numbers = #tpu.dot_dimension_numbers<[1], [0], [0], [1], [0, 0, 1, 1], [], []>} : vector<1x32xf32>, vector<32x32xf32>, vector<1x32xf32> -> vector<1x32xf32>
    %238 = math.tanh %237 : vector<1x32xf32>
    %239 = vector.broadcast %238 : vector<1x32xf32> to vector<8x32xf32>
    %240 = arith.mulf %230, %239 : vector<8x32xf32>
    %cst_100 = arith.constant dense<0.000000e+00> : vector<8xf32>
    %241 = vector.multi_reduction <add>, %240, %cst_100 [1] : vector<8x32xf32> to vector<8xf32>
    %242 = vector.shape_cast %241 : vector<8xf32> to vector<8x1xf32>
    %243 = arith.negf %242 : vector<8x1xf32>
    %244 = math.exp %243 : vector<8x1xf32>
    %cst_101 = arith.constant 1.000000e+00 : f32
    %245 = vector.broadcast %cst_101 : f32 to vector<8x1xf32>
    %246 = arith.addf %245, %244 : vector<8x1xf32>
    %247 = arith.divf %245, %246 : vector<8x1xf32>
    %248 = vector.broadcast %247 : vector<8x1xf32> to vector<8x32xf32>
    %249 = arith.mulf %248, %230 : vector<8x32xf32>
    %cst_102 = arith.constant dense<0.000000e+00> : vector<32xf32>
    %250 = vector.multi_reduction <add>, %249, %cst_102 [0] : vector<8x32xf32> to vector<32xf32>
    %251 = vector.shape_cast %250 : vector<32xf32> to vector<1x32xf32>
    %cst_103 = arith.constant dense<0.000000e+00> : vector<32xf32>
    %252 = vector.multi_reduction <add>, %231, %cst_103 [0] : vector<8x32xf32> to vector<32xf32>
    %253 = vector.shape_cast %252 : vector<32xf32> to vector<1x32xf32>
    %cst_104 = arith.constant 8.000000e+00 : f32
    %254 = vector.broadcast %cst_104 : f32 to vector<1x32xf32>
    %255 = arith.divf %253, %254 : vector<1x32xf32>
    %cst_105 = arith.constant dense<0.000000e+00> : vector<1x32xf32>
    %256 = tpu.matmul %255, %108, %cst_105 {dimension_numbers = #tpu.dot_dimension_numbers<[1], [0], [0], [1], [0, 0, 1, 1], [], []>} : vector<1x32xf32>, vector<32x32xf32>, vector<1x32xf32> -> vector<1x32xf32>
    %257 = math.tanh %256 : vector<1x32xf32>
    %258 = vector.broadcast %257 : vector<1x32xf32> to vector<8x32xf32>
    %259 = arith.mulf %231, %258 : vector<8x32xf32>
    %cst_106 = arith.constant dense<0.000000e+00> : vector<8xf32>
    %260 = vector.multi_reduction <add>, %259, %cst_106 [1] : vector<8x32xf32> to vector<8xf32>
    %261 = vector.shape_cast %260 : vector<8xf32> to vector<8x1xf32>
    %262 = arith.negf %261 : vector<8x1xf32>
    %263 = math.exp %262 : vector<8x1xf32>
    %cst_107 = arith.constant 1.000000e+00 : f32
    %264 = vector.broadcast %cst_107 : f32 to vector<8x1xf32>
    %265 = arith.addf %264, %263 : vector<8x1xf32>
    %266 = arith.divf %264, %265 : vector<8x1xf32>
    %267 = vector.broadcast %266 : vector<8x1xf32> to vector<8x32xf32>
    %268 = arith.mulf %267, %231 : vector<8x32xf32>
    %cst_108 = arith.constant dense<0.000000e+00> : vector<32xf32>
    %269 = vector.multi_reduction <add>, %268, %cst_108 [0] : vector<8x32xf32> to vector<32xf32>
    %270 = vector.shape_cast %269 : vector<32xf32> to vector<1x32xf32>
    %c1_109 = arith.constant 1 : index
    %c0_110 = arith.constant 0 : index
    %c0_111 = arith.constant 0 : index
    %271 = vector.load %arg4[%c1_109, %c0_110, %c0_111] : memref<10x32x32xf32, #tpu.memory_space<vmem>>, vector<1x32x32xf32>
    %272 = vector.shape_cast %271 : vector<1x32x32xf32> to vector<32x32xf32>
    %c2 = arith.constant 2 : index
    %c0_112 = arith.constant 0 : index
    %273 = vector.load %arg5[%c2, %c0_112] : memref<4x32xf32, #tpu.memory_space<vmem>>, vector<1x32xf32>
    %c1_113 = arith.constant 1 : index
    %c0_114 = arith.constant 0 : index
    %274 = vector.load %arg6[%c1_113, %c0_114] : memref<3x32xf32, #tpu.memory_space<vmem>>, vector<1x32xf32>
    %c4 = arith.constant 4 : index
    %c0_115 = arith.constant 0 : index
    %c0_116 = arith.constant 0 : index
    %275 = vector.load %arg4[%c4, %c0_115, %c0_116] : memref<10x32x32xf32, #tpu.memory_space<vmem>>, vector<1x32x32xf32>
    %276 = vector.shape_cast %275 : vector<1x32x32xf32> to vector<32x32xf32>
    %c8 = arith.constant 8 : index
    %c0_117 = arith.constant 0 : index
    %c0_118 = arith.constant 0 : index
    %277 = vector.load %arg4[%c8, %c0_117, %c0_118] : memref<10x32x32xf32, #tpu.memory_space<vmem>>, vector<1x32x32xf32>
    %278 = vector.shape_cast %277 : vector<1x32x32xf32> to vector<32x32xf32>
    %cst_119 = arith.constant dense<0.000000e+00> : vector<16x32xf32>
    %279 = tpu.matmul %232, %272, %cst_119 {dimension_numbers = #tpu.dot_dimension_numbers<[1], [0], [0], [1], [0, 0, 1, 1], [], []>} : vector<16x32xf32>, vector<32x32xf32>, vector<16x32xf32> -> vector<16x32xf32>
    %cst_120 = arith.constant dense<0.000000e+00> : vector<16xf32>
    %280 = vector.multi_reduction <add>, %203, %cst_120 [1] : vector<16x16xf32> to vector<16xf32>
    %281 = vector.shape_cast %280 : vector<16xf32> to vector<16x1xf32>
    %cst_121 = arith.constant dense<0.000000e+00> : vector<16xf32>
    %282 = vector.multi_reduction <add>, %203, %cst_121 [0] : vector<16x16xf32> to vector<16xf32>
    %283 = vector.shape_cast %282 : vector<16xf32> to vector<1x16xf32>
    %cst_122 = arith.constant 0.000000e+00 : f32
    %284 = vector.broadcast %cst_122 : f32 to vector<16x1xf32>
    %285 = arith.cmpf ogt, %281, %284 : vector<16x1xf32>
    %cst_123 = arith.constant 1.000000e+00 : f32
    %286 = vector.broadcast %cst_123 : f32 to vector<16x1xf32>
    %287 = arith.divf %286, %281 : vector<16x1xf32>
    %cst_124 = arith.constant 0.000000e+00 : f32
    %288 = vector.broadcast %cst_124 : f32 to vector<16x1xf32>
    %289 = arith.select %285, %287, %288 : vector<16x1xi1>, vector<16x1xf32>
    %cst_125 = arith.constant 0.000000e+00 : f32
    %290 = vector.broadcast %cst_125 : f32 to vector<1x16xf32>
    %291 = arith.cmpf ogt, %283, %290 : vector<1x16xf32>
    %cst_126 = arith.constant 1.000000e+00 : f32
    %292 = vector.broadcast %cst_126 : f32 to vector<1x16xf32>
    %293 = arith.divf %292, %283 : vector<1x16xf32>
    %cst_127 = arith.constant 0.000000e+00 : f32
    %294 = vector.broadcast %cst_127 : f32 to vector<1x16xf32>
    %295 = arith.select %291, %293, %294 : vector<1x16xi1>, vector<1x16xf32>
    %296 = vector.broadcast %295 : vector<1x16xf32> to vector<16x16xf32>
    %297 = arith.mulf %203, %296 : vector<16x16xf32>
    %298 = vector.broadcast %289 : vector<16x1xf32> to vector<16x16xf32>
    %299 = arith.mulf %203, %298 : vector<16x16xf32>
    %cst_128 = arith.constant dense<0.000000e+00> : vector<16x32xf32>
    %300 = tpu.matmul %297, %279, %cst_128 {dimension_numbers = #tpu.dot_dimension_numbers<[0], [0], [1], [1], [0, 1, 1, 1], [], []>} : vector<16x16xf32>, vector<16x32xf32>, vector<16x32xf32> -> vector<16x32xf32>
    %cst_129 = arith.constant dense<0.000000e+00> : vector<16x32xf32>
    %301 = tpu.matmul %299, %300, %cst_129 {dimension_numbers = #tpu.dot_dimension_numbers<[1], [0], [0], [1], [0, 0, 1, 1], [], []>} : vector<16x16xf32>, vector<16x32xf32>, vector<16x32xf32> -> vector<16x32xf32>
    %302 = vector.broadcast %273 : vector<1x32xf32> to vector<16x32xf32>
    %303 = arith.addf %301, %302 : vector<16x32xf32>
    %cst_130 = arith.constant 0.000000e+00 : f32
    %304 = vector.broadcast %cst_130 : f32 to vector<16x32xf32>
    %305 = arith.cmpf ogt, %303, %304 : vector<16x32xf32>
    %cst_131 = arith.constant 2.000000e-01 : f32
    %306 = vector.broadcast %cst_131 : f32 to vector<16x32xf32>
    %307 = arith.mulf %306, %303 : vector<16x32xf32>
    %308 = arith.select %305, %303, %307 : vector<16x32xi1>, vector<16x32xf32>
    %cst_132 = arith.constant dense<0.000000e+00> : vector<16x32xf32>
    %309 = tpu.matmul %297, %308, %cst_132 {dimension_numbers = #tpu.dot_dimension_numbers<[0], [0], [1], [1], [0, 1, 1, 1], [], []>} : vector<16x16xf32>, vector<16x32xf32>, vector<16x32xf32> -> vector<16x32xf32>
    %cst_133 = arith.constant dense<0.000000e+00> : vector<16x1xf32>
    %310 = tpu.matmul %309, %274, %cst_133 {dimension_numbers = #tpu.dot_dimension_numbers<[1], [1], [0], [0], [0, 0, 1, 0], [], []>} : vector<16x32xf32>, vector<1x32xf32>, vector<16x1xf32> -> vector<16x1xf32>
    %311 = vector.extract_strided_slice %4 {offsets = [0, 0], sizes = [16, 16], strides = [1, 1]} : vector<32x32xf32> to vector<16x16xf32>
    %cst_134 = arith.constant dense<0.000000e+00> : vector<1x16xf32>
    %312 = tpu.matmul %310, %311, %cst_134 {dimension_numbers = #tpu.dot_dimension_numbers<[0], [0], [1], [1], [0, 1, 1, 1], [], []>} : vector<16x1xf32>, vector<16x16xf32>, vector<1x16xf32> -> vector<1x16xf32>
    %313 = arith.negf %310 : vector<16x1xf32>
    %314 = math.exp %313 : vector<16x1xf32>
    %cst_135 = arith.constant 1.000000e+00 : f32
    %315 = vector.broadcast %cst_135 : f32 to vector<16x1xf32>
    %316 = arith.addf %315, %314 : vector<16x1xf32>
    %317 = arith.divf %315, %316 : vector<16x1xf32>
    %318 = tpu.iota {dimensions = array<i32: 0>} : vector<16x16xi32>
    %319 = tpu.iota {dimensions = array<i32: 1>} : vector<16x16xi32>
    %c8_i32 = arith.constant 8 : i32
    %320 = vector.broadcast %c8_i32 : i32 to vector<16x16xi32>
    %321 = arith.cmpi slt, %318, %320 : vector<16x16xi32>
    %c0_i32_136 = arith.constant 0 : i32
    %c1_i32_137 = arith.constant 1 : i32
    %322 = vector.broadcast %c0_i32_136 : i32 to vector<16x16xi32>
    %323 = vector.broadcast %c1_i32_137 : i32 to vector<16x16xi32>
    %324 = arith.select %321, %322, %323 : vector<16x16xi1>, vector<16x16xi32>
    %c8_i32_138 = arith.constant 8 : i32
    %325 = vector.broadcast %c8_i32_138 : i32 to vector<16x16xi32>
    %326 = arith.cmpi slt, %319, %325 : vector<16x16xi32>
    %c0_i32_139 = arith.constant 0 : i32
    %c1_i32_140 = arith.constant 1 : i32
    %327 = vector.broadcast %c0_i32_139 : i32 to vector<16x16xi32>
    %328 = vector.broadcast %c1_i32_140 : i32 to vector<16x16xi32>
    %329 = arith.select %326, %327, %328 : vector<16x16xi1>, vector<16x16xi32>
    %330 = arith.cmpi eq, %324, %329 : vector<16x16xi32>
    %331 = vector.broadcast %312 : vector<1x16xf32> to vector<16x16xf32>
    %332 = vector.broadcast %310 : vector<16x1xf32> to vector<16x16xf32>
    %333 = arith.cmpf ogt, %331, %332 : vector<16x16xf32>
    %334 = vector.broadcast %312 : vector<1x16xf32> to vector<16x16xf32>
    %335 = vector.broadcast %310 : vector<16x1xf32> to vector<16x16xf32>
    %336 = arith.cmpf oeq, %334, %335 : vector<16x16xf32>
    %337 = arith.cmpi slt, %319, %318 : vector<16x16xi32>
    %338 = arith.andi %336, %337 : vector<16x16xi1>
    %339 = arith.ori %333, %338 : vector<16x16xi1>
    %340 = arith.andi %330, %339 : vector<16x16xi1>
    %341 = arith.extui %340 : vector<16x16xi1> to vector<16x16xi32>
    %342 = arith.sitofp %341 : vector<16x16xi32> to vector<16x16xf32>
    %cst_141 = arith.constant dense<0.000000e+00> : vector<16xf32>
    %343 = vector.multi_reduction <add>, %342, %cst_141 [1] : vector<16x16xf32> to vector<16xf32>
    %344 = vector.shape_cast %343 : vector<16xf32> to vector<16x1xf32>
    %345 = tpu.iota {dimensions = array<i32: 0>} : vector<16x1xi32>
    %c8_i32_142 = arith.constant 8 : i32
    %346 = vector.broadcast %c8_i32_142 : i32 to vector<16x1xi32>
    %347 = arith.cmpi slt, %345, %346 : vector<16x1xi32>
    %cst_143 = arith.constant 4.000000e+00 : f32
    %cst_144 = arith.constant 4.000000e+00 : f32
    %348 = vector.broadcast %cst_143 : f32 to vector<16x1xf32>
    %349 = vector.broadcast %cst_144 : f32 to vector<16x1xf32>
    %350 = arith.select %347, %348, %349 : vector<16x1xi1>, vector<16x1xf32>
    %351 = arith.cmpf olt, %344, %350 : vector<16x1xf32>
    %352 = arith.extui %351 : vector<16x1xi1> to vector<16x1xi32>
    %353 = arith.sitofp %352 : vector<16x1xi32> to vector<16x1xf32>
    %cst_145 = arith.constant 0.000000e+00 : f32
    %cst_146 = arith.constant 4.000000e+00 : f32
    %354 = vector.broadcast %cst_145 : f32 to vector<16x1xf32>
    %355 = vector.broadcast %cst_146 : f32 to vector<16x1xf32>
    %356 = arith.select %347, %354, %355 : vector<16x1xi1>, vector<16x1xf32>
    %357 = arith.addf %344, %356 : vector<16x1xf32>
    %358 = tpu.iota {dimensions = array<i32: 1>} : vector<16x8xi32>
    %359 = arith.sitofp %358 : vector<16x8xi32> to vector<16x8xf32>
    %360 = vector.broadcast %357 : vector<16x1xf32> to vector<16x8xf32>
    %361 = arith.cmpf oeq, %360, %359 : vector<16x8xf32>
    %362 = arith.extui %361 : vector<16x8xi1> to vector<16x8xi32>
    %363 = arith.sitofp %362 : vector<16x8xi32> to vector<16x8xf32>
    %364 = vector.broadcast %353 : vector<16x1xf32> to vector<16x8xf32>
    %365 = arith.mulf %364, %363 : vector<16x8xf32>
    %366 = vector.broadcast %317 : vector<16x1xf32> to vector<16x8xf32>
    %367 = arith.mulf %365, %366 : vector<16x8xf32>
    %cst_147 = arith.constant dense<0.000000e+00> : vector<8x32xf32>
    %368 = tpu.matmul %367, %309, %cst_147 {dimension_numbers = #tpu.dot_dimension_numbers<[0], [0], [1], [1], [0, 1, 1, 1], [], []>} : vector<16x8xf32>, vector<16x32xf32>, vector<8x32xf32> -> vector<8x32xf32>
    %cst_148 = arith.constant dense<0.000000e+00> : vector<16x8xf32>
    %369 = tpu.matmul %203, %365, %cst_148 {dimension_numbers = #tpu.dot_dimension_numbers<[1], [0], [0], [1], [0, 0, 1, 1], [], []>} : vector<16x16xf32>, vector<16x8xf32>, vector<16x8xf32> -> vector<16x8xf32>
    %cst_149 = arith.constant dense<0.000000e+00> : vector<8x8xf32>
    %370 = tpu.matmul %369, %369, %cst_149 {dimension_numbers = #tpu.dot_dimension_numbers<[0], [0], [1], [1], [0, 1, 1, 1], [], []>} : vector<16x8xf32>, vector<16x8xf32>, vector<8x8xf32> -> vector<8x8xf32>
    %cst_150 = arith.constant 0.000000e+00 : f32
    %371 = vector.broadcast %cst_150 : f32 to vector<8x8xf32>
    %372 = arith.cmpf ogt, %370, %371 : vector<8x8xf32>
    %373 = arith.extui %372 : vector<8x8xi1> to vector<8x8xi32>
    %374 = arith.sitofp %373 : vector<8x8xi32> to vector<8x8xf32>
    %375 = vector.extract_strided_slice %368 {offsets = [0, 0], sizes = [4, 32], strides = [1, 1]} : vector<8x32xf32> to vector<4x32xf32>
    %376 = vector.extract_strided_slice %368 {offsets = [4, 0], sizes = [4, 32], strides = [1, 1]} : vector<8x32xf32> to vector<4x32xf32>
    %cst_151 = arith.constant dense<0.000000e+00> : vector<4x32xf32>
    %377 = tpu.matmul %375, %276, %cst_151 {dimension_numbers = #tpu.dot_dimension_numbers<[1], [0], [0], [1], [0, 0, 1, 1], [], []>} : vector<4x32xf32>, vector<32x32xf32>, vector<4x32xf32> -> vector<4x32xf32>
    %cst_152 = arith.constant dense<0.000000e+00> : vector<4x4xf32>
    %378 = tpu.matmul %377, %376, %cst_152 {dimension_numbers = #tpu.dot_dimension_numbers<[1], [1], [0], [0], [0, 0, 1, 0], [], []>} : vector<4x32xf32>, vector<4x32xf32>, vector<4x4xf32> -> vector<4x4xf32>
    %cst_153 = arith.constant dense<0xFF800000> : vector<4xf32>
    %379 = vector.multi_reduction <maximumf>, %378, %cst_153 [1] : vector<4x4xf32> to vector<4xf32>
    %cst_154 = arith.constant 0xFF800000 : f32
    %380 = vector.broadcast %cst_154 : f32 to vector<4xf32>
    %381 = arith.maximumf %380, %379 : vector<4xf32>
    %382 = vector.shape_cast %381 : vector<4xf32> to vector<4x1xf32>
    %383 = vector.broadcast %382 : vector<4x1xf32> to vector<4x4xf32>
    %384 = arith.subf %378, %383 : vector<4x4xf32>
    %385 = math.exp %384 : vector<4x4xf32>
    %cst_155 = arith.constant dense<0.000000e+00> : vector<4xf32>
    %386 = vector.multi_reduction <add>, %385, %cst_155 [1] : vector<4x4xf32> to vector<4xf32>
    %387 = vector.shape_cast %386 : vector<4xf32> to vector<4x1xf32>
    %388 = vector.broadcast %387 : vector<4x1xf32> to vector<4x4xf32>
    %389 = arith.divf %385, %388 : vector<4x4xf32>
    %cst_156 = arith.constant dense<0xFF800000> : vector<4xf32>
    %390 = vector.multi_reduction <maximumf>, %378, %cst_156 [0] : vector<4x4xf32> to vector<4xf32>
    %cst_157 = arith.constant 0xFF800000 : f32
    %391 = vector.broadcast %cst_157 : f32 to vector<4xf32>
    %392 = arith.maximumf %391, %390 : vector<4xf32>
    %393 = vector.shape_cast %392 : vector<4xf32> to vector<1x4xf32>
    %394 = vector.broadcast %393 : vector<1x4xf32> to vector<4x4xf32>
    %395 = arith.subf %378, %394 : vector<4x4xf32>
    %396 = math.exp %395 : vector<4x4xf32>
    %cst_158 = arith.constant dense<0.000000e+00> : vector<4xf32>
    %397 = vector.multi_reduction <add>, %396, %cst_158 [0] : vector<4x4xf32> to vector<4xf32>
    %398 = vector.shape_cast %397 : vector<4xf32> to vector<1x4xf32>
    %399 = vector.broadcast %398 : vector<1x4xf32> to vector<4x4xf32>
    %400 = arith.divf %396, %399 : vector<4x4xf32>
    %cst_159 = arith.constant dense<0.000000e+00> : vector<4x32xf32>
    %401 = tpu.matmul %389, %376, %cst_159 {dimension_numbers = #tpu.dot_dimension_numbers<[1], [0], [0], [1], [0, 0, 1, 1], [], []>} : vector<4x4xf32>, vector<4x32xf32>, vector<4x32xf32> -> vector<4x32xf32>
    %cst_160 = arith.constant dense<0.000000e+00> : vector<4x32xf32>
    %402 = tpu.matmul %400, %375, %cst_160 {dimension_numbers = #tpu.dot_dimension_numbers<[0], [0], [1], [1], [0, 1, 1, 1], [], []>} : vector<4x4xf32>, vector<4x32xf32>, vector<4x32xf32> -> vector<4x32xf32>
    %403 = tpu.concatenate %401, %402 in 0 : vector<4x32xf32>, vector<4x32xf32> -> vector<8x32xf32>
    %cst_161 = arith.constant dense<0.000000e+00> : vector<32xf32>
    %404 = vector.multi_reduction <add>, %401, %cst_161 [0] : vector<4x32xf32> to vector<32xf32>
    %405 = vector.shape_cast %404 : vector<32xf32> to vector<1x32xf32>
    %cst_162 = arith.constant 4.000000e+00 : f32
    %406 = vector.broadcast %cst_162 : f32 to vector<1x32xf32>
    %407 = arith.divf %405, %406 : vector<1x32xf32>
    %cst_163 = arith.constant dense<0.000000e+00> : vector<1x32xf32>
    %408 = tpu.matmul %407, %278, %cst_163 {dimension_numbers = #tpu.dot_dimension_numbers<[1], [0], [0], [1], [0, 0, 1, 1], [], []>} : vector<1x32xf32>, vector<32x32xf32>, vector<1x32xf32> -> vector<1x32xf32>
    %409 = math.tanh %408 : vector<1x32xf32>
    %410 = vector.broadcast %409 : vector<1x32xf32> to vector<4x32xf32>
    %411 = arith.mulf %401, %410 : vector<4x32xf32>
    %cst_164 = arith.constant dense<0.000000e+00> : vector<4xf32>
    %412 = vector.multi_reduction <add>, %411, %cst_164 [1] : vector<4x32xf32> to vector<4xf32>
    %413 = vector.shape_cast %412 : vector<4xf32> to vector<4x1xf32>
    %414 = arith.negf %413 : vector<4x1xf32>
    %415 = math.exp %414 : vector<4x1xf32>
    %cst_165 = arith.constant 1.000000e+00 : f32
    %416 = vector.broadcast %cst_165 : f32 to vector<4x1xf32>
    %417 = arith.addf %416, %415 : vector<4x1xf32>
    %418 = arith.divf %416, %417 : vector<4x1xf32>
    %419 = vector.broadcast %418 : vector<4x1xf32> to vector<4x32xf32>
    %420 = arith.mulf %419, %401 : vector<4x32xf32>
    %cst_166 = arith.constant dense<0.000000e+00> : vector<32xf32>
    %421 = vector.multi_reduction <add>, %420, %cst_166 [0] : vector<4x32xf32> to vector<32xf32>
    %422 = vector.shape_cast %421 : vector<32xf32> to vector<1x32xf32>
    %cst_167 = arith.constant dense<0.000000e+00> : vector<32xf32>
    %423 = vector.multi_reduction <add>, %402, %cst_167 [0] : vector<4x32xf32> to vector<32xf32>
    %424 = vector.shape_cast %423 : vector<32xf32> to vector<1x32xf32>
    %cst_168 = arith.constant 4.000000e+00 : f32
    %425 = vector.broadcast %cst_168 : f32 to vector<1x32xf32>
    %426 = arith.divf %424, %425 : vector<1x32xf32>
    %cst_169 = arith.constant dense<0.000000e+00> : vector<1x32xf32>
    %427 = tpu.matmul %426, %278, %cst_169 {dimension_numbers = #tpu.dot_dimension_numbers<[1], [0], [0], [1], [0, 0, 1, 1], [], []>} : vector<1x32xf32>, vector<32x32xf32>, vector<1x32xf32> -> vector<1x32xf32>
    %428 = math.tanh %427 : vector<1x32xf32>
    %429 = vector.broadcast %428 : vector<1x32xf32> to vector<4x32xf32>
    %430 = arith.mulf %402, %429 : vector<4x32xf32>
    %cst_170 = arith.constant dense<0.000000e+00> : vector<4xf32>
    %431 = vector.multi_reduction <add>, %430, %cst_170 [1] : vector<4x32xf32> to vector<4xf32>
    %432 = vector.shape_cast %431 : vector<4xf32> to vector<4x1xf32>
    %433 = arith.negf %432 : vector<4x1xf32>
    %434 = math.exp %433 : vector<4x1xf32>
    %cst_171 = arith.constant 1.000000e+00 : f32
    %435 = vector.broadcast %cst_171 : f32 to vector<4x1xf32>
    %436 = arith.addf %435, %434 : vector<4x1xf32>
    %437 = arith.divf %435, %436 : vector<4x1xf32>
    %438 = vector.broadcast %437 : vector<4x1xf32> to vector<4x32xf32>
    %439 = arith.mulf %438, %402 : vector<4x32xf32>
    %cst_172 = arith.constant dense<0.000000e+00> : vector<32xf32>
    %440 = vector.multi_reduction <add>, %439, %cst_172 [0] : vector<4x32xf32> to vector<32xf32>
    %441 = vector.shape_cast %440 : vector<32xf32> to vector<1x32xf32>
    %c2_173 = arith.constant 2 : index
    %c0_174 = arith.constant 0 : index
    %c0_175 = arith.constant 0 : index
    %442 = vector.load %arg4[%c2_173, %c0_174, %c0_175] : memref<10x32x32xf32, #tpu.memory_space<vmem>>, vector<1x32x32xf32>
    %443 = vector.shape_cast %442 : vector<1x32x32xf32> to vector<32x32xf32>
    %c3_176 = arith.constant 3 : index
    %c0_177 = arith.constant 0 : index
    %444 = vector.load %arg5[%c3_176, %c0_177] : memref<4x32xf32, #tpu.memory_space<vmem>>, vector<1x32xf32>
    %c2_178 = arith.constant 2 : index
    %c0_179 = arith.constant 0 : index
    %445 = vector.load %arg6[%c2_178, %c0_179] : memref<3x32xf32, #tpu.memory_space<vmem>>, vector<1x32xf32>
    %c5 = arith.constant 5 : index
    %c0_180 = arith.constant 0 : index
    %c0_181 = arith.constant 0 : index
    %446 = vector.load %arg4[%c5, %c0_180, %c0_181] : memref<10x32x32xf32, #tpu.memory_space<vmem>>, vector<1x32x32xf32>
    %447 = vector.shape_cast %446 : vector<1x32x32xf32> to vector<32x32xf32>
    %c9 = arith.constant 9 : index
    %c0_182 = arith.constant 0 : index
    %c0_183 = arith.constant 0 : index
    %448 = vector.load %arg4[%c9, %c0_182, %c0_183] : memref<10x32x32xf32, #tpu.memory_space<vmem>>, vector<1x32x32xf32>
    %449 = vector.shape_cast %448 : vector<1x32x32xf32> to vector<32x32xf32>
    %cst_184 = arith.constant dense<0.000000e+00> : vector<8x32xf32>
    %450 = tpu.matmul %403, %443, %cst_184 {dimension_numbers = #tpu.dot_dimension_numbers<[1], [0], [0], [1], [0, 0, 1, 1], [], []>} : vector<8x32xf32>, vector<32x32xf32>, vector<8x32xf32> -> vector<8x32xf32>
    %cst_185 = arith.constant dense<0.000000e+00> : vector<8xf32>
    %451 = vector.multi_reduction <add>, %374, %cst_185 [1] : vector<8x8xf32> to vector<8xf32>
    %452 = vector.shape_cast %451 : vector<8xf32> to vector<8x1xf32>
    %cst_186 = arith.constant dense<0.000000e+00> : vector<8xf32>
    %453 = vector.multi_reduction <add>, %374, %cst_186 [0] : vector<8x8xf32> to vector<8xf32>
    %454 = vector.shape_cast %453 : vector<8xf32> to vector<1x8xf32>
    %cst_187 = arith.constant 0.000000e+00 : f32
    %455 = vector.broadcast %cst_187 : f32 to vector<8x1xf32>
    %456 = arith.cmpf ogt, %452, %455 : vector<8x1xf32>
    %cst_188 = arith.constant 1.000000e+00 : f32
    %457 = vector.broadcast %cst_188 : f32 to vector<8x1xf32>
    %458 = arith.divf %457, %452 : vector<8x1xf32>
    %cst_189 = arith.constant 0.000000e+00 : f32
    %459 = vector.broadcast %cst_189 : f32 to vector<8x1xf32>
    %460 = arith.select %456, %458, %459 : vector<8x1xi1>, vector<8x1xf32>
    %cst_190 = arith.constant 0.000000e+00 : f32
    %461 = vector.broadcast %cst_190 : f32 to vector<1x8xf32>
    %462 = arith.cmpf ogt, %454, %461 : vector<1x8xf32>
    %cst_191 = arith.constant 1.000000e+00 : f32
    %463 = vector.broadcast %cst_191 : f32 to vector<1x8xf32>
    %464 = arith.divf %463, %454 : vector<1x8xf32>
    %cst_192 = arith.constant 0.000000e+00 : f32
    %465 = vector.broadcast %cst_192 : f32 to vector<1x8xf32>
    %466 = arith.select %462, %464, %465 : vector<1x8xi1>, vector<1x8xf32>
    %467 = vector.broadcast %466 : vector<1x8xf32> to vector<8x8xf32>
    %468 = arith.mulf %374, %467 : vector<8x8xf32>
    %469 = vector.broadcast %460 : vector<8x1xf32> to vector<8x8xf32>
    %470 = arith.mulf %374, %469 : vector<8x8xf32>
    %cst_193 = arith.constant dense<0.000000e+00> : vector<8x32xf32>
    %471 = tpu.matmul %468, %450, %cst_193 {dimension_numbers = #tpu.dot_dimension_numbers<[0], [0], [1], [1], [0, 1, 1, 1], [], []>} : vector<8x8xf32>, vector<8x32xf32>, vector<8x32xf32> -> vector<8x32xf32>
    %cst_194 = arith.constant dense<0.000000e+00> : vector<8x32xf32>
    %472 = tpu.matmul %470, %471, %cst_194 {dimension_numbers = #tpu.dot_dimension_numbers<[1], [0], [0], [1], [0, 0, 1, 1], [], []>} : vector<8x8xf32>, vector<8x32xf32>, vector<8x32xf32> -> vector<8x32xf32>
    %473 = vector.broadcast %444 : vector<1x32xf32> to vector<8x32xf32>
    %474 = arith.addf %472, %473 : vector<8x32xf32>
    %cst_195 = arith.constant 0.000000e+00 : f32
    %475 = vector.broadcast %cst_195 : f32 to vector<8x32xf32>
    %476 = arith.cmpf ogt, %474, %475 : vector<8x32xf32>
    %cst_196 = arith.constant 2.000000e-01 : f32
    %477 = vector.broadcast %cst_196 : f32 to vector<8x32xf32>
    %478 = arith.mulf %477, %474 : vector<8x32xf32>
    %479 = arith.select %476, %474, %478 : vector<8x32xi1>, vector<8x32xf32>
    %cst_197 = arith.constant dense<0.000000e+00> : vector<8x32xf32>
    %480 = tpu.matmul %468, %479, %cst_197 {dimension_numbers = #tpu.dot_dimension_numbers<[0], [0], [1], [1], [0, 1, 1, 1], [], []>} : vector<8x8xf32>, vector<8x32xf32>, vector<8x32xf32> -> vector<8x32xf32>
    %cst_198 = arith.constant dense<0.000000e+00> : vector<8x1xf32>
    %481 = tpu.matmul %480, %445, %cst_198 {dimension_numbers = #tpu.dot_dimension_numbers<[1], [1], [0], [0], [0, 0, 1, 0], [], []>} : vector<8x32xf32>, vector<1x32xf32>, vector<8x1xf32> -> vector<8x1xf32>
    %482 = vector.extract_strided_slice %4 {offsets = [0, 0], sizes = [8, 8], strides = [1, 1]} : vector<32x32xf32> to vector<8x8xf32>
    %cst_199 = arith.constant dense<0.000000e+00> : vector<1x8xf32>
    %483 = tpu.matmul %481, %482, %cst_199 {dimension_numbers = #tpu.dot_dimension_numbers<[0], [0], [1], [1], [0, 1, 1, 1], [], []>} : vector<8x1xf32>, vector<8x8xf32>, vector<1x8xf32> -> vector<1x8xf32>
    %484 = arith.negf %481 : vector<8x1xf32>
    %485 = math.exp %484 : vector<8x1xf32>
    %cst_200 = arith.constant 1.000000e+00 : f32
    %486 = vector.broadcast %cst_200 : f32 to vector<8x1xf32>
    %487 = arith.addf %486, %485 : vector<8x1xf32>
    %488 = arith.divf %486, %487 : vector<8x1xf32>
    %489 = tpu.iota {dimensions = array<i32: 0>} : vector<8x8xi32>
    %490 = tpu.iota {dimensions = array<i32: 1>} : vector<8x8xi32>
    %c4_i32 = arith.constant 4 : i32
    %491 = vector.broadcast %c4_i32 : i32 to vector<8x8xi32>
    %492 = arith.cmpi slt, %489, %491 : vector<8x8xi32>
    %c0_i32_201 = arith.constant 0 : i32
    %c1_i32_202 = arith.constant 1 : i32
    %493 = vector.broadcast %c0_i32_201 : i32 to vector<8x8xi32>
    %494 = vector.broadcast %c1_i32_202 : i32 to vector<8x8xi32>
    %495 = arith.select %492, %493, %494 : vector<8x8xi1>, vector<8x8xi32>
    %c4_i32_203 = arith.constant 4 : i32
    %496 = vector.broadcast %c4_i32_203 : i32 to vector<8x8xi32>
    %497 = arith.cmpi slt, %490, %496 : vector<8x8xi32>
    %c0_i32_204 = arith.constant 0 : i32
    %c1_i32_205 = arith.constant 1 : i32
    %498 = vector.broadcast %c0_i32_204 : i32 to vector<8x8xi32>
    %499 = vector.broadcast %c1_i32_205 : i32 to vector<8x8xi32>
    %500 = arith.select %497, %498, %499 : vector<8x8xi1>, vector<8x8xi32>
    %501 = arith.cmpi eq, %495, %500 : vector<8x8xi32>
    %502 = vector.broadcast %483 : vector<1x8xf32> to vector<8x8xf32>
    %503 = vector.broadcast %481 : vector<8x1xf32> to vector<8x8xf32>
    %504 = arith.cmpf ogt, %502, %503 : vector<8x8xf32>
    %505 = vector.broadcast %483 : vector<1x8xf32> to vector<8x8xf32>
    %506 = vector.broadcast %481 : vector<8x1xf32> to vector<8x8xf32>
    %507 = arith.cmpf oeq, %505, %506 : vector<8x8xf32>
    %508 = arith.cmpi slt, %490, %489 : vector<8x8xi32>
    %509 = arith.andi %507, %508 : vector<8x8xi1>
    %510 = arith.ori %504, %509 : vector<8x8xi1>
    %511 = arith.andi %501, %510 : vector<8x8xi1>
    %512 = arith.extui %511 : vector<8x8xi1> to vector<8x8xi32>
    %513 = arith.sitofp %512 : vector<8x8xi32> to vector<8x8xf32>
    %cst_206 = arith.constant dense<0.000000e+00> : vector<8xf32>
    %514 = vector.multi_reduction <add>, %513, %cst_206 [1] : vector<8x8xf32> to vector<8xf32>
    %515 = vector.shape_cast %514 : vector<8xf32> to vector<8x1xf32>
    %516 = tpu.iota {dimensions = array<i32: 0>} : vector<8x1xi32>
    %c4_i32_207 = arith.constant 4 : i32
    %517 = vector.broadcast %c4_i32_207 : i32 to vector<8x1xi32>
    %518 = arith.cmpi slt, %516, %517 : vector<8x1xi32>
    %cst_208 = arith.constant 2.000000e+00 : f32
    %cst_209 = arith.constant 2.000000e+00 : f32
    %519 = vector.broadcast %cst_208 : f32 to vector<8x1xf32>
    %520 = vector.broadcast %cst_209 : f32 to vector<8x1xf32>
    %521 = arith.select %518, %519, %520 : vector<8x1xi1>, vector<8x1xf32>
    %522 = arith.cmpf olt, %515, %521 : vector<8x1xf32>
    %523 = arith.extui %522 : vector<8x1xi1> to vector<8x1xi32>
    %524 = arith.sitofp %523 : vector<8x1xi32> to vector<8x1xf32>
    %cst_210 = arith.constant 0.000000e+00 : f32
    %cst_211 = arith.constant 2.000000e+00 : f32
    %525 = vector.broadcast %cst_210 : f32 to vector<8x1xf32>
    %526 = vector.broadcast %cst_211 : f32 to vector<8x1xf32>
    %527 = arith.select %518, %525, %526 : vector<8x1xi1>, vector<8x1xf32>
    %528 = arith.addf %515, %527 : vector<8x1xf32>
    %529 = tpu.iota {dimensions = array<i32: 1>} : vector<8x4xi32>
    %530 = arith.sitofp %529 : vector<8x4xi32> to vector<8x4xf32>
    %531 = vector.broadcast %528 : vector<8x1xf32> to vector<8x4xf32>
    %532 = arith.cmpf oeq, %531, %530 : vector<8x4xf32>
    %533 = arith.extui %532 : vector<8x4xi1> to vector<8x4xi32>
    %534 = arith.sitofp %533 : vector<8x4xi32> to vector<8x4xf32>
    %535 = vector.broadcast %524 : vector<8x1xf32> to vector<8x4xf32>
    %536 = arith.mulf %535, %534 : vector<8x4xf32>
    %537 = vector.broadcast %488 : vector<8x1xf32> to vector<8x4xf32>
    %538 = arith.mulf %536, %537 : vector<8x4xf32>
    %cst_212 = arith.constant dense<0.000000e+00> : vector<4x32xf32>
    %539 = tpu.matmul %538, %480, %cst_212 {dimension_numbers = #tpu.dot_dimension_numbers<[0], [0], [1], [1], [0, 1, 1, 1], [], []>} : vector<8x4xf32>, vector<8x32xf32>, vector<4x32xf32> -> vector<4x32xf32>
    %540 = vector.extract_strided_slice %539 {offsets = [0, 0], sizes = [2, 32], strides = [1, 1]} : vector<4x32xf32> to vector<2x32xf32>
    %541 = vector.extract_strided_slice %539 {offsets = [2, 0], sizes = [2, 32], strides = [1, 1]} : vector<4x32xf32> to vector<2x32xf32>
    %cst_213 = arith.constant dense<0.000000e+00> : vector<2x32xf32>
    %542 = tpu.matmul %540, %447, %cst_213 {dimension_numbers = #tpu.dot_dimension_numbers<[1], [0], [0], [1], [0, 0, 1, 1], [], []>} : vector<2x32xf32>, vector<32x32xf32>, vector<2x32xf32> -> vector<2x32xf32>
    %cst_214 = arith.constant dense<0.000000e+00> : vector<2x2xf32>
    %543 = tpu.matmul %542, %541, %cst_214 {dimension_numbers = #tpu.dot_dimension_numbers<[1], [1], [0], [0], [0, 0, 1, 0], [], []>} : vector<2x32xf32>, vector<2x32xf32>, vector<2x2xf32> -> vector<2x2xf32>
    %cst_215 = arith.constant dense<0xFF800000> : vector<2xf32>
    %544 = vector.multi_reduction <maximumf>, %543, %cst_215 [1] : vector<2x2xf32> to vector<2xf32>
    %cst_216 = arith.constant 0xFF800000 : f32
    %545 = vector.broadcast %cst_216 : f32 to vector<2xf32>
    %546 = arith.maximumf %545, %544 : vector<2xf32>
    %547 = vector.shape_cast %546 : vector<2xf32> to vector<2x1xf32>
    %548 = vector.broadcast %547 : vector<2x1xf32> to vector<2x2xf32>
    %549 = arith.subf %543, %548 : vector<2x2xf32>
    %550 = math.exp %549 : vector<2x2xf32>
    %cst_217 = arith.constant dense<0.000000e+00> : vector<2xf32>
    %551 = vector.multi_reduction <add>, %550, %cst_217 [1] : vector<2x2xf32> to vector<2xf32>
    %552 = vector.shape_cast %551 : vector<2xf32> to vector<2x1xf32>
    %553 = vector.broadcast %552 : vector<2x1xf32> to vector<2x2xf32>
    %554 = arith.divf %550, %553 : vector<2x2xf32>
    %cst_218 = arith.constant dense<0xFF800000> : vector<2xf32>
    %555 = vector.multi_reduction <maximumf>, %543, %cst_218 [0] : vector<2x2xf32> to vector<2xf32>
    %cst_219 = arith.constant 0xFF800000 : f32
    %556 = vector.broadcast %cst_219 : f32 to vector<2xf32>
    %557 = arith.maximumf %556, %555 : vector<2xf32>
    %558 = vector.shape_cast %557 : vector<2xf32> to vector<1x2xf32>
    %559 = vector.broadcast %558 : vector<1x2xf32> to vector<2x2xf32>
    %560 = arith.subf %543, %559 : vector<2x2xf32>
    %561 = math.exp %560 : vector<2x2xf32>
    %cst_220 = arith.constant dense<0.000000e+00> : vector<2xf32>
    %562 = vector.multi_reduction <add>, %561, %cst_220 [0] : vector<2x2xf32> to vector<2xf32>
    %563 = vector.shape_cast %562 : vector<2xf32> to vector<1x2xf32>
    %564 = vector.broadcast %563 : vector<1x2xf32> to vector<2x2xf32>
    %565 = arith.divf %561, %564 : vector<2x2xf32>
    %cst_221 = arith.constant dense<0.000000e+00> : vector<2x32xf32>
    %566 = tpu.matmul %554, %541, %cst_221 {dimension_numbers = #tpu.dot_dimension_numbers<[1], [0], [0], [1], [0, 0, 1, 1], [], []>} : vector<2x2xf32>, vector<2x32xf32>, vector<2x32xf32> -> vector<2x32xf32>
    %cst_222 = arith.constant dense<0.000000e+00> : vector<2x32xf32>
    %567 = tpu.matmul %565, %540, %cst_222 {dimension_numbers = #tpu.dot_dimension_numbers<[0], [0], [1], [1], [0, 1, 1, 1], [], []>} : vector<2x2xf32>, vector<2x32xf32>, vector<2x32xf32> -> vector<2x32xf32>
    %cst_223 = arith.constant dense<0.000000e+00> : vector<32xf32>
    %568 = vector.multi_reduction <add>, %566, %cst_223 [0] : vector<2x32xf32> to vector<32xf32>
    %569 = vector.shape_cast %568 : vector<32xf32> to vector<1x32xf32>
    %cst_224 = arith.constant 2.000000e+00 : f32
    %570 = vector.broadcast %cst_224 : f32 to vector<1x32xf32>
    %571 = arith.divf %569, %570 : vector<1x32xf32>
    %cst_225 = arith.constant dense<0.000000e+00> : vector<1x32xf32>
    %572 = tpu.matmul %571, %449, %cst_225 {dimension_numbers = #tpu.dot_dimension_numbers<[1], [0], [0], [1], [0, 0, 1, 1], [], []>} : vector<1x32xf32>, vector<32x32xf32>, vector<1x32xf32> -> vector<1x32xf32>
    %573 = math.tanh %572 : vector<1x32xf32>
    %574 = vector.broadcast %573 : vector<1x32xf32> to vector<2x32xf32>
    %575 = arith.mulf %566, %574 : vector<2x32xf32>
    %cst_226 = arith.constant dense<0.000000e+00> : vector<2xf32>
    %576 = vector.multi_reduction <add>, %575, %cst_226 [1] : vector<2x32xf32> to vector<2xf32>
    %577 = vector.shape_cast %576 : vector<2xf32> to vector<2x1xf32>
    %578 = arith.negf %577 : vector<2x1xf32>
    %579 = math.exp %578 : vector<2x1xf32>
    %cst_227 = arith.constant 1.000000e+00 : f32
    %580 = vector.broadcast %cst_227 : f32 to vector<2x1xf32>
    %581 = arith.addf %580, %579 : vector<2x1xf32>
    %582 = arith.divf %580, %581 : vector<2x1xf32>
    %583 = vector.broadcast %582 : vector<2x1xf32> to vector<2x32xf32>
    %584 = arith.mulf %583, %566 : vector<2x32xf32>
    %cst_228 = arith.constant dense<0.000000e+00> : vector<32xf32>
    %585 = vector.multi_reduction <add>, %584, %cst_228 [0] : vector<2x32xf32> to vector<32xf32>
    %586 = vector.shape_cast %585 : vector<32xf32> to vector<1x32xf32>
    %cst_229 = arith.constant dense<0.000000e+00> : vector<32xf32>
    %587 = vector.multi_reduction <add>, %567, %cst_229 [0] : vector<2x32xf32> to vector<32xf32>
    %588 = vector.shape_cast %587 : vector<32xf32> to vector<1x32xf32>
    %cst_230 = arith.constant 2.000000e+00 : f32
    %589 = vector.broadcast %cst_230 : f32 to vector<1x32xf32>
    %590 = arith.divf %588, %589 : vector<1x32xf32>
    %cst_231 = arith.constant dense<0.000000e+00> : vector<1x32xf32>
    %591 = tpu.matmul %590, %449, %cst_231 {dimension_numbers = #tpu.dot_dimension_numbers<[1], [0], [0], [1], [0, 0, 1, 1], [], []>} : vector<1x32xf32>, vector<32x32xf32>, vector<1x32xf32> -> vector<1x32xf32>
    %592 = math.tanh %591 : vector<1x32xf32>
    %593 = vector.broadcast %592 : vector<1x32xf32> to vector<2x32xf32>
    %594 = arith.mulf %567, %593 : vector<2x32xf32>
    %cst_232 = arith.constant dense<0.000000e+00> : vector<2xf32>
    %595 = vector.multi_reduction <add>, %594, %cst_232 [1] : vector<2x32xf32> to vector<2xf32>
    %596 = vector.shape_cast %595 : vector<2xf32> to vector<2x1xf32>
    %597 = arith.negf %596 : vector<2x1xf32>
    %598 = math.exp %597 : vector<2x1xf32>
    %cst_233 = arith.constant 1.000000e+00 : f32
    %599 = vector.broadcast %cst_233 : f32 to vector<2x1xf32>
    %600 = arith.addf %599, %598 : vector<2x1xf32>
    %601 = arith.divf %599, %600 : vector<2x1xf32>
    %602 = vector.broadcast %601 : vector<2x1xf32> to vector<2x32xf32>
    %603 = arith.mulf %602, %567 : vector<2x32xf32>
    %cst_234 = arith.constant dense<0.000000e+00> : vector<32xf32>
    %604 = vector.multi_reduction <add>, %603, %cst_234 [0] : vector<2x32xf32> to vector<32xf32>
    %605 = vector.shape_cast %604 : vector<32xf32> to vector<1x32xf32>
    %606 = tpu.concatenate %70, %90, %251, %270, %422, %441, %586, %605 in 1 : vector<1x32xf32>, vector<1x32xf32>, vector<1x32xf32>, vector<1x32xf32>, vector<1x32xf32>, vector<1x32xf32>, vector<1x32xf32>, vector<1x32xf32> -> vector<1x256xf32>
    %c0_235 = arith.constant 0 : index
    %c0_236 = arith.constant 0 : index
    %607 = vector.load %arg7[%c0_235, %c0_236] : memref<480x128xf32, #tpu.memory_space<vmem>>, vector<256x128xf32>
    %cst_237 = arith.constant dense<0.000000e+00> : vector<1x128xf32>
    %608 = tpu.matmul %606, %607, %cst_237 {dimension_numbers = #tpu.dot_dimension_numbers<[1], [0], [0], [1], [0, 0, 1, 1], [], []>} : vector<1x256xf32>, vector<256x128xf32>, vector<1x128xf32> -> vector<1x128xf32>
    %c0_238 = arith.constant 0 : index
    %c0_239 = arith.constant 0 : index
    %609 = vector.load %arg8[%c0_238, %c0_239] : memref<4x128xf32, #tpu.memory_space<vmem>>, vector<1x128xf32>
    %610 = arith.addf %608, %609 : vector<1x128xf32>
    %cst_240 = arith.constant 0.000000e+00 : f32
    %611 = vector.broadcast %cst_240 : f32 to vector<1x128xf32>
    %612 = arith.maximumf %610, %611 : vector<1x128xf32>
    %c256 = arith.constant 256 : index
    %c0_241 = arith.constant 0 : index
    %613 = vector.load %arg7[%c256, %c0_241] : memref<480x128xf32, #tpu.memory_space<vmem>>, vector<128x64xf32>
    %cst_242 = arith.constant dense<0.000000e+00> : vector<1x64xf32>
    %614 = tpu.matmul %612, %613, %cst_242 {dimension_numbers = #tpu.dot_dimension_numbers<[1], [0], [0], [1], [0, 0, 1, 1], [], []>} : vector<1x128xf32>, vector<128x64xf32>, vector<1x64xf32> -> vector<1x64xf32>
    %c1_243 = arith.constant 1 : index
    %c0_244 = arith.constant 0 : index
    %615 = vector.load %arg8[%c1_243, %c0_244] : memref<4x128xf32, #tpu.memory_space<vmem>>, vector<1x64xf32>
    %616 = arith.addf %614, %615 : vector<1x64xf32>
    %cst_245 = arith.constant 0.000000e+00 : f32
    %617 = vector.broadcast %cst_245 : f32 to vector<1x64xf32>
    %618 = arith.maximumf %616, %617 : vector<1x64xf32>
    %c384 = arith.constant 384 : index
    %c0_246 = arith.constant 0 : index
    %619 = vector.load %arg7[%c384, %c0_246] : memref<480x128xf32, #tpu.memory_space<vmem>>, vector<64x32xf32>
    %cst_247 = arith.constant dense<0.000000e+00> : vector<1x32xf32>
    %620 = tpu.matmul %618, %619, %cst_247 {dimension_numbers = #tpu.dot_dimension_numbers<[1], [0], [0], [1], [0, 0, 1, 1], [], []>} : vector<1x64xf32>, vector<64x32xf32>, vector<1x32xf32> -> vector<1x32xf32>
    %c2_248 = arith.constant 2 : index
    %c0_249 = arith.constant 0 : index
    %621 = vector.load %arg8[%c2_248, %c0_249] : memref<4x128xf32, #tpu.memory_space<vmem>>, vector<1x32xf32>
    %622 = arith.addf %620, %621 : vector<1x32xf32>
    %cst_250 = arith.constant 0.000000e+00 : f32
    %623 = vector.broadcast %cst_250 : f32 to vector<1x32xf32>
    %624 = arith.maximumf %622, %623 : vector<1x32xf32>
    %c448 = arith.constant 448 : index
    %c0_251 = arith.constant 0 : index
    %625 = vector.load %arg7[%c448, %c0_251] : memref<480x128xf32, #tpu.memory_space<vmem>>, vector<32x1xf32>
    %cst_252 = arith.constant dense<0.000000e+00> : vector<1x1xf32>
    %626 = tpu.matmul %624, %625, %cst_252 {dimension_numbers = #tpu.dot_dimension_numbers<[1], [0], [0], [1], [0, 0, 1, 1], [], []>} : vector<1x32xf32>, vector<32x1xf32>, vector<1x1xf32> -> vector<1x1xf32>
    %c3_253 = arith.constant 3 : index
    %c0_254 = arith.constant 0 : index
    %627 = vector.load %arg8[%c3_253, %c0_254] : memref<4x128xf32, #tpu.memory_space<vmem>>, vector<1x1xf32>
    %628 = arith.addf %626, %627 : vector<1x1xf32>
    %629 = arith.negf %628 : vector<1x1xf32>
    %630 = math.exp %629 : vector<1x1xf32>
    %cst_255 = arith.constant 1.000000e+00 : f32
    %631 = vector.broadcast %cst_255 : f32 to vector<1x1xf32>
    %632 = arith.addf %631, %630 : vector<1x1xf32>
    %633 = arith.divf %631, %632 : vector<1x1xf32>
    %634 = vector.shape_cast %633 : vector<1x1xf32> to vector<1x1xf32>
    %635 = vector.broadcast %634 : vector<1x1xf32> to vector<1x128xf32>
    %c0_256 = arith.constant 0 : index
    %c0_257 = arith.constant 0 : index
    %c0_258 = arith.constant 0 : index
    %636 = vector.load %arg9[%c0_256, %c0_257, %c0_258] : memref<1x1x128xf32, #tpu.memory_space<vmem>>, vector<1x1x128xf32>
    %637 = vector.shape_cast %636 : vector<1x1x128xf32> to vector<1x128xf32>
    %638 = vector.shape_cast %635 : vector<1x128xf32> to vector<1x1x128xf32>
    tpu.vector_store %arg9[%c0_256, %c0_257, %c0_258], %638 {strides = array<i32>} : memref<1x1x128xf32, #tpu.memory_space<vmem>>, vector<1x1x128xf32>,
    return
  }
  func.func @transform_0(%arg0: i32) -> (i32, i32, i32, i32) {
    %c0_i32 = arith.constant 0 : i32
    %c0_i32_0 = arith.constant 0 : i32
    %c0_i32_1 = arith.constant 0 : i32
    %c0_i32_2 = arith.constant 0 : i32
    return %arg0, %c0_i32, %c0_i32_0, %c0_i32_1 : i32, i32, i32, i32
  }
  func.func @transform_1(%arg0: i32) -> (i32, i32, i32, i32) {
    %c0_i32 = arith.constant 0 : i32
    %c0_i32_0 = arith.constant 0 : i32
    %c0_i32_1 = arith.constant 0 : i32
    %c0_i32_2 = arith.constant 0 : i32
    return %arg0, %c0_i32, %c0_i32_0, %c0_i32_1 : i32, i32, i32, i32
  }
  func.func @transform_2(%arg0: i32) -> (i32, i32) {
    %c0_i32 = arith.constant 0 : i32
    %c0_i32_0 = arith.constant 0 : i32
    %c0_i32_1 = arith.constant 0 : i32
    return %c0_i32, %c0_i32_0 : i32, i32
  }
  func.func @transform_3(%arg0: i32) -> (i32, i32, i32) {
    %c0_i32 = arith.constant 0 : i32
    %c0_i32_0 = arith.constant 0 : i32
    %c0_i32_1 = arith.constant 0 : i32
    %c0_i32_2 = arith.constant 0 : i32
    return %c0_i32, %c0_i32_0, %c0_i32_1 : i32, i32, i32
  }
  func.func @transform_4(%arg0: i32) -> (i32, i32) {
    %c0_i32 = arith.constant 0 : i32
    %c0_i32_0 = arith.constant 0 : i32
    %c0_i32_1 = arith.constant 0 : i32
    return %c0_i32, %c0_i32_0 : i32, i32
  }
  func.func @transform_5(%arg0: i32) -> (i32, i32) {
    %c0_i32 = arith.constant 0 : i32
    %c0_i32_0 = arith.constant 0 : i32
    %c0_i32_1 = arith.constant 0 : i32
    return %c0_i32, %c0_i32_0 : i32, i32
  }
  func.func @transform_6(%arg0: i32) -> (i32, i32) {
    %c0_i32 = arith.constant 0 : i32
    %c0_i32_0 = arith.constant 0 : i32
    %c0_i32_1 = arith.constant 0 : i32
    return %c0_i32, %c0_i32_0 : i32, i32
  }
  func.func @transform_7(%arg0: i32) -> (i32, i32) {
    %c0_i32 = arith.constant 0 : i32
    %c0_i32_0 = arith.constant 0 : i32
    %c0_i32_1 = arith.constant 0 : i32
    return %c0_i32, %c0_i32_0 : i32, i32
  }
  func.func @transform_8(%arg0: i32) -> (i32, i32, i32) {
    %c0_i32 = arith.constant 0 : i32
    %c0_i32_0 = arith.constant 0 : i32
    %c0_i32_1 = arith.constant 0 : i32
    return %arg0, %c0_i32, %c0_i32_0 : i32, i32, i32
  }
}

</mosaic_0001>

<llo_original>
// kernel: tpu_custom_call.1
$region0: #{tpu_custom_call.1}
  #allocation0 [shape = 'u32[]', space=smem, size = 0x4, offset = 0x4, fixed_abs, tag = 'smem constant byte address 0x4 - core index']
  #allocation1 [shape = 'u32[144,128]{1,0:T(1,128)}', space=vmem, size = 0x12000, scoped, tag = 'internal scratch']
  %s0 = inlined_call_operand.hbm [shape: f32[8,2,16,16], index: 0, kind: input, shape index: {}]
  %s1 = inlined_call_operand.vmem [shape: f32[8,2,16,8], index: 1, kind: input, shape index: {}]
  %s2 = inlined_call_operand.vmem [shape: f32[8,32], index: 2, kind: input, shape index: {}]
  %s3 = inlined_call_operand.vmem [shape: f32[10,32,32], index: 3, kind: input, shape index: {}]
  %s4 = inlined_call_operand.vmem [shape: f32[4,32], index: 4, kind: input, shape index: {}]
  %s5 = inlined_call_operand.vmem [shape: f32[3,32], index: 5, kind: input, shape index: {}]
  %s6 = inlined_call_operand.hbm [shape: f32[480,128], index: 6, kind: input, shape index: {}]
  %s7 = inlined_call_operand.vmem [shape: f32[4,128], index: 7, kind: input, shape index: {}]
  %s8 = inlined_call_operand.hbm [shape: f32[8,1,128], index: 8, kind: output, shape index: {}]
  %s9 = sld [smem:[#allocation0]]
  $region73: #{tpu_custom_call.1} parent=0
    _
  %s11 = ssub.s32 1, %s9
  %s12 = scalar_select 0, %s11, %s9
  $region1: #{tpu_custom_call.1} parent=0
    #allocation2 [shape = 'u8[32768]{0}', space=vmem, size = 0x8000, scoped, tag = 'input window, operand 0']
    #allocation3 [shape = 's32[2]{0}', space=sflag, size = 0x8, scoped, tag = 'scoped memory for tpu_custom_call.1']
    #allocation4 [shape = 's32[2]{0}', space=sflag, size = 0x8, scoped, tag = 'scoped memory for tpu_custom_call.1']
    #allocation5 [shape = 'u8[245760]{0}', space=vmem, size = 0x3c000, scoped, tag = 'input window, operand 6, single buffered']
    #allocation6 [shape = 's32[1]{0}', space=sflag, size = 0x4, scoped, tag = 'scoped memory for tpu_custom_call.1']
    #allocation7 [shape = 'u8[1024]{0}', space=vmem, size = 0x400, scoped, tag = 'output window, operand 0']
    %13 = vsyncpa [#allocation3], 0
    %s14 = scalar_lea.sflag [#allocation3], 1
    %15 = vsyncpa %s14, 0
    %16 = vsyncpa [#allocation6], 0
    %17 = vsyncpa [#allocation4], 0
    %s18 = scalar_lea.sflag [#allocation4], 1
    %19 = vsyncpa %s18, 0
    loop: start=0, step=1, limit=10
    $region2: #{tpu_custom_call.1} parent=1 // loop_pre_header
      _
    $region3: #{tpu_custom_call.1} parent=1 // loop_header
      %s21 = sphi 0, %s25
      %p22 = scmp.ge.s32.totalorder %s21, 10
      %s31 = sphi 0, %s33
      %s34 = sphi 0, %s31
      %s35 = sphi 0, %s34
      %s51 = sphi 0, %s35
      %s57 = sphi 0, %s59
      %s60 = sphi 0, %s57
      %s61 = sphi 0, %s60
      %s77 = sphi 0, %s61
      %s81 = sphi 0, %s81
      %s83 = sphi 0, %s81
      %s84 = sphi 0, %s83
      %s98 = sphi 0, %s84
      %s102 = sphi 0, %s102
      %s104 = sphi 0, %s102
      %s105 = sphi 0, %s104
      %s119 = sphi 0, %s105
      %s123 = sphi 0, %s123
      %s125 = sphi 0, %s123
      %s126 = sphi 0, %s125
      %s140 = sphi 0, %s126
      %s144 = sphi 0, %s144
      %s146 = sphi 0, %s144
      %s147 = sphi 0, %s146
      %s161 = sphi 0, %s147
      %s165 = sphi 0, %s165
      %s167 = sphi 0, %s165
      %s168 = sphi 0, %s167
      %s182 = sphi 0, %s168
      %s186 = sphi 0, %s186
      %s188 = sphi 0, %s186
      %s189 = sphi 0, %s188
      %s203 = sphi 0, %s189
      %s209 = sphi 0, %s211
      %s212 = sphi 0, %s209
      %s213 = sphi 0, %s212
      %s229 = sphi 0, %s213
    $region4: #{tpu_custom_call.1} parent=1 // loop_header_branch
      %24 = sbr.rel (%p22) target = $region8
    $region5: #{tpu_custom_call.1} parent=1 // loop_body
      %s26 = ssub.s32 %s21, 1
      %s27 = ssub.s32 %s21, 2
      %s28 = sadd.s32 %s21, 1
      %s29 = ssub.s32 %s21, %s28
      %p30 = scmp.eq.s32.totalorder %s29, 0
      %s32 = sadd.s32 %s31, 1
      %s33 = scalar_select %p30, %s31, %s32
      %p36 = pneg %p30
      %p37 = scmp.eq.s32.totalorder %s21, 7
      %p38 = por %p36, %p37
      %p39 = scmp.ne.s32.totalorder %s31, %s34
      %p40 = scmp.eq.s32.totalorder %s21, 0
      %p41 = por %p39, %p40
      %p42 = scmp.ne.s32.totalorder %s31, %s34
      %p43 = scmp.eq.s32.totalorder %s26, 7
      %p44 = por %p42, %p43
      %p45 = scmp.ne.s32.totalorder %s34, %s35
      %p46 = scmp.eq.s32.totalorder %s26, 0
      %p47 = por %p45, %p46
      %p48 = scmp.ne.s32.totalorder %s34, %s35
      %p49 = scmp.eq.s32.totalorder %s27, 7
      %p50 = por %p48, %p49
      %p52 = scmp.ne.s32.totalorder %s35, %s51
      %p53 = scmp.eq.s32.totalorder %s27, 0
      %p54 = por %p52, %p53
      %s55 = ssub.s32 %s21, %s28
      %p56 = scmp.eq.s32.totalorder %s55, 0
      %s58 = sadd.s32 %s57, 1
      %s59 = scalar_select %p56, %s57, %s58
      %p62 = pneg %p56
      %p63 = scmp.eq.s32.totalorder %s21, 7
      %p64 = por %p62, %p63
      %p65 = scmp.ne.s32.totalorder %s57, %s60
      %p66 = scmp.eq.s32.totalorder %s21, 0
      %p67 = por %p65, %p66
      %p68 = scmp.ne.s32.totalorder %s57, %s60
      %p69 = scmp.eq.s32.totalorder %s26, 7
      %p70 = por %p68, %p69
      %p71 = scmp.ne.s32.totalorder %s60, %s61
      %p72 = scmp.eq.s32.totalorder %s26, 0
      %p73 = por %p71, %p72
      %p74 = scmp.ne.s32.totalorder %s60, %s61
      %p75 = scmp.eq.s32.totalorder %s27, 7
      %p76 = por %p74, %p75
      %p78 = scmp.ne.s32.totalorder %s61, %s77
      %p79 = scmp.eq.s32.totalorder %s27, 0
      %p80 = por %p78, %p79
      %s82 = sadd.s32 %s81, 1
      %p85 = scmp.eq.s32.totalorder %s21, 7
      %p86 = scmp.ne.s32.totalorder %s81, %s83
      %p87 = scmp.eq.s32.totalorder %s21, 0
      %p88 = por %p86, %p87
      %p89 = scmp.ne.s32.totalorder %s81, %s83
      %p90 = scmp.eq.s32.totalorder %s26, 7
      %p91 = por %p89, %p90
      %p92 = scmp.ne.s32.totalorder %s83, %s84
      %p93 = scmp.eq.s32.totalorder %s26, 0
      %p94 = por %p92, %p93
      %p95 = scmp.ne.s32.totalorder %s83, %s84
      %p96 = scmp.eq.s32.totalorder %s27, 7
      %p97 = por %p95, %p96
      %p99 = scmp.ne.s32.totalorder %s84, %s98
      %p100 = scmp.eq.s32.totalorder %s27, 0
      %p101 = por %p99, %p100
      %s103 = sadd.s32 %s102, 1
      %p106 = scmp.eq.s32.totalorder %s21, 7
      %p107 = scmp.ne.s32.totalorder %s102, %s104
      %p108 = scmp.eq.s32.totalorder %s21, 0
      %p109 = por %p107, %p108
      %p110 = scmp.ne.s32.totalorder %s102, %s104
      %p111 = scmp.eq.s32.totalorder %s26, 7
      %p112 = por %p110, %p111
      %p113 = scmp.ne.s32.totalorder %s104, %s105
      %p114 = scmp.eq.s32.totalorder %s26, 0
      %p115 = por %p113, %p114
      %p116 = scmp.ne.s32.totalorder %s104, %s105
      %p117 = scmp.eq.s32.totalorder %s27, 7
      %p118 = por %p116, %p117
      %p120 = scmp.ne.s32.totalorder %s105, %s119
      %p121 = scmp.eq.s32.totalorder %s27, 0
      %p122 = por %p120, %p121
      %s124 = sadd.s32 %s123, 1
      %p127 = scmp.eq.s32.totalorder %s21, 7
      %p128 = scmp.ne.s32.totalorder %s123, %s125
      %p129 = scmp.eq.s32.totalorder %s21, 0
      %p130 = por %p128, %p129
      %p131 = scmp.ne.s32.totalorder %s123, %s125
      %p132 = scmp.eq.s32.totalorder %s26, 7
      %p133 = por %p131, %p132
      %p134 = scmp.ne.s32.totalorder %s125, %s126
      %p135 = scmp.eq.s32.totalorder %s26, 0
      %p136 = por %p134, %p135
      %p137 = scmp.ne.s32.totalorder %s125, %s126
      %p138 = scmp.eq.s32.totalorder %s27, 7
      %p139 = por %p137, %p138
      %p141 = scmp.ne.s32.totalorder %s126, %s140
      %p142 = scmp.eq.s32.totalorder %s27, 0
      %p143 = por %p141, %p142
      %s145 = sadd.s32 %s144, 1
      %p148 = scmp.eq.s32.totalorder %s21, 7
      %p149 = scmp.ne.s32.totalorder %s144, %s146
      %p150 = scmp.eq.s32.totalorder %s21, 0
      %p151 = por %p149, %p150
      %p152 = scmp.ne.s32.totalorder %s144, %s146
      %p153 = scmp.eq.s32.totalorder %s26, 7
      %p154 = por %p152, %p153
      %p155 = scmp.ne.s32.totalorder %s146, %s147
      %p156 = scmp.eq.s32.totalorder %s26, 0
      %p157 = por %p155, %p156
      %p158 = scmp.ne.s32.totalorder %s146, %s147
      %p159 = scmp.eq.s32.totalorder %s27, 7
      %p160 = por %p158, %p159
      %p162 = scmp.ne.s32.totalorder %s147, %s161
      %p163 = scmp.eq.s32.totalorder %s27, 0
      %p164 = por %p162, %p163
      %s166 = sadd.s32 %s165, 1
      %p169 = scmp.eq.s32.totalorder %s21, 7
      %p170 = scmp.ne.s32.totalorder %s165, %s167
      %p171 = scmp.eq.s32.totalorder %s21, 0
      %p172 = por %p170, %p171
      %p173 = scmp.ne.s32.totalorder %s165, %s167
      %p174 = scmp.eq.s32.totalorder %s26, 7
      %p175 = por %p173, %p174
      %p176 = scmp.ne.s32.totalorder %s167, %s168
      %p177 = scmp.eq.s32.totalorder %s26, 0
      %p178 = por %p176, %p177
      %p179 = scmp.ne.s32.totalorder %s167, %s168
      %p180 = scmp.eq.s32.totalorder %s27, 7
      %p181 = por %p179, %p180
      %p183 = scmp.ne.s32.totalorder %s168, %s182
      %p184 = scmp.eq.s32.totalorder %s27, 0
      %p185 = por %p183, %p184
      %s187 = sadd.s32 %s186, 1
      %p190 = scmp.eq.s32.totalorder %s21, 7
      %p191 = scmp.ne.s32.totalorder %s186, %s188
      %p192 = scmp.eq.s32.totalorder %s21, 0
      %p193 = por %p191, %p192
      %p194 = scmp.ne.s32.totalorder %s186, %s188
      %p195 = scmp.eq.s32.totalorder %s26, 7
      %p196 = por %p194, %p195
      %p197 = scmp.ne.s32.totalorder %s188, %s189
      %p198 = scmp.eq.s32.totalorder %s26, 0
      %p199 = por %p197, %p198
      %p200 = scmp.ne.s32.totalorder %s188, %s189
      %p201 = scmp.eq.s32.totalorder %s27, 7
      %p202 = por %p200, %p201
      %p204 = scmp.ne.s32.totalorder %s189, %s203
      %p205 = scmp.eq.s32.totalorder %s27, 0
      %p206 = por %p204, %p205
      %s207 = ssub.s32 %s21, %s28
      %p208 = scmp.eq.s32.totalorder %s207, 0
      %s210 = sadd.s32 %s209, 1
      %s211 = scalar_select %p208, %s209, %s210
      %p214 = pneg %p208
      %p215 = scmp.eq.s32.totalorder %s21, 7
      %p216 = por %p214, %p215
      %p217 = scmp.ne.s32.totalorder %s209, %s212
      %p218 = scmp.eq.s32.totalorder %s21, 0
      %p219 = por %p217, %p218
      %p220 = scmp.ne.s32.totalorder %s209, %s212
      %p221 = scmp.eq.s32.totalorder %s26, 7
      %p222 = por %p220, %p221
      %p223 = scmp.ne.s32.totalorder %s212, %s213
      %p224 = scmp.eq.s32.totalorder %s26, 0
      %p225 = por %p223, %p224
      %p226 = scmp.ne.s32.totalorder %s212, %s213
      %p227 = scmp.eq.s32.totalorder %s27, 7
      %p228 = por %p226, %p227
      %p230 = scmp.ne.s32.totalorder %s213, %s229
      %p231 = scmp.eq.s32.totalorder %s27, 0
      %p232 = por %p230, %p231
      %p233 = scmp.le.s32.totalorder 1, %s21
      %p234 = scmp.lt.s32.totalorder %s21, 9
      %p235 = pnand %p233, %p234
      %p236 = pneg %p235
      // Predicated region
      $region9: #{tpu_custom_call.1} parent=5 // pred_check
        _
      $region10: #{tpu_custom_call.1} parent=5 // pred_check_branch
        %238 = sbr.rel (%p235) target = $region12
      $region11: #{tpu_custom_call.1} parent=5 // pred_region
        %s239 = ssub.s32 %s21, 1
        // Predicated region
        $region13: #{tpu_custom_call.1} parent=11 // pred_check
          %p240 = pneg %p94
        $region14: #{tpu_custom_call.1} parent=11 // pred_check_branch
          %242 = sbr.rel (%p240) target = $region16
        $region15: #{tpu_custom_call.1} parent=11 // pred_region
          _
        $region16: #{tpu_custom_call.1} parent=11 // pred_fallthru
          _
        // Predicated region
        $region17: #{tpu_custom_call.1} parent=11 // pred_check
          %p243 = pneg %p115
        $region18: #{tpu_custom_call.1} parent=11 // pred_check_branch
          %245 = sbr.rel (%p243) target = $region20
        $region19: #{tpu_custom_call.1} parent=11 // pred_region
          _
        $region20: #{tpu_custom_call.1} parent=11 // pred_fallthru
          _
        // Predicated region
        $region21: #{tpu_custom_call.1} parent=11 // pred_check
          %p246 = pneg %p136
        $region22: #{tpu_custom_call.1} parent=11 // pred_check_branch
          %248 = sbr.rel (%p246) target = $region24
        $region23: #{tpu_custom_call.1} parent=11 // pred_region
          _
        $region24: #{tpu_custom_call.1} parent=11 // pred_fallthru
          _
        // Predicated region
        $region25: #{tpu_custom_call.1} parent=11 // pred_check
          %p249 = pneg %p157
        $region26: #{tpu_custom_call.1} parent=11 // pred_check_branch
          %251 = sbr.rel (%p249) target = $region28
        $region27: #{tpu_custom_call.1} parent=11 // pred_region
          _
        $region28: #{tpu_custom_call.1} parent=11 // pred_fallthru
          _
        // Predicated region
        $region29: #{tpu_custom_call.1} parent=11 // pred_check
          %p252 = pneg %p178
        $region30: #{tpu_custom_call.1} parent=11 // pred_check_branch
          %254 = sbr.rel (%p252) target = $region32
        $region31: #{tpu_custom_call.1} parent=11 // pred_region
          %s256 = ssub.s32 7680, 7680
          %257 = vsyncadd [#allocation6], %s256
          %s258 = sshll.u32 [#allocation5], 4
          %s259 = int_to_ptr.vmem [resolvable:$true] %s258
          %264 = dma.hbm_to_vmem [thread:$0]  %s6, 7680, %s259, [#allocation6], 128, 128, 8
        $region32: #{tpu_custom_call.1} parent=11 // pred_fallthru
          _
        // Predicated region
        $region33: #{tpu_custom_call.1} parent=11 // pred_check
          %p265 = pneg %p199
        $region34: #{tpu_custom_call.1} parent=11 // pred_check_branch
          %267 = sbr.rel (%p265) target = $region36
        $region35: #{tpu_custom_call.1} parent=11 // pred_region
          _
        $region36: #{tpu_custom_call.1} parent=11 // pred_fallthru
          _
      $region12: #{tpu_custom_call.1} parent=5 // pred_fallthru
        _
      %p268 = scmp.lt.s32.totalorder %s21, 8
      // Predicated region
      $region37: #{tpu_custom_call.1} parent=5 // pred_check
        %p269 = pneg %p268
      $region38: #{tpu_custom_call.1} parent=5 // pred_check_branch
        %271 = sbr.rel (%p269) target = $region40
      $region39: #{tpu_custom_call.1} parent=5 // pred_region
        // Predicated region
        $region41: #{tpu_custom_call.1} parent=39 // pred_check
          %p272 = pneg %p41
        $region42: #{tpu_custom_call.1} parent=39 // pred_check_branch
          %274 = sbr.rel (%p272) target = $region44
        $region43: #{tpu_custom_call.1} parent=39 // pred_region
          %s275 = sand.u32 %s31, 1
          %s276 = scalar_lea.sflag [#allocation3], %s275
          %s277 = sand.u32 %s31, 1
          %s278 = smul.addr %s277, 32
          %s279 = scalar_lea.vmem [#allocation2], %s278
          %s281 = ssub.s32 512, 512
          %282 = vsyncadd %s276, %s281
          %s283 = smul.addr %s21, 4
          %s284 = smul.addr %s283, 128
          %s285 = scalar_lea.hbm %s0, %s284
          %s286 = sshll.u32 %s279, 4
          %s287 = int_to_ptr.vmem [resolvable:$true] %s286
          %292 = dma.hbm_to_vmem [thread:$0]  %s285, 512, %s287, %s276, 128, 128, 8
        $region44: #{tpu_custom_call.1} parent=39 // pred_fallthru
          _
        // Predicated region
        $region45: #{tpu_custom_call.1} parent=39 // pred_check
          %p293 = pneg %p67
        $region46: #{tpu_custom_call.1} parent=39 // pred_check_branch
          %295 = sbr.rel (%p293) target = $region48
        $region47: #{tpu_custom_call.1} parent=39 // pred_region
          %p296 = scmp.lt.s32.totalorder %s21, 7
          %s297 = scalar_select %p296, %s21, 7
          %s298 = smul.addr %s297, 4
          %s299 = smul.addr %s298, 8
          %s300 = scalar_lea.vmem %s1, %s299
        $region48: #{tpu_custom_call.1} parent=39 // pred_fallthru
          _
      $region40: #{tpu_custom_call.1} parent=5 // pred_fallthru
        _
      %p301 = scmp.le.s32.totalorder 1, %s21
      %p302 = scmp.lt.s32.totalorder %s21, 9
      %p303 = pnand %p301, %p302
      %p304 = pneg %p303
      // Predicated region
      $region49: #{tpu_custom_call.1} parent=5 // pred_check
        _
      $region50: #{tpu_custom_call.1} parent=5 // pred_check_branch
        %306 = sbr.rel (%p303) target = $region52
      $region51: #{tpu_custom_call.1} parent=5 // pred_region
        %s307 = ssub.s32 %s21, 1
        %s308 = sand.u32 %s34, 1
        %s309 = scalar_lea.sflag [#allocation3], %s308
        %s310 = sand.u32 %s34, 1
        %s311 = smul.addr %s310, 32
        %s312 = scalar_lea.vmem [#allocation2], %s311
        // Predicated region
        $region53: #{tpu_custom_call.1} parent=51 // pred_check
          %p313 = pneg %p47
        $region54: #{tpu_custom_call.1} parent=51 // pred_check_branch
          %315 = sbr.rel (%p313) target = $region56
        $region55: #{tpu_custom_call.1} parent=51 // pred_region
          %316 = dma.done %s309, 512
        $region56: #{tpu_custom_call.1} parent=51 // pred_fallthru
          _
        // Predicated region
        $region57: #{tpu_custom_call.1} parent=51 // pred_check
          %p317 = pneg %p178
        $region58: #{tpu_custom_call.1} parent=51 // pred_check_branch
          %319 = sbr.rel (%p317) target = $region60
        $region59: #{tpu_custom_call.1} parent=51 // pred_region
          %320 = dma.done [#allocation6], 7680
        $region60: #{tpu_custom_call.1} parent=51 // pred_fallthru
          _
        %s321 = sand.u32 %s34, 1
        %s322 = scalar_lea.sflag [#allocation3], %s321
        %s323 = sand.u32 %s34, 1
        %s324 = smul.addr %s323, 32
        %s325 = scalar_lea.vmem [#allocation2], %s324
        %p326 = pneg %p47
        %p327 = pneg %p44
        %p328 = scmp.lt.s32.totalorder %s26, 7
        %s329 = scalar_select %p328, %s26, 7
        %s330 = smul.addr %s329, 4
        %s331 = smul.addr %s330, 8
        %s332 = scalar_lea.vmem %s1, %s331
        %p333 = pneg %p73
        %p334 = pneg %p70
        %p335 = pneg %p94
        %p336 = pneg %p91
        %p337 = pneg %p115
        %p338 = pneg %p112
        %p339 = pneg %p136
        %p340 = pneg %p133
        %p341 = pneg %p157
        %p342 = pneg %p154
        %p343 = pneg %p178
        %p344 = pneg %p175
        %p345 = pneg %p199
        %p346 = pneg %p196
        %p347 = pneg %p225
        %p348 = pneg %p222
        %s349 = sand.u32 %s212, 1
        %s350 = scalar_lea.sflag [#allocation4], %s349
        %s351 = sand.u32 %s212, 1
        %s352 = scalar_lea.vmem [#allocation7], %s351
        %p353 = scmp.lt.s32.totalorder %s26, 7
        %s354 = scalar_select %p353, %s26, 7
        %s355 = smul.addr %s354, 4
        %s356 = smul.addr %s355, 8
        %s357 = scalar_lea.vmem %s1, %s356
        %v358 = vlaneseq
        %v359 = vshrl.u32 %v358, 7
        %v360 = vadd.s32 %v359, 8
        %v361 = vadd.s32 %v359, 16
        %v362 = vadd.s32 %v359, 24
        %v363 = vlaneseq
        %v364 = vand.u32 %v363, 127
        %vm365 = vcmp.eq.s32.totalorder %v359, %v364
        %vm366 = vcmp.eq.s32.totalorder %v360, %v364
        %vm367 = vcmp.eq.s32.totalorder %v361, %v364
        %vm368 = vcmp.eq.s32.totalorder %v362, %v364
        %v369 = vsel %vm365, 1, 0
        %v370 = vsel %vm366, 1, 0
        %v371 = vsel %vm367, 1, 0
        %v372 = vsel %vm368, 1, 0
        %v373 = vcvt.s32.f32 %v369
        %v374 = vcvt.s32.f32 %v370
        %v375 = vcvt.s32.f32 %v371
        %v376 = vcvt.s32.f32 %v372
        %v377 = vld [vmem:[%s312] sm:$0xff]
        %v378 = vld [vmem:[%s312 + $0x8] sm:$0xff]
        %s379 = scalar_lea.vmem %s312, 16 [#allocation2]
        %v380 = vld [vmem:[%s379] sm:$0xff]
        %v381 = vld [vmem:[%s379 + $0x8] sm:$0xff]
        %v382 = vld [vmem:[%s357] sm:$0xff]
        %v383 = vld [vmem:[%s357 + $0x8] sm:$0xff]
        %s384 = scalar_lea.vmem %s357, 16
        %v385 = vld [vmem:[%s384] sm:$0xff]
        %v386 = vld [vmem:[%s384 + $0x8] sm:$0xff]
        %vm387 = vcmask 130048
        %v388 = vsel %vm387, %v377, 0.0
        %v389 = vsel %vm387, %v378, 0.0
        %392 = vrot.lane.b32.xlu0 %v380, 16
        %v393 = vpop.permute.xlu0 %392
        %394 = vrot.lane.b32.xlu0 %v381, 16
        %v395 = vpop.permute.xlu0 %394
        %v398 = vsel %vm387, 0.0, %v393
        %v399 = vsel %vm387, 0.0, %v395
        %v400 = vadd.f32 %v388, %v373
        %v401 = vadd.f32 %v389, %v374
        %v402 = vadd.f32 %v398, %v375
        %v403 = vadd.f32 %v399, %v376
        %vm404 = vcmask 261120
        %v405 = vsel %vm404, %v400, 0.0
        %406 = vadd.xlane.f32.xlu0 %v405
        %v407 = vpop.xlane.xlu0 %406
        %v408 = vsel %vm404, %v401, 0.0
        %409 = vadd.xlane.f32.xlu0 %v408
        %v410 = vpop.xlane.xlu0 %409
        %v411 = vsel %vm404, %v402, 0.0
        %412 = vadd.xlane.f32.xlu0 %v411
        %v413 = vpop.xlane.xlu0 %412
        %v414 = vsel %vm404, %v403, 0.0
        %415 = vadd.xlane.f32.xlu0 %v414
        %v416 = vpop.xlane.xlu0 %415
        %v417 = vadd.f32 %v405, %v408
        %v418 = vadd.f32 %v417, %v411
        %v419 = vadd.f32 %v418, %v414
        %v420 = vrot.slane %v419, 4
        %v421 = vadd.f32 %v419, %v420
        %v422 = vrot.slane %v421, 2
        %v423 = vadd.f32 %v421, %v422
        %v424 = vrot.slane %v423, 1
        %v425 = vadd.f32 %v423, %v424
        %vm426 = vcmp.gt.f32.partialorder %v407, 0.0
        %vm427 = vcmp.gt.f32.partialorder %v410, 0.0
        %vm428 = vcmp.gt.f32.partialorder %v413, 0.0
        %vm429 = vcmp.gt.f32.partialorder %v416, 0.0
        %v430 = vrsqrt.pop %v407
        %v431 = vrsqrt.pop %v410
        %v432 = vrsqrt.pop %v413
        %v433 = vrsqrt.pop %v416
        %v434 = vsel %vm426, %v430, 0.0
        %v435 = vsel %vm427, %v431, 0.0
        %v436 = vsel %vm428, %v432, 0.0
        %v437 = vsel %vm429, %v433, 0.0
        %vm438 = vcmp.gt.f32.partialorder %v425, 0.0
        %v439 = vrsqrt.pop %v425
        %v440 = vsel %vm438, %v439, 0.0
        %v441 = vmul.f32 %v400, %v434
        %v442 = vmul.f32 %v401, %v435
        %v443 = vmul.f32 %v402, %v436
        %v444 = vmul.f32 %v403, %v437
        %v445 = vmul.f32 %v441, %v440
        %v446 = vmul.f32 %v442, %v440
        %v447 = vmul.f32 %v443, %v440
        %v448 = vmul.f32 %v444, %v440
        %v449 = vld [vmem:[%s2] sm:$0xff]
        %vm450 = vcmask 64512
        %v452 = vsel %vm450, %v382, 0
        %v455 = vsel %vm450, %v383, 0
        %v458 = vsel %vm450, %v385, 0
        %v461 = vsel %vm450, %v386, 0
        %463 = vmatprep.subr.mxu0 0.0
        %464 = vmatpush1.msra.mxu0 %v449
        %465 = vmatprep.subr.mxu0 0.0
        %466 = vmatpush1.msra.mxu0 0.0
        %467 = vmatprep.subr.mxu0 0.0
        %468 = vmatpush1.msra.mxu0 0.0
        %469 = vmatprep.subr.mxu0 0.0
        %470 = vmatpush1.msra.mxu0 0.0
        %471 = vmatprep.subr.mxu0 0.0
        %472 = vmatpush1.msra.mxu0 0.0
        %473 = vmatprep.subr.mxu0 0.0
        %474 = vmatpush1.msra.mxu0 0.0
        %475 = vmatprep.subr.mxu0 0.0
        %476 = vmatpush1.msra.mxu0 0.0
        %477 = vmatprep.subr.mxu0 0.0
        %478 = vmatpush1.msra.mxu0 0.0
        %479 = vmatprep.subr.mxu0 0.0
        %480 = vmatpush1.msra.mxu0 0.0
        %481 = vmatprep.subr.mxu0 0.0
        %482 = vmatpush1.msra.mxu0 0.0
        %483 = vmatprep.subr.mxu0 0.0
        %484 = vmatpush1.msra.mxu0 0.0
        %485 = vmatprep.subr.mxu0 0.0
        %486 = vmatpush1.msra.mxu0 0.0
        %487 = vmatprep.subr.mxu0 0.0
        %488 = vmatpush1.msra.mxu0 0.0
        %489 = vmatprep.subr.mxu0 0.0
        %490 = vmatpush1.msra.mxu0 0.0
        %491 = vmatprep.subr.mxu0 0.0
        %492 = vmatpush1.msra.mxu0 0.0
        %493 = vmatprep.subr.mxu0 0.0
        %494 = vmatpush1.msra.mxu0 0.0
        %495 = vmatprep.subr.mxu0 0.0
        %496 = vmatpush1.msra.mxu0 0.0
        %497 = vmatprep.subr.mxu0 0.0
        %498 = vmatpush1.msra.mxu0 0.0
        %499 = vmatprep.subr.mxu0 0.0
        %500 = vmatpush1.msra.mxu0 0.0
        %501 = vmatprep.subr.mxu0 0.0
        %502 = vmatpush1.msra.mxu0 0.0
        %503 = vmatprep.subr.mxu0 0.0
        %504 = vmatpush1.msra.mxu0 0.0
        %505 = vmatprep.subr.mxu0 0.0
        %506 = vmatpush1.msra.mxu0 0.0
        %507 = vmatprep.subr.mxu0 0.0
        %508 = vmatpush1.msra.mxu0 0.0
        %509 = vmatprep.subr.mxu0 0.0
        %510 = vmatpush1.msra.mxu0 0.0
        %511 = vmatprep.subr.mxu0 0.0
        %512 = vmatpush1.msra.mxu0 0.0
        %513 = vmatprep.subr.mxu0 0.0
        %514 = vmatpush1.msra.mxu0 0.0
        %515 = vmatprep.subr.mxu0 0.0
        %516 = vmatpush1.msra.mxu0 0.0
        %517 = vmatprep.subr.mxu0 0.0
        %518 = vmatpush1.msra.mxu0 0.0
        %519 = vmatprep.subr.mxu0 0.0
        %520 = vmatpush1.msra.mxu0 0.0
        %521 = vmatprep.subr.mxu0 0.0
        %522 = vmatpush1.msra.mxu0 0.0
        %523 = vmatprep.subr.mxu0 0.0
        %524 = vmatpush1.msra.mxu0 0.0
        %525 = vmatprep.subr.mxu0 0.0
        %526 = vmatpush1.msra.mxu0 0.0
        %527 = vmatprep.mubr.f32.mxu0 0.0
        %528 = vmatmul.mubr.f32.gmra.mrb[0].mxu0 %v452
        %v529 = vpop.f32.mrb[0].mxu0
        %v530 = vadd.f32 0.0, %v529
        %v531 = vpop.f32.mrb[0].mxu0
        %532 = vmatprep.mubr.f32.mxu0 0.0
        %533 = vmatmul.mubr.f32.gmra.mrb[0].mxu0 %v455
        %v534 = vpop.f32.mrb[0].mxu0
        %v535 = vadd.f32 0.0, %v534
        %v536 = vpop.f32.mrb[0].mxu0
        %537 = vmatprep.mubr.f32.mxu0 0.0
        %538 = vmatmul.mubr.f32.gmra.mrb[0].mxu0 %v458
        %v539 = vpop.f32.mrb[0].mxu0
        %v540 = vadd.f32 0.0, %v539
        %v541 = vpop.f32.mrb[0].mxu0
        %542 = vmatprep.mubr.f32.mxu0 0.0
        %543 = vmatmul.mubr.f32.gmra.mrb[0].mxu0 %v461
        %v544 = vpop.f32.mrb[0].mxu0
        %v545 = vadd.f32 0.0, %v544
        %v546 = vpop.f32.mrb[0].mxu0
        %547 = vdwg.mxu0
        %v548 = vld [vmem:[%s4] sm:$0x1]
        %v549 = vlaneseq
        %v550 = vshrl.u32 %v549, 7
        %v551 = vsub.s32 0, %v550
        %v552 = vrot.slane %v548, %v551
        %v554 = vsel %vm404, %v445, 0
        %v557 = vsel %vm404, %v446, 0
        %v560 = vsel %vm404, %v447, 0
        %v563 = vsel %vm404, %v448, 0
        %565 = vmatprep.subr.mxu0 0.0
        %566 = vmatpush1.msra.mxu0 %v530
        %567 = vmatprep.subr.mxu0 0.0
        %568 = vmatpush1.msra.mxu0 %v535
        %569 = vmatprep.subr.mxu0 0.0
        %570 = vmatpush1.msra.mxu0 %v540
        %571 = vmatprep.subr.mxu0 0.0
        %572 = vmatpush1.msra.mxu0 %v545
        %573 = vmatprep.subr.mxu0 0.0
        %574 = vmatpush1.msra.mxu0 0.0
        %575 = vmatprep.subr.mxu0 0.0
        %576 = vmatpush1.msra.mxu0 0.0
        %577 = vmatprep.subr.mxu0 0.0
        %578 = vmatpush1.msra.mxu0 0.0
        %579 = vmatprep.subr.mxu0 0.0
        %580 = vmatpush1.msra.mxu0 0.0
        %581 = vmatprep.subr.mxu0 0.0
        %582 = vmatpush1.msra.mxu0 0.0
        %583 = vmatprep.subr.mxu0 0.0
        %584 = vmatpush1.msra.mxu0 0.0
        %585 = vmatprep.subr.mxu0 0.0
        %586 = vmatpush1.msra.mxu0 0.0
        %587 = vmatprep.subr.mxu0 0.0
        %588 = vmatpush1.msra.mxu0 0.0
        %589 = vmatprep.subr.mxu0 0.0
        %590 = vmatpush1.msra.mxu0 0.0
        %591 = vmatprep.subr.mxu0 0.0
        %592 = vmatpush1.msra.mxu0 0.0
        %593 = vmatprep.subr.mxu0 0.0
        %594 = vmatpush1.msra.mxu0 0.0
        %595 = vmatprep.subr.mxu0 0.0
        %596 = vmatpush1.msra.mxu0 0.0
        %597 = vmatprep.subr.mxu0 0.0
        %598 = vmatpush1.msra.mxu0 0.0
        %599 = vmatprep.subr.mxu0 0.0
        %600 = vmatpush1.msra.mxu0 0.0
        %601 = vmatprep.subr.mxu0 0.0
        %602 = vmatpush1.msra.mxu0 0.0
        %603 = vmatprep.subr.mxu0 0.0
        %604 = vmatpush1.msra.mxu0 0.0
        %605 = vmatprep.subr.mxu0 0.0
        %606 = vmatpush1.msra.mxu0 0.0
        %607 = vmatprep.subr.mxu0 0.0
        %608 = vmatpush1.msra.mxu0 0.0
        %609 = vmatprep.subr.mxu0 0.0
        %610 = vmatpush1.msra.mxu0 0.0
        %611 = vmatprep.subr.mxu0 0.0
        %612 = vmatpush1.msra.mxu0 0.0
        %613 = vmatprep.subr.mxu0 0.0
        %614 = vmatpush1.msra.mxu0 0.0
        %615 = vmatprep.subr.mxu0 0.0
        %616 = vmatpush1.msra.mxu0 0.0
        %617 = vmatprep.subr.mxu0 0.0
        %618 = vmatpush1.msra.mxu0 0.0
        %619 = vmatprep.subr.mxu0 0.0
        %620 = vmatpush1.msra.mxu0 0.0
        %621 = vmatprep.subr.mxu0 0.0
        %622 = vmatpush1.msra.mxu0 0.0
        %623 = vmatprep.subr.mxu0 0.0
        %624 = vmatpush1.msra.mxu0 0.0
        %625 = vmatprep.subr.mxu0 0.0
        %626 = vmatpush1.msra.mxu0 0.0
        %627 = vmatprep.subr.mxu0 0.0
        %628 = vmatpush1.msra.mxu0 0.0
        %629 = vmatprep.mubr.f32.mxu0 0.0
        %630 = vmatmul.mubr.f32.gmra.mrb[0].mxu0 %v554
        %v631 = vpop.f32.mrb[0].mxu0
        %v632 = vadd.f32 %v552, %v631
        %v633 = vpop.f32.mrb[0].mxu0
        %634 = vmatprep.mubr.f32.mxu0 0.0
        %635 = vmatmul.mubr.f32.gmra.mrb[0].mxu0 %v557
        %v636 = vpop.f32.mrb[0].mxu0
        %v637 = vadd.f32 %v552, %v636
        %v638 = vpop.f32.mrb[0].mxu0
        %639 = vmatprep.mubr.f32.mxu0 0.0
        %640 = vmatmul.mubr.f32.gmra.mrb[0].mxu0 %v560
        %v641 = vpop.f32.mrb[0].mxu0
        %v642 = vadd.f32 %v552, %v641
        %v643 = vpop.f32.mrb[0].mxu0
        %644 = vmatprep.mubr.f32.mxu0 0.0
        %645 = vmatmul.mubr.f32.gmra.mrb[0].mxu0 %v563
        %v646 = vpop.f32.mrb[0].mxu0
        %v647 = vadd.f32 %v552, %v646
        %v648 = vpop.f32.mrb[0].mxu0
        %649 = vdwg.mxu0
        %vm650 = vcmp.gt.f32.partialorder %v632, 0.0
        %vm651 = vcmp.gt.f32.partialorder %v637, 0.0
        %vm652 = vcmp.gt.f32.partialorder %v642, 0.0
        %vm653 = vcmp.gt.f32.partialorder %v647, 0.0
        %v654 = vmul.f32 %v632, 0.2
        %v655 = vmul.f32 %v637, 0.2
        %v656 = vmul.f32 %v642, 0.2
        %v657 = vmul.f32 %v647, 0.2
        %v658 = vsel %vm650, %v632, %v654
        %v659 = vsel %vm651, %v637, %v655
        %v660 = vsel %vm652, %v642, %v656
        %v661 = vsel %vm653, %v647, %v657
        %s662 = scalar_lea.vmem %s3, 192
        %v663 = vld [vmem:[%s662] sm:$0xff]
        %v664 = vld [vmem:[%s662 + $0x8] sm:$0xff]
        %v665 = vld [vmem:[%s662 + $0x10] sm:$0xff]
        %v666 = vld [vmem:[%s662 + $0x18] sm:$0xff]
        %v667 = vsel %vm404, %v658, 0.0
        %v668 = vsel %vm404, %v659, 0.0
        %v669 = vadd.f32 %v667, %v668
        %v670 = vrot.slane %v669, 4
        %v671 = vadd.f32 %v669, %v670
        %v672 = vrot.slane %v671, 2
        %v673 = vadd.f32 %v671, %v672
        %v674 = vrot.slane %v673, 1
        %v675 = vadd.f32 %v673, %v674
        %v676 = vrcp.pop 16.0
        %v677 = vmul.f32 %v675, %v676
        %v679 = vsel %vm404, %v677, 0
        %681 = vmatprep.subr.mxu0 0.0
        %682 = vmatpush1.msra.mxu0 %v663
        %683 = vmatprep.subr.mxu0 0.0
        %684 = vmatpush1.msra.mxu0 %v664
        %685 = vmatprep.subr.mxu0 0.0
        %686 = vmatpush1.msra.mxu0 %v665
        %687 = vmatprep.subr.mxu0 0.0
        %688 = vmatpush1.msra.mxu0 %v666
        %689 = vmatprep.subr.mxu0 0.0
        %690 = vmatpush1.msra.mxu0 0.0
        %691 = vmatprep.subr.mxu0 0.0
        %692 = vmatpush1.msra.mxu0 0.0
        %693 = vmatprep.subr.mxu0 0.0
        %694 = vmatpush1.msra.mxu0 0.0
        %695 = vmatprep.subr.mxu0 0.0
        %696 = vmatpush1.msra.mxu0 0.0
        %697 = vmatprep.subr.mxu0 0.0
        %698 = vmatpush1.msra.mxu0 0.0
        %699 = vmatprep.subr.mxu0 0.0
        %700 = vmatpush1.msra.mxu0 0.0
        %701 = vmatprep.subr.mxu0 0.0
        %702 = vmatpush1.msra.mxu0 0.0
        %703 = vmatprep.subr.mxu0 0.0
        %704 = vmatpush1.msra.mxu0 0.0
        %705 = vmatprep.subr.mxu0 0.0
        %706 = vmatpush1.msra.mxu0 0.0
        %707 = vmatprep.subr.mxu0 0.0
        %708 = vmatpush1.msra.mxu0 0.0
        %709 = vmatprep.subr.mxu0 0.0
        %710 = vmatpush1.msra.mxu0 0.0
        %711 = vmatprep.subr.mxu0 0.0
        %712 = vmatpush1.msra.mxu0 0.0
        %713 = vmatprep.subr.mxu0 0.0
        %714 = vmatpush1.msra.mxu0 0.0
        %715 = vmatprep.subr.mxu0 0.0
        %716 = vmatpush1.msra.mxu0 0.0
        %717 = vmatprep.subr.mxu0 0.0
        %718 = vmatpush1.msra.mxu0 0.0
        %719 = vmatprep.subr.mxu0 0.0
        %720 = vmatpush1.msra.mxu0 0.0
        %721 = vmatprep.subr.mxu0 0.0
        %722 = vmatpush1.msra.mxu0 0.0
        %723 = vmatprep.subr.mxu0 0.0
        %724 = vmatpush1.msra.mxu0 0.0
        %725 = vmatprep.subr.mxu0 0.0
        %726 = vmatpush1.msra.mxu0 0.0
        %727 = vmatprep.subr.mxu0 0.0
        %728 = vmatpush1.msra.mxu0 0.0
        %729 = vmatprep.subr.mxu0 0.0
        %730 = vmatpush1.msra.mxu0 0.0
        %731 = vmatprep.subr.mxu0 0.0
        %732 = vmatpush1.msra.mxu0 0.0
        %733 = vmatprep.subr.mxu0 0.0
        %734 = vmatpush1.msra.mxu0 0.0
        %735 = vmatprep.subr.mxu0 0.0
        %736 = vmatpush1.msra.mxu0 0.0
        %737 = vmatprep.subr.mxu0 0.0
        %738 = vmatpush1.msra.mxu0 0.0
        %739 = vmatprep.subr.mxu0 0.0
        %740 = vmatpush1.msra.mxu0 0.0
        %741 = vmatprep.subr.mxu0 0.0
        %742 = vmatpush1.msra.mxu0 0.0
        %743 = vmatprep.subr.mxu0 0.0
        %744 = vmatpush1.msra.mxu0 0.0
        %745 = vmatprep.mubr.f32.mxu0 0.0
        %746 = vmatmul.mubr.f32.gmra.mrb[0].mxu0 %v679
        %v747 = vpop.f32.mrb[0].mxu0
        %v748 = vadd.f32 0.0, %v747
        %v749 = vpop.f32.mrb[0].mxu0
        %750 = vdwg.mxu0
        %v751 = vtanh.pop %v748
        %v752 = vlaneseq
        %v753 = vshrl.u32 %v752, 7
        %v754 = vsub.s32 0, %v753
        %v755 = vrot.slane %v751, %v754
        %v756 = vmul.f32 %v658, %v755
        %v757 = vmul.f32 %v659, %v755
        %v758 = vsel %vm404, %v756, 0.0
        %759 = vadd.xlane.f32.xlu0 %v758
        %v760 = vpop.xlane.xlu0 %759
        %v761 = vsel %vm404, %v757, 0.0
        %762 = vadd.xlane.f32.xlu0 %v761
        %v763 = vpop.xlane.xlu0 %762
        %v764 = vxor.u32 %v760, 2147483648
        %v765 = vxor.u32 %v763, 2147483648
        %v766 = vmul.f32 %v764, 1.442695
        %v767 = vpow.pop %v766
        %v768 = vmul.f32 %v765, 1.442695
        %v769 = vpow.pop %v768
        %v770 = vadd.f32 %v767, 1.0
        %v771 = vadd.f32 %v769, 1.0
        %v772 = vrcp.pop %v770
        %v773 = vmul.f32 1.0, %v772
        %v774 = vrcp.pop %v771
        %v775 = vmul.f32 1.0, %v774
        %v776 = vmul.f32 %v773, %v658
        %v777 = vmul.f32 %v775, %v659
        %v778 = vsel %vm404, %v776, 0.0
        %v779 = vsel %vm404, %v777, 0.0
        %v780 = vadd.f32 %v778, %v779
        %v781 = vrot.slane %v780, 4
        %v782 = vadd.f32 %v780, %v781
        %v783 = vrot.slane %v782, 2
        %v784 = vadd.f32 %v782, %v783
        %v785 = vrot.slane %v784, 1
        %v786 = vadd.f32 %v784, %v785
        %v787 = vsel %vm404, %v660, 0.0
        %v788 = vsel %vm404, %v661, 0.0
        %v789 = vadd.f32 %v787, %v788
        %v790 = vrot.slane %v789, 4
        %v791 = vadd.f32 %v789, %v790
        %v792 = vrot.slane %v791, 2
        %v793 = vadd.f32 %v791, %v792
        %v794 = vrot.slane %v793, 1
        %v795 = vadd.f32 %v793, %v794
        %v796 = vmul.f32 %v795, %v676
        %v798 = vsel %vm404, %v796, 0
        %800 = vmatprep.subr.mxu0 0.0
        %801 = vmatpush1.msra.mxu0 %v663
        %802 = vmatprep.subr.mxu0 0.0
        %803 = vmatpush1.msra.mxu0 %v664
        %804 = vmatprep.subr.mxu0 0.0
        %805 = vmatpush1.msra.mxu0 %v665
        %806 = vmatprep.subr.mxu0 0.0
        %807 = vmatpush1.msra.mxu0 %v666
        %808 = vmatprep.subr.mxu0 0.0
        %809 = vmatpush1.msra.mxu0 0.0
        %810 = vmatprep.subr.mxu0 0.0
        %811 = vmatpush1.msra.mxu0 0.0
        %812 = vmatprep.subr.mxu0 0.0
        %813 = vmatpush1.msra.mxu0 0.0
        %814 = vmatprep.subr.mxu0 0.0
        %815 = vmatpush1.msra.mxu0 0.0
        %816 = vmatprep.subr.mxu0 0.0
        %817 = vmatpush1.msra.mxu0 0.0
        %818 = vmatprep.subr.mxu0 0.0
        %819 = vmatpush1.msra.mxu0 0.0
        %820 = vmatprep.subr.mxu0 0.0
        %821 = vmatpush1.msra.mxu0 0.0
        %822 = vmatprep.subr.mxu0 0.0
        %823 = vmatpush1.msra.mxu0 0.0
        %824 = vmatprep.subr.mxu0 0.0
        %825 = vmatpush1.msra.mxu0 0.0
        %826 = vmatprep.subr.mxu0 0.0
        %827 = vmatpush1.msra.mxu0 0.0
        %828 = vmatprep.subr.mxu0 0.0
        %829 = vmatpush1.msra.mxu0 0.0
        %830 = vmatprep.subr.mxu0 0.0
        %831 = vmatpush1.msra.mxu0 0.0
        %832 = vmatprep.subr.mxu0 0.0
        %833 = vmatpush1.msra.mxu0 0.0
        %834 = vmatprep.subr.mxu0 0.0
        %835 = vmatpush1.msra.mxu0 0.0
        %836 = vmatprep.subr.mxu0 0.0
        %837 = vmatpush1.msra.mxu0 0.0
        %838 = vmatprep.subr.mxu0 0.0
        %839 = vmatpush1.msra.mxu0 0.0
        %840 = vmatprep.subr.mxu0 0.0
        %841 = vmatpush1.msra.mxu0 0.0
        %842 = vmatprep.subr.mxu0 0.0
        %843 = vmatpush1.msra.mxu0 0.0
        %844 = vmatprep.subr.mxu0 0.0
        %845 = vmatpush1.msra.mxu0 0.0
        %846 = vmatprep.subr.mxu0 0.0
        %847 = vmatpush1.msra.mxu0 0.0
        %848 = vmatprep.subr.mxu0 0.0
        %849 = vmatpush1.msra.mxu0 0.0
        %850 = vmatprep.subr.mxu0 0.0
        %851 = vmatpush1.msra.mxu0 0.0
        %852 = vmatprep.subr.mxu0 0.0
        %853 = vmatpush1.msra.mxu0 0.0
        %854 = vmatprep.subr.mxu0 0.0
        %855 = vmatpush1.msra.mxu0 0.0
        %856 = vmatprep.subr.mxu0 0.0
        %857 = vmatpush1.msra.mxu0 0.0
        %858 = vmatprep.subr.mxu0 0.0
        %859 = vmatpush1.msra.mxu0 0.0
        %860 = vmatprep.subr.mxu0 0.0
        %861 = vmatpush1.msra.mxu0 0.0
        %862 = vmatprep.subr.mxu0 0.0
        %863 = vmatpush1.msra.mxu0 0.0
        %864 = vmatprep.mubr.f32.mxu0 0.0
        %865 = vmatmul.mubr.f32.gmra.mrb[0].mxu0 %v798
        %v866 = vpop.f32.mrb[0].mxu0
        %v867 = vadd.f32 0.0, %v866
        %v868 = vpop.f32.mrb[0].mxu0
        %869 = vdwg.mxu0
        %v870 = vtanh.pop %v867
        %v871 = vlaneseq
        %v872 = vshrl.u32 %v871, 7
        %v873 = vsub.s32 0, %v872
        %v874 = vrot.slane %v870, %v873
        %v875 = vmul.f32 %v660, %v874
        %v876 = vmul.f32 %v661, %v874
        %v877 = vsel %vm404, %v875, 0.0
        %878 = vadd.xlane.f32.xlu0 %v877
        %v879 = vpop.xlane.xlu0 %878
        %v880 = vsel %vm404, %v876, 0.0
        %881 = vadd.xlane.f32.xlu0 %v880
        %v882 = vpop.xlane.xlu0 %881
        %v883 = vxor.u32 %v879, 2147483648
        %v884 = vxor.u32 %v882, 2147483648
        %v885 = vmul.f32 %v883, 1.442695
        %v886 = vpow.pop %v885
        %v887 = vmul.f32 %v884, 1.442695
        %v888 = vpow.pop %v887
        %v889 = vadd.f32 %v886, 1.0
        %v890 = vadd.f32 %v888, 1.0
        %v891 = vrcp.pop %v889
        %v892 = vmul.f32 1.0, %v891
        %v893 = vrcp.pop %v890
        %v894 = vmul.f32 1.0, %v893
        %v895 = vmul.f32 %v892, %v660
        %v896 = vmul.f32 %v894, %v661
        %v897 = vsel %vm404, %v895, 0.0
        %v898 = vsel %vm404, %v896, 0.0
        %v899 = vadd.f32 %v897, %v898
        %v900 = vrot.slane %v899, 4
        %v901 = vadd.f32 %v899, %v900
        %v902 = vrot.slane %v901, 2
        %v903 = vadd.f32 %v901, %v902
        %v904 = vrot.slane %v903, 1
        %v905 = vadd.f32 %v903, %v904
        %vm906 = vcmp.gt.f32.partialorder %v388, 0.0
        %vm907 = vcmp.gt.f32.partialorder %v389, 0.0
        %vm908 = vcmp.gt.f32.partialorder %v398, 0.0
        %vm909 = vcmp.gt.f32.partialorder %v399, 0.0
        %v910 = vsel %vm906, 1, 0
        %v911 = vsel %vm907, 1, 0
        %v912 = vsel %vm908, 1, 0
        %v913 = vsel %vm909, 1, 0
        %v914 = vcvt.s32.f32 %v910
        %v915 = vcvt.s32.f32 %v911
        %v916 = vcvt.s32.f32 %v912
        %v917 = vcvt.s32.f32 %v913
        %v918 = vadd.f32 %v914, %v373
        %v919 = vadd.f32 %v915, %v374
        %v920 = vadd.f32 %v916, %v375
        %v921 = vadd.f32 %v917, %v376
        %v923 = vsel %vm404, %v918, 0
        %v926 = vsel %vm404, %v919, 0
        %v929 = vsel %vm404, %v920, 0
        %v932 = vsel %vm404, %v921, 0
        %934 = vmatprep.subr.mxu0 0.0
        %935 = vmatpush1.msra.mxu0 %v918
        %936 = vmatprep.subr.mxu0 0.0
        %937 = vmatpush1.msra.mxu0 %v919
        %938 = vmatprep.subr.mxu0 0.0
        %939 = vmatpush1.msra.mxu0 %v920
        %940 = vmatprep.subr.mxu0 0.0
        %941 = vmatpush1.msra.mxu0 %v921
        %942 = vmatprep.subr.mxu0 0.0
        %943 = vmatpush1.msra.mxu0 0.0
        %944 = vmatprep.subr.mxu0 0.0
        %945 = vmatpush1.msra.mxu0 0.0
        %946 = vmatprep.subr.mxu0 0.0
        %947 = vmatpush1.msra.mxu0 0.0
        %948 = vmatprep.subr.mxu0 0.0
        %949 = vmatpush1.msra.mxu0 0.0
        %950 = vmatprep.subr.mxu0 0.0
        %951 = vmatpush1.msra.mxu0 0.0
        %952 = vmatprep.subr.mxu0 0.0
        %953 = vmatpush1.msra.mxu0 0.0
        %954 = vmatprep.subr.mxu0 0.0
        %955 = vmatpush1.msra.mxu0 0.0
        %956 = vmatprep.subr.mxu0 0.0
        %957 = vmatpush1.msra.mxu0 0.0
        %958 = vmatprep.subr.mxu0 0.0
        %959 = vmatpush1.msra.mxu0 0.0
        %960 = vmatprep.subr.mxu0 0.0
        %961 = vmatpush1.msra.mxu0 0.0
        %962 = vmatprep.subr.mxu0 0.0
        %963 = vmatpush1.msra.mxu0 0.0
        %964 = vmatprep.subr.mxu0 0.0
        %965 = vmatpush1.msra.mxu0 0.0
        %966 = vmatprep.subr.mxu0 0.0
        %967 = vmatpush1.msra.mxu0 0.0
        %968 = vmatprep.subr.mxu0 0.0
        %969 = vmatpush1.msra.mxu0 0.0
        %970 = vmatprep.subr.mxu0 0.0
        %971 = vmatpush1.msra.mxu0 0.0
        %972 = vmatprep.subr.mxu0 0.0
        %973 = vmatpush1.msra.mxu0 0.0
        %974 = vmatprep.subr.mxu0 0.0
        %975 = vmatpush1.msra.mxu0 0.0
        %976 = vmatprep.subr.mxu0 0.0
        %977 = vmatpush1.msra.mxu0 0.0
        %978 = vmatprep.subr.mxu0 0.0
        %979 = vmatpush1.msra.mxu0 0.0
        %980 = vmatprep.subr.mxu0 0.0
        %981 = vmatpush1.msra.mxu0 0.0
        %982 = vmatprep.subr.mxu0 0.0
        %983 = vmatpush1.msra.mxu0 0.0
        %984 = vmatprep.subr.mxu0 0.0
        %985 = vmatpush1.msra.mxu0 0.0
        %986 = vmatprep.subr.mxu0 0.0
        %987 = vmatpush1.msra.mxu0 0.0
        %988 = vmatprep.subr.mxu0 0.0
        %989 = vmatpush1.msra.mxu0 0.0
        %990 = vmatprep.subr.mxu0 0.0
        %991 = vmatpush1.msra.mxu0 0.0
        %992 = vmatprep.subr.mxu0 0.0
        %993 = vmatpush1.msra.mxu0 0.0
        %994 = vmatprep.subr.mxu0 0.0
        %995 = vmatpush1.msra.mxu0 0.0
        %996 = vmatprep.subr.mxu0 0.0
        %997 = vmatpush1.msra.mxu0 0.0
        %998 = vmatprep.mubr.f32.mxu0 0.0
        %999 = vmatmul.mubr.f32.gmra.mrb[0].mxu0 %v923
        %v1000 = vpop.f32.mrb[0].mxu0
        %v1001 = vadd.f32 0.0, %v1000
        %v1002 = vpop.f32.mrb[0].mxu0
        %1003 = vmatprep.mubr.f32.mxu0 0.0
        %1004 = vmatmul.mubr.f32.gmra.mrb[0].mxu0 %v926
        %v1005 = vpop.f32.mrb[0].mxu0
        %v1006 = vadd.f32 0.0, %v1005
        %v1007 = vpop.f32.mrb[0].mxu0
        %1008 = vmatprep.mubr.f32.mxu0 0.0
        %1009 = vmatmul.mubr.f32.gmra.mrb[0].mxu0 %v929
        %v1010 = vpop.f32.mrb[0].mxu0
        %v1011 = vadd.f32 0.0, %v1010
        %v1012 = vpop.f32.mrb[0].mxu0
        %1013 = vmatprep.mubr.f32.mxu0 0.0
        %1014 = vmatmul.mubr.f32.gmra.mrb[0].mxu0 %v932
        %v1015 = vpop.f32.mrb[0].mxu0
        %v1016 = vadd.f32 0.0, %v1015
        %v1017 = vpop.f32.mrb[0].mxu0
        %1018 = vdwg.mxu0
        %vm1019 = vcmp.gt.f32.partialorder %v1001, 0.0
        %vm1020 = vcmp.gt.f32.partialorder %v1006, 0.0
        %vm1021 = vcmp.gt.f32.partialorder %v1011, 0.0
        %vm1022 = vcmp.gt.f32.partialorder %v1016, 0.0
        %v1023 = vsel %vm1019, 1, 0
        %v1024 = vsel %vm1020, 1, 0
        %v1025 = vsel %vm1021, 1, 0
        %v1026 = vsel %vm1022, 1, 0
        %v1027 = vcvt.s32.f32 %v1023
        %v1028 = vcvt.s32.f32 %v1024
        %v1029 = vcvt.s32.f32 %v1025
        %v1030 = vcvt.s32.f32 %v1026
        %v1031 = vld [vmem:[%s3] sm:$0xff]
        %v1032 = vld [vmem:[%s3 + $0x8] sm:$0xff]
        %v1033 = vld [vmem:[%s3 + $0x10] sm:$0xff]
        %v1034 = vld [vmem:[%s3 + $0x18] sm:$0xff]
        %v1035 = vld [vmem:[%s4 + $0x1] sm:$0x1]
        %v1036 = vld [vmem:[%s5] sm:$0x1]
        %s1037 = scalar_lea.vmem %s3, 96
        %v1038 = vld [vmem:[%s1037] sm:$0xff]
        %v1039 = vld [vmem:[%s1037 + $0x8] sm:$0xff]
        %v1040 = vld [vmem:[%s1037 + $0x10] sm:$0xff]
        %v1041 = vld [vmem:[%s1037 + $0x18] sm:$0xff]
        %s1042 = scalar_lea.vmem %s3, 224
        %v1043 = vld [vmem:[%s1042] sm:$0xff]
        %v1044 = vld [vmem:[%s1042 + $0x8] sm:$0xff]
        %v1045 = vld [vmem:[%s1042 + $0x10] sm:$0xff]
        %v1046 = vld [vmem:[%s1042 + $0x18] sm:$0xff]
        %v1048 = vsel %vm404, %v658, 0
        %v1051 = vsel %vm404, %v659, 0
        %v1054 = vsel %vm404, %v660, 0
        %v1057 = vsel %vm404, %v661, 0
        %1059 = vmatprep.subr.mxu0 0.0
        %1060 = vmatpush1.msra.mxu0 %v1031
        %1061 = vmatprep.subr.mxu0 0.0
        %1062 = vmatpush1.msra.mxu0 %v1032
        %1063 = vmatprep.subr.mxu0 0.0
        %1064 = vmatpush1.msra.mxu0 %v1033
        %1065 = vmatprep.subr.mxu0 0.0
        %1066 = vmatpush1.msra.mxu0 %v1034
        %1067 = vmatprep.subr.mxu0 0.0
        %1068 = vmatpush1.msra.mxu0 0.0
        %1069 = vmatprep.subr.mxu0 0.0
        %1070 = vmatpush1.msra.mxu0 0.0
        %1071 = vmatprep.subr.mxu0 0.0
        %1072 = vmatpush1.msra.mxu0 0.0
        %1073 = vmatprep.subr.mxu0 0.0
        %1074 = vmatpush1.msra.mxu0 0.0
        %1075 = vmatprep.subr.mxu0 0.0
        %1076 = vmatpush1.msra.mxu0 0.0
        %1077 = vmatprep.subr.mxu0 0.0
        %1078 = vmatpush1.msra.mxu0 0.0
        %1079 = vmatprep.subr.mxu0 0.0
        %1080 = vmatpush1.msra.mxu0 0.0
        %1081 = vmatprep.subr.mxu0 0.0
        %1082 = vmatpush1.msra.mxu0 0.0
        %1083 = vmatprep.subr.mxu0 0.0
        %1084 = vmatpush1.msra.mxu0 0.0
        %1085 = vmatprep.subr.mxu0 0.0
        %1086 = vmatpush1.msra.mxu0 0.0
        %1087 = vmatprep.subr.mxu0 0.0
        %1088 = vmatpush1.msra.mxu0 0.0
        %1089 = vmatprep.subr.mxu0 0.0
        %1090 = vmatpush1.msra.mxu0 0.0
        %1091 = vmatprep.subr.mxu0 0.0
        %1092 = vmatpush1.msra.mxu0 0.0
        %1093 = vmatprep.subr.mxu0 0.0
        %1094 = vmatpush1.msra.mxu0 0.0
        %1095 = vmatprep.subr.mxu0 0.0
        %1096 = vmatpush1.msra.mxu0 0.0
        %1097 = vmatprep.subr.mxu0 0.0
        %1098 = vmatpush1.msra.mxu0 0.0
        %1099 = vmatprep.subr.mxu0 0.0
        %1100 = vmatpush1.msra.mxu0 0.0
        %1101 = vmatprep.subr.mxu0 0.0
        %1102 = vmatpush1.msra.mxu0 0.0
        %1103 = vmatprep.subr.mxu0 0.0
        %1104 = vmatpush1.msra.mxu0 0.0
        %1105 = vmatprep.subr.mxu0 0.0
        %1106 = vmatpush1.msra.mxu0 0.0
        %1107 = vmatprep.subr.mxu0 0.0
        %1108 = vmatpush1.msra.mxu0 0.0
        %1109 = vmatprep.subr.mxu0 0.0
        %1110 = vmatpush1.msra.mxu0 0.0
        %1111 = vmatprep.subr.mxu0 0.0
        %1112 = vmatpush1.msra.mxu0 0.0
        %1113 = vmatprep.subr.mxu0 0.0
        %1114 = vmatpush1.msra.mxu0 0.0
        %1115 = vmatprep.subr.mxu0 0.0
        %1116 = vmatpush1.msra.mxu0 0.0
        %1117 = vmatprep.subr.mxu0 0.0
        %1118 = vmatpush1.msra.mxu0 0.0
        %1119 = vmatprep.subr.mxu0 0.0
        %1120 = vmatpush1.msra.mxu0 0.0
        %1121 = vmatprep.subr.mxu0 0.0
        %1122 = vmatpush1.msra.mxu0 0.0
        %1123 = vmatprep.mubr.f32.mxu0 0.0
        %1124 = vmatmul.mubr.f32.gmra.mrb[0].mxu0 %v1048
        %v1125 = vpop.f32.mrb[0].mxu0
        %v1126 = vadd.f32 0.0, %v1125
        %v1127 = vpop.f32.mrb[0].mxu0
        %1128 = vmatprep.mubr.f32.mxu0 0.0
        %1129 = vmatmul.mubr.f32.gmra.mrb[0].mxu0 %v1051
        %v1130 = vpop.f32.mrb[0].mxu0
        %v1131 = vadd.f32 0.0, %v1130
        %v1132 = vpop.f32.mrb[0].mxu0
        %1133 = vmatprep.mubr.f32.mxu0 0.0
        %1134 = vmatmul.mubr.f32.gmra.mrb[0].mxu0 %v1054
        %v1135 = vpop.f32.mrb[0].mxu0
        %v1136 = vadd.f32 0.0, %v1135
        %v1137 = vpop.f32.mrb[0].mxu0
        %1138 = vmatprep.mubr.f32.mxu0 0.0
        %1139 = vmatmul.mubr.f32.gmra.mrb[0].mxu0 %v1057
        %v1140 = vpop.f32.mrb[0].mxu0
        %v1141 = vadd.f32 0.0, %v1140
        %v1142 = vpop.f32.mrb[0].mxu0
        %1143 = vdwg.mxu0
        %v1144 = vsel %vm404, %v1027, 0.0
        %1145 = vadd.xlane.f32.xlu0 %v1144
        %v1146 = vpop.xlane.xlu0 %1145
        %v1147 = vsel %vm404, %v1028, 0.0
        %1148 = vadd.xlane.f32.xlu0 %v1147
        %v1149 = vpop.xlane.xlu0 %1148
        %v1150 = vsel %vm404, %v1029, 0.0
        %1151 = vadd.xlane.f32.xlu0 %v1150
        %v1152 = vpop.xlane.xlu0 %1151
        %v1153 = vsel %vm404, %v1030, 0.0
        %1154 = vadd.xlane.f32.xlu0 %v1153
        %v1155 = vpop.xlane.xlu0 %1154
        %v1156 = vadd.f32 %v1144, %v1147
        %v1157 = vadd.f32 %v1156, %v1150
        %v1158 = vadd.f32 %v1157, %v1153
        %v1159 = vrot.slane %v1158, 4
        %v1160 = vadd.f32 %v1158, %v1159
        %v1161 = vrot.slane %v1160, 2
        %v1162 = vadd.f32 %v1160, %v1161
        %v1163 = vrot.slane %v1162, 1
        %v1164 = vadd.f32 %v1162, %v1163
        %vm1165 = vcmp.gt.f32.partialorder %v1146, 0.0
        %vm1166 = vcmp.gt.f32.partialorder %v1149, 0.0
        %vm1167 = vcmp.gt.f32.partialorder %v1152, 0.0
        %vm1168 = vcmp.gt.f32.partialorder %v1155, 0.0
        %v1169 = vrcp.pop %v1146
        %v1170 = vmul.f32 1.0, %v1169
        %v1171 = vrcp.pop %v1149
        %v1172 = vmul.f32 1.0, %v1171
        %v1173 = vrcp.pop %v1152
        %v1174 = vmul.f32 1.0, %v1173
        %v1175 = vrcp.pop %v1155
        %v1176 = vmul.f32 1.0, %v1175
        %v1177 = vsel %vm1165, %v1170, 0.0
        %v1178 = vsel %vm1166, %v1172, 0.0
        %v1179 = vsel %vm1167, %v1174, 0.0
        %v1180 = vsel %vm1168, %v1176, 0.0
        %vm1181 = vcmp.gt.f32.partialorder %v1164, 0.0
        %v1182 = vrcp.pop %v1164
        %v1183 = vmul.f32 1.0, %v1182
        %v1184 = vsel %vm1181, %v1183, 0.0
        %v1185 = vmul.f32 %v1027, %v1184
        %v1186 = vmul.f32 %v1028, %v1184
        %v1187 = vmul.f32 %v1029, %v1184
        %v1188 = vmul.f32 %v1030, %v1184
        %v1189 = vmul.f32 %v1027, %v1177
        %v1190 = vmul.f32 %v1028, %v1178
        %v1191 = vmul.f32 %v1029, %v1179
        %v1192 = vmul.f32 %v1030, %v1180
        %1193 = vxpose.xlu0.b32.start [1/16] %v1185, 128
        %1194 = vxpose.xlu0.b32.cont [2/16] %v1186, 128
        %1195 = vxpose.xlu0.b32.cont [3/16] %v1187, 128
        %1196 = vxpose.xlu0.b32.cont [4/16] %v1188, 128
        %1197 = vxpose.xlu0.b32.cont [5/16] 0.0, 128
        %1198 = vxpose.xlu0.b32.cont [6/16] 0.0, 128
        %1199 = vxpose.xlu0.b32.cont [7/16] 0.0, 128
        %1200 = vxpose.xlu0.b32.cont [8/16] 0.0, 128
        %1201 = vxpose.xlu0.b32.cont [9/16] 0.0, 128
        %1202 = vxpose.xlu0.b32.cont [10/16] 0.0, 128
        %1203 = vxpose.xlu0.b32.cont [11/16] 0.0, 128
        %1204 = vxpose.xlu0.b32.cont [12/16] 0.0, 128
        %1205 = vxpose.xlu0.b32.cont [13/16] 0.0, 128
        %1206 = vxpose.xlu0.b32.cont [14/16] 0.0, 128
        %1207 = vxpose.xlu0.b32.cont [15/16] 0.0, 128
        %1208 = vxpose.xlu0.b32.end [16/16] 0.0, 128
        %v1209 = vpop.trf.xlu0
        %v1210 = vpop.trf.xlu0
        %v1211 = vpop.trf.xlu0
        %v1212 = vpop.trf.xlu0
        %v1213 = vpop.trf.xlu0
        %v1214 = vpop.trf.xlu0
        %v1215 = vpop.trf.xlu0
        %v1216 = vpop.trf.xlu0
        %v1217 = vpop.trf.xlu0
        %v1218 = vpop.trf.xlu0
        %v1219 = vpop.trf.xlu0
        %v1220 = vpop.trf.xlu0
        %v1221 = vpop.trf.xlu0
        %v1222 = vpop.trf.xlu0
        %v1223 = vpop.trf.xlu0
        %v1224 = vpop.trf.xlu0
        %v1226 = vsel %vm404, %v1209, 0
        %v1229 = vsel %vm404, %v1210, 0
        %v1232 = vsel %vm404, %v1211, 0
        %v1235 = vsel %vm404, %v1212, 0
        %1237 = vmatprep.subr.mxu0 0.0
        %1238 = vmatpush1.msra.mxu0 %v1126
        %1239 = vmatprep.subr.mxu0 0.0
        %1240 = vmatpush1.msra.mxu0 %v1131
        %1241 = vmatprep.subr.mxu0 0.0
        %1242 = vmatpush1.msra.mxu0 %v1136
        %1243 = vmatprep.subr.mxu0 0.0
        %1244 = vmatpush1.msra.mxu0 %v1141
        %1245 = vmatprep.subr.mxu0 0.0
        %1246 = vmatpush1.msra.mxu0 0.0
        %1247 = vmatprep.subr.mxu0 0.0
        %1248 = vmatpush1.msra.mxu0 0.0
        %1249 = vmatprep.subr.mxu0 0.0
        %1250 = vmatpush1.msra.mxu0 0.0
        %1251 = vmatprep.subr.mxu0 0.0
        %1252 = vmatpush1.msra.mxu0 0.0
        %1253 = vmatprep.subr.mxu0 0.0
        %1254 = vmatpush1.msra.mxu0 0.0
        %1255 = vmatprep.subr.mxu0 0.0
        %1256 = vmatpush1.msra.mxu0 0.0
        %1257 = vmatprep.subr.mxu0 0.0
        %1258 = vmatpush1.msra.mxu0 0.0
        %1259 = vmatprep.subr.mxu0 0.0
        %1260 = vmatpush1.msra.mxu0 0.0
        %1261 = vmatprep.subr.mxu0 0.0
        %1262 = vmatpush1.msra.mxu0 0.0
        %1263 = vmatprep.subr.mxu0 0.0
        %1264 = vmatpush1.msra.mxu0 0.0
        %1265 = vmatprep.subr.mxu0 0.0
        %1266 = vmatpush1.msra.mxu0 0.0
        %1267 = vmatprep.subr.mxu0 0.0
        %1268 = vmatpush1.msra.mxu0 0.0
        %1269 = vmatprep.subr.mxu0 0.0
        %1270 = vmatpush1.msra.mxu0 0.0
        %1271 = vmatprep.subr.mxu0 0.0
        %1272 = vmatpush1.msra.mxu0 0.0
        %1273 = vmatprep.subr.mxu0 0.0
        %1274 = vmatpush1.msra.mxu0 0.0
        %1275 = vmatprep.subr.mxu0 0.0
        %1276 = vmatpush1.msra.mxu0 0.0
        %1277 = vmatprep.subr.mxu0 0.0
        %1278 = vmatpush1.msra.mxu0 0.0
        %1279 = vmatprep.subr.mxu0 0.0
        %1280 = vmatpush1.msra.mxu0 0.0
        %1281 = vmatprep.subr.mxu0 0.0
        %1282 = vmatpush1.msra.mxu0 0.0
        %1283 = vmatprep.subr.mxu0 0.0
        %1284 = vmatpush1.msra.mxu0 0.0
        %1285 = vmatprep.subr.mxu0 0.0
        %1286 = vmatpush1.msra.mxu0 0.0
        %1287 = vmatprep.subr.mxu0 0.0
        %1288 = vmatpush1.msra.mxu0 0.0
        %1289 = vmatprep.subr.mxu0 0.0
        %1290 = vmatpush1.msra.mxu0 0.0
        %1291 = vmatprep.subr.mxu0 0.0
        %1292 = vmatpush1.msra.mxu0 0.0
        %1293 = vmatprep.subr.mxu0 0.0
        %1294 = vmatpush1.msra.mxu0 0.0
        %1295 = vmatprep.subr.mxu0 0.0
        %1296 = vmatpush1.msra.mxu0 0.0
        %1297 = vmatprep.subr.mxu0 0.0
        %1298 = vmatpush1.msra.mxu0 0.0
        %1299 = vmatprep.subr.mxu0 0.0
        %1300 = vmatpush1.msra.mxu0 0.0
        %1301 = vmatprep.mubr.f32.mxu0 0.0
        %1302 = vmatmul.mubr.f32.gmra.mrb[0].mxu0 %v1226
        %v1303 = vpop.f32.mrb[0].mxu0
        %v1304 = vadd.f32 0.0, %v1303
        %v1305 = vpop.f32.mrb[0].mxu0
        %1306 = vmatprep.mubr.f32.mxu0 0.0
        %1307 = vmatmul.mubr.f32.gmra.mrb[0].mxu0 %v1229
        %v1308 = vpop.f32.mrb[0].mxu0
        %v1309 = vadd.f32 0.0, %v1308
        %v1310 = vpop.f32.mrb[0].mxu0
        %1311 = vmatprep.mubr.f32.mxu0 0.0
        %1312 = vmatmul.mubr.f32.gmra.mrb[0].mxu0 %v1232
        %v1313 = vpop.f32.mrb[0].mxu0
        %v1314 = vadd.f32 0.0, %v1313
        %v1315 = vpop.f32.mrb[0].mxu0
        %1316 = vmatprep.mubr.f32.mxu0 0.0
        %1317 = vmatmul.mubr.f32.gmra.mrb[0].mxu0 %v1235
        %v1318 = vpop.f32.mrb[0].mxu0
        %v1319 = vadd.f32 0.0, %v1318
        %v1320 = vpop.f32.mrb[0].mxu0
        %1321 = vdwg.mxu0
        %v1322 = vlaneseq
        %v1323 = vshrl.u32 %v1322, 7
        %v1324 = vsub.s32 0, %v1323
        %v1325 = vrot.slane %v1035, %v1324
        %v1327 = vsel %vm404, %v1189, 0
        %v1330 = vsel %vm404, %v1190, 0
        %v1333 = vsel %vm404, %v1191, 0
        %v1336 = vsel %vm404, %v1192, 0
        %1338 = vmatprep.subr.mxu0 0.0
        %1339 = vmatpush1.msra.mxu0 %v1304
        %1340 = vmatprep.subr.mxu0 0.0
        %1341 = vmatpush1.msra.mxu0 %v1309
        %1342 = vmatprep.subr.mxu0 0.0
        %1343 = vmatpush1.msra.mxu0 %v1314
        %1344 = vmatprep.subr.mxu0 0.0
        %1345 = vmatpush1.msra.mxu0 %v1319
        %1346 = vmatprep.subr.mxu0 0.0
        %1347 = vmatpush1.msra.mxu0 0.0
        %1348 = vmatprep.subr.mxu0 0.0
        %1349 = vmatpush1.msra.mxu0 0.0
        %1350 = vmatprep.subr.mxu0 0.0
        %1351 = vmatpush1.msra.mxu0 0.0
        %1352 = vmatprep.subr.mxu0 0.0
        %1353 = vmatpush1.msra.mxu0 0.0
        %1354 = vmatprep.subr.mxu0 0.0
        %1355 = vmatpush1.msra.mxu0 0.0
        %1356 = vmatprep.subr.mxu0 0.0
        %1357 = vmatpush1.msra.mxu0 0.0
        %1358 = vmatprep.subr.mxu0 0.0
        %1359 = vmatpush1.msra.mxu0 0.0
        %1360 = vmatprep.subr.mxu0 0.0
        %1361 = vmatpush1.msra.mxu0 0.0
        %1362 = vmatprep.subr.mxu0 0.0
        %1363 = vmatpush1.msra.mxu0 0.0
        %1364 = vmatprep.subr.mxu0 0.0
        %1365 = vmatpush1.msra.mxu0 0.0
        %1366 = vmatprep.subr.mxu0 0.0
        %1367 = vmatpush1.msra.mxu0 0.0
        %1368 = vmatprep.subr.mxu0 0.0
        %1369 = vmatpush1.msra.mxu0 0.0
        %1370 = vmatprep.subr.mxu0 0.0
        %1371 = vmatpush1.msra.mxu0 0.0
        %1372 = vmatprep.subr.mxu0 0.0
        %1373 = vmatpush1.msra.mxu0 0.0
        %1374 = vmatprep.subr.mxu0 0.0
        %1375 = vmatpush1.msra.mxu0 0.0
        %1376 = vmatprep.subr.mxu0 0.0
        %1377 = vmatpush1.msra.mxu0 0.0
        %1378 = vmatprep.subr.mxu0 0.0
        %1379 = vmatpush1.msra.mxu0 0.0
        %1380 = vmatprep.subr.mxu0 0.0
        %1381 = vmatpush1.msra.mxu0 0.0
        %1382 = vmatprep.subr.mxu0 0.0
        %1383 = vmatpush1.msra.mxu0 0.0
        %1384 = vmatprep.subr.mxu0 0.0
        %1385 = vmatpush1.msra.mxu0 0.0
        %1386 = vmatprep.subr.mxu0 0.0
        %1387 = vmatpush1.msra.mxu0 0.0
        %1388 = vmatprep.subr.mxu0 0.0
        %1389 = vmatpush1.msra.mxu0 0.0
        %1390 = vmatprep.subr.mxu0 0.0
        %1391 = vmatpush1.msra.mxu0 0.0
        %1392 = vmatprep.subr.mxu0 0.0
        %1393 = vmatpush1.msra.mxu0 0.0
        %1394 = vmatprep.subr.mxu0 0.0
        %1395 = vmatpush1.msra.mxu0 0.0
        %1396 = vmatprep.subr.mxu0 0.0
        %1397 = vmatpush1.msra.mxu0 0.0
        %1398 = vmatprep.subr.mxu0 0.0
        %1399 = vmatpush1.msra.mxu0 0.0
        %1400 = vmatprep.subr.mxu0 0.0
        %1401 = vmatpush1.msra.mxu0 0.0
        %1402 = vmatprep.mubr.f32.mxu0 0.0
        %1403 = vmatmul.mubr.f32.gmra.mrb[0].mxu0 %v1327
        %v1404 = vpop.f32.mrb[0].mxu0
        %v1405 = vadd.f32 %v1325, %v1404
        %v1406 = vpop.f32.mrb[0].mxu0
        %1407 = vmatprep.mubr.f32.mxu0 0.0
        %1408 = vmatmul.mubr.f32.gmra.mrb[0].mxu0 %v1330
        %v1409 = vpop.f32.mrb[0].mxu0
        %v1410 = vadd.f32 %v1325, %v1409
        %v1411 = vpop.f32.mrb[0].mxu0
        %1412 = vmatprep.mubr.f32.mxu0 0.0
        %1413 = vmatmul.mubr.f32.gmra.mrb[0].mxu0 %v1333
        %v1414 = vpop.f32.mrb[0].mxu0
        %v1415 = vadd.f32 %v1325, %v1414
        %v1416 = vpop.f32.mrb[0].mxu0
        %1417 = vmatprep.mubr.f32.mxu0 0.0
        %1418 = vmatmul.mubr.f32.gmra.mrb[0].mxu0 %v1336
        %v1419 = vpop.f32.mrb[0].mxu0
        %v1420 = vadd.f32 %v1325, %v1419
        %v1421 = vpop.f32.mrb[0].mxu0
        %1422 = vdwg.mxu0
        %vm1423 = vcmp.gt.f32.partialorder %v1405, 0.0
        %vm1424 = vcmp.gt.f32.partialorder %v1410, 0.0
        %vm1425 = vcmp.gt.f32.partialorder %v1415, 0.0
        %vm1426 = vcmp.gt.f32.partialorder %v1420, 0.0
        %v1427 = vmul.f32 %v1405, 0.2
        %v1428 = vmul.f32 %v1410, 0.2
        %v1429 = vmul.f32 %v1415, 0.2
        %v1430 = vmul.f32 %v1420, 0.2
        %v1431 = vsel %vm1423, %v1405, %v1427
        %v1432 = vsel %vm1424, %v1410, %v1428
        %v1433 = vsel %vm1425, %v1415, %v1429
        %v1434 = vsel %vm1426, %v1420, %v1430
        %1435 = vmatprep.subr.mxu0 0.0
        %1436 = vmatpush1.msra.mxu0 %v1431
        %1437 = vmatprep.subr.mxu0 0.0
        %1438 = vmatpush1.msra.mxu0 %v1432
        %1439 = vmatprep.subr.mxu0 0.0
        %1440 = vmatpush1.msra.mxu0 %v1433
        %1441 = vmatprep.subr.mxu0 0.0
        %1442 = vmatpush1.msra.mxu0 %v1434
        %1443 = vmatprep.subr.mxu0 0.0
        %1444 = vmatpush1.msra.mxu0 0.0
        %1445 = vmatprep.subr.mxu0 0.0
        %1446 = vmatpush1.msra.mxu0 0.0
        %1447 = vmatprep.subr.mxu0 0.0
        %1448 = vmatpush1.msra.mxu0 0.0
        %1449 = vmatprep.subr.mxu0 0.0
        %1450 = vmatpush1.msra.mxu0 0.0
        %1451 = vmatprep.subr.mxu0 0.0
        %1452 = vmatpush1.msra.mxu0 0.0
        %1453 = vmatprep.subr.mxu0 0.0
        %1454 = vmatpush1.msra.mxu0 0.0
        %1455 = vmatprep.subr.mxu0 0.0
        %1456 = vmatpush1.msra.mxu0 0.0
        %1457 = vmatprep.subr.mxu0 0.0
        %1458 = vmatpush1.msra.mxu0 0.0
        %1459 = vmatprep.subr.mxu0 0.0
        %1460 = vmatpush1.msra.mxu0 0.0
        %1461 = vmatprep.subr.mxu0 0.0
        %1462 = vmatpush1.msra.mxu0 0.0
        %1463 = vmatprep.subr.mxu0 0.0
        %1464 = vmatpush1.msra.mxu0 0.0
        %1465 = vmatprep.subr.mxu0 0.0
        %1466 = vmatpush1.msra.mxu0 0.0
        %1467 = vmatprep.subr.mxu0 0.0
        %1468 = vmatpush1.msra.mxu0 0.0
        %1469 = vmatprep.subr.mxu0 0.0
        %1470 = vmatpush1.msra.mxu0 0.0
        %1471 = vmatprep.subr.mxu0 0.0
        %1472 = vmatpush1.msra.mxu0 0.0
        %1473 = vmatprep.subr.mxu0 0.0
        %1474 = vmatpush1.msra.mxu0 0.0
        %1475 = vmatprep.subr.mxu0 0.0
        %1476 = vmatpush1.msra.mxu0 0.0
        %1477 = vmatprep.subr.mxu0 0.0
        %1478 = vmatpush1.msra.mxu0 0.0
        %1479 = vmatprep.subr.mxu0 0.0
        %1480 = vmatpush1.msra.mxu0 0.0
        %1481 = vmatprep.subr.mxu0 0.0
        %1482 = vmatpush1.msra.mxu0 0.0
        %1483 = vmatprep.subr.mxu0 0.0
        %1484 = vmatpush1.msra.mxu0 0.0
        %1485 = vmatprep.subr.mxu0 0.0
        %1486 = vmatpush1.msra.mxu0 0.0
        %1487 = vmatprep.subr.mxu0 0.0
        %1488 = vmatpush1.msra.mxu0 0.0
        %1489 = vmatprep.subr.mxu0 0.0
        %1490 = vmatpush1.msra.mxu0 0.0
        %1491 = vmatprep.subr.mxu0 0.0
        %1492 = vmatpush1.msra.mxu0 0.0
        %1493 = vmatprep.subr.mxu0 0.0
        %1494 = vmatpush1.msra.mxu0 0.0
        %1495 = vmatprep.subr.mxu0 0.0
        %1496 = vmatpush1.msra.mxu0 0.0
        %1497 = vmatprep.subr.mxu0 0.0
        %1498 = vmatpush1.msra.mxu0 0.0
        %1499 = vmatprep.mubr.f32.mxu0 0.0
        %1500 = vmatmul.mubr.f32.gmra.mrb[0].mxu0 %v1226
        %v1501 = vpop.f32.mrb[0].mxu0
        %v1502 = vadd.f32 0.0, %v1501
        %v1503 = vpop.f32.mrb[0].mxu0
        %1504 = vmatprep.mubr.f32.mxu0 0.0
        %1505 = vmatmul.mubr.f32.gmra.mrb[0].mxu0 %v1229
        %v1506 = vpop.f32.mrb[0].mxu0
        %v1507 = vadd.f32 0.0, %v1506
        %v1508 = vpop.f32.mrb[0].mxu0
        %1509 = vmatprep.mubr.f32.mxu0 0.0
        %1510 = vmatmul.mubr.f32.gmra.mrb[0].mxu0 %v1232
        %v1511 = vpop.f32.mrb[0].mxu0
        %v1512 = vadd.f32 0.0, %v1511
        %v1513 = vpop.f32.mrb[0].mxu0
        %1514 = vmatprep.mubr.f32.mxu0 0.0
        %1515 = vmatmul.mubr.f32.gmra.mrb[0].mxu0 %v1235
        %v1516 = vpop.f32.mrb[0].mxu0
        %v1517 = vadd.f32 0.0, %v1516
        %v1518 = vpop.f32.mrb[0].mxu0
        %1519 = vdwg.mxu0
        %v1520 = vlaneseq
        %v1521 = vshrl.u32 %v1520, 7
        %v1522 = vsub.s32 0, %v1521
        %v1523 = vrot.slane %v1036, %v1522
        %v1524 = vmul.f32 %v1502, %v1523
        %v1525 = vmul.f32 %v1507, %v1523
        %v1526 = vmul.f32 %v1512, %v1523
        %v1527 = vmul.f32 %v1517, %v1523
        %v1528 = vsel %vm404, %v1524, 0.0
        %1529 = vadd.xlane.f32.xlu0 %v1528
        %v1530 = vpop.xlane.xlu0 %1529
        %v1531 = vsel %vm404, %v1525, 0.0
        %1532 = vadd.xlane.f32.xlu0 %v1531
        %v1533 = vpop.xlane.xlu0 %1532
        %v1534 = vsel %vm404, %v1526, 0.0
        %1535 = vadd.xlane.f32.xlu0 %v1534
        %v1536 = vpop.xlane.xlu0 %1535
        %v1537 = vsel %vm404, %v1527, 0.0
        %1538 = vadd.xlane.f32.xlu0 %v1537
        %v1539 = vpop.xlane.xlu0 %1538
        %1540 = vxpose.xlu0.b32.start [1/16] %v1530, 128
        %1541 = vxpose.xlu0.b32.cont [2/16] %v1533, 128
        %1542 = vxpose.xlu0.b32.cont [3/16] %v1536, 128
        %1543 = vxpose.xlu0.b32.cont [4/16] %v1539, 128
        %1544 = vxpose.xlu0.b32.cont [5/16] 0.0, 128
        %1545 = vxpose.xlu0.b32.cont [6/16] 0.0, 128
        %1546 = vxpose.xlu0.b32.cont [7/16] 0.0, 128
        %1547 = vxpose.xlu0.b32.cont [8/16] 0.0, 128
        %1548 = vxpose.xlu0.b32.cont [9/16] 0.0, 128
        %1549 = vxpose.xlu0.b32.cont [10/16] 0.0, 128
        %1550 = vxpose.xlu0.b32.cont [11/16] 0.0, 128
        %1551 = vxpose.xlu0.b32.cont [12/16] 0.0, 128
        %1552 = vxpose.xlu0.b32.cont [13/16] 0.0, 128
        %1553 = vxpose.xlu0.b32.cont [14/16] 0.0, 128
        %1554 = vxpose.xlu0.b32.cont [15/16] 0.0, 128
        %1555 = vxpose.xlu0.b32.end [16/16] 0.0, 128
        %v1556 = vpop.trf.xlu0
        %v1557 = vpop.trf.xlu0
        %v1558 = vpop.trf.xlu0
        %v1559 = vpop.trf.xlu0
        %v1560 = vpop.trf.xlu0
        %v1561 = vpop.trf.xlu0
        %v1562 = vpop.trf.xlu0
        %v1563 = vpop.trf.xlu0
        %v1564 = vpop.trf.xlu0
        %v1565 = vpop.trf.xlu0
        %v1566 = vpop.trf.xlu0
        %v1567 = vpop.trf.xlu0
        %v1568 = vpop.trf.xlu0
        %v1569 = vpop.trf.xlu0
        %v1570 = vpop.trf.xlu0
        %v1571 = vpop.trf.xlu0
        %v1573 = vsel %vm404, %v1556, 0
        %1575 = vmatprep.subr.mxu0 0.0
        %1576 = vmatpush1.msra.mxu0 %v373
        %1577 = vmatprep.subr.mxu0 0.0
        %1578 = vmatpush1.msra.mxu0 %v374
        %1579 = vmatprep.subr.mxu0 0.0
        %1580 = vmatpush1.msra.mxu0 %v375
        %1581 = vmatprep.subr.mxu0 0.0
        %1582 = vmatpush1.msra.mxu0 %v376
        %1583 = vmatprep.subr.mxu0 0.0
        %1584 = vmatpush1.msra.mxu0 0.0
        %1585 = vmatprep.subr.mxu0 0.0
        %1586 = vmatpush1.msra.mxu0 0.0
        %1587 = vmatprep.subr.mxu0 0.0
        %1588 = vmatpush1.msra.mxu0 0.0
        %1589 = vmatprep.subr.mxu0 0.0
        %1590 = vmatpush1.msra.mxu0 0.0
        %1591 = vmatprep.subr.mxu0 0.0
        %1592 = vmatpush1.msra.mxu0 0.0
        %1593 = vmatprep.subr.mxu0 0.0
        %1594 = vmatpush1.msra.mxu0 0.0
        %1595 = vmatprep.subr.mxu0 0.0
        %1596 = vmatpush1.msra.mxu0 0.0
        %1597 = vmatprep.subr.mxu0 0.0
        %1598 = vmatpush1.msra.mxu0 0.0
        %1599 = vmatprep.subr.mxu0 0.0
        %1600 = vmatpush1.msra.mxu0 0.0
        %1601 = vmatprep.subr.mxu0 0.0
        %1602 = vmatpush1.msra.mxu0 0.0
        %1603 = vmatprep.subr.mxu0 0.0
        %1604 = vmatpush1.msra.mxu0 0.0
        %1605 = vmatprep.subr.mxu0 0.0
        %1606 = vmatpush1.msra.mxu0 0.0
        %1607 = vmatprep.subr.mxu0 0.0
        %1608 = vmatpush1.msra.mxu0 0.0
        %1609 = vmatprep.subr.mxu0 0.0
        %1610 = vmatpush1.msra.mxu0 0.0
        %1611 = vmatprep.subr.mxu0 0.0
        %1612 = vmatpush1.msra.mxu0 0.0
        %1613 = vmatprep.subr.mxu0 0.0
        %1614 = vmatpush1.msra.mxu0 0.0
        %1615 = vmatprep.subr.mxu0 0.0
        %1616 = vmatpush1.msra.mxu0 0.0
        %1617 = vmatprep.subr.mxu0 0.0
        %1618 = vmatpush1.msra.mxu0 0.0
        %1619 = vmatprep.subr.mxu0 0.0
        %1620 = vmatpush1.msra.mxu0 0.0
        %1621 = vmatprep.subr.mxu0 0.0
        %1622 = vmatpush1.msra.mxu0 0.0
        %1623 = vmatprep.subr.mxu0 0.0
        %1624 = vmatpush1.msra.mxu0 0.0
        %1625 = vmatprep.subr.mxu0 0.0
        %1626 = vmatpush1.msra.mxu0 0.0
        %1627 = vmatprep.subr.mxu0 0.0
        %1628 = vmatpush1.msra.mxu0 0.0
        %1629 = vmatprep.subr.mxu0 0.0
        %1630 = vmatpush1.msra.mxu0 0.0
        %1631 = vmatprep.subr.mxu0 0.0
        %1632 = vmatpush1.msra.mxu0 0.0
        %1633 = vmatprep.subr.mxu0 0.0
        %1634 = vmatpush1.msra.mxu0 0.0
        %1635 = vmatprep.subr.mxu0 0.0
        %1636 = vmatpush1.msra.mxu0 0.0
        %1637 = vmatprep.subr.mxu0 0.0
        %1638 = vmatpush1.msra.mxu0 0.0
        %1639 = vmatprep.mubr.f32.mxu0 0.0
        %1640 = vmatmul.mubr.f32.gmra.mrb[0].mxu0 %v1573
        %v1641 = vpop.f32.mrb[0].mxu0
        %v1642 = vadd.f32 0.0, %v1641
        %v1643 = vpop.f32.mrb[0].mxu0
        %1644 = vdwg.mxu0
        %v1645 = vxor.u32 %v1530, 2147483648
        %v1646 = vxor.u32 %v1533, 2147483648
        %v1647 = vxor.u32 %v1536, 2147483648
        %v1648 = vxor.u32 %v1539, 2147483648
        %v1649 = vmul.f32 %v1645, 1.442695
        %v1650 = vpow.pop %v1649
        %v1651 = vmul.f32 %v1646, 1.442695
        %v1652 = vpow.pop %v1651
        %v1653 = vmul.f32 %v1647, 1.442695
        %v1654 = vpow.pop %v1653
        %v1655 = vmul.f32 %v1648, 1.442695
        %v1656 = vpow.pop %v1655
        %v1657 = vadd.f32 %v1650, 1.0
        %v1658 = vadd.f32 %v1652, 1.0
        %v1659 = vadd.f32 %v1654, 1.0
        %v1660 = vadd.f32 %v1656, 1.0
        %v1661 = vrcp.pop %v1657
        %v1662 = vmul.f32 1.0, %v1661
        %v1663 = vrcp.pop %v1658
        %v1664 = vmul.f32 1.0, %v1663
        %v1665 = vrcp.pop %v1659
        %v1666 = vmul.f32 1.0, %v1665
        %v1667 = vrcp.pop %v1660
        %v1668 = vmul.f32 1.0, %v1667
        %vm1669 = vcmp.lt.s32.totalorder %v359, 16
        %vm1670 = vcmp.lt.s32.totalorder %v360, 16
        %vm1671 = vcmp.lt.s32.totalorder %v361, 16
        %vm1672 = vcmp.lt.s32.totalorder %v362, 16
        %v1673 = vsel %vm1669, 0, 1
        %v1674 = vsel %vm1670, 0, 1
        %v1675 = vsel %vm1671, 0, 1
        %v1676 = vsel %vm1672, 0, 1
        %vm1677 = vcmp.lt.s32.totalorder %v364, 16
        %v1678 = vsel %vm1677, 0, 1
        %vm1679 = vcmp.eq.s32.totalorder %v1673, %v1678
        %vm1680 = vcmp.eq.s32.totalorder %v1674, %v1678
        %vm1681 = vcmp.eq.s32.totalorder %v1675, %v1678
        %vm1682 = vcmp.eq.s32.totalorder %v1676, %v1678
        %v1683 = vlaneseq
        %v1684 = vshrl.u32 %v1683, 7
        %v1685 = vsub.s32 0, %v1684
        %v1686 = vrot.slane %v1642, %v1685
        %vm1687 = vcmp.gt.f32.partialorder %v1686, %v1530
        %vm1688 = vcmp.gt.f32.partialorder %v1686, %v1533
        %vm1689 = vcmp.gt.f32.partialorder %v1686, %v1536
        %vm1690 = vcmp.gt.f32.partialorder %v1686, %v1539
        %vm1691 = vcmp.eq.f32.partialorder %v1686, %v1530
        %vm1692 = vcmp.eq.f32.partialorder %v1686, %v1533
        %vm1693 = vcmp.eq.f32.partialorder %v1686, %v1536
        %vm1694 = vcmp.eq.f32.partialorder %v1686, %v1539
        %vm1695 = vcmp.lt.s32.totalorder %v364, %v359
        %vm1696 = vcmp.lt.s32.totalorder %v364, %v360
        %vm1697 = vcmp.lt.s32.totalorder %v364, %v361
        %vm1698 = vcmp.lt.s32.totalorder %v364, %v362
        %vm1699 = vmand %vm1691, %vm1695
        %vm1700 = vmand %vm1692, %vm1696
        %vm1701 = vmand %vm1693, %vm1697
        %vm1702 = vmand %vm1694, %vm1698
        %vm1703 = vmor %vm1687, %vm1699
        %vm1704 = vmor %vm1688, %vm1700
        %vm1705 = vmor %vm1689, %vm1701
        %vm1706 = vmor %vm1690, %vm1702
        %vm1707 = vmand %vm1679, %vm1703
        %vm1708 = vmand %vm1680, %vm1704
        %vm1709 = vmand %vm1681, %vm1705
        %vm1710 = vmand %vm1682, %vm1706
        %v1711 = vsel %vm1707, 1, 0
        %v1712 = vsel %vm1708, 1, 0
        %v1713 = vsel %vm1709, 1, 0
        %v1714 = vsel %vm1710, 1, 0
        %v1715 = vcvt.s32.f32 %v1711
        %v1716 = vcvt.s32.f32 %v1712
        %v1717 = vcvt.s32.f32 %v1713
        %v1718 = vcvt.s32.f32 %v1714
        %v1719 = vsel %vm404, %v1715, 0.0
        %1720 = vadd.xlane.f32.xlu0 %v1719
        %v1721 = vpop.xlane.xlu0 %1720
        %v1722 = vsel %vm404, %v1716, 0.0
        %1723 = vadd.xlane.f32.xlu0 %v1722
        %v1724 = vpop.xlane.xlu0 %1723
        %v1725 = vsel %vm404, %v1717, 0.0
        %1726 = vadd.xlane.f32.xlu0 %v1725
        %v1727 = vpop.xlane.xlu0 %1726
        %v1728 = vsel %vm404, %v1718, 0.0
        %1729 = vadd.xlane.f32.xlu0 %v1728
        %v1730 = vpop.xlane.xlu0 %1729
        %vm1731 = vcmp.lt.f32.partialorder %v1721, 8.0
        %vm1732 = vcmp.lt.f32.partialorder %v1724, 8.0
        %vm1733 = vcmp.lt.f32.partialorder %v1727, 8.0
        %vm1734 = vcmp.lt.f32.partialorder %v1730, 8.0
        %v1735 = vsel %vm1731, 1, 0
        %v1736 = vsel %vm1732, 1, 0
        %v1737 = vsel %vm1733, 1, 0
        %v1738 = vsel %vm1734, 1, 0
        %v1739 = vcvt.s32.f32 %v1735
        %v1740 = vcvt.s32.f32 %v1736
        %v1741 = vcvt.s32.f32 %v1737
        %v1742 = vcvt.s32.f32 %v1738
        %v1743 = vsel %vm1669, 0.0, 8.0
        %v1744 = vsel %vm1670, 0.0, 8.0
        %v1745 = vsel %vm1671, 0.0, 8.0
        %v1746 = vsel %vm1672, 0.0, 8.0
        %v1747 = vadd.f32 %v1721, %v1743
        %v1748 = vadd.f32 %v1724, %v1744
        %v1749 = vadd.f32 %v1727, %v1745
        %v1750 = vadd.f32 %v1730, %v1746
        %v1751 = vcvt.s32.f32 %v364
        %vm1752 = vcmp.eq.f32.partialorder %v1747, %v1751
        %vm1753 = vcmp.eq.f32.partialorder %v1748, %v1751
        %vm1754 = vcmp.eq.f32.partialorder %v1749, %v1751
        %vm1755 = vcmp.eq.f32.partialorder %v1750, %v1751
        %v1756 = vsel %vm1752, 1, 0
        %v1757 = vsel %vm1753, 1, 0
        %v1758 = vsel %vm1754, 1, 0
        %v1759 = vsel %vm1755, 1, 0
        %v1760 = vcvt.s32.f32 %v1756
        %v1761 = vcvt.s32.f32 %v1757
        %v1762 = vcvt.s32.f32 %v1758
        %v1763 = vcvt.s32.f32 %v1759
        %v1764 = vmul.f32 %v1739, %v1760
        %v1765 = vmul.f32 %v1740, %v1761
        %v1766 = vmul.f32 %v1741, %v1762
        %v1767 = vmul.f32 %v1742, %v1763
        %v1768 = vmul.f32 %v1764, %v1662
        %v1769 = vmul.f32 %v1765, %v1664
        %v1770 = vmul.f32 %v1766, %v1666
        %v1771 = vmul.f32 %v1767, %v1668
        %1772 = vxpose.xlu0.b32.start [1/16] %v1768, 128
        %1773 = vxpose.xlu0.b32.cont [2/16] %v1769, 128
        %1774 = vxpose.xlu0.b32.cont [3/16] %v1770, 128
        %1775 = vxpose.xlu0.b32.cont [4/16] %v1771, 128
        %1776 = vxpose.xlu0.b32.cont [5/16] 0.0, 128
        %1777 = vxpose.xlu0.b32.cont [6/16] 0.0, 128
        %1778 = vxpose.xlu0.b32.cont [7/16] 0.0, 128
        %1779 = vxpose.xlu0.b32.cont [8/16] 0.0, 128
        %1780 = vxpose.xlu0.b32.cont [9/16] 0.0, 128
        %1781 = vxpose.xlu0.b32.cont [10/16] 0.0, 128
        %1782 = vxpose.xlu0.b32.cont [11/16] 0.0, 128
        %1783 = vxpose.xlu0.b32.cont [12/16] 0.0, 128
        %1784 = vxpose.xlu0.b32.cont [13/16] 0.0, 128
        %1785 = vxpose.xlu0.b32.cont [14/16] 0.0, 128
        %1786 = vxpose.xlu0.b32.cont [15/16] 0.0, 128
        %1787 = vxpose.xlu0.b32.end [16/16] 0.0, 128
        %v1788 = vpop.trf.xlu0
        %v1789 = vpop.trf.xlu0
        %v1790 = vpop.trf.xlu0
        %v1791 = vpop.trf.xlu0
        %v1792 = vpop.trf.xlu0
        %v1793 = vpop.trf.xlu0
        %v1794 = vpop.trf.xlu0
        %v1795 = vpop.trf.xlu0
        %v1796 = vpop.trf.xlu0
        %v1797 = vpop.trf.xlu0
        %v1798 = vpop.trf.xlu0
        %v1799 = vpop.trf.xlu0
        %v1800 = vpop.trf.xlu0
        %v1801 = vpop.trf.xlu0
        %v1802 = vpop.trf.xlu0
        %v1803 = vpop.trf.xlu0
        %v1805 = vsel %vm404, %v1788, 0
        %v1808 = vsel %vm404, %v1789, 0
        %1810 = vmatprep.subr.mxu0 0.0
        %1811 = vmatpush1.msra.mxu0 %v1502
        %1812 = vmatprep.subr.mxu0 0.0
        %1813 = vmatpush1.msra.mxu0 %v1507
        %1814 = vmatprep.subr.mxu0 0.0
        %1815 = vmatpush1.msra.mxu0 %v1512
        %1816 = vmatprep.subr.mxu0 0.0
        %1817 = vmatpush1.msra.mxu0 %v1517
        %1818 = vmatprep.subr.mxu0 0.0
        %1819 = vmatpush1.msra.mxu0 0.0
        %1820 = vmatprep.subr.mxu0 0.0
        %1821 = vmatpush1.msra.mxu0 0.0
        %1822 = vmatprep.subr.mxu0 0.0
        %1823 = vmatpush1.msra.mxu0 0.0
        %1824 = vmatprep.subr.mxu0 0.0
        %1825 = vmatpush1.msra.mxu0 0.0
        %1826 = vmatprep.subr.mxu0 0.0
        %1827 = vmatpush1.msra.mxu0 0.0
        %1828 = vmatprep.subr.mxu0 0.0
        %1829 = vmatpush1.msra.mxu0 0.0
        %1830 = vmatprep.subr.mxu0 0.0
        %1831 = vmatpush1.msra.mxu0 0.0
        %1832 = vmatprep.subr.mxu0 0.0
        %1833 = vmatpush1.msra.mxu0 0.0
        %1834 = vmatprep.subr.mxu0 0.0
        %1835 = vmatpush1.msra.mxu0 0.0
        %1836 = vmatprep.subr.mxu0 0.0
        %1837 = vmatpush1.msra.mxu0 0.0
        %1838 = vmatprep.subr.mxu0 0.0
        %1839 = vmatpush1.msra.mxu0 0.0
        %1840 = vmatprep.subr.mxu0 0.0
        %1841 = vmatpush1.msra.mxu0 0.0
        %1842 = vmatprep.subr.mxu0 0.0
        %1843 = vmatpush1.msra.mxu0 0.0
        %1844 = vmatprep.subr.mxu0 0.0
        %1845 = vmatpush1.msra.mxu0 0.0
        %1846 = vmatprep.subr.mxu0 0.0
        %1847 = vmatpush1.msra.mxu0 0.0
        %1848 = vmatprep.subr.mxu0 0.0
        %1849 = vmatpush1.msra.mxu0 0.0
        %1850 = vmatprep.subr.mxu0 0.0
        %1851 = vmatpush1.msra.mxu0 0.0
        %1852 = vmatprep.subr.mxu0 0.0
        %1853 = vmatpush1.msra.mxu0 0.0
        %1854 = vmatprep.subr.mxu0 0.0
        %1855 = vmatpush1.msra.mxu0 0.0
        %1856 = vmatprep.subr.mxu0 0.0
        %1857 = vmatpush1.msra.mxu0 0.0
        %1858 = vmatprep.subr.mxu0 0.0
        %1859 = vmatpush1.msra.mxu0 0.0
        %1860 = vmatprep.subr.mxu0 0.0
        %1861 = vmatpush1.msra.mxu0 0.0
        %1862 = vmatprep.subr.mxu0 0.0
        %1863 = vmatpush1.msra.mxu0 0.0
        %1864 = vmatprep.subr.mxu0 0.0
        %1865 = vmatpush1.msra.mxu0 0.0
        %1866 = vmatprep.subr.mxu0 0.0
        %1867 = vmatpush1.msra.mxu0 0.0
        %1868 = vmatprep.subr.mxu0 0.0
        %1869 = vmatpush1.msra.mxu0 0.0
        %1870 = vmatprep.subr.mxu0 0.0
        %1871 = vmatpush1.msra.mxu0 0.0
        %1872 = vmatprep.subr.mxu0 0.0
        %1873 = vmatpush1.msra.mxu0 0.0
        %1874 = vmatprep.mubr.f32.mxu0 0.0
        %1875 = vmatmul.mubr.f32.gmra.mrb[0].mxu0 %v1805
        %v1876 = vpop.f32.mrb[0].mxu0
        %v1877 = vadd.f32 0.0, %v1876
        %v1878 = vpop.f32.mrb[0].mxu0
        %1879 = vmatprep.mubr.f32.mxu0 0.0
        %1880 = vmatmul.mubr.f32.gmra.mrb[0].mxu0 %v1808
        %v1881 = vpop.f32.mrb[0].mxu0
        %v1882 = vadd.f32 0.0, %v1881
        %v1883 = vpop.f32.mrb[0].mxu0
        %1884 = vdwg.mxu0
        %v1886 = vsel %vm404, %v1027, 0
        %v1889 = vsel %vm404, %v1028, 0
        %v1892 = vsel %vm404, %v1029, 0
        %v1895 = vsel %vm404, %v1030, 0
        %1897 = vmatprep.subr.mxu0 0.0
        %1898 = vmatpush1.msra.mxu0 %v1764
        %1899 = vmatprep.subr.mxu0 0.0
        %1900 = vmatpush1.msra.mxu0 %v1765
        %1901 = vmatprep.subr.mxu0 0.0
        %1902 = vmatpush1.msra.mxu0 %v1766
        %1903 = vmatprep.subr.mxu0 0.0
        %1904 = vmatpush1.msra.mxu0 %v1767
        %1905 = vmatprep.subr.mxu0 0.0
        %1906 = vmatpush1.msra.mxu0 0.0
        %1907 = vmatprep.subr.mxu0 0.0
        %1908 = vmatpush1.msra.mxu0 0.0
        %1909 = vmatprep.subr.mxu0 0.0
        %1910 = vmatpush1.msra.mxu0 0.0
        %1911 = vmatprep.subr.mxu0 0.0
        %1912 = vmatpush1.msra.mxu0 0.0
        %1913 = vmatprep.subr.mxu0 0.0
        %1914 = vmatpush1.msra.mxu0 0.0
        %1915 = vmatprep.subr.mxu0 0.0
        %1916 = vmatpush1.msra.mxu0 0.0
        %1917 = vmatprep.subr.mxu0 0.0
        %1918 = vmatpush1.msra.mxu0 0.0
        %1919 = vmatprep.subr.mxu0 0.0
        %1920 = vmatpush1.msra.mxu0 0.0
        %1921 = vmatprep.subr.mxu0 0.0
        %1922 = vmatpush1.msra.mxu0 0.0
        %1923 = vmatprep.subr.mxu0 0.0
        %1924 = vmatpush1.msra.mxu0 0.0
        %1925 = vmatprep.subr.mxu0 0.0
        %1926 = vmatpush1.msra.mxu0 0.0
        %1927 = vmatprep.subr.mxu0 0.0
        %1928 = vmatpush1.msra.mxu0 0.0
        %1929 = vmatprep.subr.mxu0 0.0
        %1930 = vmatpush1.msra.mxu0 0.0
        %1931 = vmatprep.subr.mxu0 0.0
        %1932 = vmatpush1.msra.mxu0 0.0
        %1933 = vmatprep.subr.mxu0 0.0
        %1934 = vmatpush1.msra.mxu0 0.0
        %1935 = vmatprep.subr.mxu0 0.0
        %1936 = vmatpush1.msra.mxu0 0.0
        %1937 = vmatprep.subr.mxu0 0.0
        %1938 = vmatpush1.msra.mxu0 0.0
        %1939 = vmatprep.subr.mxu0 0.0
        %1940 = vmatpush1.msra.mxu0 0.0
        %1941 = vmatprep.subr.mxu0 0.0
        %1942 = vmatpush1.msra.mxu0 0.0
        %1943 = vmatprep.subr.mxu0 0.0
        %1944 = vmatpush1.msra.mxu0 0.0
        %1945 = vmatprep.subr.mxu0 0.0
        %1946 = vmatpush1.msra.mxu0 0.0
        %1947 = vmatprep.subr.mxu0 0.0
        %1948 = vmatpush1.msra.mxu0 0.0
        %1949 = vmatprep.subr.mxu0 0.0
        %1950 = vmatpush1.msra.mxu0 0.0
        %1951 = vmatprep.subr.mxu0 0.0
        %1952 = vmatpush1.msra.mxu0 0.0
        %1953 = vmatprep.subr.mxu0 0.0
        %1954 = vmatpush1.msra.mxu0 0.0
        %1955 = vmatprep.subr.mxu0 0.0
        %1956 = vmatpush1.msra.mxu0 0.0
        %1957 = vmatprep.subr.mxu0 0.0
        %1958 = vmatpush1.msra.mxu0 0.0
        %1959 = vmatprep.subr.mxu0 0.0
        %1960 = vmatpush1.msra.mxu0 0.0
        %1961 = vmatprep.mubr.f32.mxu0 0.0
        %1962 = vmatmul.mubr.f32.gmra.mrb[0].mxu0 %v1886
        %v1963 = vpop.f32.mrb[0].mxu0
        %v1964 = vadd.f32 0.0, %v1963
        %v1965 = vpop.f32.mrb[0].mxu0
        %1966 = vmatprep.mubr.f32.mxu0 0.0
        %1967 = vmatmul.mubr.f32.gmra.mrb[0].mxu0 %v1889
        %v1968 = vpop.f32.mrb[0].mxu0
        %v1969 = vadd.f32 0.0, %v1968
        %v1970 = vpop.f32.mrb[0].mxu0
        %1971 = vmatprep.mubr.f32.mxu0 0.0
        %1972 = vmatmul.mubr.f32.gmra.mrb[0].mxu0 %v1892
        %v1973 = vpop.f32.mrb[0].mxu0
        %v1974 = vadd.f32 0.0, %v1973
        %v1975 = vpop.f32.mrb[0].mxu0
        %1976 = vmatprep.mubr.f32.mxu0 0.0
        %1977 = vmatmul.mubr.f32.gmra.mrb[0].mxu0 %v1895
        %v1978 = vpop.f32.mrb[0].mxu0
        %v1979 = vadd.f32 0.0, %v1978
        %v1980 = vpop.f32.mrb[0].mxu0
        %1981 = vdwg.mxu0
        %1982 = vxpose.xlu0.b32.start [1/16] %v1964, 128
        %1983 = vxpose.xlu0.b32.cont [2/16] %v1969, 128
        %1984 = vxpose.xlu0.b32.cont [3/16] %v1974, 128
        %1985 = vxpose.xlu0.b32.cont [4/16] %v1979, 128
        %1986 = vxpose.xlu0.b32.cont [5/16] 0.0, 128
        %1987 = vxpose.xlu0.b32.cont [6/16] 0.0, 128
        %1988 = vxpose.xlu0.b32.cont [7/16] 0.0, 128
        %1989 = vxpose.xlu0.b32.cont [8/16] 0.0, 128
        %1990 = vxpose.xlu0.b32.cont [9/16] 0.0, 128
        %1991 = vxpose.xlu0.b32.cont [10/16] 0.0, 128
        %1992 = vxpose.xlu0.b32.cont [11/16] 0.0, 128
        %1993 = vxpose.xlu0.b32.cont [12/16] 0.0, 128
        %1994 = vxpose.xlu0.b32.cont [13/16] 0.0, 128
        %1995 = vxpose.xlu0.b32.cont [14/16] 0.0, 128
        %1996 = vxpose.xlu0.b32.cont [15/16] 0.0, 128
        %1997 = vxpose.xlu0.b32.end [16/16] 0.0, 128
        %v1998 = vpop.trf.xlu0
        %v1999 = vpop.trf.xlu0
        %v2000 = vpop.trf.xlu0
        %v2001 = vpop.trf.xlu0
        %v2002 = vpop.trf.xlu0
        %v2003 = vpop.trf.xlu0
        %v2004 = vpop.trf.xlu0
        %v2005 = vpop.trf.xlu0
        %v2006 = vpop.trf.xlu0
        %v2007 = vpop.trf.xlu0
        %v2008 = vpop.trf.xlu0
        %v2009 = vpop.trf.xlu0
        %v2010 = vpop.trf.xlu0
        %v2011 = vpop.trf.xlu0
        %v2012 = vpop.trf.xlu0
        %v2013 = vpop.trf.xlu0
        %v2015 = vsel %vm404, %v1998, 0
        %v2018 = vsel %vm404, %v1999, 0
        %2020 = vmatprep.subr.mxu0 0.0
        %2021 = vmatpush1.msra.mxu0 %v1964
        %2022 = vmatprep.subr.mxu0 0.0
        %2023 = vmatpush1.msra.mxu0 %v1969
        %2024 = vmatprep.subr.mxu0 0.0
        %2025 = vmatpush1.msra.mxu0 %v1974
        %2026 = vmatprep.subr.mxu0 0.0
        %2027 = vmatpush1.msra.mxu0 %v1979
        %2028 = vmatprep.subr.mxu0 0.0
        %2029 = vmatpush1.msra.mxu0 0.0
        %2030 = vmatprep.subr.mxu0 0.0
        %2031 = vmatpush1.msra.mxu0 0.0
        %2032 = vmatprep.subr.mxu0 0.0
        %2033 = vmatpush1.msra.mxu0 0.0
        %2034 = vmatprep.subr.mxu0 0.0
        %2035 = vmatpush1.msra.mxu0 0.0
        %2036 = vmatprep.subr.mxu0 0.0
        %2037 = vmatpush1.msra.mxu0 0.0
        %2038 = vmatprep.subr.mxu0 0.0
        %2039 = vmatpush1.msra.mxu0 0.0
        %2040 = vmatprep.subr.mxu0 0.0
        %2041 = vmatpush1.msra.mxu0 0.0
        %2042 = vmatprep.subr.mxu0 0.0
        %2043 = vmatpush1.msra.mxu0 0.0
        %2044 = vmatprep.subr.mxu0 0.0
        %2045 = vmatpush1.msra.mxu0 0.0
        %2046 = vmatprep.subr.mxu0 0.0
        %2047 = vmatpush1.msra.mxu0 0.0
        %2048 = vmatprep.subr.mxu0 0.0
        %2049 = vmatpush1.msra.mxu0 0.0
        %2050 = vmatprep.subr.mxu0 0.0
        %2051 = vmatpush1.msra.mxu0 0.0
        %2052 = vmatprep.subr.mxu0 0.0
        %2053 = vmatpush1.msra.mxu0 0.0
        %2054 = vmatprep.subr.mxu0 0.0
        %2055 = vmatpush1.msra.mxu0 0.0
        %2056 = vmatprep.subr.mxu0 0.0
        %2057 = vmatpush1.msra.mxu0 0.0
        %2058 = vmatprep.subr.mxu0 0.0
        %2059 = vmatpush1.msra.mxu0 0.0
        %2060 = vmatprep.subr.mxu0 0.0
        %2061 = vmatpush1.msra.mxu0 0.0
        %2062 = vmatprep.subr.mxu0 0.0
        %2063 = vmatpush1.msra.mxu0 0.0
        %2064 = vmatprep.subr.mxu0 0.0
        %2065 = vmatpush1.msra.mxu0 0.0
        %2066 = vmatprep.subr.mxu0 0.0
        %2067 = vmatpush1.msra.mxu0 0.0
        %2068 = vmatprep.subr.mxu0 0.0
        %2069 = vmatpush1.msra.mxu0 0.0
        %2070 = vmatprep.subr.mxu0 0.0
        %2071 = vmatpush1.msra.mxu0 0.0
        %2072 = vmatprep.subr.mxu0 0.0
        %2073 = vmatpush1.msra.mxu0 0.0
        %2074 = vmatprep.subr.mxu0 0.0
        %2075 = vmatpush1.msra.mxu0 0.0
        %2076 = vmatprep.subr.mxu0 0.0
        %2077 = vmatpush1.msra.mxu0 0.0
        %2078 = vmatprep.subr.mxu0 0.0
        %2079 = vmatpush1.msra.mxu0 0.0
        %2080 = vmatprep.subr.mxu0 0.0
        %2081 = vmatpush1.msra.mxu0 0.0
        %2082 = vmatprep.subr.mxu0 0.0
        %2083 = vmatpush1.msra.mxu0 0.0
        %2084 = vmatprep.mubr.f32.mxu0 0.0
        %2085 = vmatmul.mubr.f32.gmra.mrb[0].mxu0 %v2015
        %v2086 = vpop.f32.mrb[0].mxu0
        %v2087 = vadd.f32 0.0, %v2086
        %v2088 = vpop.f32.mrb[0].mxu0
        %2089 = vmatprep.mubr.f32.mxu0 0.0
        %2090 = vmatmul.mubr.f32.gmra.mrb[0].mxu0 %v2018
        %v2091 = vpop.f32.mrb[0].mxu0
        %v2092 = vadd.f32 0.0, %v2091
        %v2093 = vpop.f32.mrb[0].mxu0
        %2094 = vdwg.mxu0
        %vm2095 = vcmp.gt.f32.partialorder %v2087, 0.0
        %vm2096 = vcmp.gt.f32.partialorder %v2092, 0.0
        %v2097 = vsel %vm2095, 1, 0
        %v2098 = vsel %vm2096, 1, 0
        %v2099 = vcvt.s32.f32 %v2097
        %v2100 = vcvt.s32.f32 %v2098
        %v2102 = vsel %vm404, %v1877, 0
        %2104 = vmatprep.subr.mxu0 0.0
        %2105 = vmatpush1.msra.mxu0 %v1038
        %2106 = vmatprep.subr.mxu0 0.0
        %2107 = vmatpush1.msra.mxu0 %v1039
        %2108 = vmatprep.subr.mxu0 0.0
        %2109 = vmatpush1.msra.mxu0 %v1040
        %2110 = vmatprep.subr.mxu0 0.0
        %2111 = vmatpush1.msra.mxu0 %v1041
        %2112 = vmatprep.subr.mxu0 0.0
        %2113 = vmatpush1.msra.mxu0 0.0
        %2114 = vmatprep.subr.mxu0 0.0
        %2115 = vmatpush1.msra.mxu0 0.0
        %2116 = vmatprep.subr.mxu0 0.0
        %2117 = vmatpush1.msra.mxu0 0.0
        %2118 = vmatprep.subr.mxu0 0.0
        %2119 = vmatpush1.msra.mxu0 0.0
        %2120 = vmatprep.subr.mxu0 0.0
        %2121 = vmatpush1.msra.mxu0 0.0
        %2122 = vmatprep.subr.mxu0 0.0
        %2123 = vmatpush1.msra.mxu0 0.0
        %2124 = vmatprep.subr.mxu0 0.0
        %2125 = vmatpush1.msra.mxu0 0.0
        %2126 = vmatprep.subr.mxu0 0.0
        %2127 = vmatpush1.msra.mxu0 0.0
        %2128 = vmatprep.subr.mxu0 0.0
        %2129 = vmatpush1.msra.mxu0 0.0
        %2130 = vmatprep.subr.mxu0 0.0
        %2131 = vmatpush1.msra.mxu0 0.0
        %2132 = vmatprep.subr.mxu0 0.0
        %2133 = vmatpush1.msra.mxu0 0.0
        %2134 = vmatprep.subr.mxu0 0.0
        %2135 = vmatpush1.msra.mxu0 0.0
        %2136 = vmatprep.subr.mxu0 0.0
        %2137 = vmatpush1.msra.mxu0 0.0
        %2138 = vmatprep.subr.mxu0 0.0
        %2139 = vmatpush1.msra.mxu0 0.0
        %2140 = vmatprep.subr.mxu0 0.0
        %2141 = vmatpush1.msra.mxu0 0.0
        %2142 = vmatprep.subr.mxu0 0.0
        %2143 = vmatpush1.msra.mxu0 0.0
        %2144 = vmatprep.subr.mxu0 0.0
        %2145 = vmatpush1.msra.mxu0 0.0
        %2146 = vmatprep.subr.mxu0 0.0
        %2147 = vmatpush1.msra.mxu0 0.0
        %2148 = vmatprep.subr.mxu0 0.0
        %2149 = vmatpush1.msra.mxu0 0.0
        %2150 = vmatprep.subr.mxu0 0.0
        %2151 = vmatpush1.msra.mxu0 0.0
        %2152 = vmatprep.subr.mxu0 0.0
        %2153 = vmatpush1.msra.mxu0 0.0
        %2154 = vmatprep.subr.mxu0 0.0
        %2155 = vmatpush1.msra.mxu0 0.0
        %2156 = vmatprep.subr.mxu0 0.0
        %2157 = vmatpush1.msra.mxu0 0.0
        %2158 = vmatprep.subr.mxu0 0.0
        %2159 = vmatpush1.msra.mxu0 0.0
        %2160 = vmatprep.subr.mxu0 0.0
        %2161 = vmatpush1.msra.mxu0 0.0
        %2162 = vmatprep.subr.mxu0 0.0
        %2163 = vmatpush1.msra.mxu0 0.0
        %2164 = vmatprep.subr.mxu0 0.0
        %2165 = vmatpush1.msra.mxu0 0.0
        %2166 = vmatprep.subr.mxu0 0.0
        %2167 = vmatpush1.msra.mxu0 0.0
        %2168 = vmatprep.mubr.f32.mxu0 0.0
        %2169 = vmatmul.mubr.f32.gmra.mrb[0].mxu0 %v2102
        %v2170 = vpop.f32.mrb[0].mxu0
        %v2171 = vadd.f32 0.0, %v2170
        %v2172 = vpop.f32.mrb[0].mxu0
        %2173 = vdwg.mxu0
        %v2175 = vsel %vm404, %v2171, 0
        %v2178 = vsel %vm404, %v1882, 0
        %2180 = vmatprep.subr.mxu0 0.0
        %2181 = vmatpush1.xpose.msra.mxu0 %v2178
        %2182 = vmatprep.subr.mxu0 0.0
        %2183 = vmatpush1.xpose.msra.mxu0 0.0
        %2184 = vmatprep.subr.mxu0 0.0
        %2185 = vmatpush1.xpose.msra.mxu0 0.0
        %2186 = vmatprep.subr.mxu0 0.0
        %2187 = vmatpush1.xpose.msra.mxu0 0.0
        %2188 = vmatprep.subr.mxu0 0.0
        %2189 = vmatpush1.xpose.msra.mxu0 0.0
        %2190 = vmatprep.subr.mxu0 0.0
        %2191 = vmatpush1.xpose.msra.mxu0 0.0
        %2192 = vmatprep.subr.mxu0 0.0
        %2193 = vmatpush1.xpose.msra.mxu0 0.0
        %2194 = vmatprep.subr.mxu0 0.0
        %2195 = vmatpush1.xpose.msra.mxu0 0.0
        %2196 = vmatprep.subr.mxu0 0.0
        %2197 = vmatpush1.xpose.msra.mxu0 0.0
        %2198 = vmatprep.subr.mxu0 0.0
        %2199 = vmatpush1.xpose.msra.mxu0 0.0
        %2200 = vmatprep.subr.mxu0 0.0
        %2201 = vmatpush1.xpose.msra.mxu0 0.0
        %2202 = vmatprep.subr.mxu0 0.0
        %2203 = vmatpush1.xpose.msra.mxu0 0.0
        %2204 = vmatprep.subr.mxu0 0.0
        %2205 = vmatpush1.xpose.msra.mxu0 0.0
        %2206 = vmatprep.subr.mxu0 0.0
        %2207 = vmatpush1.xpose.msra.mxu0 0.0
        %2208 = vmatprep.subr.mxu0 0.0
        %2209 = vmatpush1.xpose.msra.mxu0 0.0
        %2210 = vmatprep.subr.mxu0 0.0
        %2211 = vmatpush1.xpose.msra.mxu0 0.0
        %2212 = vmatprep.subr.mxu0 0.0
        %2213 = vmatpush1.xpose.msra.mxu0 0.0
        %2214 = vmatprep.subr.mxu0 0.0
        %2215 = vmatpush1.xpose.msra.mxu0 0.0
        %2216 = vmatprep.subr.mxu0 0.0
        %2217 = vmatpush1.xpose.msra.mxu0 0.0
        %2218 = vmatprep.subr.mxu0 0.0
        %2219 = vmatpush1.xpose.msra.mxu0 0.0
        %2220 = vmatprep.subr.mxu0 0.0
        %2221 = vmatpush1.xpose.msra.mxu0 0.0
        %2222 = vmatprep.subr.mxu0 0.0
        %2223 = vmatpush1.xpose.msra.mxu0 0.0
        %2224 = vmatprep.subr.mxu0 0.0
        %2225 = vmatpush1.xpose.msra.mxu0 0.0
        %2226 = vmatprep.subr.mxu0 0.0
        %2227 = vmatpush1.xpose.msra.mxu0 0.0
        %2228 = vmatprep.subr.mxu0 0.0
        %2229 = vmatpush1.xpose.msra.mxu0 0.0
        %2230 = vmatprep.subr.mxu0 0.0
        %2231 = vmatpush1.xpose.msra.mxu0 0.0
        %2232 = vmatprep.subr.mxu0 0.0
        %2233 = vmatpush1.xpose.msra.mxu0 0.0
        %2234 = vmatprep.subr.mxu0 0.0
        %2235 = vmatpush1.xpose.msra.mxu0 0.0
        %2236 = vmatprep.subr.mxu0 0.0
        %2237 = vmatpush1.xpose.msra.mxu0 0.0
        %2238 = vmatprep.subr.mxu0 0.0
        %2239 = vmatpush1.xpose.msra.mxu0 0.0
        %2240 = vmatprep.subr.mxu0 0.0
        %2241 = vmatpush1.xpose.msra.mxu0 0.0
        %2242 = vmatprep.subr.mxu0 0.0
        %2243 = vmatpush1.xpose.msra.mxu0 0.0
        %2244 = vmatprep.mubr.f32.mxu0 0.0
        %2245 = vmatmul.mubr.f32.gmra.mrb[0].mxu0 %v2175
        %v2246 = vpop.f32.mrb[0].mxu0
        %v2247 = vadd.f32 0.0, %v2246
        %v2248 = vpop.f32.mrb[0].mxu0
        %2249 = vdwg.mxu0
        %v2250 = vsel %vm450, %v2247, -inf
        %2251 = vmax.xlane.f32.xlu0 %v2250
        %v2252 = vpop.xlane.xlu0 %2251
        %v2253 = vsub.f32 %v2247, %v2252
        %v2254 = vmul.f32 %v2253, 1.442695
        %v2255 = vpow.pop %v2254
        %v2256 = vsel %vm450, %v2255, 0.0
        %2257 = vadd.xlane.f32.xlu0 %v2256
        %v2258 = vpop.xlane.xlu0 %2257
        %v2259 = vrcp.pop %v2258
        %v2260 = vmul.f32 %v2255, %v2259
        %v2261 = vrot.slane %v2250, 4
        %v2262 = vmax.f32 %v2250, %v2261
        %v2263 = vrot.slane %v2262, 2
        %v2264 = vmax.f32 %v2262, %v2263
        %v2265 = vrot.slane %v2264, 1
        %v2266 = vmax.f32 %v2264, %v2265
        %v2267 = vsub.f32 %v2247, %v2266
        %v2268 = vmul.f32 %v2267, 1.442695
        %v2269 = vpow.pop %v2268
        %v2270 = vsel %vm450, %v2269, 0.0
        %v2271 = vrot.slane %v2270, 4
        %v2272 = vadd.f32 %v2270, %v2271
        %v2273 = vrot.slane %v2272, 2
        %v2274 = vadd.f32 %v2272, %v2273
        %v2275 = vrot.slane %v2274, 1
        %v2276 = vadd.f32 %v2274, %v2275
        %v2277 = vrcp.pop %v2276
        %v2278 = vmul.f32 %v2269, %v2277
        %v2280 = vsel %vm450, %v2260, 0
        %2282 = vmatprep.subr.mxu0 0.0
        %2283 = vmatpush1.msra.mxu0 %v1882
        %2284 = vmatprep.subr.mxu0 0.0
        %2285 = vmatpush1.msra.mxu0 0.0
        %2286 = vmatprep.subr.mxu0 0.0
        %2287 = vmatpush1.msra.mxu0 0.0
        %2288 = vmatprep.subr.mxu0 0.0
        %2289 = vmatpush1.msra.mxu0 0.0
        %2290 = vmatprep.subr.mxu0 0.0
        %2291 = vmatpush1.msra.mxu0 0.0
        %2292 = vmatprep.subr.mxu0 0.0
        %2293 = vmatpush1.msra.mxu0 0.0
        %2294 = vmatprep.subr.mxu0 0.0
        %2295 = vmatpush1.msra.mxu0 0.0
        %2296 = vmatprep.subr.mxu0 0.0
        %2297 = vmatpush1.msra.mxu0 0.0
        %2298 = vmatprep.subr.mxu0 0.0
        %2299 = vmatpush1.msra.mxu0 0.0
        %2300 = vmatprep.subr.mxu0 0.0
        %2301 = vmatpush1.msra.mxu0 0.0
        %2302 = vmatprep.subr.mxu0 0.0
        %2303 = vmatpush1.msra.mxu0 0.0
        %2304 = vmatprep.subr.mxu0 0.0
        %2305 = vmatpush1.msra.mxu0 0.0
        %2306 = vmatprep.subr.mxu0 0.0
        %2307 = vmatpush1.msra.mxu0 0.0
        %2308 = vmatprep.subr.mxu0 0.0
        %2309 = vmatpush1.msra.mxu0 0.0
        %2310 = vmatprep.subr.mxu0 0.0
        %2311 = vmatpush1.msra.mxu0 0.0
        %2312 = vmatprep.subr.mxu0 0.0
        %2313 = vmatpush1.msra.mxu0 0.0
        %2314 = vmatprep.subr.mxu0 0.0
        %2315 = vmatpush1.msra.mxu0 0.0
        %2316 = vmatprep.subr.mxu0 0.0
        %2317 = vmatpush1.msra.mxu0 0.0
        %2318 = vmatprep.subr.mxu0 0.0
        %2319 = vmatpush1.msra.mxu0 0.0
        %2320 = vmatprep.subr.mxu0 0.0
        %2321 = vmatpush1.msra.mxu0 0.0
        %2322 = vmatprep.subr.mxu0 0.0
        %2323 = vmatpush1.msra.mxu0 0.0
        %2324 = vmatprep.subr.mxu0 0.0
        %2325 = vmatpush1.msra.mxu0 0.0
        %2326 = vmatprep.subr.mxu0 0.0
        %2327 = vmatpush1.msra.mxu0 0.0
        %2328 = vmatprep.subr.mxu0 0.0
        %2329 = vmatpush1.msra.mxu0 0.0
        %2330 = vmatprep.subr.mxu0 0.0
        %2331 = vmatpush1.msra.mxu0 0.0
        %2332 = vmatprep.subr.mxu0 0.0
        %2333 = vmatpush1.msra.mxu0 0.0
        %2334 = vmatprep.subr.mxu0 0.0
        %2335 = vmatpush1.msra.mxu0 0.0
        %2336 = vmatprep.subr.mxu0 0.0
        %2337 = vmatpush1.msra.mxu0 0.0
        %2338 = vmatprep.subr.mxu0 0.0
        %2339 = vmatpush1.msra.mxu0 0.0
        %2340 = vmatprep.subr.mxu0 0.0
        %2341 = vmatpush1.msra.mxu0 0.0
        %2342 = vmatprep.subr.mxu0 0.0
        %2343 = vmatpush1.msra.mxu0 0.0
        %2344 = vmatprep.subr.mxu0 0.0
        %2345 = vmatpush1.msra.mxu0 0.0
        %2346 = vmatprep.mubr.f32.mxu0 0.0
        %2347 = vmatmul.mubr.f32.gmra.mrb[0].mxu0 %v2280
        %v2348 = vpop.f32.mrb[0].mxu0
        %v2349 = vadd.f32 0.0, %v2348
        %v2350 = vpop.f32.mrb[0].mxu0
        %2351 = vdwg.mxu0
        %2352 = vxpose.xlu0.b32.start [1/16] %v2278, 128
        %2353 = vxpose.xlu0.b32.cont [2/16] 0.0, 128
        %2354 = vxpose.xlu0.b32.cont [3/16] 0.0, 128
        %2355 = vxpose.xlu0.b32.cont [4/16] 0.0, 128
        %2356 = vxpose.xlu0.b32.cont [5/16] 0.0, 128
        %2357 = vxpose.xlu0.b32.cont [6/16] 0.0, 128
        %2358 = vxpose.xlu0.b32.cont [7/16] 0.0, 128
        %2359 = vxpose.xlu0.b32.cont [8/16] 0.0, 128
        %2360 = vxpose.xlu0.b32.cont [9/16] 0.0, 128
        %2361 = vxpose.xlu0.b32.cont [10/16] 0.0, 128
        %2362 = vxpose.xlu0.b32.cont [11/16] 0.0, 128
        %2363 = vxpose.xlu0.b32.cont [12/16] 0.0, 128
        %2364 = vxpose.xlu0.b32.cont [13/16] 0.0, 128
        %2365 = vxpose.xlu0.b32.cont [14/16] 0.0, 128
        %2366 = vxpose.xlu0.b32.cont [15/16] 0.0, 128
        %2367 = vxpose.xlu0.b32.end [16/16] 0.0, 128
        %v2368 = vpop.trf.xlu0
        %v2369 = vpop.trf.xlu0
        %v2370 = vpop.trf.xlu0
        %v2371 = vpop.trf.xlu0
        %v2372 = vpop.trf.xlu0
        %v2373 = vpop.trf.xlu0
        %v2374 = vpop.trf.xlu0
        %v2375 = vpop.trf.xlu0
        %v2376 = vpop.trf.xlu0
        %v2377 = vpop.trf.xlu0
        %v2378 = vpop.trf.xlu0
        %v2379 = vpop.trf.xlu0
        %v2380 = vpop.trf.xlu0
        %v2381 = vpop.trf.xlu0
        %v2382 = vpop.trf.xlu0
        %v2383 = vpop.trf.xlu0
        %v2385 = vsel %vm450, %v2368, 0
        %2387 = vmatprep.subr.mxu0 0.0
        %2388 = vmatpush1.msra.mxu0 %v1877
        %2389 = vmatprep.subr.mxu0 0.0
        %2390 = vmatpush1.msra.mxu0 0.0
        %2391 = vmatprep.subr.mxu0 0.0
        %2392 = vmatpush1.msra.mxu0 0.0
        %2393 = vmatprep.subr.mxu0 0.0
        %2394 = vmatpush1.msra.mxu0 0.0
        %2395 = vmatprep.subr.mxu0 0.0
        %2396 = vmatpush1.msra.mxu0 0.0
        %2397 = vmatprep.subr.mxu0 0.0
        %2398 = vmatpush1.msra.mxu0 0.0
        %2399 = vmatprep.subr.mxu0 0.0
        %2400 = vmatpush1.msra.mxu0 0.0
        %2401 = vmatprep.subr.mxu0 0.0
        %2402 = vmatpush1.msra.mxu0 0.0
        %2403 = vmatprep.subr.mxu0 0.0
        %2404 = vmatpush1.msra.mxu0 0.0
        %2405 = vmatprep.subr.mxu0 0.0
        %2406 = vmatpush1.msra.mxu0 0.0
        %2407 = vmatprep.subr.mxu0 0.0
        %2408 = vmatpush1.msra.mxu0 0.0
        %2409 = vmatprep.subr.mxu0 0.0
        %2410 = vmatpush1.msra.mxu0 0.0
        %2411 = vmatprep.subr.mxu0 0.0
        %2412 = vmatpush1.msra.mxu0 0.0
        %2413 = vmatprep.subr.mxu0 0.0
        %2414 = vmatpush1.msra.mxu0 0.0
        %2415 = vmatprep.subr.mxu0 0.0
        %2416 = vmatpush1.msra.mxu0 0.0
        %2417 = vmatprep.subr.mxu0 0.0
        %2418 = vmatpush1.msra.mxu0 0.0
        %2419 = vmatprep.subr.mxu0 0.0
        %2420 = vmatpush1.msra.mxu0 0.0
        %2421 = vmatprep.subr.mxu0 0.0
        %2422 = vmatpush1.msra.mxu0 0.0
        %2423 = vmatprep.subr.mxu0 0.0
        %2424 = vmatpush1.msra.mxu0 0.0
        %2425 = vmatprep.subr.mxu0 0.0
        %2426 = vmatpush1.msra.mxu0 0.0
        %2427 = vmatprep.subr.mxu0 0.0
        %2428 = vmatpush1.msra.mxu0 0.0
        %2429 = vmatprep.subr.mxu0 0.0
        %2430 = vmatpush1.msra.mxu0 0.0
        %2431 = vmatprep.subr.mxu0 0.0
        %2432 = vmatpush1.msra.mxu0 0.0
        %2433 = vmatprep.subr.mxu0 0.0
        %2434 = vmatpush1.msra.mxu0 0.0
        %2435 = vmatprep.subr.mxu0 0.0
        %2436 = vmatpush1.msra.mxu0 0.0
        %2437 = vmatprep.subr.mxu0 0.0
        %2438 = vmatpush1.msra.mxu0 0.0
        %2439 = vmatprep.subr.mxu0 0.0
        %2440 = vmatpush1.msra.mxu0 0.0
        %2441 = vmatprep.subr.mxu0 0.0
        %2442 = vmatpush1.msra.mxu0 0.0
        %2443 = vmatprep.subr.mxu0 0.0
        %2444 = vmatpush1.msra.mxu0 0.0
        %2445 = vmatprep.subr.mxu0 0.0
        %2446 = vmatpush1.msra.mxu0 0.0
        %2447 = vmatprep.subr.mxu0 0.0
        %2448 = vmatpush1.msra.mxu0 0.0
        %2449 = vmatprep.subr.mxu0 0.0
        %2450 = vmatpush1.msra.mxu0 0.0
        %2451 = vmatprep.mubr.f32.mxu0 0.0
        %2452 = vmatmul.mubr.f32.gmra.mrb[0].mxu0 %v2385
        %v2453 = vpop.f32.mrb[0].mxu0
        %v2454 = vadd.f32 0.0, %v2453
        %v2455 = vpop.f32.mrb[0].mxu0
        %2456 = vdwg.mxu0
        %v2457 = vsel %vm404, %v2349, 0.0
        %v2458 = vrot.slane %v2457, 4
        %v2459 = vadd.f32 %v2457, %v2458
        %v2460 = vrot.slane %v2459, 2
        %v2461 = vadd.f32 %v2459, %v2460
        %v2462 = vrot.slane %v2461, 1
        %v2463 = vadd.f32 %v2461, %v2462
        %v2464 = vrcp.pop 8.0
        %v2465 = vmul.f32 %v2463, %v2464
        %v2467 = vsel %vm404, %v2465, 0
        %2469 = vmatprep.subr.mxu0 0.0
        %2470 = vmatpush1.msra.mxu0 %v1043
        %2471 = vmatprep.subr.mxu0 0.0
        %2472 = vmatpush1.msra.mxu0 %v1044
        %2473 = vmatprep.subr.mxu0 0.0
        %2474 = vmatpush1.msra.mxu0 %v1045
        %2475 = vmatprep.subr.mxu0 0.0
        %2476 = vmatpush1.msra.mxu0 %v1046
        %2477 = vmatprep.subr.mxu0 0.0
        %2478 = vmatpush1.msra.mxu0 0.0
        %2479 = vmatprep.subr.mxu0 0.0
        %2480 = vmatpush1.msra.mxu0 0.0
        %2481 = vmatprep.subr.mxu0 0.0
        %2482 = vmatpush1.msra.mxu0 0.0
        %2483 = vmatprep.subr.mxu0 0.0
        %2484 = vmatpush1.msra.mxu0 0.0
        %2485 = vmatprep.subr.mxu0 0.0
        %2486 = vmatpush1.msra.mxu0 0.0
        %2487 = vmatprep.subr.mxu0 0.0
        %2488 = vmatpush1.msra.mxu0 0.0
        %2489 = vmatprep.subr.mxu0 0.0
        %2490 = vmatpush1.msra.mxu0 0.0
        %2491 = vmatprep.subr.mxu0 0.0
        %2492 = vmatpush1.msra.mxu0 0.0
        %2493 = vmatprep.subr.mxu0 0.0
        %2494 = vmatpush1.msra.mxu0 0.0
        %2495 = vmatprep.subr.mxu0 0.0
        %2496 = vmatpush1.msra.mxu0 0.0
        %2497 = vmatprep.subr.mxu0 0.0
        %2498 = vmatpush1.msra.mxu0 0.0
        %2499 = vmatprep.subr.mxu0 0.0
        %2500 = vmatpush1.msra.mxu0 0.0
        %2501 = vmatprep.subr.mxu0 0.0
        %2502 = vmatpush1.msra.mxu0 0.0
        %2503 = vmatprep.subr.mxu0 0.0
        %2504 = vmatpush1.msra.mxu0 0.0
        %2505 = vmatprep.subr.mxu0 0.0
        %2506 = vmatpush1.msra.mxu0 0.0
        %2507 = vmatprep.subr.mxu0 0.0
        %2508 = vmatpush1.msra.mxu0 0.0
        %2509 = vmatprep.subr.mxu0 0.0
        %2510 = vmatpush1.msra.mxu0 0.0
        %2511 = vmatprep.subr.mxu0 0.0
        %2512 = vmatpush1.msra.mxu0 0.0
        %2513 = vmatprep.subr.mxu0 0.0
        %2514 = vmatpush1.msra.mxu0 0.0
        %2515 = vmatprep.subr.mxu0 0.0
        %2516 = vmatpush1.msra.mxu0 0.0
        %2517 = vmatprep.subr.mxu0 0.0
        %2518 = vmatpush1.msra.mxu0 0.0
        %2519 = vmatprep.subr.mxu0 0.0
        %2520 = vmatpush1.msra.mxu0 0.0
        %2521 = vmatprep.subr.mxu0 0.0
        %2522 = vmatpush1.msra.mxu0 0.0
        %2523 = vmatprep.subr.mxu0 0.0
        %2524 = vmatpush1.msra.mxu0 0.0
        %2525 = vmatprep.subr.mxu0 0.0
        %2526 = vmatpush1.msra.mxu0 0.0
        %2527 = vmatprep.subr.mxu0 0.0
        %2528 = vmatpush1.msra.mxu0 0.0
        %2529 = vmatprep.subr.mxu0 0.0
        %2530 = vmatpush1.msra.mxu0 0.0
        %2531 = vmatprep.subr.mxu0 0.0
        %2532 = vmatpush1.msra.mxu0 0.0
        %2533 = vmatprep.mubr.f32.mxu0 0.0
        %2534 = vmatmul.mubr.f32.gmra.mrb[0].mxu0 %v2467
        %v2535 = vpop.f32.mrb[0].mxu0
        %v2536 = vadd.f32 0.0, %v2535
        %v2537 = vpop.f32.mrb[0].mxu0
        %2538 = vdwg.mxu0
        %v2539 = vtanh.pop %v2536
        %v2540 = vlaneseq
        %v2541 = vshrl.u32 %v2540, 7
        %v2542 = vsub.s32 0, %v2541
        %v2543 = vrot.slane %v2539, %v2542
        %v2544 = vmul.f32 %v2349, %v2543
        %v2545 = vsel %vm404, %v2544, 0.0
        %2546 = vadd.xlane.f32.xlu0 %v2545
        %v2547 = vpop.xlane.xlu0 %2546
        %v2548 = vxor.u32 %v2547, 2147483648
        %v2549 = vmul.f32 %v2548, 1.442695
        %v2550 = vpow.pop %v2549
        %v2551 = vadd.f32 %v2550, 1.0
        %v2552 = vrcp.pop %v2551
        %v2553 = vmul.f32 1.0, %v2552
        %v2554 = vmul.f32 %v2553, %v2349
        %v2555 = vsel %vm404, %v2554, 0.0
        %v2556 = vrot.slane %v2555, 4
        %v2557 = vadd.f32 %v2555, %v2556
        %v2558 = vrot.slane %v2557, 2
        %v2559 = vadd.f32 %v2557, %v2558
        %v2560 = vrot.slane %v2559, 1
        %v2561 = vadd.f32 %v2559, %v2560
        %v2562 = vsel %vm404, %v2454, 0.0
        %v2563 = vrot.slane %v2562, 4
        %v2564 = vadd.f32 %v2562, %v2563
        %v2565 = vrot.slane %v2564, 2
        %v2566 = vadd.f32 %v2564, %v2565
        %v2567 = vrot.slane %v2566, 1
        %v2568 = vadd.f32 %v2566, %v2567
        %v2569 = vmul.f32 %v2568, %v2464
        %v2571 = vsel %vm404, %v2569, 0
        %2573 = vmatprep.subr.mxu0 0.0
        %2574 = vmatpush1.msra.mxu0 %v1043
        %2575 = vmatprep.subr.mxu0 0.0
        %2576 = vmatpush1.msra.mxu0 %v1044
        %2577 = vmatprep.subr.mxu0 0.0
        %2578 = vmatpush1.msra.mxu0 %v1045
        %2579 = vmatprep.subr.mxu0 0.0
        %2580 = vmatpush1.msra.mxu0 %v1046
        %2581 = vmatprep.subr.mxu0 0.0
        %2582 = vmatpush1.msra.mxu0 0.0
        %2583 = vmatprep.subr.mxu0 0.0
        %2584 = vmatpush1.msra.mxu0 0.0
        %2585 = vmatprep.subr.mxu0 0.0
        %2586 = vmatpush1.msra.mxu0 0.0
        %2587 = vmatprep.subr.mxu0 0.0
        %2588 = vmatpush1.msra.mxu0 0.0
        %2589 = vmatprep.subr.mxu0 0.0
        %2590 = vmatpush1.msra.mxu0 0.0
        %2591 = vmatprep.subr.mxu0 0.0
        %2592 = vmatpush1.msra.mxu0 0.0
        %2593 = vmatprep.subr.mxu0 0.0
        %2594 = vmatpush1.msra.mxu0 0.0
        %2595 = vmatprep.subr.mxu0 0.0
        %2596 = vmatpush1.msra.mxu0 0.0
        %2597 = vmatprep.subr.mxu0 0.0
        %2598 = vmatpush1.msra.mxu0 0.0
        %2599 = vmatprep.subr.mxu0 0.0
        %2600 = vmatpush1.msra.mxu0 0.0
        %2601 = vmatprep.subr.mxu0 0.0
        %2602 = vmatpush1.msra.mxu0 0.0
        %2603 = vmatprep.subr.mxu0 0.0
        %2604 = vmatpush1.msra.mxu0 0.0
        %2605 = vmatprep.subr.mxu0 0.0
        %2606 = vmatpush1.msra.mxu0 0.0
        %2607 = vmatprep.subr.mxu0 0.0
        %2608 = vmatpush1.msra.mxu0 0.0
        %2609 = vmatprep.subr.mxu0 0.0
        %2610 = vmatpush1.msra.mxu0 0.0
        %2611 = vmatprep.subr.mxu0 0.0
        %2612 = vmatpush1.msra.mxu0 0.0
        %2613 = vmatprep.subr.mxu0 0.0
        %2614 = vmatpush1.msra.mxu0 0.0
        %2615 = vmatprep.subr.mxu0 0.0
        %2616 = vmatpush1.msra.mxu0 0.0
        %2617 = vmatprep.subr.mxu0 0.0
        %2618 = vmatpush1.msra.mxu0 0.0
        %2619 = vmatprep.subr.mxu0 0.0
        %2620 = vmatpush1.msra.mxu0 0.0
        %2621 = vmatprep.subr.mxu0 0.0
        %2622 = vmatpush1.msra.mxu0 0.0
        %2623 = vmatprep.subr.mxu0 0.0
        %2624 = vmatpush1.msra.mxu0 0.0
        %2625 = vmatprep.subr.mxu0 0.0
        %2626 = vmatpush1.msra.mxu0 0.0
        %2627 = vmatprep.subr.mxu0 0.0
        %2628 = vmatpush1.msra.mxu0 0.0
        %2629 = vmatprep.subr.mxu0 0.0
        %2630 = vmatpush1.msra.mxu0 0.0
        %2631 = vmatprep.subr.mxu0 0.0
        %2632 = vmatpush1.msra.mxu0 0.0
        %2633 = vmatprep.subr.mxu0 0.0
        %2634 = vmatpush1.msra.mxu0 0.0
        %2635 = vmatprep.subr.mxu0 0.0
        %2636 = vmatpush1.msra.mxu0 0.0
        %2637 = vmatprep.mubr.f32.mxu0 0.0
        %2638 = vmatmul.mubr.f32.gmra.mrb[0].mxu0 %v2571
        %v2639 = vpop.f32.mrb[0].mxu0
        %v2640 = vadd.f32 0.0, %v2639
        %v2641 = vpop.f32.mrb[0].mxu0
        %2642 = vdwg.mxu0
        %v2643 = vtanh.pop %v2640
        %v2644 = vlaneseq
        %v2645 = vshrl.u32 %v2644, 7
        %v2646 = vsub.s32 0, %v2645
        %v2647 = vrot.slane %v2643, %v2646
        %v2648 = vmul.f32 %v2454, %v2647
        %v2649 = vsel %vm404, %v2648, 0.0
        %2650 = vadd.xlane.f32.xlu0 %v2649
        %v2651 = vpop.xlane.xlu0 %2650
        %v2652 = vxor.u32 %v2651, 2147483648
        %v2653 = vmul.f32 %v2652, 1.442695
        %v2654 = vpow.pop %v2653
        %v2655 = vadd.f32 %v2654, 1.0
        %v2656 = vrcp.pop %v2655
        %v2657 = vmul.f32 1.0, %v2656
        %v2658 = vmul.f32 %v2657, %v2454
        %v2659 = vsel %vm404, %v2658, 0.0
        %v2660 = vrot.slane %v2659, 4
        %v2661 = vadd.f32 %v2659, %v2660
        %v2662 = vrot.slane %v2661, 2
        %v2663 = vadd.f32 %v2661, %v2662
        %v2664 = vrot.slane %v2663, 1
        %v2665 = vadd.f32 %v2663, %v2664
        %s2666 = scalar_lea.vmem %s3, 32
        %v2667 = vld [vmem:[%s2666] sm:$0xff]
        %v2668 = vld [vmem:[%s2666 + $0x8] sm:$0xff]
        %v2669 = vld [vmem:[%s2666 + $0x10] sm:$0xff]
        %v2670 = vld [vmem:[%s2666 + $0x18] sm:$0xff]
        %v2671 = vld [vmem:[%s4 + $0x2] sm:$0x1]
        %v2672 = vld [vmem:[%s5 + $0x1] sm:$0x1]
        %s2673 = scalar_lea.vmem %s3, 128
        %v2674 = vld [vmem:[%s2673] sm:$0xff]
        %v2675 = vld [vmem:[%s2673 + $0x8] sm:$0xff]
        %v2676 = vld [vmem:[%s2673 + $0x10] sm:$0xff]
        %v2677 = vld [vmem:[%s2673 + $0x18] sm:$0xff]
        %s2678 = scalar_lea.vmem %s3, 256
        %v2679 = vld [vmem:[%s2678] sm:$0xff]
        %v2680 = vld [vmem:[%s2678 + $0x8] sm:$0xff]
        %v2681 = vld [vmem:[%s2678 + $0x10] sm:$0xff]
        %v2682 = vld [vmem:[%s2678 + $0x18] sm:$0xff]
        %v2684 = vsel %vm404, %v2349, 0
        %v2687 = vsel %vm404, %v2454, 0
        %2689 = vmatprep.subr.mxu0 0.0
        %2690 = vmatpush1.msra.mxu0 %v2667
        %2691 = vmatprep.subr.mxu0 0.0
        %2692 = vmatpush1.msra.mxu0 %v2668
        %2693 = vmatprep.subr.mxu0 0.0
        %2694 = vmatpush1.msra.mxu0 %v2669
        %2695 = vmatprep.subr.mxu0 0.0
        %2696 = vmatpush1.msra.mxu0 %v2670
        %2697 = vmatprep.subr.mxu0 0.0
        %2698 = vmatpush1.msra.mxu0 0.0
        %2699 = vmatprep.subr.mxu0 0.0
        %2700 = vmatpush1.msra.mxu0 0.0
        %2701 = vmatprep.subr.mxu0 0.0
        %2702 = vmatpush1.msra.mxu0 0.0
        %2703 = vmatprep.subr.mxu0 0.0
        %2704 = vmatpush1.msra.mxu0 0.0
        %2705 = vmatprep.subr.mxu0 0.0
        %2706 = vmatpush1.msra.mxu0 0.0
        %2707 = vmatprep.subr.mxu0 0.0
        %2708 = vmatpush1.msra.mxu0 0.0
        %2709 = vmatprep.subr.mxu0 0.0
        %2710 = vmatpush1.msra.mxu0 0.0
        %2711 = vmatprep.subr.mxu0 0.0
        %2712 = vmatpush1.msra.mxu0 0.0
        %2713 = vmatprep.subr.mxu0 0.0
        %2714 = vmatpush1.msra.mxu0 0.0
        %2715 = vmatprep.subr.mxu0 0.0
        %2716 = vmatpush1.msra.mxu0 0.0
        %2717 = vmatprep.subr.mxu0 0.0
        %2718 = vmatpush1.msra.mxu0 0.0
        %2719 = vmatprep.subr.mxu0 0.0
        %2720 = vmatpush1.msra.mxu0 0.0
        %2721 = vmatprep.subr.mxu0 0.0
        %2722 = vmatpush1.msra.mxu0 0.0
        %2723 = vmatprep.subr.mxu0 0.0
        %2724 = vmatpush1.msra.mxu0 0.0
        %2725 = vmatprep.subr.mxu0 0.0
        %2726 = vmatpush1.msra.mxu0 0.0
        %2727 = vmatprep.subr.mxu0 0.0
        %2728 = vmatpush1.msra.mxu0 0.0
        %2729 = vmatprep.subr.mxu0 0.0
        %2730 = vmatpush1.msra.mxu0 0.0
        %2731 = vmatprep.subr.mxu0 0.0
        %2732 = vmatpush1.msra.mxu0 0.0
        %2733 = vmatprep.subr.mxu0 0.0
        %2734 = vmatpush1.msra.mxu0 0.0
        %2735 = vmatprep.subr.mxu0 0.0
        %2736 = vmatpush1.msra.mxu0 0.0
        %2737 = vmatprep.subr.mxu0 0.0
        %2738 = vmatpush1.msra.mxu0 0.0
        %2739 = vmatprep.subr.mxu0 0.0
        %2740 = vmatpush1.msra.mxu0 0.0
        %2741 = vmatprep.subr.mxu0 0.0
        %2742 = vmatpush1.msra.mxu0 0.0
        %2743 = vmatprep.subr.mxu0 0.0
        %2744 = vmatpush1.msra.mxu0 0.0
        %2745 = vmatprep.subr.mxu0 0.0
        %2746 = vmatpush1.msra.mxu0 0.0
        %2747 = vmatprep.subr.mxu0 0.0
        %2748 = vmatpush1.msra.mxu0 0.0
        %2749 = vmatprep.subr.mxu0 0.0
        %2750 = vmatpush1.msra.mxu0 0.0
        %2751 = vmatprep.subr.mxu0 0.0
        %2752 = vmatpush1.msra.mxu0 0.0
        %2753 = vmatprep.mubr.f32.mxu0 0.0
        %2754 = vmatmul.mubr.f32.gmra.mrb[0].mxu0 %v2684
        %v2755 = vpop.f32.mrb[0].mxu0
        %v2756 = vadd.f32 0.0, %v2755
        %v2757 = vpop.f32.mrb[0].mxu0
        %2758 = vmatprep.mubr.f32.mxu0 0.0
        %2759 = vmatmul.mubr.f32.gmra.mrb[0].mxu0 %v2687
        %v2760 = vpop.f32.mrb[0].mxu0
        %v2761 = vadd.f32 0.0, %v2760
        %v2762 = vpop.f32.mrb[0].mxu0
        %2763 = vdwg.mxu0
        %v2764 = vsel %vm387, %v2099, 0.0
        %2765 = vadd.xlane.f32.xlu0 %v2764
        %v2766 = vpop.xlane.xlu0 %2765
        %v2767 = vsel %vm387, %v2100, 0.0
        %2768 = vadd.xlane.f32.xlu0 %v2767
        %v2769 = vpop.xlane.xlu0 %2768
        %v2770 = vadd.f32 %v2764, %v2767
        %v2771 = vrot.slane %v2770, 4
        %v2772 = vadd.f32 %v2770, %v2771
        %v2773 = vrot.slane %v2772, 2
        %v2774 = vadd.f32 %v2772, %v2773
        %v2775 = vrot.slane %v2774, 1
        %v2776 = vadd.f32 %v2774, %v2775
        %vm2777 = vcmp.gt.f32.partialorder %v2766, 0.0
        %vm2778 = vcmp.gt.f32.partialorder %v2769, 0.0
        %v2779 = vrcp.pop %v2766
        %v2780 = vmul.f32 1.0, %v2779
        %v2781 = vrcp.pop %v2769
        %v2782 = vmul.f32 1.0, %v2781
        %v2783 = vsel %vm2777, %v2780, 0.0
        %v2784 = vsel %vm2778, %v2782, 0.0
        %vm2785 = vcmp.gt.f32.partialorder %v2776, 0.0
        %v2786 = vrcp.pop %v2776
        %v2787 = vmul.f32 1.0, %v2786
        %v2788 = vsel %vm2785, %v2787, 0.0
        %v2789 = vmul.f32 %v2099, %v2788
        %v2790 = vmul.f32 %v2100, %v2788
        %v2791 = vmul.f32 %v2099, %v2783
        %v2792 = vmul.f32 %v2100, %v2784
        %2793 = vxpose.xlu0.b32.start [1/16] %v2789, 128
        %2794 = vxpose.xlu0.b32.cont [2/16] %v2790, 128
        %2795 = vxpose.xlu0.b32.cont [3/16] 0.0, 128
        %2796 = vxpose.xlu0.b32.cont [4/16] 0.0, 128
        %2797 = vxpose.xlu0.b32.cont [5/16] 0.0, 128
        %2798 = vxpose.xlu0.b32.cont [6/16] 0.0, 128
        %2799 = vxpose.xlu0.b32.cont [7/16] 0.0, 128
        %2800 = vxpose.xlu0.b32.cont [8/16] 0.0, 128
        %2801 = vxpose.xlu0.b32.cont [9/16] 0.0, 128
        %2802 = vxpose.xlu0.b32.cont [10/16] 0.0, 128
        %2803 = vxpose.xlu0.b32.cont [11/16] 0.0, 128
        %2804 = vxpose.xlu0.b32.cont [12/16] 0.0, 128
        %2805 = vxpose.xlu0.b32.cont [13/16] 0.0, 128
        %2806 = vxpose.xlu0.b32.cont [14/16] 0.0, 128
        %2807 = vxpose.xlu0.b32.cont [15/16] 0.0, 128
        %2808 = vxpose.xlu0.b32.end [16/16] 0.0, 128
        %v2809 = vpop.trf.xlu0
        %v2810 = vpop.trf.xlu0
        %v2811 = vpop.trf.xlu0
        %v2812 = vpop.trf.xlu0
        %v2813 = vpop.trf.xlu0
        %v2814 = vpop.trf.xlu0
        %v2815 = vpop.trf.xlu0
        %v2816 = vpop.trf.xlu0
        %v2817 = vpop.trf.xlu0
        %v2818 = vpop.trf.xlu0
        %v2819 = vpop.trf.xlu0
        %v2820 = vpop.trf.xlu0
        %v2821 = vpop.trf.xlu0
        %v2822 = vpop.trf.xlu0
        %v2823 = vpop.trf.xlu0
        %v2824 = vpop.trf.xlu0
        %v2826 = vsel %vm387, %v2809, 0
        %v2829 = vsel %vm387, %v2810, 0
        %2831 = vmatprep.subr.mxu0 0.0
        %2832 = vmatpush1.msra.mxu0 %v2756
        %2833 = vmatprep.subr.mxu0 0.0
        %2834 = vmatpush1.msra.mxu0 %v2761
        %2835 = vmatprep.subr.mxu0 0.0
        %2836 = vmatpush1.msra.mxu0 0.0
        %2837 = vmatprep.subr.mxu0 0.0
        %2838 = vmatpush1.msra.mxu0 0.0
        %2839 = vmatprep.subr.mxu0 0.0
        %2840 = vmatpush1.msra.mxu0 0.0
        %2841 = vmatprep.subr.mxu0 0.0
        %2842 = vmatpush1.msra.mxu0 0.0
        %2843 = vmatprep.subr.mxu0 0.0
        %2844 = vmatpush1.msra.mxu0 0.0
        %2845 = vmatprep.subr.mxu0 0.0
        %2846 = vmatpush1.msra.mxu0 0.0
        %2847 = vmatprep.subr.mxu0 0.0
        %2848 = vmatpush1.msra.mxu0 0.0
        %2849 = vmatprep.subr.mxu0 0.0
        %2850 = vmatpush1.msra.mxu0 0.0
        %2851 = vmatprep.subr.mxu0 0.0
        %2852 = vmatpush1.msra.mxu0 0.0
        %2853 = vmatprep.subr.mxu0 0.0
        %2854 = vmatpush1.msra.mxu0 0.0
        %2855 = vmatprep.subr.mxu0 0.0
        %2856 = vmatpush1.msra.mxu0 0.0
        %2857 = vmatprep.subr.mxu0 0.0
        %2858 = vmatpush1.msra.mxu0 0.0
        %2859 = vmatprep.subr.mxu0 0.0
        %2860 = vmatpush1.msra.mxu0 0.0
        %2861 = vmatprep.subr.mxu0 0.0
        %2862 = vmatpush1.msra.mxu0 0.0
        %2863 = vmatprep.subr.mxu0 0.0
        %2864 = vmatpush1.msra.mxu0 0.0
        %2865 = vmatprep.subr.mxu0 0.0
        %2866 = vmatpush1.msra.mxu0 0.0
        %2867 = vmatprep.subr.mxu0 0.0
        %2868 = vmatpush1.msra.mxu0 0.0
        %2869 = vmatprep.subr.mxu0 0.0
        %2870 = vmatpush1.msra.mxu0 0.0
        %2871 = vmatprep.subr.mxu0 0.0
        %2872 = vmatpush1.msra.mxu0 0.0
        %2873 = vmatprep.subr.mxu0 0.0
        %2874 = vmatpush1.msra.mxu0 0.0
        %2875 = vmatprep.subr.mxu0 0.0
        %2876 = vmatpush1.msra.mxu0 0.0
        %2877 = vmatprep.subr.mxu0 0.0
        %2878 = vmatpush1.msra.mxu0 0.0
        %2879 = vmatprep.subr.mxu0 0.0
        %2880 = vmatpush1.msra.mxu0 0.0
        %2881 = vmatprep.subr.mxu0 0.0
        %2882 = vmatpush1.msra.mxu0 0.0
        %2883 = vmatprep.subr.mxu0 0.0
        %2884 = vmatpush1.msra.mxu0 0.0
        %2885 = vmatprep.subr.mxu0 0.0
        %2886 = vmatpush1.msra.mxu0 0.0
        %2887 = vmatprep.subr.mxu0 0.0
        %2888 = vmatpush1.msra.mxu0 0.0
        %2889 = vmatprep.subr.mxu0 0.0
        %2890 = vmatpush1.msra.mxu0 0.0
        %2891 = vmatprep.subr.mxu0 0.0
        %2892 = vmatpush1.msra.mxu0 0.0
        %2893 = vmatprep.subr.mxu0 0.0
        %2894 = vmatpush1.msra.mxu0 0.0
        %2895 = vmatprep.mubr.f32.mxu0 0.0
        %2896 = vmatmul.mubr.f32.gmra.mrb[0].mxu0 %v2826
        %v2897 = vpop.f32.mrb[0].mxu0
        %v2898 = vadd.f32 0.0, %v2897
        %v2899 = vpop.f32.mrb[0].mxu0
        %2900 = vmatprep.mubr.f32.mxu0 0.0
        %2901 = vmatmul.mubr.f32.gmra.mrb[0].mxu0 %v2829
        %v2902 = vpop.f32.mrb[0].mxu0
        %v2903 = vadd.f32 0.0, %v2902
        %v2904 = vpop.f32.mrb[0].mxu0
        %2905 = vdwg.mxu0
        %v2906 = vlaneseq
        %v2907 = vshrl.u32 %v2906, 7
        %v2908 = vsub.s32 0, %v2907
        %v2909 = vrot.slane %v2671, %v2908
        %v2911 = vsel %vm387, %v2791, 0
        %v2914 = vsel %vm387, %v2792, 0
        %2916 = vmatprep.subr.mxu0 0.0
        %2917 = vmatpush1.msra.mxu0 %v2898
        %2918 = vmatprep.subr.mxu0 0.0
        %2919 = vmatpush1.msra.mxu0 %v2903
        %2920 = vmatprep.subr.mxu0 0.0
        %2921 = vmatpush1.msra.mxu0 0.0
        %2922 = vmatprep.subr.mxu0 0.0
        %2923 = vmatpush1.msra.mxu0 0.0
        %2924 = vmatprep.subr.mxu0 0.0
        %2925 = vmatpush1.msra.mxu0 0.0
        %2926 = vmatprep.subr.mxu0 0.0
        %2927 = vmatpush1.msra.mxu0 0.0
        %2928 = vmatprep.subr.mxu0 0.0
        %2929 = vmatpush1.msra.mxu0 0.0
        %2930 = vmatprep.subr.mxu0 0.0
        %2931 = vmatpush1.msra.mxu0 0.0
        %2932 = vmatprep.subr.mxu0 0.0
        %2933 = vmatpush1.msra.mxu0 0.0
        %2934 = vmatprep.subr.mxu0 0.0
        %2935 = vmatpush1.msra.mxu0 0.0
        %2936 = vmatprep.subr.mxu0 0.0
        %2937 = vmatpush1.msra.mxu0 0.0
        %2938 = vmatprep.subr.mxu0 0.0
        %2939 = vmatpush1.msra.mxu0 0.0
        %2940 = vmatprep.subr.mxu0 0.0
        %2941 = vmatpush1.msra.mxu0 0.0
        %2942 = vmatprep.subr.mxu0 0.0
        %2943 = vmatpush1.msra.mxu0 0.0
        %2944 = vmatprep.subr.mxu0 0.0
        %2945 = vmatpush1.msra.mxu0 0.0
        %2946 = vmatprep.subr.mxu0 0.0
        %2947 = vmatpush1.msra.mxu0 0.0
        %2948 = vmatprep.subr.mxu0 0.0
        %2949 = vmatpush1.msra.mxu0 0.0
        %2950 = vmatprep.subr.mxu0 0.0
        %2951 = vmatpush1.msra.mxu0 0.0
        %2952 = vmatprep.subr.mxu0 0.0
        %2953 = vmatpush1.msra.mxu0 0.0
        %2954 = vmatprep.subr.mxu0 0.0
        %2955 = vmatpush1.msra.mxu0 0.0
        %2956 = vmatprep.subr.mxu0 0.0
        %2957 = vmatpush1.msra.mxu0 0.0
        %2958 = vmatprep.subr.mxu0 0.0
        %2959 = vmatpush1.msra.mxu0 0.0
        %2960 = vmatprep.subr.mxu0 0.0
        %2961 = vmatpush1.msra.mxu0 0.0
        %2962 = vmatprep.subr.mxu0 0.0
        %2963 = vmatpush1.msra.mxu0 0.0
        %2964 = vmatprep.subr.mxu0 0.0
        %2965 = vmatpush1.msra.mxu0 0.0
        %2966 = vmatprep.subr.mxu0 0.0
        %2967 = vmatpush1.msra.mxu0 0.0
        %2968 = vmatprep.subr.mxu0 0.0
        %2969 = vmatpush1.msra.mxu0 0.0
        %2970 = vmatprep.subr.mxu0 0.0
        %2971 = vmatpush1.msra.mxu0 0.0
        %2972 = vmatprep.subr.mxu0 0.0
        %2973 = vmatpush1.msra.mxu0 0.0
        %2974 = vmatprep.subr.mxu0 0.0
        %2975 = vmatpush1.msra.mxu0 0.0
        %2976 = vmatprep.subr.mxu0 0.0
        %2977 = vmatpush1.msra.mxu0 0.0
        %2978 = vmatprep.subr.mxu0 0.0
        %2979 = vmatpush1.msra.mxu0 0.0
        %2980 = vmatprep.mubr.f32.mxu0 0.0
        %2981 = vmatmul.mubr.f32.gmra.mrb[0].mxu0 %v2911
        %v2982 = vpop.f32.mrb[0].mxu0
        %v2983 = vadd.f32 %v2909, %v2982
        %v2984 = vpop.f32.mrb[0].mxu0
        %2985 = vmatprep.mubr.f32.mxu0 0.0
        %2986 = vmatmul.mubr.f32.gmra.mrb[0].mxu0 %v2914
        %v2987 = vpop.f32.mrb[0].mxu0
        %v2988 = vadd.f32 %v2909, %v2987
        %v2989 = vpop.f32.mrb[0].mxu0
        %2990 = vdwg.mxu0
        %vm2991 = vcmp.gt.f32.partialorder %v2983, 0.0
        %vm2992 = vcmp.gt.f32.partialorder %v2988, 0.0
        %v2993 = vmul.f32 %v2983, 0.2
        %v2994 = vmul.f32 %v2988, 0.2
        %v2995 = vsel %vm2991, %v2983, %v2993
        %v2996 = vsel %vm2992, %v2988, %v2994
        %2997 = vmatprep.subr.mxu0 0.0
        %2998 = vmatpush1.msra.mxu0 %v2995
        %2999 = vmatprep.subr.mxu0 0.0
        %3000 = vmatpush1.msra.mxu0 %v2996
        %3001 = vmatprep.subr.mxu0 0.0
        %3002 = vmatpush1.msra.mxu0 0.0
        %3003 = vmatprep.subr.mxu0 0.0
        %3004 = vmatpush1.msra.mxu0 0.0
        %3005 = vmatprep.subr.mxu0 0.0
        %3006 = vmatpush1.msra.mxu0 0.0
        %3007 = vmatprep.subr.mxu0 0.0
        %3008 = vmatpush1.msra.mxu0 0.0
        %3009 = vmatprep.subr.mxu0 0.0
        %3010 = vmatpush1.msra.mxu0 0.0
        %3011 = vmatprep.subr.mxu0 0.0
        %3012 = vmatpush1.msra.mxu0 0.0
        %3013 = vmatprep.subr.mxu0 0.0
        %3014 = vmatpush1.msra.mxu0 0.0
        %3015 = vmatprep.subr.mxu0 0.0
        %3016 = vmatpush1.msra.mxu0 0.0
        %3017 = vmatprep.subr.mxu0 0.0
        %3018 = vmatpush1.msra.mxu0 0.0
        %3019 = vmatprep.subr.mxu0 0.0
        %3020 = vmatpush1.msra.mxu0 0.0
        %3021 = vmatprep.subr.mxu0 0.0
        %3022 = vmatpush1.msra.mxu0 0.0
        %3023 = vmatprep.subr.mxu0 0.0
        %3024 = vmatpush1.msra.mxu0 0.0
        %3025 = vmatprep.subr.mxu0 0.0
        %3026 = vmatpush1.msra.mxu0 0.0
        %3027 = vmatprep.subr.mxu0 0.0
        %3028 = vmatpush1.msra.mxu0 0.0
        %3029 = vmatprep.subr.mxu0 0.0
        %3030 = vmatpush1.msra.mxu0 0.0
        %3031 = vmatprep.subr.mxu0 0.0
        %3032 = vmatpush1.msra.mxu0 0.0
        %3033 = vmatprep.subr.mxu0 0.0
        %3034 = vmatpush1.msra.mxu0 0.0
        %3035 = vmatprep.subr.mxu0 0.0
        %3036 = vmatpush1.msra.mxu0 0.0
        %3037 = vmatprep.subr.mxu0 0.0
        %3038 = vmatpush1.msra.mxu0 0.0
        %3039 = vmatprep.subr.mxu0 0.0
        %3040 = vmatpush1.msra.mxu0 0.0
        %3041 = vmatprep.subr.mxu0 0.0
        %3042 = vmatpush1.msra.mxu0 0.0
        %3043 = vmatprep.subr.mxu0 0.0
        %3044 = vmatpush1.msra.mxu0 0.0
        %3045 = vmatprep.subr.mxu0 0.0
        %3046 = vmatpush1.msra.mxu0 0.0
        %3047 = vmatprep.subr.mxu0 0.0
        %3048 = vmatpush1.msra.mxu0 0.0
        %3049 = vmatprep.subr.mxu0 0.0
        %3050 = vmatpush1.msra.mxu0 0.0
        %3051 = vmatprep.subr.mxu0 0.0
        %3052 = vmatpush1.msra.mxu0 0.0
        %3053 = vmatprep.subr.mxu0 0.0
        %3054 = vmatpush1.msra.mxu0 0.0
        %3055 = vmatprep.subr.mxu0 0.0
        %3056 = vmatpush1.msra.mxu0 0.0
        %3057 = vmatprep.subr.mxu0 0.0
        %3058 = vmatpush1.msra.mxu0 0.0
        %3059 = vmatprep.subr.mxu0 0.0
        %3060 = vmatpush1.msra.mxu0 0.0
        %3061 = vmatprep.mubr.f32.mxu0 0.0
        %3062 = vmatmul.mubr.f32.gmra.mrb[0].mxu0 %v2826
        %v3063 = vpop.f32.mrb[0].mxu0
        %v3064 = vadd.f32 0.0, %v3063
        %v3065 = vpop.f32.mrb[0].mxu0
        %3066 = vmatprep.mubr.f32.mxu0 0.0
        %3067 = vmatmul.mubr.f32.gmra.mrb[0].mxu0 %v2829
        %v3068 = vpop.f32.mrb[0].mxu0
        %v3069 = vadd.f32 0.0, %v3068
        %v3070 = vpop.f32.mrb[0].mxu0
        %3071 = vdwg.mxu0
        %v3072 = vlaneseq
        %v3073 = vshrl.u32 %v3072, 7
        %v3074 = vsub.s32 0, %v3073
        %v3075 = vrot.slane %v2672, %v3074
        %v3076 = vmul.f32 %v3064, %v3075
        %v3077 = vmul.f32 %v3069, %v3075
        %v3078 = vsel %vm404, %v3076, 0.0
        %3079 = vadd.xlane.f32.xlu0 %v3078
        %v3080 = vpop.xlane.xlu0 %3079
        %v3081 = vsel %vm404, %v3077, 0.0
        %3082 = vadd.xlane.f32.xlu0 %v3081
        %v3083 = vpop.xlane.xlu0 %3082
        %3084 = vxpose.xlu0.b32.start [1/16] %v3080, 128
        %3085 = vxpose.xlu0.b32.cont [2/16] %v3083, 128
        %3086 = vxpose.xlu0.b32.cont [3/16] 0.0, 128
        %3087 = vxpose.xlu0.b32.cont [4/16] 0.0, 128
        %3088 = vxpose.xlu0.b32.cont [5/16] 0.0, 128
        %3089 = vxpose.xlu0.b32.cont [6/16] 0.0, 128
        %3090 = vxpose.xlu0.b32.cont [7/16] 0.0, 128
        %3091 = vxpose.xlu0.b32.cont [8/16] 0.0, 128
        %3092 = vxpose.xlu0.b32.cont [9/16] 0.0, 128
        %3093 = vxpose.xlu0.b32.cont [10/16] 0.0, 128
        %3094 = vxpose.xlu0.b32.cont [11/16] 0.0, 128
        %3095 = vxpose.xlu0.b32.cont [12/16] 0.0, 128
        %3096 = vxpose.xlu0.b32.cont [13/16] 0.0, 128
        %3097 = vxpose.xlu0.b32.cont [14/16] 0.0, 128
        %3098 = vxpose.xlu0.b32.cont [15/16] 0.0, 128
        %3099 = vxpose.xlu0.b32.end [16/16] 0.0, 128
        %v3100 = vpop.trf.xlu0
        %v3101 = vpop.trf.xlu0
        %v3102 = vpop.trf.xlu0
        %v3103 = vpop.trf.xlu0
        %v3104 = vpop.trf.xlu0
        %v3105 = vpop.trf.xlu0
        %v3106 = vpop.trf.xlu0
        %v3107 = vpop.trf.xlu0
        %v3108 = vpop.trf.xlu0
        %v3109 = vpop.trf.xlu0
        %v3110 = vpop.trf.xlu0
        %v3111 = vpop.trf.xlu0
        %v3112 = vpop.trf.xlu0
        %v3113 = vpop.trf.xlu0
        %v3114 = vpop.trf.xlu0
        %v3115 = vpop.trf.xlu0
        %v3117 = vsel %vm387, %v3100, 0
        %3119 = vmatprep.subr.mxu0 0.0
        %3120 = vmatpush1.msra.mxu0 %v373
        %3121 = vmatprep.subr.mxu0 0.0
        %3122 = vmatpush1.msra.mxu0 %v374
        %3123 = vmatprep.subr.mxu0 0.0
        %3124 = vmatpush1.msra.mxu0 0.0
        %3125 = vmatprep.subr.mxu0 0.0
        %3126 = vmatpush1.msra.mxu0 0.0
        %3127 = vmatprep.subr.mxu0 0.0
        %3128 = vmatpush1.msra.mxu0 0.0
        %3129 = vmatprep.subr.mxu0 0.0
        %3130 = vmatpush1.msra.mxu0 0.0
        %3131 = vmatprep.subr.mxu0 0.0
        %3132 = vmatpush1.msra.mxu0 0.0
        %3133 = vmatprep.subr.mxu0 0.0
        %3134 = vmatpush1.msra.mxu0 0.0
        %3135 = vmatprep.subr.mxu0 0.0
        %3136 = vmatpush1.msra.mxu0 0.0
        %3137 = vmatprep.subr.mxu0 0.0
        %3138 = vmatpush1.msra.mxu0 0.0
        %3139 = vmatprep.subr.mxu0 0.0
        %3140 = vmatpush1.msra.mxu0 0.0
        %3141 = vmatprep.subr.mxu0 0.0
        %3142 = vmatpush1.msra.mxu0 0.0
        %3143 = vmatprep.subr.mxu0 0.0
        %3144 = vmatpush1.msra.mxu0 0.0
        %3145 = vmatprep.subr.mxu0 0.0
        %3146 = vmatpush1.msra.mxu0 0.0
        %3147 = vmatprep.subr.mxu0 0.0
        %3148 = vmatpush1.msra.mxu0 0.0
        %3149 = vmatprep.subr.mxu0 0.0
        %3150 = vmatpush1.msra.mxu0 0.0
        %3151 = vmatprep.subr.mxu0 0.0
        %3152 = vmatpush1.msra.mxu0 0.0
        %3153 = vmatprep.subr.mxu0 0.0
        %3154 = vmatpush1.msra.mxu0 0.0
        %3155 = vmatprep.subr.mxu0 0.0
        %3156 = vmatpush1.msra.mxu0 0.0
        %3157 = vmatprep.subr.mxu0 0.0
        %3158 = vmatpush1.msra.mxu0 0.0
        %3159 = vmatprep.subr.mxu0 0.0
        %3160 = vmatpush1.msra.mxu0 0.0
        %3161 = vmatprep.subr.mxu0 0.0
        %3162 = vmatpush1.msra.mxu0 0.0
        %3163 = vmatprep.subr.mxu0 0.0
        %3164 = vmatpush1.msra.mxu0 0.0
        %3165 = vmatprep.subr.mxu0 0.0
        %3166 = vmatpush1.msra.mxu0 0.0
        %3167 = vmatprep.subr.mxu0 0.0
        %3168 = vmatpush1.msra.mxu0 0.0
        %3169 = vmatprep.subr.mxu0 0.0
        %3170 = vmatpush1.msra.mxu0 0.0
        %3171 = vmatprep.subr.mxu0 0.0
        %3172 = vmatpush1.msra.mxu0 0.0
        %3173 = vmatprep.subr.mxu0 0.0
        %3174 = vmatpush1.msra.mxu0 0.0
        %3175 = vmatprep.subr.mxu0 0.0
        %3176 = vmatpush1.msra.mxu0 0.0
        %3177 = vmatprep.subr.mxu0 0.0
        %3178 = vmatpush1.msra.mxu0 0.0
        %3179 = vmatprep.subr.mxu0 0.0
        %3180 = vmatpush1.msra.mxu0 0.0
        %3181 = vmatprep.subr.mxu0 0.0
        %3182 = vmatpush1.msra.mxu0 0.0
        %3183 = vmatprep.mubr.f32.mxu0 0.0
        %3184 = vmatmul.mubr.f32.gmra.mrb[0].mxu0 %v3117
        %v3185 = vpop.f32.mrb[0].mxu0
        %v3186 = vadd.f32 0.0, %v3185
        %v3187 = vpop.f32.mrb[0].mxu0
        %3188 = vdwg.mxu0
        %v3189 = vxor.u32 %v3080, 2147483648
        %v3190 = vxor.u32 %v3083, 2147483648
        %v3191 = vmul.f32 %v3189, 1.442695
        %v3192 = vpow.pop %v3191
        %v3193 = vmul.f32 %v3190, 1.442695
        %v3194 = vpow.pop %v3193
        %v3195 = vadd.f32 %v3192, 1.0
        %v3196 = vadd.f32 %v3194, 1.0
        %v3197 = vrcp.pop %v3195
        %v3198 = vmul.f32 1.0, %v3197
        %v3199 = vrcp.pop %v3196
        %v3200 = vmul.f32 1.0, %v3199
        %vm3201 = vcmp.lt.s32.totalorder %v359, 8
        %vm3202 = vcmp.lt.s32.totalorder %v360, 8
        %v3203 = vsel %vm3201, 0, 1
        %v3204 = vsel %vm3202, 0, 1
        %vm3205 = vcmp.lt.s32.totalorder %v364, 8
        %v3206 = vsel %vm3205, 0, 1
        %vm3207 = vcmp.eq.s32.totalorder %v3203, %v3206
        %vm3208 = vcmp.eq.s32.totalorder %v3204, %v3206
        %v3209 = vlaneseq
        %v3210 = vshrl.u32 %v3209, 7
        %v3211 = vsub.s32 0, %v3210
        %v3212 = vrot.slane %v3186, %v3211
        %vm3213 = vcmp.gt.f32.partialorder %v3212, %v3080
        %vm3214 = vcmp.gt.f32.partialorder %v3212, %v3083
        %vm3215 = vcmp.eq.f32.partialorder %v3212, %v3080
        %vm3216 = vcmp.eq.f32.partialorder %v3212, %v3083
        %vm3217 = vmand %vm3215, %vm1695
        %vm3218 = vmand %vm3216, %vm1696
        %vm3219 = vmor %vm3213, %vm3217
        %vm3220 = vmor %vm3214, %vm3218
        %vm3221 = vmand %vm3207, %vm3219
        %vm3222 = vmand %vm3208, %vm3220
        %v3223 = vsel %vm3221, 1, 0
        %v3224 = vsel %vm3222, 1, 0
        %v3225 = vcvt.s32.f32 %v3223
        %v3226 = vcvt.s32.f32 %v3224
        %v3227 = vsel %vm387, %v3225, 0.0
        %3228 = vadd.xlane.f32.xlu0 %v3227
        %v3229 = vpop.xlane.xlu0 %3228
        %v3230 = vsel %vm387, %v3226, 0.0
        %3231 = vadd.xlane.f32.xlu0 %v3230
        %v3232 = vpop.xlane.xlu0 %3231
        %vm3233 = vcmp.lt.f32.partialorder %v3229, 4.0
        %vm3234 = vcmp.lt.f32.partialorder %v3232, 4.0
        %v3235 = vsel %vm3233, 1, 0
        %v3236 = vsel %vm3234, 1, 0
        %v3237 = vcvt.s32.f32 %v3235
        %v3238 = vcvt.s32.f32 %v3236
        %v3239 = vsel %vm3201, 0.0, 4.0
        %v3240 = vsel %vm3202, 0.0, 4.0
        %v3241 = vadd.f32 %v3229, %v3239
        %v3242 = vadd.f32 %v3232, %v3240
        %vm3243 = vcmp.eq.f32.partialorder %v3241, %v1751
        %vm3244 = vcmp.eq.f32.partialorder %v3242, %v1751
        %v3245 = vsel %vm3243, 1, 0
        %v3246 = vsel %vm3244, 1, 0
        %v3247 = vcvt.s32.f32 %v3245
        %v3248 = vcvt.s32.f32 %v3246
        %v3249 = vmul.f32 %v3237, %v3247
        %v3250 = vmul.f32 %v3238, %v3248
        %v3251 = vmul.f32 %v3249, %v3198
        %v3252 = vmul.f32 %v3250, %v3200
        %3253 = vxpose.xlu0.b32.start [1/16] %v3251, 128
        %3254 = vxpose.xlu0.b32.cont [2/16] %v3252, 128
        %3255 = vxpose.xlu0.b32.cont [3/16] 0.0, 128
        %3256 = vxpose.xlu0.b32.cont [4/16] 0.0, 128
        %3257 = vxpose.xlu0.b32.cont [5/16] 0.0, 128
        %3258 = vxpose.xlu0.b32.cont [6/16] 0.0, 128
        %3259 = vxpose.xlu0.b32.cont [7/16] 0.0, 128
        %3260 = vxpose.xlu0.b32.cont [8/16] 0.0, 128
        %3261 = vxpose.xlu0.b32.cont [9/16] 0.0, 128
        %3262 = vxpose.xlu0.b32.cont [10/16] 0.0, 128
        %3263 = vxpose.xlu0.b32.cont [11/16] 0.0, 128
        %3264 = vxpose.xlu0.b32.cont [12/16] 0.0, 128
        %3265 = vxpose.xlu0.b32.cont [13/16] 0.0, 128
        %3266 = vxpose.xlu0.b32.cont [14/16] 0.0, 128
        %3267 = vxpose.xlu0.b32.cont [15/16] 0.0, 128
        %3268 = vxpose.xlu0.b32.end [16/16] 0.0, 128
        %v3269 = vpop.trf.xlu0
        %v3270 = vpop.trf.xlu0
        %v3271 = vpop.trf.xlu0
        %v3272 = vpop.trf.xlu0
        %v3273 = vpop.trf.xlu0
        %v3274 = vpop.trf.xlu0
        %v3275 = vpop.trf.xlu0
        %v3276 = vpop.trf.xlu0
        %v3277 = vpop.trf.xlu0
        %v3278 = vpop.trf.xlu0
        %v3279 = vpop.trf.xlu0
        %v3280 = vpop.trf.xlu0
        %v3281 = vpop.trf.xlu0
        %v3282 = vpop.trf.xlu0
        %v3283 = vpop.trf.xlu0
        %v3284 = vpop.trf.xlu0
        %v3286 = vsel %vm387, %v3269, 0
        %3288 = vmatprep.subr.mxu0 0.0
        %3289 = vmatpush1.msra.mxu0 %v3064
        %3290 = vmatprep.subr.mxu0 0.0
        %3291 = vmatpush1.msra.mxu0 %v3069
        %3292 = vmatprep.subr.mxu0 0.0
        %3293 = vmatpush1.msra.mxu0 0.0
        %3294 = vmatprep.subr.mxu0 0.0
        %3295 = vmatpush1.msra.mxu0 0.0
        %3296 = vmatprep.subr.mxu0 0.0
        %3297 = vmatpush1.msra.mxu0 0.0
        %3298 = vmatprep.subr.mxu0 0.0
        %3299 = vmatpush1.msra.mxu0 0.0
        %3300 = vmatprep.subr.mxu0 0.0
        %3301 = vmatpush1.msra.mxu0 0.0
        %3302 = vmatprep.subr.mxu0 0.0
        %3303 = vmatpush1.msra.mxu0 0.0
        %3304 = vmatprep.subr.mxu0 0.0
        %3305 = vmatpush1.msra.mxu0 0.0
        %3306 = vmatprep.subr.mxu0 0.0
        %3307 = vmatpush1.msra.mxu0 0.0
        %3308 = vmatprep.subr.mxu0 0.0
        %3309 = vmatpush1.msra.mxu0 0.0
        %3310 = vmatprep.subr.mxu0 0.0
        %3311 = vmatpush1.msra.mxu0 0.0
        %3312 = vmatprep.subr.mxu0 0.0
        %3313 = vmatpush1.msra.mxu0 0.0
        %3314 = vmatprep.subr.mxu0 0.0
        %3315 = vmatpush1.msra.mxu0 0.0
        %3316 = vmatprep.subr.mxu0 0.0
        %3317 = vmatpush1.msra.mxu0 0.0
        %3318 = vmatprep.subr.mxu0 0.0
        %3319 = vmatpush1.msra.mxu0 0.0
        %3320 = vmatprep.subr.mxu0 0.0
        %3321 = vmatpush1.msra.mxu0 0.0
        %3322 = vmatprep.subr.mxu0 0.0
        %3323 = vmatpush1.msra.mxu0 0.0
        %3324 = vmatprep.subr.mxu0 0.0
        %3325 = vmatpush1.msra.mxu0 0.0
        %3326 = vmatprep.subr.mxu0 0.0
        %3327 = vmatpush1.msra.mxu0 0.0
        %3328 = vmatprep.subr.mxu0 0.0
        %3329 = vmatpush1.msra.mxu0 0.0
        %3330 = vmatprep.subr.mxu0 0.0
        %3331 = vmatpush1.msra.mxu0 0.0
        %3332 = vmatprep.subr.mxu0 0.0
        %3333 = vmatpush1.msra.mxu0 0.0
        %3334 = vmatprep.subr.mxu0 0.0
        %3335 = vmatpush1.msra.mxu0 0.0
        %3336 = vmatprep.subr.mxu0 0.0
        %3337 = vmatpush1.msra.mxu0 0.0
        %3338 = vmatprep.subr.mxu0 0.0
        %3339 = vmatpush1.msra.mxu0 0.0
        %3340 = vmatprep.subr.mxu0 0.0
        %3341 = vmatpush1.msra.mxu0 0.0
        %3342 = vmatprep.subr.mxu0 0.0
        %3343 = vmatpush1.msra.mxu0 0.0
        %3344 = vmatprep.subr.mxu0 0.0
        %3345 = vmatpush1.msra.mxu0 0.0
        %3346 = vmatprep.subr.mxu0 0.0
        %3347 = vmatpush1.msra.mxu0 0.0
        %3348 = vmatprep.subr.mxu0 0.0
        %3349 = vmatpush1.msra.mxu0 0.0
        %3350 = vmatprep.subr.mxu0 0.0
        %3351 = vmatpush1.msra.mxu0 0.0
        %3352 = vmatprep.mubr.f32.mxu0 0.0
        %3353 = vmatmul.mubr.f32.gmra.mrb[0].mxu0 %v3286
        %v3354 = vpop.f32.mrb[0].mxu0
        %v3355 = vadd.f32 0.0, %v3354
        %v3356 = vpop.f32.mrb[0].mxu0
        %3357 = vdwg.mxu0
        %v3359 = vsel %vm387, %v2099, 0
        %v3362 = vsel %vm387, %v2100, 0
        %3364 = vmatprep.subr.mxu0 0.0
        %3365 = vmatpush1.msra.mxu0 %v3249
        %3366 = vmatprep.subr.mxu0 0.0
        %3367 = vmatpush1.msra.mxu0 %v3250
        %3368 = vmatprep.subr.mxu0 0.0
        %3369 = vmatpush1.msra.mxu0 0.0
        %3370 = vmatprep.subr.mxu0 0.0
        %3371 = vmatpush1.msra.mxu0 0.0
        %3372 = vmatprep.subr.mxu0 0.0
        %3373 = vmatpush1.msra.mxu0 0.0
        %3374 = vmatprep.subr.mxu0 0.0
        %3375 = vmatpush1.msra.mxu0 0.0
        %3376 = vmatprep.subr.mxu0 0.0
        %3377 = vmatpush1.msra.mxu0 0.0
        %3378 = vmatprep.subr.mxu0 0.0
        %3379 = vmatpush1.msra.mxu0 0.0
        %3380 = vmatprep.subr.mxu0 0.0
        %3381 = vmatpush1.msra.mxu0 0.0
        %3382 = vmatprep.subr.mxu0 0.0
        %3383 = vmatpush1.msra.mxu0 0.0
        %3384 = vmatprep.subr.mxu0 0.0
        %3385 = vmatpush1.msra.mxu0 0.0
        %3386 = vmatprep.subr.mxu0 0.0
        %3387 = vmatpush1.msra.mxu0 0.0
        %3388 = vmatprep.subr.mxu0 0.0
        %3389 = vmatpush1.msra.mxu0 0.0
        %3390 = vmatprep.subr.mxu0 0.0
        %3391 = vmatpush1.msra.mxu0 0.0
        %3392 = vmatprep.subr.mxu0 0.0
        %3393 = vmatpush1.msra.mxu0 0.0
        %3394 = vmatprep.subr.mxu0 0.0
        %3395 = vmatpush1.msra.mxu0 0.0
        %3396 = vmatprep.subr.mxu0 0.0
        %3397 = vmatpush1.msra.mxu0 0.0
        %3398 = vmatprep.subr.mxu0 0.0
        %3399 = vmatpush1.msra.mxu0 0.0
        %3400 = vmatprep.subr.mxu0 0.0
        %3401 = vmatpush1.msra.mxu0 0.0
        %3402 = vmatprep.subr.mxu0 0.0
        %3403 = vmatpush1.msra.mxu0 0.0
        %3404 = vmatprep.subr.mxu0 0.0
        %3405 = vmatpush1.msra.mxu0 0.0
        %3406 = vmatprep.subr.mxu0 0.0
        %3407 = vmatpush1.msra.mxu0 0.0
        %3408 = vmatprep.subr.mxu0 0.0
        %3409 = vmatpush1.msra.mxu0 0.0
        %3410 = vmatprep.subr.mxu0 0.0
        %3411 = vmatpush1.msra.mxu0 0.0
        %3412 = vmatprep.subr.mxu0 0.0
        %3413 = vmatpush1.msra.mxu0 0.0
        %3414 = vmatprep.subr.mxu0 0.0
        %3415 = vmatpush1.msra.mxu0 0.0
        %3416 = vmatprep.subr.mxu0 0.0
        %3417 = vmatpush1.msra.mxu0 0.0
        %3418 = vmatprep.subr.mxu0 0.0
        %3419 = vmatpush1.msra.mxu0 0.0
        %3420 = vmatprep.subr.mxu0 0.0
        %3421 = vmatpush1.msra.mxu0 0.0
        %3422 = vmatprep.subr.mxu0 0.0
        %3423 = vmatpush1.msra.mxu0 0.0
        %3424 = vmatprep.subr.mxu0 0.0
        %3425 = vmatpush1.msra.mxu0 0.0
        %3426 = vmatprep.subr.mxu0 0.0
        %3427 = vmatpush1.msra.mxu0 0.0
        %3428 = vmatprep.mubr.f32.mxu0 0.0
        %3429 = vmatmul.mubr.f32.gmra.mrb[0].mxu0 %v3359
        %v3430 = vpop.f32.mrb[0].mxu0
        %v3431 = vadd.f32 0.0, %v3430
        %v3432 = vpop.f32.mrb[0].mxu0
        %3433 = vmatprep.mubr.f32.mxu0 0.0
        %3434 = vmatmul.mubr.f32.gmra.mrb[0].mxu0 %v3362
        %v3435 = vpop.f32.mrb[0].mxu0
        %v3436 = vadd.f32 0.0, %v3435
        %v3437 = vpop.f32.mrb[0].mxu0
        %3438 = vdwg.mxu0
        %3439 = vxpose.xlu0.b32.start [1/16] %v3431, 128
        %3440 = vxpose.xlu0.b32.cont [2/16] %v3436, 128
        %3441 = vxpose.xlu0.b32.cont [3/16] 0.0, 128
        %3442 = vxpose.xlu0.b32.cont [4/16] 0.0, 128
        %3443 = vxpose.xlu0.b32.cont [5/16] 0.0, 128
        %3444 = vxpose.xlu0.b32.cont [6/16] 0.0, 128
        %3445 = vxpose.xlu0.b32.cont [7/16] 0.0, 128
        %3446 = vxpose.xlu0.b32.cont [8/16] 0.0, 128
        %3447 = vxpose.xlu0.b32.cont [9/16] 0.0, 128
        %3448 = vxpose.xlu0.b32.cont [10/16] 0.0, 128
        %3449 = vxpose.xlu0.b32.cont [11/16] 0.0, 128
        %3450 = vxpose.xlu0.b32.cont [12/16] 0.0, 128
        %3451 = vxpose.xlu0.b32.cont [13/16] 0.0, 128
        %3452 = vxpose.xlu0.b32.cont [14/16] 0.0, 128
        %3453 = vxpose.xlu0.b32.cont [15/16] 0.0, 128
        %3454 = vxpose.xlu0.b32.end [16/16] 0.0, 128
        %v3455 = vpop.trf.xlu0
        %v3456 = vpop.trf.xlu0
        %v3457 = vpop.trf.xlu0
        %v3458 = vpop.trf.xlu0
        %v3459 = vpop.trf.xlu0
        %v3460 = vpop.trf.xlu0
        %v3461 = vpop.trf.xlu0
        %v3462 = vpop.trf.xlu0
        %v3463 = vpop.trf.xlu0
        %v3464 = vpop.trf.xlu0
        %v3465 = vpop.trf.xlu0
        %v3466 = vpop.trf.xlu0
        %v3467 = vpop.trf.xlu0
        %v3468 = vpop.trf.xlu0
        %v3469 = vpop.trf.xlu0
        %v3470 = vpop.trf.xlu0
        %v3472 = vsel %vm387, %v3455, 0
        %3474 = vmatprep.subr.mxu0 0.0
        %3475 = vmatpush1.msra.mxu0 %v3431
        %3476 = vmatprep.subr.mxu0 0.0
        %3477 = vmatpush1.msra.mxu0 %v3436
        %3478 = vmatprep.subr.mxu0 0.0
        %3479 = vmatpush1.msra.mxu0 0.0
        %3480 = vmatprep.subr.mxu0 0.0
        %3481 = vmatpush1.msra.mxu0 0.0
        %3482 = vmatprep.subr.mxu0 0.0
        %3483 = vmatpush1.msra.mxu0 0.0
        %3484 = vmatprep.subr.mxu0 0.0
        %3485 = vmatpush1.msra.mxu0 0.0
        %3486 = vmatprep.subr.mxu0 0.0
        %3487 = vmatpush1.msra.mxu0 0.0
        %3488 = vmatprep.subr.mxu0 0.0
        %3489 = vmatpush1.msra.mxu0 0.0
        %3490 = vmatprep.subr.mxu0 0.0
        %3491 = vmatpush1.msra.mxu0 0.0
        %3492 = vmatprep.subr.mxu0 0.0
        %3493 = vmatpush1.msra.mxu0 0.0
        %3494 = vmatprep.subr.mxu0 0.0
        %3495 = vmatpush1.msra.mxu0 0.0
        %3496 = vmatprep.subr.mxu0 0.0
        %3497 = vmatpush1.msra.mxu0 0.0
        %3498 = vmatprep.subr.mxu0 0.0
        %3499 = vmatpush1.msra.mxu0 0.0
        %3500 = vmatprep.subr.mxu0 0.0
        %3501 = vmatpush1.msra.mxu0 0.0
        %3502 = vmatprep.subr.mxu0 0.0
        %3503 = vmatpush1.msra.mxu0 0.0
        %3504 = vmatprep.subr.mxu0 0.0
        %3505 = vmatpush1.msra.mxu0 0.0
        %3506 = vmatprep.subr.mxu0 0.0
        %3507 = vmatpush1.msra.mxu0 0.0
        %3508 = vmatprep.subr.mxu0 0.0
        %3509 = vmatpush1.msra.mxu0 0.0
        %3510 = vmatprep.subr.mxu0 0.0
        %3511 = vmatpush1.msra.mxu0 0.0
        %3512 = vmatprep.subr.mxu0 0.0
        %3513 = vmatpush1.msra.mxu0 0.0
        %3514 = vmatprep.subr.mxu0 0.0
        %3515 = vmatpush1.msra.mxu0 0.0
        %3516 = vmatprep.subr.mxu0 0.0
        %3517 = vmatpush1.msra.mxu0 0.0
        %3518 = vmatprep.subr.mxu0 0.0
        %3519 = vmatpush1.msra.mxu0 0.0
        %3520 = vmatprep.subr.mxu0 0.0
        %3521 = vmatpush1.msra.mxu0 0.0
        %3522 = vmatprep.subr.mxu0 0.0
        %3523 = vmatpush1.msra.mxu0 0.0
        %3524 = vmatprep.subr.mxu0 0.0
        %3525 = vmatpush1.msra.mxu0 0.0
        %3526 = vmatprep.subr.mxu0 0.0
        %3527 = vmatpush1.msra.mxu0 0.0
        %3528 = vmatprep.subr.mxu0 0.0
        %3529 = vmatpush1.msra.mxu0 0.0
        %3530 = vmatprep.subr.mxu0 0.0
        %3531 = vmatpush1.msra.mxu0 0.0
        %3532 = vmatprep.subr.mxu0 0.0
        %3533 = vmatpush1.msra.mxu0 0.0
        %3534 = vmatprep.subr.mxu0 0.0
        %3535 = vmatpush1.msra.mxu0 0.0
        %3536 = vmatprep.subr.mxu0 0.0
        %3537 = vmatpush1.msra.mxu0 0.0
        %3538 = vmatprep.mubr.f32.mxu0 0.0
        %3539 = vmatmul.mubr.f32.gmra.mrb[0].mxu0 %v3472
        %v3540 = vpop.f32.mrb[0].mxu0
        %v3541 = vadd.f32 0.0, %v3540
        %v3542 = vpop.f32.mrb[0].mxu0
        %3543 = vdwg.mxu0
        %vm3544 = vcmp.gt.f32.partialorder %v3541, 0.0
        %v3545 = vsel %vm3544, 1, 0
        %v3546 = vcvt.s32.f32 %v3545
        %v3548 = vsel %vm404, %v3355, 0
        %3550 = vmatprep.subr.mxu0 0.0
        %3551 = vmatpush1.msra.mxu0 %v2674
        %3552 = vmatprep.subr.mxu0 0.0
        %3553 = vmatpush1.msra.mxu0 %v2675
        %3554 = vmatprep.subr.mxu0 0.0
        %3555 = vmatpush1.msra.mxu0 %v2676
        %3556 = vmatprep.subr.mxu0 0.0
        %3557 = vmatpush1.msra.mxu0 %v2677
        %3558 = vmatprep.subr.mxu0 0.0
        %3559 = vmatpush1.msra.mxu0 0.0
        %3560 = vmatprep.subr.mxu0 0.0
        %3561 = vmatpush1.msra.mxu0 0.0
        %3562 = vmatprep.subr.mxu0 0.0
        %3563 = vmatpush1.msra.mxu0 0.0
        %3564 = vmatprep.subr.mxu0 0.0
        %3565 = vmatpush1.msra.mxu0 0.0
        %3566 = vmatprep.subr.mxu0 0.0
        %3567 = vmatpush1.msra.mxu0 0.0
        %3568 = vmatprep.subr.mxu0 0.0
        %3569 = vmatpush1.msra.mxu0 0.0
        %3570 = vmatprep.subr.mxu0 0.0
        %3571 = vmatpush1.msra.mxu0 0.0
        %3572 = vmatprep.subr.mxu0 0.0
        %3573 = vmatpush1.msra.mxu0 0.0
        %3574 = vmatprep.subr.mxu0 0.0
        %3575 = vmatpush1.msra.mxu0 0.0
        %3576 = vmatprep.subr.mxu0 0.0
        %3577 = vmatpush1.msra.mxu0 0.0
        %3578 = vmatprep.subr.mxu0 0.0
        %3579 = vmatpush1.msra.mxu0 0.0
        %3580 = vmatprep.subr.mxu0 0.0
        %3581 = vmatpush1.msra.mxu0 0.0
        %3582 = vmatprep.subr.mxu0 0.0
        %3583 = vmatpush1.msra.mxu0 0.0
        %3584 = vmatprep.subr.mxu0 0.0
        %3585 = vmatpush1.msra.mxu0 0.0
        %3586 = vmatprep.subr.mxu0 0.0
        %3587 = vmatpush1.msra.mxu0 0.0
        %3588 = vmatprep.subr.mxu0 0.0
        %3589 = vmatpush1.msra.mxu0 0.0
        %3590 = vmatprep.subr.mxu0 0.0
        %3591 = vmatpush1.msra.mxu0 0.0
        %3592 = vmatprep.subr.mxu0 0.0
        %3593 = vmatpush1.msra.mxu0 0.0
        %3594 = vmatprep.subr.mxu0 0.0
        %3595 = vmatpush1.msra.mxu0 0.0
        %3596 = vmatprep.subr.mxu0 0.0
        %3597 = vmatpush1.msra.mxu0 0.0
        %3598 = vmatprep.subr.mxu0 0.0
        %3599 = vmatpush1.msra.mxu0 0.0
        %3600 = vmatprep.subr.mxu0 0.0
        %3601 = vmatpush1.msra.mxu0 0.0
        %3602 = vmatprep.subr.mxu0 0.0
        %3603 = vmatpush1.msra.mxu0 0.0
        %3604 = vmatprep.subr.mxu0 0.0
        %3605 = vmatpush1.msra.mxu0 0.0
        %3606 = vmatprep.subr.mxu0 0.0
        %3607 = vmatpush1.msra.mxu0 0.0
        %3608 = vmatprep.subr.mxu0 0.0
        %3609 = vmatpush1.msra.mxu0 0.0
        %3610 = vmatprep.subr.mxu0 0.0
        %3611 = vmatpush1.msra.mxu0 0.0
        %3612 = vmatprep.subr.mxu0 0.0
        %3613 = vmatpush1.msra.mxu0 0.0
        %3614 = vmatprep.mubr.f32.mxu0 0.0
        %3615 = vmatmul.mubr.f32.gmra.mrb[0].mxu0 %v3548
        %v3616 = vpop.f32.mrb[0].mxu0
        %v3617 = vadd.f32 0.0, %v3616
        %v3618 = vpop.f32.mrb[0].mxu0
        %3619 = vdwg.mxu0
        %v3620 = vrot.slane %v3355, 4
        %v3622 = vsel %vm404, %v3617, 0
        %v3624 = vsel %vm404, %v3620, 0
        %3626 = vmatprep.subr.mxu0 0.0
        %3627 = vmatpush1.xpose.msra.mxu0 %v3624
        %3628 = vmatprep.subr.mxu0 0.0
        %3629 = vmatpush1.xpose.msra.mxu0 0.0
        %3630 = vmatprep.subr.mxu0 0.0
        %3631 = vmatpush1.xpose.msra.mxu0 0.0
        %3632 = vmatprep.subr.mxu0 0.0
        %3633 = vmatpush1.xpose.msra.mxu0 0.0
        %3634 = vmatprep.subr.mxu0 0.0
        %3635 = vmatpush1.xpose.msra.mxu0 0.0
        %3636 = vmatprep.subr.mxu0 0.0
        %3637 = vmatpush1.xpose.msra.mxu0 0.0
        %3638 = vmatprep.subr.mxu0 0.0
        %3639 = vmatpush1.xpose.msra.mxu0 0.0
        %3640 = vmatprep.subr.mxu0 0.0
        %3641 = vmatpush1.xpose.msra.mxu0 0.0
        %3642 = vmatprep.subr.mxu0 0.0
        %3643 = vmatpush1.xpose.msra.mxu0 0.0
        %3644 = vmatprep.subr.mxu0 0.0
        %3645 = vmatpush1.xpose.msra.mxu0 0.0
        %3646 = vmatprep.subr.mxu0 0.0
        %3647 = vmatpush1.xpose.msra.mxu0 0.0
        %3648 = vmatprep.subr.mxu0 0.0
        %3649 = vmatpush1.xpose.msra.mxu0 0.0
        %3650 = vmatprep.subr.mxu0 0.0
        %3651 = vmatpush1.xpose.msra.mxu0 0.0
        %3652 = vmatprep.subr.mxu0 0.0
        %3653 = vmatpush1.xpose.msra.mxu0 0.0
        %3654 = vmatprep.subr.mxu0 0.0
        %3655 = vmatpush1.xpose.msra.mxu0 0.0
        %3656 = vmatprep.subr.mxu0 0.0
        %3657 = vmatpush1.xpose.msra.mxu0 0.0
        %3658 = vmatprep.subr.mxu0 0.0
        %3659 = vmatpush1.xpose.msra.mxu0 0.0
        %3660 = vmatprep.subr.mxu0 0.0
        %3661 = vmatpush1.xpose.msra.mxu0 0.0
        %3662 = vmatprep.subr.mxu0 0.0
        %3663 = vmatpush1.xpose.msra.mxu0 0.0
        %3664 = vmatprep.subr.mxu0 0.0
        %3665 = vmatpush1.xpose.msra.mxu0 0.0
        %3666 = vmatprep.subr.mxu0 0.0
        %3667 = vmatpush1.xpose.msra.mxu0 0.0
        %3668 = vmatprep.subr.mxu0 0.0
        %3669 = vmatpush1.xpose.msra.mxu0 0.0
        %3670 = vmatprep.subr.mxu0 0.0
        %3671 = vmatpush1.xpose.msra.mxu0 0.0
        %3672 = vmatprep.subr.mxu0 0.0
        %3673 = vmatpush1.xpose.msra.mxu0 0.0
        %3674 = vmatprep.subr.mxu0 0.0
        %3675 = vmatpush1.xpose.msra.mxu0 0.0
        %3676 = vmatprep.subr.mxu0 0.0
        %3677 = vmatpush1.xpose.msra.mxu0 0.0
        %3678 = vmatprep.subr.mxu0 0.0
        %3679 = vmatpush1.xpose.msra.mxu0 0.0
        %3680 = vmatprep.subr.mxu0 0.0
        %3681 = vmatpush1.xpose.msra.mxu0 0.0
        %3682 = vmatprep.subr.mxu0 0.0
        %3683 = vmatpush1.xpose.msra.mxu0 0.0
        %3684 = vmatprep.subr.mxu0 0.0
        %3685 = vmatpush1.xpose.msra.mxu0 0.0
        %3686 = vmatprep.subr.mxu0 0.0
        %3687 = vmatpush1.xpose.msra.mxu0 0.0
        %3688 = vmatprep.subr.mxu0 0.0
        %3689 = vmatpush1.xpose.msra.mxu0 0.0
        %3690 = vmatprep.mubr.f32.mxu0 0.0
        %3691 = vmatmul.mubr.f32.gmra.mrb[0].mxu0 %v3622
        %v3692 = vpop.f32.mrb[0].mxu0
        %v3693 = vadd.f32 0.0, %v3692
        %v3694 = vpop.f32.mrb[0].mxu0
        %3695 = vdwg.mxu0
        %vm3696 = vcmask 27648
        %v3697 = vsel %vm3696, %v3693, -inf
        %3698 = vmax.xlane.f32.xlu0 %v3697
        %v3699 = vpop.xlane.xlu0 %3698
        %v3700 = vsub.f32 %v3693, %v3699
        %v3701 = vmul.f32 %v3700, 1.442695
        %v3702 = vpow.pop %v3701
        %v3703 = vsel %vm3696, %v3702, 0.0
        %3704 = vadd.xlane.f32.xlu0 %v3703
        %v3705 = vpop.xlane.xlu0 %3704
        %v3706 = vrcp.pop %v3705
        %v3707 = vmul.f32 %v3702, %v3706
        %v3708 = vrot.slane %v3697, 4
        %v3709 = vmax.f32 %v3697, %v3708
        %v3710 = vrot.slane %v3709, 2
        %v3711 = vmax.f32 %v3709, %v3710
        %v3712 = vrot.slane %v3711, 1
        %v3713 = vmax.f32 %v3711, %v3712
        %v3714 = vsub.f32 %v3693, %v3713
        %v3715 = vmul.f32 %v3714, 1.442695
        %v3716 = vpow.pop %v3715
        %v3717 = vsel %vm3696, %v3716, 0.0
        %v3718 = vrot.slane %v3717, 4
        %v3719 = vadd.f32 %v3717, %v3718
        %v3720 = vrot.slane %v3719, 2
        %v3721 = vadd.f32 %v3719, %v3720
        %v3722 = vrot.slane %v3721, 1
        %v3723 = vadd.f32 %v3721, %v3722
        %v3724 = vrcp.pop %v3723
        %v3725 = vmul.f32 %v3716, %v3724
        %vm3726 = vcmask 31744
        %v3728 = vsel %vm3726, %v3707, 0
        %vm3730 = vcmask 1043456
        %v3731 = vsel %vm3730, %v3620, 0
        %3733 = vmatprep.subr.mxu0 0.0
        %3734 = vmatpush1.msra.mxu0 %v3731
        %3735 = vmatprep.subr.mxu0 0.0
        %3736 = vmatpush1.msra.mxu0 0.0
        %3737 = vmatprep.subr.mxu0 0.0
        %3738 = vmatpush1.msra.mxu0 0.0
        %3739 = vmatprep.subr.mxu0 0.0
        %3740 = vmatpush1.msra.mxu0 0.0
        %3741 = vmatprep.subr.mxu0 0.0
        %3742 = vmatpush1.msra.mxu0 0.0
        %3743 = vmatprep.subr.mxu0 0.0
        %3744 = vmatpush1.msra.mxu0 0.0
        %3745 = vmatprep.subr.mxu0 0.0
        %3746 = vmatpush1.msra.mxu0 0.0
        %3747 = vmatprep.subr.mxu0 0.0
        %3748 = vmatpush1.msra.mxu0 0.0
        %3749 = vmatprep.subr.mxu0 0.0
        %3750 = vmatpush1.msra.mxu0 0.0
        %3751 = vmatprep.subr.mxu0 0.0
        %3752 = vmatpush1.msra.mxu0 0.0
        %3753 = vmatprep.subr.mxu0 0.0
        %3754 = vmatpush1.msra.mxu0 0.0
        %3755 = vmatprep.subr.mxu0 0.0
        %3756 = vmatpush1.msra.mxu0 0.0
        %3757 = vmatprep.subr.mxu0 0.0
        %3758 = vmatpush1.msra.mxu0 0.0
        %3759 = vmatprep.subr.mxu0 0.0
        %3760 = vmatpush1.msra.mxu0 0.0
        %3761 = vmatprep.subr.mxu0 0.0
        %3762 = vmatpush1.msra.mxu0 0.0
        %3763 = vmatprep.subr.mxu0 0.0
        %3764 = vmatpush1.msra.mxu0 0.0
        %3765 = vmatprep.subr.mxu0 0.0
        %3766 = vmatpush1.msra.mxu0 0.0
        %3767 = vmatprep.subr.mxu0 0.0
        %3768 = vmatpush1.msra.mxu0 0.0
        %3769 = vmatprep.subr.mxu0 0.0
        %3770 = vmatpush1.msra.mxu0 0.0
        %3771 = vmatprep.subr.mxu0 0.0
        %3772 = vmatpush1.msra.mxu0 0.0
        %3773 = vmatprep.subr.mxu0 0.0
        %3774 = vmatpush1.msra.mxu0 0.0
        %3775 = vmatprep.subr.mxu0 0.0
        %3776 = vmatpush1.msra.mxu0 0.0
        %3777 = vmatprep.subr.mxu0 0.0
        %3778 = vmatpush1.msra.mxu0 0.0
        %3779 = vmatprep.subr.mxu0 0.0
        %3780 = vmatpush1.msra.mxu0 0.0
        %3781 = vmatprep.subr.mxu0 0.0
        %3782 = vmatpush1.msra.mxu0 0.0
        %3783 = vmatprep.subr.mxu0 0.0
        %3784 = vmatpush1.msra.mxu0 0.0
        %3785 = vmatprep.subr.mxu0 0.0
        %3786 = vmatpush1.msra.mxu0 0.0
        %3787 = vmatprep.subr.mxu0 0.0
        %3788 = vmatpush1.msra.mxu0 0.0
        %3789 = vmatprep.subr.mxu0 0.0
        %3790 = vmatpush1.msra.mxu0 0.0
        %3791 = vmatprep.subr.mxu0 0.0
        %3792 = vmatpush1.msra.mxu0 0.0
        %3793 = vmatprep.subr.mxu0 0.0
        %3794 = vmatpush1.msra.mxu0 0.0
        %3795 = vmatprep.subr.mxu0 0.0
        %3796 = vmatpush1.msra.mxu0 0.0
        %3797 = vmatprep.mubr.f32.mxu0 0.0
        %3798 = vmatmul.mubr.f32.gmra.mrb[0].mxu0 %v3728
        %v3799 = vpop.f32.mrb[0].mxu0
        %v3800 = vadd.f32 0.0, %v3799
        %v3801 = vpop.f32.mrb[0].mxu0
        %3802 = vdwg.mxu0
        %3803 = vxpose.xlu0.b32.start [1/16] %v3725, 128
        %3804 = vxpose.xlu0.b32.cont [2/16] 0.0, 128
        %3805 = vxpose.xlu0.b32.cont [3/16] 0.0, 128
        %3806 = vxpose.xlu0.b32.cont [4/16] 0.0, 128
        %3807 = vxpose.xlu0.b32.cont [5/16] 0.0, 128
        %3808 = vxpose.xlu0.b32.cont [6/16] 0.0, 128
        %3809 = vxpose.xlu0.b32.cont [7/16] 0.0, 128
        %3810 = vxpose.xlu0.b32.cont [8/16] 0.0, 128
        %3811 = vxpose.xlu0.b32.cont [9/16] 0.0, 128
        %3812 = vxpose.xlu0.b32.cont [10/16] 0.0, 128
        %3813 = vxpose.xlu0.b32.cont [11/16] 0.0, 128
        %3814 = vxpose.xlu0.b32.cont [12/16] 0.0, 128
        %3815 = vxpose.xlu0.b32.cont [13/16] 0.0, 128
        %3816 = vxpose.xlu0.b32.cont [14/16] 0.0, 128
        %3817 = vxpose.xlu0.b32.cont [15/16] 0.0, 128
        %3818 = vxpose.xlu0.b32.end [16/16] 0.0, 128
        %v3819 = vpop.trf.xlu0
        %v3820 = vpop.trf.xlu0
        %v3821 = vpop.trf.xlu0
        %v3822 = vpop.trf.xlu0
        %v3823 = vpop.trf.xlu0
        %v3824 = vpop.trf.xlu0
        %v3825 = vpop.trf.xlu0
        %v3826 = vpop.trf.xlu0
        %v3827 = vpop.trf.xlu0
        %v3828 = vpop.trf.xlu0
        %v3829 = vpop.trf.xlu0
        %v3830 = vpop.trf.xlu0
        %v3831 = vpop.trf.xlu0
        %v3832 = vpop.trf.xlu0
        %v3833 = vpop.trf.xlu0
        %v3834 = vpop.trf.xlu0
        %v3836 = vsel %vm3726, %v3819, 0
        %v3838 = vsel %vm3730, %v3355, 0
        %3840 = vmatprep.subr.mxu0 0.0
        %3841 = vmatpush1.msra.mxu0 %v3838
        %3842 = vmatprep.subr.mxu0 0.0
        %3843 = vmatpush1.msra.mxu0 0.0
        %3844 = vmatprep.subr.mxu0 0.0
        %3845 = vmatpush1.msra.mxu0 0.0
        %3846 = vmatprep.subr.mxu0 0.0
        %3847 = vmatpush1.msra.mxu0 0.0
        %3848 = vmatprep.subr.mxu0 0.0
        %3849 = vmatpush1.msra.mxu0 0.0
        %3850 = vmatprep.subr.mxu0 0.0
        %3851 = vmatpush1.msra.mxu0 0.0
        %3852 = vmatprep.subr.mxu0 0.0
        %3853 = vmatpush1.msra.mxu0 0.0
        %3854 = vmatprep.subr.mxu0 0.0
        %3855 = vmatpush1.msra.mxu0 0.0
        %3856 = vmatprep.subr.mxu0 0.0
        %3857 = vmatpush1.msra.mxu0 0.0
        %3858 = vmatprep.subr.mxu0 0.0
        %3859 = vmatpush1.msra.mxu0 0.0
        %3860 = vmatprep.subr.mxu0 0.0
        %3861 = vmatpush1.msra.mxu0 0.0
        %3862 = vmatprep.subr.mxu0 0.0
        %3863 = vmatpush1.msra.mxu0 0.0
        %3864 = vmatprep.subr.mxu0 0.0
        %3865 = vmatpush1.msra.mxu0 0.0
        %3866 = vmatprep.subr.mxu0 0.0
        %3867 = vmatpush1.msra.mxu0 0.0
        %3868 = vmatprep.subr.mxu0 0.0
        %3869 = vmatpush1.msra.mxu0 0.0
        %3870 = vmatprep.subr.mxu0 0.0
        %3871 = vmatpush1.msra.mxu0 0.0
        %3872 = vmatprep.subr.mxu0 0.0
        %3873 = vmatpush1.msra.mxu0 0.0
        %3874 = vmatprep.subr.mxu0 0.0
        %3875 = vmatpush1.msra.mxu0 0.0
        %3876 = vmatprep.subr.mxu0 0.0
        %3877 = vmatpush1.msra.mxu0 0.0
        %3878 = vmatprep.subr.mxu0 0.0
        %3879 = vmatpush1.msra.mxu0 0.0
        %3880 = vmatprep.subr.mxu0 0.0
        %3881 = vmatpush1.msra.mxu0 0.0
        %3882 = vmatprep.subr.mxu0 0.0
        %3883 = vmatpush1.msra.mxu0 0.0
        %3884 = vmatprep.subr.mxu0 0.0
        %3885 = vmatpush1.msra.mxu0 0.0
        %3886 = vmatprep.subr.mxu0 0.0
        %3887 = vmatpush1.msra.mxu0 0.0
        %3888 = vmatprep.subr.mxu0 0.0
        %3889 = vmatpush1.msra.mxu0 0.0
        %3890 = vmatprep.subr.mxu0 0.0
        %3891 = vmatpush1.msra.mxu0 0.0
        %3892 = vmatprep.subr.mxu0 0.0
        %3893 = vmatpush1.msra.mxu0 0.0
        %3894 = vmatprep.subr.mxu0 0.0
        %3895 = vmatpush1.msra.mxu0 0.0
        %3896 = vmatprep.subr.mxu0 0.0
        %3897 = vmatpush1.msra.mxu0 0.0
        %3898 = vmatprep.subr.mxu0 0.0
        %3899 = vmatpush1.msra.mxu0 0.0
        %3900 = vmatprep.subr.mxu0 0.0
        %3901 = vmatpush1.msra.mxu0 0.0
        %3902 = vmatprep.subr.mxu0 0.0
        %3903 = vmatpush1.msra.mxu0 0.0
        %3904 = vmatprep.mubr.f32.mxu0 0.0
        %3905 = vmatmul.mubr.f32.gmra.mrb[0].mxu0 %v3836
        %v3906 = vpop.f32.mrb[0].mxu0
        %v3907 = vadd.f32 0.0, %v3906
        %v3908 = vpop.f32.mrb[0].mxu0
        %3909 = vdwg.mxu0
        %v3911 = vrot.slane %v3907, 4
        %v3913 = vsel %vm3730, %v3800, %v3911
        %vm3914 = vcmask 257024
        %v3915 = vsel %vm3914, %v3800, 0.0
        %v3916 = vrot.slane %v3915, 4
        %v3917 = vadd.f32 %v3915, %v3916
        %v3918 = vrot.slane %v3917, 2
        %v3919 = vadd.f32 %v3917, %v3918
        %v3920 = vrot.slane %v3919, 1
        %v3921 = vadd.f32 %v3919, %v3920
        %v3922 = vrcp.pop 4.0
        %v3923 = vmul.f32 %v3921, %v3922
        %v3925 = vsel %vm404, %v3923, 0
        %3927 = vmatprep.subr.mxu0 0.0
        %3928 = vmatpush1.msra.mxu0 %v2679
        %3929 = vmatprep.subr.mxu0 0.0
        %3930 = vmatpush1.msra.mxu0 %v2680
        %3931 = vmatprep.subr.mxu0 0.0
        %3932 = vmatpush1.msra.mxu0 %v2681
        %3933 = vmatprep.subr.mxu0 0.0
        %3934 = vmatpush1.msra.mxu0 %v2682
        %3935 = vmatprep.subr.mxu0 0.0
        %3936 = vmatpush1.msra.mxu0 0.0
        %3937 = vmatprep.subr.mxu0 0.0
        %3938 = vmatpush1.msra.mxu0 0.0
        %3939 = vmatprep.subr.mxu0 0.0
        %3940 = vmatpush1.msra.mxu0 0.0
        %3941 = vmatprep.subr.mxu0 0.0
        %3942 = vmatpush1.msra.mxu0 0.0
        %3943 = vmatprep.subr.mxu0 0.0
        %3944 = vmatpush1.msra.mxu0 0.0
        %3945 = vmatprep.subr.mxu0 0.0
        %3946 = vmatpush1.msra.mxu0 0.0
        %3947 = vmatprep.subr.mxu0 0.0
        %3948 = vmatpush1.msra.mxu0 0.0
        %3949 = vmatprep.subr.mxu0 0.0
        %3950 = vmatpush1.msra.mxu0 0.0
        %3951 = vmatprep.subr.mxu0 0.0
        %3952 = vmatpush1.msra.mxu0 0.0
        %3953 = vmatprep.subr.mxu0 0.0
        %3954 = vmatpush1.msra.mxu0 0.0
        %3955 = vmatprep.subr.mxu0 0.0
        %3956 = vmatpush1.msra.mxu0 0.0
        %3957 = vmatprep.subr.mxu0 0.0
        %3958 = vmatpush1.msra.mxu0 0.0
        %3959 = vmatprep.subr.mxu0 0.0
        %3960 = vmatpush1.msra.mxu0 0.0
        %3961 = vmatprep.subr.mxu0 0.0
        %3962 = vmatpush1.msra.mxu0 0.0
        %3963 = vmatprep.subr.mxu0 0.0
        %3964 = vmatpush1.msra.mxu0 0.0
        %3965 = vmatprep.subr.mxu0 0.0
        %3966 = vmatpush1.msra.mxu0 0.0
        %3967 = vmatprep.subr.mxu0 0.0
        %3968 = vmatpush1.msra.mxu0 0.0
        %3969 = vmatprep.subr.mxu0 0.0
        %3970 = vmatpush1.msra.mxu0 0.0
        %3971 = vmatprep.subr.mxu0 0.0
        %3972 = vmatpush1.msra.mxu0 0.0
        %3973 = vmatprep.subr.mxu0 0.0
        %3974 = vmatpush1.msra.mxu0 0.0
        %3975 = vmatprep.subr.mxu0 0.0
        %3976 = vmatpush1.msra.mxu0 0.0
        %3977 = vmatprep.subr.mxu0 0.0
        %3978 = vmatpush1.msra.mxu0 0.0
        %3979 = vmatprep.subr.mxu0 0.0
        %3980 = vmatpush1.msra.mxu0 0.0
        %3981 = vmatprep.subr.mxu0 0.0
        %3982 = vmatpush1.msra.mxu0 0.0
        %3983 = vmatprep.subr.mxu0 0.0
        %3984 = vmatpush1.msra.mxu0 0.0
        %3985 = vmatprep.subr.mxu0 0.0
        %3986 = vmatpush1.msra.mxu0 0.0
        %3987 = vmatprep.subr.mxu0 0.0
        %3988 = vmatpush1.msra.mxu0 0.0
        %3989 = vmatprep.subr.mxu0 0.0
        %3990 = vmatpush1.msra.mxu0 0.0
        %3991 = vmatprep.mubr.f32.mxu0 0.0
        %3992 = vmatmul.mubr.f32.gmra.mrb[0].mxu0 %v3925
        %v3993 = vpop.f32.mrb[0].mxu0
        %v3994 = vadd.f32 0.0, %v3993
        %v3995 = vpop.f32.mrb[0].mxu0
        %3996 = vdwg.mxu0
        %v3997 = vtanh.pop %v3994
        %v3998 = vlaneseq
        %v3999 = vshrl.u32 %v3998, 7
        %v4000 = vsub.s32 0, %v3999
        %v4001 = vrot.slane %v3997, %v4000
        %v4002 = vmul.f32 %v3800, %v4001
        %v4003 = vsel %vm3914, %v4002, 0.0
        %4004 = vadd.xlane.f32.xlu0 %v4003
        %v4005 = vpop.xlane.xlu0 %4004
        %v4006 = vxor.u32 %v4005, 2147483648
        %v4007 = vmul.f32 %v4006, 1.442695
        %v4008 = vpow.pop %v4007
        %v4009 = vadd.f32 %v4008, 1.0
        %v4010 = vrcp.pop %v4009
        %v4011 = vmul.f32 1.0, %v4010
        %v4012 = vmul.f32 %v4011, %v3800
        %v4013 = vsel %vm3914, %v4012, 0.0
        %v4014 = vrot.slane %v4013, 4
        %v4015 = vadd.f32 %v4013, %v4014
        %v4016 = vrot.slane %v4015, 2
        %v4017 = vadd.f32 %v4015, %v4016
        %v4018 = vrot.slane %v4017, 1
        %v4019 = vadd.f32 %v4017, %v4018
        %v4020 = vsel %vm3914, %v3907, 0.0
        %v4021 = vrot.slane %v4020, 4
        %v4022 = vadd.f32 %v4020, %v4021
        %v4023 = vrot.slane %v4022, 2
        %v4024 = vadd.f32 %v4022, %v4023
        %v4025 = vrot.slane %v4024, 1
        %v4026 = vadd.f32 %v4024, %v4025
        %v4027 = vmul.f32 %v4026, %v3922
        %v4029 = vsel %vm404, %v4027, 0
        %4031 = vmatprep.subr.mxu0 0.0
        %4032 = vmatpush1.msra.mxu0 %v2679
        %4033 = vmatprep.subr.mxu0 0.0
        %4034 = vmatpush1.msra.mxu0 %v2680
        %4035 = vmatprep.subr.mxu0 0.0
        %4036 = vmatpush1.msra.mxu0 %v2681
        %4037 = vmatprep.subr.mxu0 0.0
        %4038 = vmatpush1.msra.mxu0 %v2682
        %4039 = vmatprep.subr.mxu0 0.0
        %4040 = vmatpush1.msra.mxu0 0.0
        %4041 = vmatprep.subr.mxu0 0.0
        %4042 = vmatpush1.msra.mxu0 0.0
        %4043 = vmatprep.subr.mxu0 0.0
        %4044 = vmatpush1.msra.mxu0 0.0
        %4045 = vmatprep.subr.mxu0 0.0
        %4046 = vmatpush1.msra.mxu0 0.0
        %4047 = vmatprep.subr.mxu0 0.0
        %4048 = vmatpush1.msra.mxu0 0.0
        %4049 = vmatprep.subr.mxu0 0.0
        %4050 = vmatpush1.msra.mxu0 0.0
        %4051 = vmatprep.subr.mxu0 0.0
        %4052 = vmatpush1.msra.mxu0 0.0
        %4053 = vmatprep.subr.mxu0 0.0
        %4054 = vmatpush1.msra.mxu0 0.0
        %4055 = vmatprep.subr.mxu0 0.0
        %4056 = vmatpush1.msra.mxu0 0.0
        %4057 = vmatprep.subr.mxu0 0.0
        %4058 = vmatpush1.msra.mxu0 0.0
        %4059 = vmatprep.subr.mxu0 0.0
        %4060 = vmatpush1.msra.mxu0 0.0
        %4061 = vmatprep.subr.mxu0 0.0
        %4062 = vmatpush1.msra.mxu0 0.0
        %4063 = vmatprep.subr.mxu0 0.0
        %4064 = vmatpush1.msra.mxu0 0.0
        %4065 = vmatprep.subr.mxu0 0.0
        %4066 = vmatpush1.msra.mxu0 0.0
        %4067 = vmatprep.subr.mxu0 0.0
        %4068 = vmatpush1.msra.mxu0 0.0
        %4069 = vmatprep.subr.mxu0 0.0
        %4070 = vmatpush1.msra.mxu0 0.0
        %4071 = vmatprep.subr.mxu0 0.0
        %4072 = vmatpush1.msra.mxu0 0.0
        %4073 = vmatprep.subr.mxu0 0.0
        %4074 = vmatpush1.msra.mxu0 0.0
        %4075 = vmatprep.subr.mxu0 0.0
        %4076 = vmatpush1.msra.mxu0 0.0
        %4077 = vmatprep.subr.mxu0 0.0
        %4078 = vmatpush1.msra.mxu0 0.0
        %4079 = vmatprep.subr.mxu0 0.0
        %4080 = vmatpush1.msra.mxu0 0.0
        %4081 = vmatprep.subr.mxu0 0.0
        %4082 = vmatpush1.msra.mxu0 0.0
        %4083 = vmatprep.subr.mxu0 0.0
        %4084 = vmatpush1.msra.mxu0 0.0
        %4085 = vmatprep.subr.mxu0 0.0
        %4086 = vmatpush1.msra.mxu0 0.0
        %4087 = vmatprep.subr.mxu0 0.0
        %4088 = vmatpush1.msra.mxu0 0.0
        %4089 = vmatprep.subr.mxu0 0.0
        %4090 = vmatpush1.msra.mxu0 0.0
        %4091 = vmatprep.subr.mxu0 0.0
        %4092 = vmatpush1.msra.mxu0 0.0
        %4093 = vmatprep.subr.mxu0 0.0
        %4094 = vmatpush1.msra.mxu0 0.0
        %4095 = vmatprep.mubr.f32.mxu0 0.0
        %4096 = vmatmul.mubr.f32.gmra.mrb[0].mxu0 %v4029
        %v4097 = vpop.f32.mrb[0].mxu0
        %v4098 = vadd.f32 0.0, %v4097
        %v4099 = vpop.f32.mrb[0].mxu0
        %4100 = vdwg.mxu0
        %v4101 = vtanh.pop %v4098
        %v4102 = vlaneseq
        %v4103 = vshrl.u32 %v4102, 7
        %v4104 = vsub.s32 0, %v4103
        %v4105 = vrot.slane %v4101, %v4104
        %v4106 = vmul.f32 %v3907, %v4105
        %v4107 = vsel %vm3914, %v4106, 0.0
        %4108 = vadd.xlane.f32.xlu0 %v4107
        %v4109 = vpop.xlane.xlu0 %4108
        %v4110 = vxor.u32 %v4109, 2147483648
        %v4111 = vmul.f32 %v4110, 1.442695
        %v4112 = vpow.pop %v4111
        %v4113 = vadd.f32 %v4112, 1.0
        %v4114 = vrcp.pop %v4113
        %v4115 = vmul.f32 1.0, %v4114
        %v4116 = vmul.f32 %v4115, %v3907
        %v4117 = vsel %vm3914, %v4116, 0.0
        %v4118 = vrot.slane %v4117, 4
        %v4119 = vadd.f32 %v4117, %v4118
        %v4120 = vrot.slane %v4119, 2
        %v4121 = vadd.f32 %v4119, %v4120
        %v4122 = vrot.slane %v4121, 1
        %v4123 = vadd.f32 %v4121, %v4122
        %s4124 = scalar_lea.vmem %s3, 64
        %v4125 = vld [vmem:[%s4124] sm:$0xff]
        %v4126 = vld [vmem:[%s4124 + $0x8] sm:$0xff]
        %v4127 = vld [vmem:[%s4124 + $0x10] sm:$0xff]
        %v4128 = vld [vmem:[%s4124 + $0x18] sm:$0xff]
        %v4129 = vld [vmem:[%s4 + $0x3] sm:$0x1]
        %v4130 = vld [vmem:[%s5 + $0x2] sm:$0x1]
        %s4131 = scalar_lea.vmem %s3, 160
        %v4132 = vld [vmem:[%s4131] sm:$0xff]
        %v4133 = vld [vmem:[%s4131 + $0x8] sm:$0xff]
        %v4134 = vld [vmem:[%s4131 + $0x10] sm:$0xff]
        %v4135 = vld [vmem:[%s4131 + $0x18] sm:$0xff]
        %s4136 = scalar_lea.vmem %s3, 288
        %v4137 = vld [vmem:[%s4136] sm:$0xff]
        %v4138 = vld [vmem:[%s4136 + $0x8] sm:$0xff]
        %v4139 = vld [vmem:[%s4136 + $0x10] sm:$0xff]
        %v4140 = vld [vmem:[%s4136 + $0x18] sm:$0xff]
        %v4142 = vsel %vm404, %v3913, 0
        %4144 = vmatprep.subr.mxu0 0.0
        %4145 = vmatpush1.msra.mxu0 %v4125
        %4146 = vmatprep.subr.mxu0 0.0
        %4147 = vmatpush1.msra.mxu0 %v4126
        %4148 = vmatprep.subr.mxu0 0.0
        %4149 = vmatpush1.msra.mxu0 %v4127
        %4150 = vmatprep.subr.mxu0 0.0
        %4151 = vmatpush1.msra.mxu0 %v4128
        %4152 = vmatprep.subr.mxu0 0.0
        %4153 = vmatpush1.msra.mxu0 0.0
        %4154 = vmatprep.subr.mxu0 0.0
        %4155 = vmatpush1.msra.mxu0 0.0
        %4156 = vmatprep.subr.mxu0 0.0
        %4157 = vmatpush1.msra.mxu0 0.0
        %4158 = vmatprep.subr.mxu0 0.0
        %4159 = vmatpush1.msra.mxu0 0.0
        %4160 = vmatprep.subr.mxu0 0.0
        %4161 = vmatpush1.msra.mxu0 0.0
        %4162 = vmatprep.subr.mxu0 0.0
        %4163 = vmatpush1.msra.mxu0 0.0
        %4164 = vmatprep.subr.mxu0 0.0
        %4165 = vmatpush1.msra.mxu0 0.0
        %4166 = vmatprep.subr.mxu0 0.0
        %4167 = vmatpush1.msra.mxu0 0.0
        %4168 = vmatprep.subr.mxu0 0.0
        %4169 = vmatpush1.msra.mxu0 0.0
        %4170 = vmatprep.subr.mxu0 0.0
        %4171 = vmatpush1.msra.mxu0 0.0
        %4172 = vmatprep.subr.mxu0 0.0
        %4173 = vmatpush1.msra.mxu0 0.0
        %4174 = vmatprep.subr.mxu0 0.0
        %4175 = vmatpush1.msra.mxu0 0.0
        %4176 = vmatprep.subr.mxu0 0.0
        %4177 = vmatpush1.msra.mxu0 0.0
        %4178 = vmatprep.subr.mxu0 0.0
        %4179 = vmatpush1.msra.mxu0 0.0
        %4180 = vmatprep.subr.mxu0 0.0
        %4181 = vmatpush1.msra.mxu0 0.0
        %4182 = vmatprep.subr.mxu0 0.0
        %4183 = vmatpush1.msra.mxu0 0.0
        %4184 = vmatprep.subr.mxu0 0.0
        %4185 = vmatpush1.msra.mxu0 0.0
        %4186 = vmatprep.subr.mxu0 0.0
        %4187 = vmatpush1.msra.mxu0 0.0
        %4188 = vmatprep.subr.mxu0 0.0
        %4189 = vmatpush1.msra.mxu0 0.0
        %4190 = vmatprep.subr.mxu0 0.0
        %4191 = vmatpush1.msra.mxu0 0.0
        %4192 = vmatprep.subr.mxu0 0.0
        %4193 = vmatpush1.msra.mxu0 0.0
        %4194 = vmatprep.subr.mxu0 0.0
        %4195 = vmatpush1.msra.mxu0 0.0
        %4196 = vmatprep.subr.mxu0 0.0
        %4197 = vmatpush1.msra.mxu0 0.0
        %4198 = vmatprep.subr.mxu0 0.0
        %4199 = vmatpush1.msra.mxu0 0.0
        %4200 = vmatprep.subr.mxu0 0.0
        %4201 = vmatpush1.msra.mxu0 0.0
        %4202 = vmatprep.subr.mxu0 0.0
        %4203 = vmatpush1.msra.mxu0 0.0
        %4204 = vmatprep.subr.mxu0 0.0
        %4205 = vmatpush1.msra.mxu0 0.0
        %4206 = vmatprep.subr.mxu0 0.0
        %4207 = vmatpush1.msra.mxu0 0.0
        %4208 = vmatprep.mubr.f32.mxu0 0.0
        %4209 = vmatmul.mubr.f32.gmra.mrb[0].mxu0 %v4142
        %v4210 = vpop.f32.mrb[0].mxu0
        %v4211 = vadd.f32 0.0, %v4210
        %v4212 = vpop.f32.mrb[0].mxu0
        %4213 = vdwg.mxu0
        %v4214 = vsel %vm450, %v3546, 0.0
        %4215 = vadd.xlane.f32.xlu0 %v4214
        %v4216 = vpop.xlane.xlu0 %4215
        %v4217 = vrot.slane %v4214, 4
        %v4218 = vadd.f32 %v4214, %v4217
        %v4219 = vrot.slane %v4218, 2
        %v4220 = vadd.f32 %v4218, %v4219
        %v4221 = vrot.slane %v4220, 1
        %v4222 = vadd.f32 %v4220, %v4221
        %vm4223 = vcmp.gt.f32.partialorder %v4216, 0.0
        %v4224 = vrcp.pop %v4216
        %v4225 = vmul.f32 1.0, %v4224
        %v4226 = vsel %vm4223, %v4225, 0.0
        %vm4227 = vcmp.gt.f32.partialorder %v4222, 0.0
        %v4228 = vrcp.pop %v4222
        %v4229 = vmul.f32 1.0, %v4228
        %v4230 = vsel %vm4227, %v4229, 0.0
        %v4231 = vmul.f32 %v3546, %v4230
        %v4232 = vmul.f32 %v3546, %v4226
        %4233 = vxpose.xlu0.b32.start [1/16] %v4231, 128
        %4234 = vxpose.xlu0.b32.cont [2/16] 0.0, 128
        %4235 = vxpose.xlu0.b32.cont [3/16] 0.0, 128
        %4236 = vxpose.xlu0.b32.cont [4/16] 0.0, 128
        %4237 = vxpose.xlu0.b32.cont [5/16] 0.0, 128
        %4238 = vxpose.xlu0.b32.cont [6/16] 0.0, 128
        %4239 = vxpose.xlu0.b32.cont [7/16] 0.0, 128
        %4240 = vxpose.xlu0.b32.cont [8/16] 0.0, 128
        %4241 = vxpose.xlu0.b32.cont [9/16] 0.0, 128
        %4242 = vxpose.xlu0.b32.cont [10/16] 0.0, 128
        %4243 = vxpose.xlu0.b32.cont [11/16] 0.0, 128
        %4244 = vxpose.xlu0.b32.cont [12/16] 0.0, 128
        %4245 = vxpose.xlu0.b32.cont [13/16] 0.0, 128
        %4246 = vxpose.xlu0.b32.cont [14/16] 0.0, 128
        %4247 = vxpose.xlu0.b32.cont [15/16] 0.0, 128
        %4248 = vxpose.xlu0.b32.end [16/16] 0.0, 128
        %v4249 = vpop.trf.xlu0
        %v4250 = vpop.trf.xlu0
        %v4251 = vpop.trf.xlu0
        %v4252 = vpop.trf.xlu0
        %v4253 = vpop.trf.xlu0
        %v4254 = vpop.trf.xlu0
        %v4255 = vpop.trf.xlu0
        %v4256 = vpop.trf.xlu0
        %v4257 = vpop.trf.xlu0
        %v4258 = vpop.trf.xlu0
        %v4259 = vpop.trf.xlu0
        %v4260 = vpop.trf.xlu0
        %v4261 = vpop.trf.xlu0
        %v4262 = vpop.trf.xlu0
        %v4263 = vpop.trf.xlu0
        %v4264 = vpop.trf.xlu0
        %v4266 = vsel %vm450, %v4249, 0
        %4268 = vmatprep.subr.mxu0 0.0
        %4269 = vmatpush1.msra.mxu0 %v4211
        %4270 = vmatprep.subr.mxu0 0.0
        %4271 = vmatpush1.msra.mxu0 0.0
        %4272 = vmatprep.subr.mxu0 0.0
        %4273 = vmatpush1.msra.mxu0 0.0
        %4274 = vmatprep.subr.mxu0 0.0
        %4275 = vmatpush1.msra.mxu0 0.0
        %4276 = vmatprep.subr.mxu0 0.0
        %4277 = vmatpush1.msra.mxu0 0.0
        %4278 = vmatprep.subr.mxu0 0.0
        %4279 = vmatpush1.msra.mxu0 0.0
        %4280 = vmatprep.subr.mxu0 0.0
        %4281 = vmatpush1.msra.mxu0 0.0
        %4282 = vmatprep.subr.mxu0 0.0
        %4283 = vmatpush1.msra.mxu0 0.0
        %4284 = vmatprep.subr.mxu0 0.0
        %4285 = vmatpush1.msra.mxu0 0.0
        %4286 = vmatprep.subr.mxu0 0.0
        %4287 = vmatpush1.msra.mxu0 0.0
        %4288 = vmatprep.subr.mxu0 0.0
        %4289 = vmatpush1.msra.mxu0 0.0
        %4290 = vmatprep.subr.mxu0 0.0
        %4291 = vmatpush1.msra.mxu0 0.0
        %4292 = vmatprep.subr.mxu0 0.0
        %4293 = vmatpush1.msra.mxu0 0.0
        %4294 = vmatprep.subr.mxu0 0.0
        %4295 = vmatpush1.msra.mxu0 0.0
        %4296 = vmatprep.subr.mxu0 0.0
        %4297 = vmatpush1.msra.mxu0 0.0
        %4298 = vmatprep.subr.mxu0 0.0
        %4299 = vmatpush1.msra.mxu0 0.0
        %4300 = vmatprep.subr.mxu0 0.0
        %4301 = vmatpush1.msra.mxu0 0.0
        %4302 = vmatprep.subr.mxu0 0.0
        %4303 = vmatpush1.msra.mxu0 0.0
        %4304 = vmatprep.subr.mxu0 0.0
        %4305 = vmatpush1.msra.mxu0 0.0
        %4306 = vmatprep.subr.mxu0 0.0
        %4307 = vmatpush1.msra.mxu0 0.0
        %4308 = vmatprep.subr.mxu0 0.0
        %4309 = vmatpush1.msra.mxu0 0.0
        %4310 = vmatprep.subr.mxu0 0.0
        %4311 = vmatpush1.msra.mxu0 0.0
        %4312 = vmatprep.subr.mxu0 0.0
        %4313 = vmatpush1.msra.mxu0 0.0
        %4314 = vmatprep.subr.mxu0 0.0
        %4315 = vmatpush1.msra.mxu0 0.0
        %4316 = vmatprep.subr.mxu0 0.0
        %4317 = vmatpush1.msra.mxu0 0.0
        %4318 = vmatprep.subr.mxu0 0.0
        %4319 = vmatpush1.msra.mxu0 0.0
        %4320 = vmatprep.subr.mxu0 0.0
        %4321 = vmatpush1.msra.mxu0 0.0
        %4322 = vmatprep.subr.mxu0 0.0
        %4323 = vmatpush1.msra.mxu0 0.0
        %4324 = vmatprep.subr.mxu0 0.0
        %4325 = vmatpush1.msra.mxu0 0.0
        %4326 = vmatprep.subr.mxu0 0.0
        %4327 = vmatpush1.msra.mxu0 0.0
        %4328 = vmatprep.subr.mxu0 0.0
        %4329 = vmatpush1.msra.mxu0 0.0
        %4330 = vmatprep.subr.mxu0 0.0
        %4331 = vmatpush1.msra.mxu0 0.0
        %4332 = vmatprep.mubr.f32.mxu0 0.0
        %4333 = vmatmul.mubr.f32.gmra.mrb[0].mxu0 %v4266
        %v4334 = vpop.f32.mrb[0].mxu0
        %v4335 = vadd.f32 0.0, %v4334
        %v4336 = vpop.f32.mrb[0].mxu0
        %4337 = vdwg.mxu0
        %v4338 = vlaneseq
        %v4339 = vshrl.u32 %v4338, 7
        %v4340 = vsub.s32 0, %v4339
        %v4341 = vrot.slane %v4129, %v4340
        %v4343 = vsel %vm450, %v4232, 0
        %4345 = vmatprep.subr.mxu0 0.0
        %4346 = vmatpush1.msra.mxu0 %v4335
        %4347 = vmatprep.subr.mxu0 0.0
        %4348 = vmatpush1.msra.mxu0 0.0
        %4349 = vmatprep.subr.mxu0 0.0
        %4350 = vmatpush1.msra.mxu0 0.0
        %4351 = vmatprep.subr.mxu0 0.0
        %4352 = vmatpush1.msra.mxu0 0.0
        %4353 = vmatprep.subr.mxu0 0.0
        %4354 = vmatpush1.msra.mxu0 0.0
        %4355 = vmatprep.subr.mxu0 0.0
        %4356 = vmatpush1.msra.mxu0 0.0
        %4357 = vmatprep.subr.mxu0 0.0
        %4358 = vmatpush1.msra.mxu0 0.0
        %4359 = vmatprep.subr.mxu0 0.0
        %4360 = vmatpush1.msra.mxu0 0.0
        %4361 = vmatprep.subr.mxu0 0.0
        %4362 = vmatpush1.msra.mxu0 0.0
        %4363 = vmatprep.subr.mxu0 0.0
        %4364 = vmatpush1.msra.mxu0 0.0
        %4365 = vmatprep.subr.mxu0 0.0
        %4366 = vmatpush1.msra.mxu0 0.0
        %4367 = vmatprep.subr.mxu0 0.0
        %4368 = vmatpush1.msra.mxu0 0.0
        %4369 = vmatprep.subr.mxu0 0.0
        %4370 = vmatpush1.msra.mxu0 0.0
        %4371 = vmatprep.subr.mxu0 0.0
        %4372 = vmatpush1.msra.mxu0 0.0
        %4373 = vmatprep.subr.mxu0 0.0
        %4374 = vmatpush1.msra.mxu0 0.0
        %4375 = vmatprep.subr.mxu0 0.0
        %4376 = vmatpush1.msra.mxu0 0.0
        %4377 = vmatprep.subr.mxu0 0.0
        %4378 = vmatpush1.msra.mxu0 0.0
        %4379 = vmatprep.subr.mxu0 0.0
        %4380 = vmatpush1.msra.mxu0 0.0
        %4381 = vmatprep.subr.mxu0 0.0
        %4382 = vmatpush1.msra.mxu0 0.0
        %4383 = vmatprep.subr.mxu0 0.0
        %4384 = vmatpush1.msra.mxu0 0.0
        %4385 = vmatprep.subr.mxu0 0.0
        %4386 = vmatpush1.msra.mxu0 0.0
        %4387 = vmatprep.subr.mxu0 0.0
        %4388 = vmatpush1.msra.mxu0 0.0
        %4389 = vmatprep.subr.mxu0 0.0
        %4390 = vmatpush1.msra.mxu0 0.0
        %4391 = vmatprep.subr.mxu0 0.0
        %4392 = vmatpush1.msra.mxu0 0.0
        %4393 = vmatprep.subr.mxu0 0.0
        %4394 = vmatpush1.msra.mxu0 0.0
        %4395 = vmatprep.subr.mxu0 0.0
        %4396 = vmatpush1.msra.mxu0 0.0
        %4397 = vmatprep.subr.mxu0 0.0
        %4398 = vmatpush1.msra.mxu0 0.0
        %4399 = vmatprep.subr.mxu0 0.0
        %4400 = vmatpush1.msra.mxu0 0.0
        %4401 = vmatprep.subr.mxu0 0.0
        %4402 = vmatpush1.msra.mxu0 0.0
        %4403 = vmatprep.subr.mxu0 0.0
        %4404 = vmatpush1.msra.mxu0 0.0
        %4405 = vmatprep.subr.mxu0 0.0
        %4406 = vmatpush1.msra.mxu0 0.0
        %4407 = vmatprep.subr.mxu0 0.0
        %4408 = vmatpush1.msra.mxu0 0.0
        %4409 = vmatprep.mubr.f32.mxu0 0.0
        %4410 = vmatmul.mubr.f32.gmra.mrb[0].mxu0 %v4343
        %v4411 = vpop.f32.mrb[0].mxu0
        %v4412 = vadd.f32 %v4341, %v4411
        %v4413 = vpop.f32.mrb[0].mxu0
        %4414 = vdwg.mxu0
        %vm4415 = vcmp.gt.f32.partialorder %v4412, 0.0
        %v4416 = vmul.f32 %v4412, 0.2
        %v4417 = vsel %vm4415, %v4412, %v4416
        %4418 = vmatprep.subr.mxu0 0.0
        %4419 = vmatpush1.msra.mxu0 %v4417
        %4420 = vmatprep.subr.mxu0 0.0
        %4421 = vmatpush1.msra.mxu0 0.0
        %4422 = vmatprep.subr.mxu0 0.0
        %4423 = vmatpush1.msra.mxu0 0.0
        %4424 = vmatprep.subr.mxu0 0.0
        %4425 = vmatpush1.msra.mxu0 0.0
        %4426 = vmatprep.subr.mxu0 0.0
        %4427 = vmatpush1.msra.mxu0 0.0
        %4428 = vmatprep.subr.mxu0 0.0
        %4429 = vmatpush1.msra.mxu0 0.0
        %4430 = vmatprep.subr.mxu0 0.0
        %4431 = vmatpush1.msra.mxu0 0.0
        %4432 = vmatprep.subr.mxu0 0.0
        %4433 = vmatpush1.msra.mxu0 0.0
        %4434 = vmatprep.subr.mxu0 0.0
        %4435 = vmatpush1.msra.mxu0 0.0
        %4436 = vmatprep.subr.mxu0 0.0
        %4437 = vmatpush1.msra.mxu0 0.0
        %4438 = vmatprep.subr.mxu0 0.0
        %4439 = vmatpush1.msra.mxu0 0.0
        %4440 = vmatprep.subr.mxu0 0.0
        %4441 = vmatpush1.msra.mxu0 0.0
        %4442 = vmatprep.subr.mxu0 0.0
        %4443 = vmatpush1.msra.mxu0 0.0
        %4444 = vmatprep.subr.mxu0 0.0
        %4445 = vmatpush1.msra.mxu0 0.0
        %4446 = vmatprep.subr.mxu0 0.0
        %4447 = vmatpush1.msra.mxu0 0.0
        %4448 = vmatprep.subr.mxu0 0.0
        %4449 = vmatpush1.msra.mxu0 0.0
        %4450 = vmatprep.subr.mxu0 0.0
        %4451 = vmatpush1.msra.mxu0 0.0
        %4452 = vmatprep.subr.mxu0 0.0
        %4453 = vmatpush1.msra.mxu0 0.0
        %4454 = vmatprep.subr.mxu0 0.0
        %4455 = vmatpush1.msra.mxu0 0.0
        %4456 = vmatprep.subr.mxu0 0.0
        %4457 = vmatpush1.msra.mxu0 0.0
        %4458 = vmatprep.subr.mxu0 0.0
        %4459 = vmatpush1.msra.mxu0 0.0
        %4460 = vmatprep.subr.mxu0 0.0
        %4461 = vmatpush1.msra.mxu0 0.0
        %4462 = vmatprep.subr.mxu0 0.0
        %4463 = vmatpush1.msra.mxu0 0.0
        %4464 = vmatprep.subr.mxu0 0.0
        %4465 = vmatpush1.msra.mxu0 0.0
        %4466 = vmatprep.subr.mxu0 0.0
        %4467 = vmatpush1.msra.mxu0 0.0
        %4468 = vmatprep.subr.mxu0 0.0
        %4469 = vmatpush1.msra.mxu0 0.0
        %4470 = vmatprep.subr.mxu0 0.0
        %4471 = vmatpush1.msra.mxu0 0.0
        %4472 = vmatprep.subr.mxu0 0.0
        %4473 = vmatpush1.msra.mxu0 0.0
        %4474 = vmatprep.subr.mxu0 0.0
        %4475 = vmatpush1.msra.mxu0 0.0
        %4476 = vmatprep.subr.mxu0 0.0
        %4477 = vmatpush1.msra.mxu0 0.0
        %4478 = vmatprep.subr.mxu0 0.0
        %4479 = vmatpush1.msra.mxu0 0.0
        %4480 = vmatprep.subr.mxu0 0.0
        %4481 = vmatpush1.msra.mxu0 0.0
        %4482 = vmatprep.mubr.f32.mxu0 0.0
        %4483 = vmatmul.mubr.f32.gmra.mrb[0].mxu0 %v4266
        %v4484 = vpop.f32.mrb[0].mxu0
        %v4485 = vadd.f32 0.0, %v4484
        %v4486 = vpop.f32.mrb[0].mxu0
        %4487 = vdwg.mxu0
        %v4488 = vlaneseq
        %v4489 = vshrl.u32 %v4488, 7
        %v4490 = vsub.s32 0, %v4489
        %v4491 = vrot.slane %v4130, %v4490
        %v4492 = vmul.f32 %v4485, %v4491
        %v4493 = vsel %vm404, %v4492, 0.0
        %4494 = vadd.xlane.f32.xlu0 %v4493
        %v4495 = vpop.xlane.xlu0 %4494
        %4496 = vxpose.xlu0.b32.start [1/16] %v4495, 128
        %4497 = vxpose.xlu0.b32.cont [2/16] 0.0, 128
        %4498 = vxpose.xlu0.b32.cont [3/16] 0.0, 128
        %4499 = vxpose.xlu0.b32.cont [4/16] 0.0, 128
        %4500 = vxpose.xlu0.b32.cont [5/16] 0.0, 128
        %4501 = vxpose.xlu0.b32.cont [6/16] 0.0, 128
        %4502 = vxpose.xlu0.b32.cont [7/16] 0.0, 128
        %4503 = vxpose.xlu0.b32.cont [8/16] 0.0, 128
        %4504 = vxpose.xlu0.b32.cont [9/16] 0.0, 128
        %4505 = vxpose.xlu0.b32.cont [10/16] 0.0, 128
        %4506 = vxpose.xlu0.b32.cont [11/16] 0.0, 128
        %4507 = vxpose.xlu0.b32.cont [12/16] 0.0, 128
        %4508 = vxpose.xlu0.b32.cont [13/16] 0.0, 128
        %4509 = vxpose.xlu0.b32.cont [14/16] 0.0, 128
        %4510 = vxpose.xlu0.b32.cont [15/16] 0.0, 128
        %4511 = vxpose.xlu0.b32.end [16/16] 0.0, 128
        %v4512 = vpop.trf.xlu0
        %v4513 = vpop.trf.xlu0
        %v4514 = vpop.trf.xlu0
        %v4515 = vpop.trf.xlu0
        %v4516 = vpop.trf.xlu0
        %v4517 = vpop.trf.xlu0
        %v4518 = vpop.trf.xlu0
        %v4519 = vpop.trf.xlu0
        %v4520 = vpop.trf.xlu0
        %v4521 = vpop.trf.xlu0
        %v4522 = vpop.trf.xlu0
        %v4523 = vpop.trf.xlu0
        %v4524 = vpop.trf.xlu0
        %v4525 = vpop.trf.xlu0
        %v4526 = vpop.trf.xlu0
        %v4527 = vpop.trf.xlu0
        %v4529 = vsel %vm450, %v4512, 0
        %4531 = vmatprep.subr.mxu0 0.0
        %4532 = vmatpush1.msra.mxu0 %v373
        %4533 = vmatprep.subr.mxu0 0.0
        %4534 = vmatpush1.msra.mxu0 0.0
        %4535 = vmatprep.subr.mxu0 0.0
        %4536 = vmatpush1.msra.mxu0 0.0
        %4537 = vmatprep.subr.mxu0 0.0
        %4538 = vmatpush1.msra.mxu0 0.0
        %4539 = vmatprep.subr.mxu0 0.0
        %4540 = vmatpush1.msra.mxu0 0.0
        %4541 = vmatprep.subr.mxu0 0.0
        %4542 = vmatpush1.msra.mxu0 0.0
        %4543 = vmatprep.subr.mxu0 0.0
        %4544 = vmatpush1.msra.mxu0 0.0
        %4545 = vmatprep.subr.mxu0 0.0
        %4546 = vmatpush1.msra.mxu0 0.0
        %4547 = vmatprep.subr.mxu0 0.0
        %4548 = vmatpush1.msra.mxu0 0.0
        %4549 = vmatprep.subr.mxu0 0.0
        %4550 = vmatpush1.msra.mxu0 0.0
        %4551 = vmatprep.subr.mxu0 0.0
        %4552 = vmatpush1.msra.mxu0 0.0
        %4553 = vmatprep.subr.mxu0 0.0
        %4554 = vmatpush1.msra.mxu0 0.0
        %4555 = vmatprep.subr.mxu0 0.0
        %4556 = vmatpush1.msra.mxu0 0.0
        %4557 = vmatprep.subr.mxu0 0.0
        %4558 = vmatpush1.msra.mxu0 0.0
        %4559 = vmatprep.subr.mxu0 0.0
        %4560 = vmatpush1.msra.mxu0 0.0
        %4561 = vmatprep.subr.mxu0 0.0
        %4562 = vmatpush1.msra.mxu0 0.0
        %4563 = vmatprep.subr.mxu0 0.0
        %4564 = vmatpush1.msra.mxu0 0.0
        %4565 = vmatprep.subr.mxu0 0.0
        %4566 = vmatpush1.msra.mxu0 0.0
        %4567 = vmatprep.subr.mxu0 0.0
        %4568 = vmatpush1.msra.mxu0 0.0
        %4569 = vmatprep.subr.mxu0 0.0
        %4570 = vmatpush1.msra.mxu0 0.0
        %4571 = vmatprep.subr.mxu0 0.0
        %4572 = vmatpush1.msra.mxu0 0.0
        %4573 = vmatprep.subr.mxu0 0.0
        %4574 = vmatpush1.msra.mxu0 0.0
        %4575 = vmatprep.subr.mxu0 0.0
        %4576 = vmatpush1.msra.mxu0 0.0
        %4577 = vmatprep.subr.mxu0 0.0
        %4578 = vmatpush1.msra.mxu0 0.0
        %4579 = vmatprep.subr.mxu0 0.0
        %4580 = vmatpush1.msra.mxu0 0.0
        %4581 = vmatprep.subr.mxu0 0.0
        %4582 = vmatpush1.msra.mxu0 0.0
        %4583 = vmatprep.subr.mxu0 0.0
        %4584 = vmatpush1.msra.mxu0 0.0
        %4585 = vmatprep.subr.mxu0 0.0
        %4586 = vmatpush1.msra.mxu0 0.0
        %4587 = vmatprep.subr.mxu0 0.0
        %4588 = vmatpush1.msra.mxu0 0.0
        %4589 = vmatprep.subr.mxu0 0.0
        %4590 = vmatpush1.msra.mxu0 0.0
        %4591 = vmatprep.subr.mxu0 0.0
        %4592 = vmatpush1.msra.mxu0 0.0
        %4593 = vmatprep.subr.mxu0 0.0
        %4594 = vmatpush1.msra.mxu0 0.0
        %4595 = vmatprep.mubr.f32.mxu0 0.0
        %4596 = vmatmul.mubr.f32.gmra.mrb[0].mxu0 %v4529
        %v4597 = vpop.f32.mrb[0].mxu0
        %v4598 = vadd.f32 0.0, %v4597
        %v4599 = vpop.f32.mrb[0].mxu0
        %4600 = vdwg.mxu0
        %v4601 = vxor.u32 %v4495, 2147483648
        %v4602 = vmul.f32 %v4601, 1.442695
        %v4603 = vpow.pop %v4602
        %v4604 = vadd.f32 %v4603, 1.0
        %v4605 = vrcp.pop %v4604
        %v4606 = vmul.f32 1.0, %v4605
        %vm4607 = vcmp.lt.s32.totalorder %v359, 4
        %v4608 = vsel %vm4607, 0, 1
        %vm4609 = vcmp.lt.s32.totalorder %v364, 4
        %v4610 = vsel %vm4609, 0, 1
        %vm4611 = vcmp.eq.s32.totalorder %v4608, %v4610
        %v4612 = vlaneseq
        %v4613 = vshrl.u32 %v4612, 7
        %v4614 = vsub.s32 0, %v4613
        %v4615 = vrot.slane %v4598, %v4614
        %vm4616 = vcmp.gt.f32.partialorder %v4615, %v4495
        %vm4617 = vcmp.eq.f32.partialorder %v4615, %v4495
        %vm4618 = vmand %vm4617, %vm1695
        %vm4619 = vmor %vm4616, %vm4618
        %vm4620 = vmand %vm4611, %vm4619
        %v4621 = vsel %vm4620, 1, 0
        %v4622 = vcvt.s32.f32 %v4621
        %v4623 = vsel %vm450, %v4622, 0.0
        %4624 = vadd.xlane.f32.xlu0 %v4623
        %v4625 = vpop.xlane.xlu0 %4624
        %vm4626 = vcmp.lt.f32.partialorder %v4625, 2.0
        %v4627 = vsel %vm4626, 1, 0
        %v4628 = vcvt.s32.f32 %v4627
        %v4629 = vsel %vm4607, 0.0, 2.0
        %v4630 = vadd.f32 %v4625, %v4629
        %vm4631 = vcmp.eq.f32.partialorder %v4630, %v1751
        %v4632 = vsel %vm4631, 1, 0
        %v4633 = vcvt.s32.f32 %v4632
        %v4634 = vmul.f32 %v4628, %v4633
        %v4635 = vmul.f32 %v4634, %v4606
        %4636 = vxpose.xlu0.b32.start [1/16] %v4635, 128
        %4637 = vxpose.xlu0.b32.cont [2/16] 0.0, 128
        %4638 = vxpose.xlu0.b32.cont [3/16] 0.0, 128
        %4639 = vxpose.xlu0.b32.cont [4/16] 0.0, 128
        %4640 = vxpose.xlu0.b32.cont [5/16] 0.0, 128
        %4641 = vxpose.xlu0.b32.cont [6/16] 0.0, 128
        %4642 = vxpose.xlu0.b32.cont [7/16] 0.0, 128
        %4643 = vxpose.xlu0.b32.cont [8/16] 0.0, 128
        %4644 = vxpose.xlu0.b32.cont [9/16] 0.0, 128
        %4645 = vxpose.xlu0.b32.cont [10/16] 0.0, 128
        %4646 = vxpose.xlu0.b32.cont [11/16] 0.0, 128
        %4647 = vxpose.xlu0.b32.cont [12/16] 0.0, 128
        %4648 = vxpose.xlu0.b32.cont [13/16] 0.0, 128
        %4649 = vxpose.xlu0.b32.cont [14/16] 0.0, 128
        %4650 = vxpose.xlu0.b32.cont [15/16] 0.0, 128
        %4651 = vxpose.xlu0.b32.end [16/16] 0.0, 128
        %v4652 = vpop.trf.xlu0
        %v4653 = vpop.trf.xlu0
        %v4654 = vpop.trf.xlu0
        %v4655 = vpop.trf.xlu0
        %v4656 = vpop.trf.xlu0
        %v4657 = vpop.trf.xlu0
        %v4658 = vpop.trf.xlu0
        %v4659 = vpop.trf.xlu0
        %v4660 = vpop.trf.xlu0
        %v4661 = vpop.trf.xlu0
        %v4662 = vpop.trf.xlu0
        %v4663 = vpop.trf.xlu0
        %v4664 = vpop.trf.xlu0
        %v4665 = vpop.trf.xlu0
        %v4666 = vpop.trf.xlu0
        %v4667 = vpop.trf.xlu0
        %v4669 = vsel %vm450, %v4652, 0
        %4671 = vmatprep.subr.mxu0 0.0
        %4672 = vmatpush1.msra.mxu0 %v4485
        %4673 = vmatprep.subr.mxu0 0.0
        %4674 = vmatpush1.msra.mxu0 0.0
        %4675 = vmatprep.subr.mxu0 0.0
        %4676 = vmatpush1.msra.mxu0 0.0
        %4677 = vmatprep.subr.mxu0 0.0
        %4678 = vmatpush1.msra.mxu0 0.0
        %4679 = vmatprep.subr.mxu0 0.0
        %4680 = vmatpush1.msra.mxu0 0.0
        %4681 = vmatprep.subr.mxu0 0.0
        %4682 = vmatpush1.msra.mxu0 0.0
        %4683 = vmatprep.subr.mxu0 0.0
        %4684 = vmatpush1.msra.mxu0 0.0
        %4685 = vmatprep.subr.mxu0 0.0
        %4686 = vmatpush1.msra.mxu0 0.0
        %4687 = vmatprep.subr.mxu0 0.0
        %4688 = vmatpush1.msra.mxu0 0.0
        %4689 = vmatprep.subr.mxu0 0.0
        %4690 = vmatpush1.msra.mxu0 0.0
        %4691 = vmatprep.subr.mxu0 0.0
        %4692 = vmatpush1.msra.mxu0 0.0
        %4693 = vmatprep.subr.mxu0 0.0
        %4694 = vmatpush1.msra.mxu0 0.0
        %4695 = vmatprep.subr.mxu0 0.0
        %4696 = vmatpush1.msra.mxu0 0.0
        %4697 = vmatprep.subr.mxu0 0.0
        %4698 = vmatpush1.msra.mxu0 0.0
        %4699 = vmatprep.subr.mxu0 0.0
        %4700 = vmatpush1.msra.mxu0 0.0
        %4701 = vmatprep.subr.mxu0 0.0
        %4702 = vmatpush1.msra.mxu0 0.0
        %4703 = vmatprep.subr.mxu0 0.0
        %4704 = vmatpush1.msra.mxu0 0.0
        %4705 = vmatprep.subr.mxu0 0.0
        %4706 = vmatpush1.msra.mxu0 0.0
        %4707 = vmatprep.subr.mxu0 0.0
        %4708 = vmatpush1.msra.mxu0 0.0
        %4709 = vmatprep.subr.mxu0 0.0
        %4710 = vmatpush1.msra.mxu0 0.0
        %4711 = vmatprep.subr.mxu0 0.0
        %4712 = vmatpush1.msra.mxu0 0.0
        %4713 = vmatprep.subr.mxu0 0.0
        %4714 = vmatpush1.msra.mxu0 0.0
        %4715 = vmatprep.subr.mxu0 0.0
        %4716 = vmatpush1.msra.mxu0 0.0
        %4717 = vmatprep.subr.mxu0 0.0
        %4718 = vmatpush1.msra.mxu0 0.0
        %4719 = vmatprep.subr.mxu0 0.0
        %4720 = vmatpush1.msra.mxu0 0.0
        %4721 = vmatprep.subr.mxu0 0.0
        %4722 = vmatpush1.msra.mxu0 0.0
        %4723 = vmatprep.subr.mxu0 0.0
        %4724 = vmatpush1.msra.mxu0 0.0
        %4725 = vmatprep.subr.mxu0 0.0
        %4726 = vmatpush1.msra.mxu0 0.0
        %4727 = vmatprep.subr.mxu0 0.0
        %4728 = vmatpush1.msra.mxu0 0.0
        %4729 = vmatprep.subr.mxu0 0.0
        %4730 = vmatpush1.msra.mxu0 0.0
        %4731 = vmatprep.subr.mxu0 0.0
        %4732 = vmatpush1.msra.mxu0 0.0
        %4733 = vmatprep.subr.mxu0 0.0
        %4734 = vmatpush1.msra.mxu0 0.0
        %4735 = vmatprep.mubr.f32.mxu0 0.0
        %4736 = vmatmul.mubr.f32.gmra.mrb[0].mxu0 %v4669
        %v4737 = vpop.f32.mrb[0].mxu0
        %v4738 = vadd.f32 0.0, %v4737
        %v4739 = vpop.f32.mrb[0].mxu0
        %4740 = vdwg.mxu0
        %v4742 = vsel %vm404, %v4738, 0
        %4744 = vmatprep.subr.mxu0 0.0
        %4745 = vmatpush1.msra.mxu0 %v4132
        %4746 = vmatprep.subr.mxu0 0.0
        %4747 = vmatpush1.msra.mxu0 %v4133
        %4748 = vmatprep.subr.mxu0 0.0
        %4749 = vmatpush1.msra.mxu0 %v4134
        %4750 = vmatprep.subr.mxu0 0.0
        %4751 = vmatpush1.msra.mxu0 %v4135
        %4752 = vmatprep.subr.mxu0 0.0
        %4753 = vmatpush1.msra.mxu0 0.0
        %4754 = vmatprep.subr.mxu0 0.0
        %4755 = vmatpush1.msra.mxu0 0.0
        %4756 = vmatprep.subr.mxu0 0.0
        %4757 = vmatpush1.msra.mxu0 0.0
        %4758 = vmatprep.subr.mxu0 0.0
        %4759 = vmatpush1.msra.mxu0 0.0
        %4760 = vmatprep.subr.mxu0 0.0
        %4761 = vmatpush1.msra.mxu0 0.0
        %4762 = vmatprep.subr.mxu0 0.0
        %4763 = vmatpush1.msra.mxu0 0.0
        %4764 = vmatprep.subr.mxu0 0.0
        %4765 = vmatpush1.msra.mxu0 0.0
        %4766 = vmatprep.subr.mxu0 0.0
        %4767 = vmatpush1.msra.mxu0 0.0
        %4768 = vmatprep.subr.mxu0 0.0
        %4769 = vmatpush1.msra.mxu0 0.0
        %4770 = vmatprep.subr.mxu0 0.0
        %4771 = vmatpush1.msra.mxu0 0.0
        %4772 = vmatprep.subr.mxu0 0.0
        %4773 = vmatpush1.msra.mxu0 0.0
        %4774 = vmatprep.subr.mxu0 0.0
        %4775 = vmatpush1.msra.mxu0 0.0
        %4776 = vmatprep.subr.mxu0 0.0
        %4777 = vmatpush1.msra.mxu0 0.0
        %4778 = vmatprep.subr.mxu0 0.0
        %4779 = vmatpush1.msra.mxu0 0.0
        %4780 = vmatprep.subr.mxu0 0.0
        %4781 = vmatpush1.msra.mxu0 0.0
        %4782 = vmatprep.subr.mxu0 0.0
        %4783 = vmatpush1.msra.mxu0 0.0
        %4784 = vmatprep.subr.mxu0 0.0
        %4785 = vmatpush1.msra.mxu0 0.0
        %4786 = vmatprep.subr.mxu0 0.0
        %4787 = vmatpush1.msra.mxu0 0.0
        %4788 = vmatprep.subr.mxu0 0.0
        %4789 = vmatpush1.msra.mxu0 0.0
        %4790 = vmatprep.subr.mxu0 0.0
        %4791 = vmatpush1.msra.mxu0 0.0
        %4792 = vmatprep.subr.mxu0 0.0
        %4793 = vmatpush1.msra.mxu0 0.0
        %4794 = vmatprep.subr.mxu0 0.0
        %4795 = vmatpush1.msra.mxu0 0.0
        %4796 = vmatprep.subr.mxu0 0.0
        %4797 = vmatpush1.msra.mxu0 0.0
        %4798 = vmatprep.subr.mxu0 0.0
        %4799 = vmatpush1.msra.mxu0 0.0
        %4800 = vmatprep.subr.mxu0 0.0
        %4801 = vmatpush1.msra.mxu0 0.0
        %4802 = vmatprep.subr.mxu0 0.0
        %4803 = vmatpush1.msra.mxu0 0.0
        %4804 = vmatprep.subr.mxu0 0.0
        %4805 = vmatpush1.msra.mxu0 0.0
        %4806 = vmatprep.subr.mxu0 0.0
        %4807 = vmatpush1.msra.mxu0 0.0
        %4808 = vmatprep.mubr.f32.mxu0 0.0
        %4809 = vmatmul.mubr.f32.gmra.mrb[0].mxu0 %v4742
        %v4810 = vpop.f32.mrb[0].mxu0
        %v4811 = vadd.f32 0.0, %v4810
        %v4812 = vpop.f32.mrb[0].mxu0
        %4813 = vdwg.mxu0
        %v4814 = vrot.slane %v4738, 2
        %v4816 = vsel %vm404, %v4811, 0
        %v4818 = vsel %vm404, %v4814, 0
        %4820 = vmatprep.subr.mxu0 0.0
        %4821 = vmatpush1.xpose.msra.mxu0 %v4818
        %4822 = vmatprep.subr.mxu0 0.0
        %4823 = vmatpush1.xpose.msra.mxu0 0.0
        %4824 = vmatprep.subr.mxu0 0.0
        %4825 = vmatpush1.xpose.msra.mxu0 0.0
        %4826 = vmatprep.subr.mxu0 0.0
        %4827 = vmatpush1.xpose.msra.mxu0 0.0
        %4828 = vmatprep.subr.mxu0 0.0
        %4829 = vmatpush1.xpose.msra.mxu0 0.0
        %4830 = vmatprep.subr.mxu0 0.0
        %4831 = vmatpush1.xpose.msra.mxu0 0.0
        %4832 = vmatprep.subr.mxu0 0.0
        %4833 = vmatpush1.xpose.msra.mxu0 0.0
        %4834 = vmatprep.subr.mxu0 0.0
        %4835 = vmatpush1.xpose.msra.mxu0 0.0
        %4836 = vmatprep.subr.mxu0 0.0
        %4837 = vmatpush1.xpose.msra.mxu0 0.0
        %4838 = vmatprep.subr.mxu0 0.0
        %4839 = vmatpush1.xpose.msra.mxu0 0.0
        %4840 = vmatprep.subr.mxu0 0.0
        %4841 = vmatpush1.xpose.msra.mxu0 0.0
        %4842 = vmatprep.subr.mxu0 0.0
        %4843 = vmatpush1.xpose.msra.mxu0 0.0
        %4844 = vmatprep.subr.mxu0 0.0
        %4845 = vmatpush1.xpose.msra.mxu0 0.0
        %4846 = vmatprep.subr.mxu0 0.0
        %4847 = vmatpush1.xpose.msra.mxu0 0.0
        %4848 = vmatprep.subr.mxu0 0.0
        %4849 = vmatpush1.xpose.msra.mxu0 0.0
        %4850 = vmatprep.subr.mxu0 0.0
        %4851 = vmatpush1.xpose.msra.mxu0 0.0
        %4852 = vmatprep.subr.mxu0 0.0
        %4853 = vmatpush1.xpose.msra.mxu0 0.0
        %4854 = vmatprep.subr.mxu0 0.0
        %4855 = vmatpush1.xpose.msra.mxu0 0.0
        %4856 = vmatprep.subr.mxu0 0.0
        %4857 = vmatpush1.xpose.msra.mxu0 0.0
        %4858 = vmatprep.subr.mxu0 0.0
        %4859 = vmatpush1.xpose.msra.mxu0 0.0
        %4860 = vmatprep.subr.mxu0 0.0
        %4861 = vmatpush1.xpose.msra.mxu0 0.0
        %4862 = vmatprep.subr.mxu0 0.0
        %4863 = vmatpush1.xpose.msra.mxu0 0.0
        %4864 = vmatprep.subr.mxu0 0.0
        %4865 = vmatpush1.xpose.msra.mxu0 0.0
        %4866 = vmatprep.subr.mxu0 0.0
        %4867 = vmatpush1.xpose.msra.mxu0 0.0
        %4868 = vmatprep.subr.mxu0 0.0
        %4869 = vmatpush1.xpose.msra.mxu0 0.0
        %4870 = vmatprep.subr.mxu0 0.0
        %4871 = vmatpush1.xpose.msra.mxu0 0.0
        %4872 = vmatprep.subr.mxu0 0.0
        %4873 = vmatpush1.xpose.msra.mxu0 0.0
        %4874 = vmatprep.subr.mxu0 0.0
        %4875 = vmatpush1.xpose.msra.mxu0 0.0
        %4876 = vmatprep.subr.mxu0 0.0
        %4877 = vmatpush1.xpose.msra.mxu0 0.0
        %4878 = vmatprep.subr.mxu0 0.0
        %4879 = vmatpush1.xpose.msra.mxu0 0.0
        %4880 = vmatprep.subr.mxu0 0.0
        %4881 = vmatpush1.xpose.msra.mxu0 0.0
        %4882 = vmatprep.subr.mxu0 0.0
        %4883 = vmatpush1.xpose.msra.mxu0 0.0
        %4884 = vmatprep.mubr.f32.mxu0 0.0
        %4885 = vmatmul.mubr.f32.gmra.mrb[0].mxu0 %v4816
        %v4886 = vpop.f32.mrb[0].mxu0
        %v4887 = vadd.f32 0.0, %v4886
        %v4888 = vpop.f32.mrb[0].mxu0
        %4889 = vdwg.mxu0
        %vm4890 = vcmask 9216
        %v4891 = vsel %vm4890, %v4887, -inf
        %4892 = vmax.xlane.f32.xlu0 %v4891
        %v4893 = vpop.xlane.xlu0 %4892
        %v4894 = vsub.f32 %v4887, %v4893
        %v4895 = vmul.f32 %v4894, 1.442695
        %v4896 = vpow.pop %v4895
        %v4897 = vsel %vm4890, %v4896, 0.0
        %4898 = vadd.xlane.f32.xlu0 %v4897
        %v4899 = vpop.xlane.xlu0 %4898
        %v4900 = vrcp.pop %v4899
        %v4901 = vmul.f32 %v4896, %v4900
        %v4902 = vrot.slane %v4891, 4
        %v4903 = vmax.f32 %v4891, %v4902
        %v4904 = vrot.slane %v4903, 2
        %v4905 = vmax.f32 %v4903, %v4904
        %v4906 = vrot.slane %v4905, 1
        %v4907 = vmax.f32 %v4905, %v4906
        %v4908 = vsub.f32 %v4887, %v4907
        %v4909 = vmul.f32 %v4908, 1.442695
        %v4910 = vpow.pop %v4909
        %v4911 = vsel %vm4890, %v4910, 0.0
        %v4912 = vrot.slane %v4911, 4
        %v4913 = vadd.f32 %v4911, %v4912
        %v4914 = vrot.slane %v4913, 2
        %v4915 = vadd.f32 %v4913, %v4914
        %v4916 = vrot.slane %v4915, 1
        %v4917 = vadd.f32 %v4915, %v4916
        %v4918 = vrcp.pop %v4917
        %v4919 = vmul.f32 %v4910, %v4918
        %vm4920 = vcmask 15360
        %v4922 = vsel %vm4920, %v4901, 0
        %vm4924 = vcmask 1041408
        %v4925 = vsel %vm4924, %v4814, 0
        %4927 = vmatprep.subr.mxu0 0.0
        %4928 = vmatpush1.msra.mxu0 %v4925
        %4929 = vmatprep.subr.mxu0 0.0
        %4930 = vmatpush1.msra.mxu0 0.0
        %4931 = vmatprep.subr.mxu0 0.0
        %4932 = vmatpush1.msra.mxu0 0.0
        %4933 = vmatprep.subr.mxu0 0.0
        %4934 = vmatpush1.msra.mxu0 0.0
        %4935 = vmatprep.subr.mxu0 0.0
        %4936 = vmatpush1.msra.mxu0 0.0
        %4937 = vmatprep.subr.mxu0 0.0
        %4938 = vmatpush1.msra.mxu0 0.0
        %4939 = vmatprep.subr.mxu0 0.0
        %4940 = vmatpush1.msra.mxu0 0.0
        %4941 = vmatprep.subr.mxu0 0.0
        %4942 = vmatpush1.msra.mxu0 0.0
        %4943 = vmatprep.subr.mxu0 0.0
        %4944 = vmatpush1.msra.mxu0 0.0
        %4945 = vmatprep.subr.mxu0 0.0
        %4946 = vmatpush1.msra.mxu0 0.0
        %4947 = vmatprep.subr.mxu0 0.0
        %4948 = vmatpush1.msra.mxu0 0.0
        %4949 = vmatprep.subr.mxu0 0.0
        %4950 = vmatpush1.msra.mxu0 0.0
        %4951 = vmatprep.subr.mxu0 0.0
        %4952 = vmatpush1.msra.mxu0 0.0
        %4953 = vmatprep.subr.mxu0 0.0
        %4954 = vmatpush1.msra.mxu0 0.0
        %4955 = vmatprep.subr.mxu0 0.0
        %4956 = vmatpush1.msra.mxu0 0.0
        %4957 = vmatprep.subr.mxu0 0.0
        %4958 = vmatpush1.msra.mxu0 0.0
        %4959 = vmatprep.subr.mxu0 0.0
        %4960 = vmatpush1.msra.mxu0 0.0
        %4961 = vmatprep.subr.mxu0 0.0
        %4962 = vmatpush1.msra.mxu0 0.0
        %4963 = vmatprep.subr.mxu0 0.0
        %4964 = vmatpush1.msra.mxu0 0.0
        %4965 = vmatprep.subr.mxu0 0.0
        %4966 = vmatpush1.msra.mxu0 0.0
        %4967 = vmatprep.subr.mxu0 0.0
        %4968 = vmatpush1.msra.mxu0 0.0
        %4969 = vmatprep.subr.mxu0 0.0
        %4970 = vmatpush1.msra.mxu0 0.0
        %4971 = vmatprep.subr.mxu0 0.0
        %4972 = vmatpush1.msra.mxu0 0.0
        %4973 = vmatprep.subr.mxu0 0.0
        %4974 = vmatpush1.msra.mxu0 0.0
        %4975 = vmatprep.subr.mxu0 0.0
        %4976 = vmatpush1.msra.mxu0 0.0
        %4977 = vmatprep.subr.mxu0 0.0
        %4978 = vmatpush1.msra.mxu0 0.0
        %4979 = vmatprep.subr.mxu0 0.0
        %4980 = vmatpush1.msra.mxu0 0.0
        %4981 = vmatprep.subr.mxu0 0.0
        %4982 = vmatpush1.msra.mxu0 0.0
        %4983 = vmatprep.subr.mxu0 0.0
        %4984 = vmatpush1.msra.mxu0 0.0
        %4985 = vmatprep.subr.mxu0 0.0
        %4986 = vmatpush1.msra.mxu0 0.0
        %4987 = vmatprep.subr.mxu0 0.0
        %4988 = vmatpush1.msra.mxu0 0.0
        %4989 = vmatprep.subr.mxu0 0.0
        %4990 = vmatpush1.msra.mxu0 0.0
        %4991 = vmatprep.mubr.f32.mxu0 0.0
        %4992 = vmatmul.mubr.f32.gmra.mrb[0].mxu0 %v4922
        %v4993 = vpop.f32.mrb[0].mxu0
        %v4994 = vadd.f32 0.0, %v4993
        %v4995 = vpop.f32.mrb[0].mxu0
        %4996 = vdwg.mxu0
        %4997 = vxpose.xlu0.b32.start [1/16] %v4919, 128
        %4998 = vxpose.xlu0.b32.cont [2/16] 0.0, 128
        %4999 = vxpose.xlu0.b32.cont [3/16] 0.0, 128
        %5000 = vxpose.xlu0.b32.cont [4/16] 0.0, 128
        %5001 = vxpose.xlu0.b32.cont [5/16] 0.0, 128
        %5002 = vxpose.xlu0.b32.cont [6/16] 0.0, 128
        %5003 = vxpose.xlu0.b32.cont [7/16] 0.0, 128
        %5004 = vxpose.xlu0.b32.cont [8/16] 0.0, 128
        %5005 = vxpose.xlu0.b32.cont [9/16] 0.0, 128
        %5006 = vxpose.xlu0.b32.cont [10/16] 0.0, 128
        %5007 = vxpose.xlu0.b32.cont [11/16] 0.0, 128
        %5008 = vxpose.xlu0.b32.cont [12/16] 0.0, 128
        %5009 = vxpose.xlu0.b32.cont [13/16] 0.0, 128
        %5010 = vxpose.xlu0.b32.cont [14/16] 0.0, 128
        %5011 = vxpose.xlu0.b32.cont [15/16] 0.0, 128
        %5012 = vxpose.xlu0.b32.end [16/16] 0.0, 128
        %v5013 = vpop.trf.xlu0
        %v5014 = vpop.trf.xlu0
        %v5015 = vpop.trf.xlu0
        %v5016 = vpop.trf.xlu0
        %v5017 = vpop.trf.xlu0
        %v5018 = vpop.trf.xlu0
        %v5019 = vpop.trf.xlu0
        %v5020 = vpop.trf.xlu0
        %v5021 = vpop.trf.xlu0
        %v5022 = vpop.trf.xlu0
        %v5023 = vpop.trf.xlu0
        %v5024 = vpop.trf.xlu0
        %v5025 = vpop.trf.xlu0
        %v5026 = vpop.trf.xlu0
        %v5027 = vpop.trf.xlu0
        %v5028 = vpop.trf.xlu0
        %v5030 = vsel %vm4920, %v5013, 0
        %v5032 = vsel %vm4924, %v4738, 0
        %5034 = vmatprep.subr.mxu0 0.0
        %5035 = vmatpush1.msra.mxu0 %v5032
        %5036 = vmatprep.subr.mxu0 0.0
        %5037 = vmatpush1.msra.mxu0 0.0
        %5038 = vmatprep.subr.mxu0 0.0
        %5039 = vmatpush1.msra.mxu0 0.0
        %5040 = vmatprep.subr.mxu0 0.0
        %5041 = vmatpush1.msra.mxu0 0.0
        %5042 = vmatprep.subr.mxu0 0.0
        %5043 = vmatpush1.msra.mxu0 0.0
        %5044 = vmatprep.subr.mxu0 0.0
        %5045 = vmatpush1.msra.mxu0 0.0
        %5046 = vmatprep.subr.mxu0 0.0
        %5047 = vmatpush1.msra.mxu0 0.0
        %5048 = vmatprep.subr.mxu0 0.0
        %5049 = vmatpush1.msra.mxu0 0.0
        %5050 = vmatprep.subr.mxu0 0.0
        %5051 = vmatpush1.msra.mxu0 0.0
        %5052 = vmatprep.subr.mxu0 0.0
        %5053 = vmatpush1.msra.mxu0 0.0
        %5054 = vmatprep.subr.mxu0 0.0
        %5055 = vmatpush1.msra.mxu0 0.0
        %5056 = vmatprep.subr.mxu0 0.0
        %5057 = vmatpush1.msra.mxu0 0.0
        %5058 = vmatprep.subr.mxu0 0.0
        %5059 = vmatpush1.msra.mxu0 0.0
        %5060 = vmatprep.subr.mxu0 0.0
        %5061 = vmatpush1.msra.mxu0 0.0
        %5062 = vmatprep.subr.mxu0 0.0
        %5063 = vmatpush1.msra.mxu0 0.0
        %5064 = vmatprep.subr.mxu0 0.0
        %5065 = vmatpush1.msra.mxu0 0.0
        %5066 = vmatprep.subr.mxu0 0.0
        %5067 = vmatpush1.msra.mxu0 0.0
        %5068 = vmatprep.subr.mxu0 0.0
        %5069 = vmatpush1.msra.mxu0 0.0
        %5070 = vmatprep.subr.mxu0 0.0
        %5071 = vmatpush1.msra.mxu0 0.0
        %5072 = vmatprep.subr.mxu0 0.0
        %5073 = vmatpush1.msra.mxu0 0.0
        %5074 = vmatprep.subr.mxu0 0.0
        %5075 = vmatpush1.msra.mxu0 0.0
        %5076 = vmatprep.subr.mxu0 0.0
        %5077 = vmatpush1.msra.mxu0 0.0
        %5078 = vmatprep.subr.mxu0 0.0
        %5079 = vmatpush1.msra.mxu0 0.0
        %5080 = vmatprep.subr.mxu0 0.0
        %5081 = vmatpush1.msra.mxu0 0.0
        %5082 = vmatprep.subr.mxu0 0.0
        %5083 = vmatpush1.msra.mxu0 0.0
        %5084 = vmatprep.subr.mxu0 0.0
        %5085 = vmatpush1.msra.mxu0 0.0
        %5086 = vmatprep.subr.mxu0 0.0
        %5087 = vmatpush1.msra.mxu0 0.0
        %5088 = vmatprep.subr.mxu0 0.0
        %5089 = vmatpush1.msra.mxu0 0.0
        %5090 = vmatprep.subr.mxu0 0.0
        %5091 = vmatpush1.msra.mxu0 0.0
        %5092 = vmatprep.subr.mxu0 0.0
        %5093 = vmatpush1.msra.mxu0 0.0
        %5094 = vmatprep.subr.mxu0 0.0
        %5095 = vmatpush1.msra.mxu0 0.0
        %5096 = vmatprep.subr.mxu0 0.0
        %5097 = vmatpush1.msra.mxu0 0.0
        %5098 = vmatprep.mubr.f32.mxu0 0.0
        %5099 = vmatmul.mubr.f32.gmra.mrb[0].mxu0 %v5030
        %v5100 = vpop.f32.mrb[0].mxu0
        %v5101 = vadd.f32 0.0, %v5100
        %v5102 = vpop.f32.mrb[0].mxu0
        %5103 = vdwg.mxu0
        %vm5104 = vcmask 254976
        %v5105 = vsel %vm5104, %v4994, 0.0
        %v5106 = vrot.slane %v5105, 4
        %v5107 = vadd.f32 %v5105, %v5106
        %v5108 = vrot.slane %v5107, 2
        %v5109 = vadd.f32 %v5107, %v5108
        %v5110 = vrot.slane %v5109, 1
        %v5111 = vadd.f32 %v5109, %v5110
        %v5112 = vrcp.pop 2.0
        %v5113 = vmul.f32 %v5111, %v5112
        %v5115 = vsel %vm404, %v5113, 0
        %5117 = vmatprep.subr.mxu0 0.0
        %5118 = vmatpush1.msra.mxu0 %v4137
        %5119 = vmatprep.subr.mxu0 0.0
        %5120 = vmatpush1.msra.mxu0 %v4138
        %5121 = vmatprep.subr.mxu0 0.0
        %5122 = vmatpush1.msra.mxu0 %v4139
        %5123 = vmatprep.subr.mxu0 0.0
        %5124 = vmatpush1.msra.mxu0 %v4140
        %5125 = vmatprep.subr.mxu0 0.0
        %5126 = vmatpush1.msra.mxu0 0.0
        %5127 = vmatprep.subr.mxu0 0.0
        %5128 = vmatpush1.msra.mxu0 0.0
        %5129 = vmatprep.subr.mxu0 0.0
        %5130 = vmatpush1.msra.mxu0 0.0
        %5131 = vmatprep.subr.mxu0 0.0
        %5132 = vmatpush1.msra.mxu0 0.0
        %5133 = vmatprep.subr.mxu0 0.0
        %5134 = vmatpush1.msra.mxu0 0.0
        %5135 = vmatprep.subr.mxu0 0.0
        %5136 = vmatpush1.msra.mxu0 0.0
        %5137 = vmatprep.subr.mxu0 0.0
        %5138 = vmatpush1.msra.mxu0 0.0
        %5139 = vmatprep.subr.mxu0 0.0
        %5140 = vmatpush1.msra.mxu0 0.0
        %5141 = vmatprep.subr.mxu0 0.0
        %5142 = vmatpush1.msra.mxu0 0.0
        %5143 = vmatprep.subr.mxu0 0.0
        %5144 = vmatpush1.msra.mxu0 0.0
        %5145 = vmatprep.subr.mxu0 0.0
        %5146 = vmatpush1.msra.mxu0 0.0
        %5147 = vmatprep.subr.mxu0 0.0
        %5148 = vmatpush1.msra.mxu0 0.0
        %5149 = vmatprep.subr.mxu0 0.0
        %5150 = vmatpush1.msra.mxu0 0.0
        %5151 = vmatprep.subr.mxu0 0.0
        %5152 = vmatpush1.msra.mxu0 0.0
        %5153 = vmatprep.subr.mxu0 0.0
        %5154 = vmatpush1.msra.mxu0 0.0
        %5155 = vmatprep.subr.mxu0 0.0
        %5156 = vmatpush1.msra.mxu0 0.0
        %5157 = vmatprep.subr.mxu0 0.0
        %5158 = vmatpush1.msra.mxu0 0.0
        %5159 = vmatprep.subr.mxu0 0.0
        %5160 = vmatpush1.msra.mxu0 0.0
        %5161 = vmatprep.subr.mxu0 0.0
        %5162 = vmatpush1.msra.mxu0 0.0
        %5163 = vmatprep.subr.mxu0 0.0
        %5164 = vmatpush1.msra.mxu0 0.0
        %5165 = vmatprep.subr.mxu0 0.0
        %5166 = vmatpush1.msra.mxu0 0.0
        %5167 = vmatprep.subr.mxu0 0.0
        %5168 = vmatpush1.msra.mxu0 0.0
        %5169 = vmatprep.subr.mxu0 0.0
        %5170 = vmatpush1.msra.mxu0 0.0
        %5171 = vmatprep.subr.mxu0 0.0
        %5172 = vmatpush1.msra.mxu0 0.0
        %5173 = vmatprep.subr.mxu0 0.0
        %5174 = vmatpush1.msra.mxu0 0.0
        %5175 = vmatprep.subr.mxu0 0.0
        %5176 = vmatpush1.msra.mxu0 0.0
        %5177 = vmatprep.subr.mxu0 0.0
        %5178 = vmatpush1.msra.mxu0 0.0
        %5179 = vmatprep.subr.mxu0 0.0
        %5180 = vmatpush1.msra.mxu0 0.0
        %5181 = vmatprep.mubr.f32.mxu0 0.0
        %5182 = vmatmul.mubr.f32.gmra.mrb[0].mxu0 %v5115
        %v5183 = vpop.f32.mrb[0].mxu0
        %v5184 = vadd.f32 0.0, %v5183
        %v5185 = vpop.f32.mrb[0].mxu0
        %5186 = vdwg.mxu0
        %v5187 = vtanh.pop %v5184
        %v5188 = vlaneseq
        %v5189 = vshrl.u32 %v5188, 7
        %v5190 = vsub.s32 0, %v5189
        %v5191 = vrot.slane %v5187, %v5190
        %v5192 = vmul.f32 %v4994, %v5191
        %v5193 = vsel %vm5104, %v5192, 0.0
        %5194 = vadd.xlane.f32.xlu0 %v5193
        %v5195 = vpop.xlane.xlu0 %5194
        %v5196 = vxor.u32 %v5195, 2147483648
        %v5197 = vmul.f32 %v5196, 1.442695
        %v5198 = vpow.pop %v5197
        %v5199 = vadd.f32 %v5198, 1.0
        %v5200 = vrcp.pop %v5199
        %v5201 = vmul.f32 1.0, %v5200
        %v5202 = vmul.f32 %v5201, %v4994
        %v5203 = vsel %vm5104, %v5202, 0.0
        %v5204 = vrot.slane %v5203, 4
        %v5205 = vadd.f32 %v5203, %v5204
        %v5206 = vrot.slane %v5205, 2
        %v5207 = vadd.f32 %v5205, %v5206
        %v5208 = vrot.slane %v5207, 1
        %v5209 = vadd.f32 %v5207, %v5208
        %v5210 = vsel %vm5104, %v5101, 0.0
        %v5211 = vrot.slane %v5210, 4
        %v5212 = vadd.f32 %v5210, %v5211
        %v5213 = vrot.slane %v5212, 2
        %v5214 = vadd.f32 %v5212, %v5213
        %v5215 = vrot.slane %v5214, 1
        %v5216 = vadd.f32 %v5214, %v5215
        %v5217 = vmul.f32 %v5216, %v5112
        %v5219 = vsel %vm404, %v5217, 0
        %5221 = vmatprep.subr.mxu0 0.0
        %5222 = vmatpush1.msra.mxu0 %v4137
        %5223 = vmatprep.subr.mxu0 0.0
        %5224 = vmatpush1.msra.mxu0 %v4138
        %5225 = vmatprep.subr.mxu0 0.0
        %5226 = vmatpush1.msra.mxu0 %v4139
        %5227 = vmatprep.subr.mxu0 0.0
        %5228 = vmatpush1.msra.mxu0 %v4140
        %5229 = vmatprep.subr.mxu0 0.0
        %5230 = vmatpush1.msra.mxu0 0.0
        %5231 = vmatprep.subr.mxu0 0.0
        %5232 = vmatpush1.msra.mxu0 0.0
        %5233 = vmatprep.subr.mxu0 0.0
        %5234 = vmatpush1.msra.mxu0 0.0
        %5235 = vmatprep.subr.mxu0 0.0
        %5236 = vmatpush1.msra.mxu0 0.0
        %5237 = vmatprep.subr.mxu0 0.0
        %5238 = vmatpush1.msra.mxu0 0.0
        %5239 = vmatprep.subr.mxu0 0.0
        %5240 = vmatpush1.msra.mxu0 0.0
        %5241 = vmatprep.subr.mxu0 0.0
        %5242 = vmatpush1.msra.mxu0 0.0
        %5243 = vmatprep.subr.mxu0 0.0
        %5244 = vmatpush1.msra.mxu0 0.0
        %5245 = vmatprep.subr.mxu0 0.0
        %5246 = vmatpush1.msra.mxu0 0.0
        %5247 = vmatprep.subr.mxu0 0.0
        %5248 = vmatpush1.msra.mxu0 0.0
        %5249 = vmatprep.subr.mxu0 0.0
        %5250 = vmatpush1.msra.mxu0 0.0
        %5251 = vmatprep.subr.mxu0 0.0
        %5252 = vmatpush1.msra.mxu0 0.0
        %5253 = vmatprep.subr.mxu0 0.0
        %5254 = vmatpush1.msra.mxu0 0.0
        %5255 = vmatprep.subr.mxu0 0.0
        %5256 = vmatpush1.msra.mxu0 0.0
        %5257 = vmatprep.subr.mxu0 0.0
        %5258 = vmatpush1.msra.mxu0 0.0
        %5259 = vmatprep.subr.mxu0 0.0
        %5260 = vmatpush1.msra.mxu0 0.0
        %5261 = vmatprep.subr.mxu0 0.0
        %5262 = vmatpush1.msra.mxu0 0.0
        %5263 = vmatprep.subr.mxu0 0.0
        %5264 = vmatpush1.msra.mxu0 0.0
        %5265 = vmatprep.subr.mxu0 0.0
        %5266 = vmatpush1.msra.mxu0 0.0
        %5267 = vmatprep.subr.mxu0 0.0
        %5268 = vmatpush1.msra.mxu0 0.0
        %5269 = vmatprep.subr.mxu0 0.0
        %5270 = vmatpush1.msra.mxu0 0.0
        %5271 = vmatprep.subr.mxu0 0.0
        %5272 = vmatpush1.msra.mxu0 0.0
        %5273 = vmatprep.subr.mxu0 0.0
        %5274 = vmatpush1.msra.mxu0 0.0
        %5275 = vmatprep.subr.mxu0 0.0
        %5276 = vmatpush1.msra.mxu0 0.0
        %5277 = vmatprep.subr.mxu0 0.0
        %5278 = vmatpush1.msra.mxu0 0.0
        %5279 = vmatprep.subr.mxu0 0.0
        %5280 = vmatpush1.msra.mxu0 0.0
        %5281 = vmatprep.subr.mxu0 0.0
        %5282 = vmatpush1.msra.mxu0 0.0
        %5283 = vmatprep.subr.mxu0 0.0
        %5284 = vmatpush1.msra.mxu0 0.0
        %5285 = vmatprep.mubr.f32.mxu0 0.0
        %5286 = vmatmul.mubr.f32.gmra.mrb[0].mxu0 %v5219
        %v5287 = vpop.f32.mrb[0].mxu0
        %v5288 = vadd.f32 0.0, %v5287
        %v5289 = vpop.f32.mrb[0].mxu0
        %5290 = vdwg.mxu0
        %v5291 = vtanh.pop %v5288
        %v5292 = vlaneseq
        %v5293 = vshrl.u32 %v5292, 7
        %v5294 = vsub.s32 0, %v5293
        %v5295 = vrot.slane %v5291, %v5294
        %v5296 = vmul.f32 %v5101, %v5295
        %v5297 = vsel %vm5104, %v5296, 0.0
        %5298 = vadd.xlane.f32.xlu0 %v5297
        %v5299 = vpop.xlane.xlu0 %5298
        %v5300 = vxor.u32 %v5299, 2147483648
        %v5301 = vmul.f32 %v5300, 1.442695
        %v5302 = vpow.pop %v5301
        %v5303 = vadd.f32 %v5302, 1.0
        %v5304 = vrcp.pop %v5303
        %v5305 = vmul.f32 1.0, %v5304
        %v5306 = vmul.f32 %v5305, %v5101
        %v5307 = vsel %vm5104, %v5306, 0.0
        %v5308 = vrot.slane %v5307, 4
        %v5309 = vadd.f32 %v5307, %v5308
        %v5310 = vrot.slane %v5309, 2
        %v5311 = vadd.f32 %v5309, %v5310
        %v5312 = vrot.slane %v5311, 1
        %v5313 = vadd.f32 %v5311, %v5312
        %5315 = vrot.lane.b32.xlu0 %v905, 32
        %v5316 = vpop.permute.xlu0 %5315
        %5319 = vrot.lane.b32.xlu0 %v2561, 64
        %v5320 = vpop.permute.xlu0 %5319
        %5323 = vrot.lane.b32.xlu0 %v2665, 96
        %v5324 = vpop.permute.xlu0 %5323
        %5327 = vrot.lane.b32.xlu0 %v4123, 32
        %v5328 = vpop.permute.xlu0 %5327
        %5331 = vrot.lane.b32.xlu0 %v5209, 64
        %v5332 = vpop.permute.xlu0 %5331
        %5335 = vrot.lane.b32.xlu0 %v5313, 96
        %v5336 = vpop.permute.xlu0 %5335
        %v5338 = vsel %vm404, %v786, %v5316
        %vm5339 = vcmask 523264
        %v5340 = vsel %vm5339, %v5338, %v5320
        %vm5341 = vcmask 785408
        %v5342 = vsel %vm5341, %v5340, %v5324
        %v5343 = vsel %vm404, %v4019, %v5328
        %v5344 = vsel %vm5339, %v5343, %v5332
        %v5345 = vsel %vm5341, %v5344, %v5336
        %v5346 = vld [vmem:[#allocation5] sm:$0xff]
        %v5347 = vld [vmem:[#allocation5 + $0x8] sm:$0xff]
        %v5348 = vld [vmem:[#allocation5 + $0x10] sm:$0xff]
        %v5349 = vld [vmem:[#allocation5 + $0x18] sm:$0xff]
        %v5350 = vld [vmem:[#allocation5 + $0x20] sm:$0xff]
        %v5351 = vld [vmem:[#allocation5 + $0x28] sm:$0xff]
        %v5352 = vld [vmem:[#allocation5 + $0x30] sm:$0xff]
        %v5353 = vld [vmem:[#allocation5 + $0x38] sm:$0xff]
        %v5354 = vld [vmem:[#allocation5 + $0x40] sm:$0xff]
        %v5355 = vld [vmem:[#allocation5 + $0x48] sm:$0xff]
        %v5356 = vld [vmem:[#allocation5 + $0x50] sm:$0xff]
        %v5357 = vld [vmem:[#allocation5 + $0x58] sm:$0xff]
        %v5358 = vld [vmem:[#allocation5 + $0x60] sm:$0xff]
        %v5359 = vld [vmem:[#allocation5 + $0x68] sm:$0xff]
        %v5360 = vld [vmem:[#allocation5 + $0x70] sm:$0xff]
        %v5361 = vld [vmem:[#allocation5 + $0x78] sm:$0xff]
        %v5362 = vld [vmem:[#allocation5 + $0x80] sm:$0xff]
        %v5363 = vld [vmem:[#allocation5 + $0x88] sm:$0xff]
        %v5364 = vld [vmem:[#allocation5 + $0x90] sm:$0xff]
        %v5365 = vld [vmem:[#allocation5 + $0x98] sm:$0xff]
        %v5366 = vld [vmem:[#allocation5 + $0xa0] sm:$0xff]
        %v5367 = vld [vmem:[#allocation5 + $0xa8] sm:$0xff]
        %v5368 = vld [vmem:[#allocation5 + $0xb0] sm:$0xff]
        %v5369 = vld [vmem:[#allocation5 + $0xb8] sm:$0xff]
        %v5370 = vld [vmem:[#allocation5 + $0xc0] sm:$0xff]
        %v5371 = vld [vmem:[#allocation5 + $0xc8] sm:$0xff]
        %v5372 = vld [vmem:[#allocation5 + $0xd0] sm:$0xff]
        %v5373 = vld [vmem:[#allocation5 + $0xd8] sm:$0xff]
        %v5374 = vld [vmem:[#allocation5 + $0xe0] sm:$0xff]
        %v5375 = vld [vmem:[#allocation5 + $0xe8] sm:$0xff]
        %v5376 = vld [vmem:[#allocation5 + $0xf0] sm:$0xff]
        %v5377 = vld [vmem:[#allocation5 + $0xf8] sm:$0xff]
        %v5378 = vld [vmem:[%s7] sm:$0x1]
        %5379 = vmatprep.subr.mxu0 0.0
        %5380 = vmatpush1.msra.mxu0 %v5346
        %5381 = vmatprep.subr.mxu0 0.0
        %5382 = vmatpush1.msra.mxu0 %v5347
        %5383 = vmatprep.subr.mxu0 0.0
        %5384 = vmatpush1.msra.mxu0 %v5348
        %5385 = vmatprep.subr.mxu0 0.0
        %5386 = vmatpush1.msra.mxu0 %v5349
        %5387 = vmatprep.subr.mxu0 0.0
        %5388 = vmatpush1.msra.mxu0 %v5350
        %5389 = vmatprep.subr.mxu0 0.0
        %5390 = vmatpush1.msra.mxu0 %v5351
        %5391 = vmatprep.subr.mxu0 0.0
        %5392 = vmatpush1.msra.mxu0 %v5352
        %5393 = vmatprep.subr.mxu0 0.0
        %5394 = vmatpush1.msra.mxu0 %v5353
        %5395 = vmatprep.subr.mxu0 0.0
        %5396 = vmatpush1.msra.mxu0 %v5354
        %5397 = vmatprep.subr.mxu0 0.0
        %5398 = vmatpush1.msra.mxu0 %v5355
        %5399 = vmatprep.subr.mxu0 0.0
        %5400 = vmatpush1.msra.mxu0 %v5356
        %5401 = vmatprep.subr.mxu0 0.0
        %5402 = vmatpush1.msra.mxu0 %v5357
        %5403 = vmatprep.subr.mxu0 0.0
        %5404 = vmatpush1.msra.mxu0 %v5358
        %5405 = vmatprep.subr.mxu0 0.0
        %5406 = vmatpush1.msra.mxu0 %v5359
        %5407 = vmatprep.subr.mxu0 0.0
        %5408 = vmatpush1.msra.mxu0 %v5360
        %5409 = vmatprep.subr.mxu0 0.0
        %5410 = vmatpush1.msra.mxu0 %v5361
        %5411 = vmatprep.subr.mxu0 0.0
        %5412 = vmatpush1.msra.mxu0 %v5362
        %5413 = vmatprep.subr.mxu0 0.0
        %5414 = vmatpush1.msra.mxu0 %v5363
        %5415 = vmatprep.subr.mxu0 0.0
        %5416 = vmatpush1.msra.mxu0 %v5364
        %5417 = vmatprep.subr.mxu0 0.0
        %5418 = vmatpush1.msra.mxu0 %v5365
        %5419 = vmatprep.subr.mxu0 0.0
        %5420 = vmatpush1.msra.mxu0 %v5366
        %5421 = vmatprep.subr.mxu0 0.0
        %5422 = vmatpush1.msra.mxu0 %v5367
        %5423 = vmatprep.subr.mxu0 0.0
        %5424 = vmatpush1.msra.mxu0 %v5368
        %5425 = vmatprep.subr.mxu0 0.0
        %5426 = vmatpush1.msra.mxu0 %v5369
        %5427 = vmatprep.subr.mxu0 0.0
        %5428 = vmatpush1.msra.mxu0 %v5370
        %5429 = vmatprep.subr.mxu0 0.0
        %5430 = vmatpush1.msra.mxu0 %v5371
        %5431 = vmatprep.subr.mxu0 0.0
        %5432 = vmatpush1.msra.mxu0 %v5372
        %5433 = vmatprep.subr.mxu0 0.0
        %5434 = vmatpush1.msra.mxu0 %v5373
        %5435 = vmatprep.subr.mxu0 0.0
        %5436 = vmatpush1.msra.mxu0 %v5374
        %5437 = vmatprep.subr.mxu0 0.0
        %5438 = vmatpush1.msra.mxu0 %v5375
        %5439 = vmatprep.subr.mxu0 0.0
        %5440 = vmatpush1.msra.mxu0 %v5376
        %5441 = vmatprep.subr.mxu0 0.0
        %5442 = vmatpush1.msra.mxu0 %v5377
        %5443 = vmatprep.mubr.f32.mxu0 %v5345
        %5444 = vmatmul.mubr.f32.gmra.mrb[0].mxu0 %v5342
        %v5445 = vpop.f32.mrb[0].mxu0
        %v5446 = vadd.f32 %v5378, %v5445
        %v5447 = vpop.f32.mrb[0].mxu0
        %5448 = vdwg.mxu0
        %v5449 = vmax.f32 %v5446, 0.0
        %v5450 = vld [vmem:[#allocation5 + $0x100] sm:$0xff]
        %v5451 = vld [vmem:[#allocation5 + $0x108] sm:$0xff]
        %v5452 = vld [vmem:[#allocation5 + $0x110] sm:$0xff]
        %v5453 = vld [vmem:[#allocation5 + $0x118] sm:$0xff]
        %v5454 = vld [vmem:[#allocation5 + $0x120] sm:$0xff]
        %v5455 = vld [vmem:[#allocation5 + $0x128] sm:$0xff]
        %v5456 = vld [vmem:[#allocation5 + $0x130] sm:$0xff]
        %v5457 = vld [vmem:[#allocation5 + $0x138] sm:$0xff]
        %v5458 = vld [vmem:[#allocation5 + $0x140] sm:$0xff]
        %v5459 = vld [vmem:[#allocation5 + $0x148] sm:$0xff]
        %v5460 = vld [vmem:[#allocation5 + $0x150] sm:$0xff]
        %v5461 = vld [vmem:[#allocation5 + $0x158] sm:$0xff]
        %v5462 = vld [vmem:[#allocation5 + $0x160] sm:$0xff]
        %v5463 = vld [vmem:[#allocation5 + $0x168] sm:$0xff]
        %v5464 = vld [vmem:[#allocation5 + $0x170] sm:$0xff]
        %v5465 = vld [vmem:[#allocation5 + $0x178] sm:$0xff]
        %v5466 = vld [vmem:[%s7 + $0x1] sm:$0x1]
        %5467 = vmatprep.subr.mxu0 0.0
        %5468 = vmatpush1.msra.mxu0 %v5450
        %5469 = vmatprep.subr.mxu0 0.0
        %5470 = vmatpush1.msra.mxu0 %v5451
        %5471 = vmatprep.subr.mxu0 0.0
        %5472 = vmatpush1.msra.mxu0 %v5452
        %5473 = vmatprep.subr.mxu0 0.0
        %5474 = vmatpush1.msra.mxu0 %v5453
        %5475 = vmatprep.subr.mxu0 0.0
        %5476 = vmatpush1.msra.mxu0 %v5454
        %5477 = vmatprep.subr.mxu0 0.0
        %5478 = vmatpush1.msra.mxu0 %v5455
        %5479 = vmatprep.subr.mxu0 0.0
        %5480 = vmatpush1.msra.mxu0 %v5456
        %5481 = vmatprep.subr.mxu0 0.0
        %5482 = vmatpush1.msra.mxu0 %v5457
        %5483 = vmatprep.subr.mxu0 0.0
        %5484 = vmatpush1.msra.mxu0 %v5458
        %5485 = vmatprep.subr.mxu0 0.0
        %5486 = vmatpush1.msra.mxu0 %v5459
        %5487 = vmatprep.subr.mxu0 0.0
        %5488 = vmatpush1.msra.mxu0 %v5460
        %5489 = vmatprep.subr.mxu0 0.0
        %5490 = vmatpush1.msra.mxu0 %v5461
        %5491 = vmatprep.subr.mxu0 0.0
        %5492 = vmatpush1.msra.mxu0 %v5462
        %5493 = vmatprep.subr.mxu0 0.0
        %5494 = vmatpush1.msra.mxu0 %v5463
        %5495 = vmatprep.subr.mxu0 0.0
        %5496 = vmatpush1.msra.mxu0 %v5464
        %5497 = vmatprep.subr.mxu0 0.0
        %5498 = vmatpush1.msra.mxu0 %v5465
        %5499 = vmatprep.subr.mxu0 0.0
        %5500 = vmatpush1.msra.mxu0 0.0
        %5501 = vmatprep.subr.mxu0 0.0
        %5502 = vmatpush1.msra.mxu0 0.0
        %5503 = vmatprep.subr.mxu0 0.0
        %5504 = vmatpush1.msra.mxu0 0.0
        %5505 = vmatprep.subr.mxu0 0.0
        %5506 = vmatpush1.msra.mxu0 0.0
        %5507 = vmatprep.subr.mxu0 0.0
        %5508 = vmatpush1.msra.mxu0 0.0
        %5509 = vmatprep.subr.mxu0 0.0
        %5510 = vmatpush1.msra.mxu0 0.0
        %5511 = vmatprep.subr.mxu0 0.0
        %5512 = vmatpush1.msra.mxu0 0.0
        %5513 = vmatprep.subr.mxu0 0.0
        %5514 = vmatpush1.msra.mxu0 0.0
        %5515 = vmatprep.subr.mxu0 0.0
        %5516 = vmatpush1.msra.mxu0 0.0
        %5517 = vmatprep.subr.mxu0 0.0
        %5518 = vmatpush1.msra.mxu0 0.0
        %5519 = vmatprep.subr.mxu0 0.0
        %5520 = vmatpush1.msra.mxu0 0.0
        %5521 = vmatprep.subr.mxu0 0.0
        %5522 = vmatpush1.msra.mxu0 0.0
        %5523 = vmatprep.subr.mxu0 0.0
        %5524 = vmatpush1.msra.mxu0 0.0
        %5525 = vmatprep.subr.mxu0 0.0
        %5526 = vmatpush1.msra.mxu0 0.0
        %5527 = vmatprep.subr.mxu0 0.0
        %5528 = vmatpush1.msra.mxu0 0.0
        %5529 = vmatprep.subr.mxu0 0.0
        %5530 = vmatpush1.msra.mxu0 0.0
        %5531 = vmatprep.mubr.f32.mxu0 0.0
        %5532 = vmatmul.mubr.f32.gmra.mrb[0].mxu0 %v5449
        %v5533 = vpop.f32.mrb[0].mxu0
        %v5534 = vadd.f32 %v5466, %v5533
        %v5535 = vpop.f32.mrb[0].mxu0
        %5536 = vdwg.mxu0
        %v5537 = vmax.f32 %v5534, 0.0
        %v5538 = vld [vmem:[#allocation5 + $0x180] sm:$0xff]
        %v5539 = vld [vmem:[#allocation5 + $0x188] sm:$0xff]
        %v5540 = vld [vmem:[#allocation5 + $0x190] sm:$0xff]
        %v5541 = vld [vmem:[#allocation5 + $0x198] sm:$0xff]
        %v5542 = vld [vmem:[#allocation5 + $0x1a0] sm:$0xff]
        %v5543 = vld [vmem:[#allocation5 + $0x1a8] sm:$0xff]
        %v5544 = vld [vmem:[#allocation5 + $0x1b0] sm:$0xff]
        %v5545 = vld [vmem:[#allocation5 + $0x1b8] sm:$0xff]
        %v5546 = vld [vmem:[%s7 + $0x2] sm:$0x1]
        %v5548 = vsel %vm5339, %v5537, 0
        %5550 = vmatprep.subr.mxu0 0.0
        %5551 = vmatpush1.msra.mxu0 %v5538
        %5552 = vmatprep.subr.mxu0 0.0
        %5553 = vmatpush1.msra.mxu0 %v5539
        %5554 = vmatprep.subr.mxu0 0.0
        %5555 = vmatpush1.msra.mxu0 %v5540
        %5556 = vmatprep.subr.mxu0 0.0
        %5557 = vmatpush1.msra.mxu0 %v5541
        %5558 = vmatprep.subr.mxu0 0.0
        %5559 = vmatpush1.msra.mxu0 %v5542
        %5560 = vmatprep.subr.mxu0 0.0
        %5561 = vmatpush1.msra.mxu0 %v5543
        %5562 = vmatprep.subr.mxu0 0.0
        %5563 = vmatpush1.msra.mxu0 %v5544
        %5564 = vmatprep.subr.mxu0 0.0
        %5565 = vmatpush1.msra.mxu0 %v5545
        %5566 = vmatprep.subr.mxu0 0.0
        %5567 = vmatpush1.msra.mxu0 0.0
        %5568 = vmatprep.subr.mxu0 0.0
        %5569 = vmatpush1.msra.mxu0 0.0
        %5570 = vmatprep.subr.mxu0 0.0
        %5571 = vmatpush1.msra.mxu0 0.0
        %5572 = vmatprep.subr.mxu0 0.0
        %5573 = vmatpush1.msra.mxu0 0.0
        %5574 = vmatprep.subr.mxu0 0.0
        %5575 = vmatpush1.msra.mxu0 0.0
        %5576 = vmatprep.subr.mxu0 0.0
        %5577 = vmatpush1.msra.mxu0 0.0
        %5578 = vmatprep.subr.mxu0 0.0
        %5579 = vmatpush1.msra.mxu0 0.0
        %5580 = vmatprep.subr.mxu0 0.0
        %5581 = vmatpush1.msra.mxu0 0.0
        %5582 = vmatprep.subr.mxu0 0.0
        %5583 = vmatpush1.msra.mxu0 0.0
        %5584 = vmatprep.subr.mxu0 0.0
        %5585 = vmatpush1.msra.mxu0 0.0
        %5586 = vmatprep.subr.mxu0 0.0
        %5587 = vmatpush1.msra.mxu0 0.0
        %5588 = vmatprep.subr.mxu0 0.0
        %5589 = vmatpush1.msra.mxu0 0.0
        %5590 = vmatprep.subr.mxu0 0.0
        %5591 = vmatpush1.msra.mxu0 0.0
        %5592 = vmatprep.subr.mxu0 0.0
        %5593 = vmatpush1.msra.mxu0 0.0
        %5594 = vmatprep.subr.mxu0 0.0
        %5595 = vmatpush1.msra.mxu0 0.0
        %5596 = vmatprep.subr.mxu0 0.0
        %5597 = vmatpush1.msra.mxu0 0.0
        %5598 = vmatprep.subr.mxu0 0.0
        %5599 = vmatpush1.msra.mxu0 0.0
        %5600 = vmatprep.subr.mxu0 0.0
        %5601 = vmatpush1.msra.mxu0 0.0
        %5602 = vmatprep.subr.mxu0 0.0
        %5603 = vmatpush1.msra.mxu0 0.0
        %5604 = vmatprep.subr.mxu0 0.0
        %5605 = vmatpush1.msra.mxu0 0.0
        %5606 = vmatprep.subr.mxu0 0.0
        %5607 = vmatpush1.msra.mxu0 0.0
        %5608 = vmatprep.subr.mxu0 0.0
        %5609 = vmatpush1.msra.mxu0 0.0
        %5610 = vmatprep.subr.mxu0 0.0
        %5611 = vmatpush1.msra.mxu0 0.0
        %5612 = vmatprep.subr.mxu0 0.0
        %5613 = vmatpush1.msra.mxu0 0.0
        %5614 = vmatprep.mubr.f32.mxu0 0.0
        %5615 = vmatmul.mubr.f32.gmra.mrb[0].mxu0 %v5548
        %v5616 = vpop.f32.mrb[0].mxu0
        %v5617 = vadd.f32 %v5546, %v5616
        %v5618 = vpop.f32.mrb[0].mxu0
        %5619 = vdwg.mxu0
        %v5620 = vmax.f32 %v5617, 0.0
        %v5621 = vld [vmem:[#allocation5 + $0x1c0] sm:$0xff]
        %v5622 = vld [vmem:[#allocation5 + $0x1c8] sm:$0xff]
        %v5623 = vld [vmem:[#allocation5 + $0x1d0] sm:$0xff]
        %v5624 = vld [vmem:[#allocation5 + $0x1d8] sm:$0xff]
        %v5625 = vld [vmem:[%s7 + $0x3] sm:$0x1]
        %v5627 = vsel %vm404, %v5620, 0
        %5629 = vmatprep.subr.mxu0 0.0
        %5630 = vmatpush1.msra.mxu0 %v5621
        %5631 = vmatprep.subr.mxu0 0.0
        %5632 = vmatpush1.msra.mxu0 %v5622
        %5633 = vmatprep.subr.mxu0 0.0
        %5634 = vmatpush1.msra.mxu0 %v5623
        %5635 = vmatprep.subr.mxu0 0.0
        %5636 = vmatpush1.msra.mxu0 %v5624
        %5637 = vmatprep.subr.mxu0 0.0
        %5638 = vmatpush1.msra.mxu0 0.0
        %5639 = vmatprep.subr.mxu0 0.0
        %5640 = vmatpush1.msra.mxu0 0.0
        %5641 = vmatprep.subr.mxu0 0.0
        %5642 = vmatpush1.msra.mxu0 0.0
        %5643 = vmatprep.subr.mxu0 0.0
        %5644 = vmatpush1.msra.mxu0 0.0
        %5645 = vmatprep.subr.mxu0 0.0
        %5646 = vmatpush1.msra.mxu0 0.0
        %5647 = vmatprep.subr.mxu0 0.0
        %5648 = vmatpush1.msra.mxu0 0.0
        %5649 = vmatprep.subr.mxu0 0.0
        %5650 = vmatpush1.msra.mxu0 0.0
        %5651 = vmatprep.subr.mxu0 0.0
        %5652 = vmatpush1.msra.mxu0 0.0
        %5653 = vmatprep.subr.mxu0 0.0
        %5654 = vmatpush1.msra.mxu0 0.0
        %5655 = vmatprep.subr.mxu0 0.0
        %5656 = vmatpush1.msra.mxu0 0.0
        %5657 = vmatprep.subr.mxu0 0.0
        %5658 = vmatpush1.msra.mxu0 0.0
        %5659 = vmatprep.subr.mxu0 0.0
        %5660 = vmatpush1.msra.mxu0 0.0
        %5661 = vmatprep.subr.mxu0 0.0
        %5662 = vmatpush1.msra.mxu0 0.0
        %5663 = vmatprep.subr.mxu0 0.0
        %5664 = vmatpush1.msra.mxu0 0.0
        %5665 = vmatprep.subr.mxu0 0.0
        %5666 = vmatpush1.msra.mxu0 0.0
        %5667 = vmatprep.subr.mxu0 0.0
        %5668 = vmatpush1.msra.mxu0 0.0
        %5669 = vmatprep.subr.mxu0 0.0
        %5670 = vmatpush1.msra.mxu0 0.0
        %5671 = vmatprep.subr.mxu0 0.0
        %5672 = vmatpush1.msra.mxu0 0.0
        %5673 = vmatprep.subr.mxu0 0.0
        %5674 = vmatpush1.msra.mxu0 0.0
        %5675 = vmatprep.subr.mxu0 0.0
        %5676 = vmatpush1.msra.mxu0 0.0
        %5677 = vmatprep.subr.mxu0 0.0
        %5678 = vmatpush1.msra.mxu0 0.0
        %5679 = vmatprep.subr.mxu0 0.0
        %5680 = vmatpush1.msra.mxu0 0.0
        %5681 = vmatprep.subr.mxu0 0.0
        %5682 = vmatpush1.msra.mxu0 0.0
        %5683 = vmatprep.subr.mxu0 0.0
        %5684 = vmatpush1.msra.mxu0 0.0
        %5685 = vmatprep.subr.mxu0 0.0
        %5686 = vmatpush1.msra.mxu0 0.0
        %5687 = vmatprep.subr.mxu0 0.0
        %5688 = vmatpush1.msra.mxu0 0.0
        %5689 = vmatprep.subr.mxu0 0.0
        %5690 = vmatpush1.msra.mxu0 0.0
        %5691 = vmatprep.subr.mxu0 0.0
        %5692 = vmatpush1.msra.mxu0 0.0
        %5693 = vmatprep.mubr.f32.mxu0 0.0
        %5694 = vmatmul.mubr.f32.gmra.mrb[0].mxu0 %v5627
        %v5695 = vpop.f32.mrb[0].mxu0
        %v5696 = vadd.f32 %v5625, %v5695
        %v5697 = vpop.f32.mrb[0].mxu0
        %5698 = vdwg.mxu0
        %v5699 = vxor.u32 %v5696, 2147483648
        %v5700 = vmul.f32 %v5699, 1.442695
        %v5701 = vpow.pop %v5700
        %v5702 = vadd.f32 %v5701, 1.0
        %v5703 = vrcp.pop %v5702
        %v5704 = vmul.f32 1.0, %v5703
        %5706 = vset.pattern.permute.xlu0 0
        %5707 = vperm.xlu0 %5706, %v5704
        %v5708 = vpop.permute.xlu0 %5707
        %5710 = vst [vmem:[%s352] sm:$0x1] %v5708
        %s5711 = sand.u32 %s212, 1
        %s5712 = scalar_lea.sflag [#allocation4], %s5711
        %s5713 = sand.u32 %s212, 1
        %s5714 = scalar_lea.vmem [#allocation7], %s5713
        // Predicated region
        $region61: #{tpu_custom_call.1} parent=51 // pred_check
          %p5715 = pneg %p222
        $region62: #{tpu_custom_call.1} parent=51 // pred_check_branch
          %5717 = sbr.rel (%p5715) target = $region64
        $region63: #{tpu_custom_call.1} parent=51 // pred_region
          %s5719 = ssub.s32 16, 16
          %5720 = vsyncadd %s5712, %s5719
          %s5721 = smul.addr %s26, 16
          %s5722 = scalar_lea.hbm %s8, %s5721
          %s5724 = sshll.u32 %s5714, 4
          %s5725 = int_to_ptr.vmem [resolvable:$true] %s5724
          %5727 = dma.vmem_to_hbm [thread:$0]  %s5725, 16, %s5722, %s5712
        $region64: #{tpu_custom_call.1} parent=51 // pred_fallthru
          _
      $region52: #{tpu_custom_call.1} parent=5 // pred_fallthru
        _
      %p5728 = scmp.le.s32.totalorder 2, %s21
      // Predicated region
      $region65: #{tpu_custom_call.1} parent=5 // pred_check
        %p5729 = pneg %p5728
      $region66: #{tpu_custom_call.1} parent=5 // pred_check_branch
        %5731 = sbr.rel (%p5729) target = $region68
      $region67: #{tpu_custom_call.1} parent=5 // pred_region
        %s5732 = ssub.s32 %s21, 2
        // Predicated region
        $region69: #{tpu_custom_call.1} parent=67 // pred_check
          %p5733 = pneg %p228
        $region70: #{tpu_custom_call.1} parent=67 // pred_check_branch
          %5735 = sbr.rel (%p5733) target = $region72
        $region71: #{tpu_custom_call.1} parent=67 // pred_region
          %s5736 = sand.u32 %s213, 1
          %s5737 = scalar_lea.sflag [#allocation4], %s5736
          %s5738 = sand.u32 %s213, 1
          %s5739 = scalar_lea.vmem [#allocation7], %s5738
          %5740 = dma.done %s5737, 16
        $region72: #{tpu_custom_call.1} parent=67 // pred_fallthru
          _
      $region68: #{tpu_custom_call.1} parent=5 // pred_fallthru
        _
    $region6: #{tpu_custom_call.1} parent=1 // loop_footer
      %s25 = sadd.s32 1, %s21
    $region7: #{tpu_custom_call.1} parent=1 // loop_footer_branch
      %20 = sbr.rel target = $region3
    $region8: #{tpu_custom_call.1} parent=1 // loop_exit
      _
    %5741 = vsyncpa [#allocation3], 1
    %s5742 = scalar_lea.sflag [#allocation3], 1
    %5743 = vsyncpa %s5742, 1
    %5744 = vsyncpa [#allocation6], 1
    %5745 = vsyncpa [#allocation4], 1
    %s5746 = scalar_lea.sflag [#allocation4], 1
    %5747 = vsyncpa %s5746, 1

</llo_original>
